<compile_context>
chip_gen: v6e
topology: v6e:2x2x1
jax: 0.10.0
libtpu: 0.0.40
codegen_flags: <defaults>
</compile_context>

<pallas_src>
import functools

import jax
import jax.numpy as jnp
from jax.experimental import pallas as pl
from jax.experimental.pallas import tpu as pltpu

ACTION_SIZE = 4
BN_EPS = 1e-5

CONV_TM = 256     # M (patch-row) tile for the conv matmuls
FC_TK1 = 3200     # K tile for fc1's reduction axis (12800 = 4 * 3200)


def _round_up(x, m):
    return (x + m - 1) // m * m


# ---------------------------------------------------------------------------
# Pallas kernels
# ---------------------------------------------------------------------------
def _conv_mm_kernel(x_ref, w_ref, b_ref, o_ref):
    # Single pass: full K, full N per grid step.  o = relu(x @ w + b).
    y = jnp.dot(x_ref[...], w_ref[...], preferred_element_type=jnp.float32)
    o_ref[...] = jnp.maximum(y + b_ref[...], 0.0).astype(o_ref.dtype)


def _fc_fused_kernel(x_ref, w1_ref, b1_ref, w2_ref, b2_ref, w3_ref, b3_ref,
                     o_ref, acc_ref):
    # Grid axis 0 = fc1's K reduction.  fc2 / fc3 run in the last-step
    # epilogue from VMEM-resident weights (their block indices are constant,
    # so they are DMA'd only once).
    k = pl.program_id(0)

    @pl.when(k == 0)
    def _():
        acc_ref[...] = jnp.zeros_like(acc_ref)

    acc_ref[...] += jnp.dot(x_ref[...], w1_ref[...],
                            preferred_element_type=jnp.float32)

    @pl.when(k == pl.num_programs(0) - 1)
    def _():
        h1 = jnp.maximum(acc_ref[...] + b1_ref[...], 0.0).astype(jnp.bfloat16)
        h2 = jnp.dot(h1, w2_ref[...], preferred_element_type=jnp.float32)
        h2 = jnp.maximum(h2 + b2_ref[...], 0.0).astype(jnp.bfloat16)
        y = jnp.dot(h2, w3_ref[...], preferred_element_type=jnp.float32)
        o_ref[...] = (y + b3_ref[...]).astype(o_ref.dtype)


# ---------------------------------------------------------------------------
# Conv layer: im2col (plain-JAX glue, NHWC) + single-pass Pallas matmul
# ---------------------------------------------------------------------------
def _im2col_nhwc(x, kh, kw, stride):
    n, h, w, c = x.shape
    oh = (h - kh) // stride + 1
    ow = (w - kw) // stride + 1
    cols = []
    for i in range(kh):
        for j in range(kw):
            cols.append(
                x[:, i:i + stride * (oh - 1) + 1:stride,
                     j:j + stride * (ow - 1) + 1:stride, :])
    patch = jnp.concatenate(cols, axis=-1)          # (n, oh, ow, kh*kw*c)
    return patch.reshape(n * oh * ow, kh * kw * c), oh, ow


def conv_bn_relu(x, layer, kh, kw, stride):
    n = x.shape[0]
    patch, oh, ow = _im2col_nhwc(x, kh, kw, stride)
    wmat, bias = layer["w"], layer["b"]             # (K, Cout) bf16, (1, Cout) f32
    m, k_dim = patch.shape
    n_out = wmat.shape[1]
    mp = _round_up(m, CONV_TM)
    if mp != m:
        patch = jnp.pad(patch, ((0, mp - m), (0, 0)))
    y = pl.pallas_call(
        _conv_mm_kernel,
        out_shape=jax.ShapeDtypeStruct((mp, n_out), jnp.bfloat16),
        grid_spec=pltpu.PrefetchScalarGridSpec(
            num_scalar_prefetch=0,
            grid=(mp // CONV_TM,),
            in_specs=[
                pl.BlockSpec((CONV_TM, k_dim), lambda i: (i, 0)),
                pl.BlockSpec((k_dim, n_out), lambda i: (0, 0)),
                pl.BlockSpec((1, n_out), lambda i: (0, 0)),
            ],
            out_specs=pl.BlockSpec((CONV_TM, n_out), lambda i: (i, 0)),
        ),
        compiler_params=pltpu.CompilerParams(
            dimension_semantics=("parallel",)),
    )(patch, wmat, bias)
    return y[:m].reshape(n, oh, ow, n_out)          # NHWC, bf16


# ---------------------------------------------------------------------------
# Fused FC head (fc1 -> relu -> fc2 -> relu -> fc3) in one pallas_call
# ---------------------------------------------------------------------------
def fc_head(x, params):
    b, k1 = x.shape
    assert k1 % FC_TK1 == 0, k1
    mp = _round_up(max(b, 8), 16)                   # tiny M: pad to 16, not 128
    xp = jnp.pad(x, ((0, mp - b), (0, 0)))
    w1, b1 = params["fc1_w"], params["fc1_b"]
    w2, b2 = params["fc2_w"], params["fc2_b"]
    w3, b3 = params["fc3_w"], params["fc3_b"]
    h1, h2, n3 = w1.shape[1], w2.shape[1], w3.shape[1]
    out = pl.pallas_call(
        _fc_fused_kernel,
        out_shape=jax.ShapeDtypeStruct((mp, n3), jnp.float32),
        grid_spec=pltpu.PrefetchScalarGridSpec(
            num_scalar_prefetch=0,
            grid=(k1 // FC_TK1,),
            in_specs=[
                pl.BlockSpec((mp, FC_TK1), lambda k: (0, k)),
                pl.BlockSpec((FC_TK1, h1), lambda k: (k, 0)),
                pl.BlockSpec((1, h1), lambda k: (0, 0)),
                pl.BlockSpec((h1, h2), lambda k: (0, 0)),
                pl.BlockSpec((1, h2), lambda k: (0, 0)),
                pl.BlockSpec((h2, n3), lambda k: (0, 0)),
                pl.BlockSpec((1, n3), lambda k: (0, 0)),
            ],
            out_specs=pl.BlockSpec((mp, n3), lambda k: (0, 0)),
            scratch_shapes=[pltpu.VMEM((mp, h1), jnp.float32)],
        ),
        compiler_params=pltpu.CompilerParams(
            dimension_semantics=("arbitrary",),
            vmem_limit_bytes=32 * 1024 * 1024,
        ),
    )(xp, w1, b1, w2, b2, w3, b3)
    return out[:b, :ACTION_SIZE]


# ---------------------------------------------------------------------------
# Parameter construction (deterministic, synthetic) + one-time pre-packing
# ---------------------------------------------------------------------------
def init_params(key):
    keys = jax.random.split(key, 7)
    raw, packed = {}, {}

    def conv_layer(k, name, cout, cin, ksz):
        ks = jax.random.split(k, 6)
        fan_in = cin * ksz * ksz
        w = jax.random.normal(ks[0], (cout, cin, ksz, ksz), jnp.float32) / jnp.sqrt(fan_in)
        b = jax.random.normal(ks[1], (cout,), jnp.float32) * 0.05
        gamma = jax.random.uniform(ks[2], (cout,), jnp.float32, minval=0.5, maxval=1.5)
        beta = jax.random.normal(ks[3], (cout,), jnp.float32) * 0.05
        mean = jax.random.normal(ks[4], (cout,), jnp.float32) * 0.05
        var = jax.random.uniform(ks[5], (cout,), jnp.float32, minval=0.5, maxval=1.5)
        raw[name] = dict(w=w, b=b, gamma=gamma, beta=beta, mean=mean, var=var)
        # Fold eval-mode BN:  y = (conv(x) + b - mean) * s + beta
        s = gamma / jnp.sqrt(var + BN_EPS)
        wmat = w.transpose(2, 3, 1, 0).reshape(fan_in, cout) * s[None, :]
        bias = ((b - mean) * s + beta)[None, :]
        packed[name] = dict(w=wmat.astype(jnp.bfloat16), b=bias)

    conv_layer(keys[0], "conv1", 32, 3, 8)
    conv_layer(keys[1], "conv2", 64, 32, 4)
    conv_layer(keys[2], "conv3", 64, 64, 3)
    conv_layer(keys[3], "conv4", 128, 64, 3)

    def fc_layer(k, out_f, in_f):
        ks = jax.random.split(k, 2)
        w = jax.random.normal(ks[0], (out_f, in_f), jnp.float32) / jnp.sqrt(in_f)
        b = jax.random.normal(ks[1], (out_f,), jnp.float32) * 0.05
        return w, b

    w1, b1 = fc_layer(keys[4], 512, 10 * 10 * 128)
    w2, b2 = fc_layer(keys[5], 256, 512)
    w3, b3 = fc_layer(keys[6], ACTION_SIZE, 256)
    raw["fc1"] = dict(w=w1, b=b1)
    raw["fc2"] = dict(w=w2, b=b2)
    raw["fc3"] = dict(w=w3, b=b3)

    # fc1: permute input features from PyTorch's NCHW (C-major) flatten order
    # to NHWC (channel-minor) flatten order so conv4's NHWC output flattens
    # directly with no runtime transpose.
    w1p = w1.reshape(512, 128, 10, 10).transpose(2, 3, 1, 0).reshape(12800, 512)
    packed["fc1_w"] = w1p.astype(jnp.bfloat16)
    packed["fc1_b"] = b1[None, :]
    packed["fc2_w"] = w2.T.astype(jnp.bfloat16)
    packed["fc2_b"] = b2[None, :]
    n3p = _round_up(ACTION_SIZE, 128)               # pad fc3's tiny N to one lane tile
    w3p = jnp.zeros((256, n3p), jnp.float32).at[:, :ACTION_SIZE].set(w3.T)
    b3p = jnp.zeros((1, n3p), jnp.float32).at[0, :ACTION_SIZE].set(b3)
    packed["fc3_w"] = w3p.astype(jnp.bfloat16)
    packed["fc3_b"] = b3p
    return packed, raw


# ---------------------------------------------------------------------------
# Forward pass (mirrors Network.forward)
# ---------------------------------------------------------------------------
@jax.jit
def network_forward(params, state):
    # state: (N, 3, H, W) NCHW f32 (PyTorch layout); go NHWC / bf16 once.
    x = state.transpose(0, 2, 3, 1).astype(jnp.bfloat16)
    x = conv_bn_relu(x, params["conv1"], 8, 8, 4)
    x = conv_bn_relu(x, params["conv2"], 4, 4, 2)
    x = conv_bn_relu(x, params["conv3"], 3, 3, 1)
    x = conv_bn_relu(x, params["conv4"], 3, 3, 1)
    x = x.reshape(x.shape[0], -1)       # NHWC flatten; fc1 weights pre-permuted
    return fc_head(x, params)


# ---------------------------------------------------------------------------
# Pure-JAX f32 reference (same eval-mode BN fold) for validation
# ---------------------------------------------------------------------------
def _ref_conv(x, w, b, gamma, beta, mean, var, stride):
    y = jax.lax.conv_general_dilated(
        x, w, (stride, stride), "VALID",
        dimension_numbers=("NCHW", "OIHW", "NCHW"),
        precision=jax.lax.Precision.HIGHEST)
    s = (gamma / jnp.sqrt(var + BN_EPS))[None, :, None, None]
    y = (y + (b - mean)[None, :, None, None]) * s + beta[None, :, None, None]
    return jnp.maximum(y, 0.0)


@jax.jit
def reference_forward(raw, state):
    x = _ref_conv(state, **raw["conv1"], stride=4)
    x = _ref_conv(x, **raw["conv2"], stride=2)
    x = _ref_conv(x, **raw["conv3"], stride=1)
    x = _ref_conv(x, **raw["conv4"], stride=1)
    x = x.reshape(x.shape[0], -1)
    mm = functools.partial(jnp.matmul, precision=jax.lax.Precision.HIGHEST)
    x = jnp.maximum(mm(x, raw["fc1"]["w"].T) + raw["fc1"]["b"], 0.0)
    x = jnp.maximum(mm(x, raw["fc2"]["w"].T) + raw["fc2"]["b"], 0.0)
    return mm(x, raw["fc3"]["w"].T) + raw["fc3"]["b"]


if __name__ == "__main__":
    key = jax.random.PRNGKey(0)
    k_in, k_par = jax.random.split(key)
    # 124x124 input is the smallest spatial size consistent with
    # fc1 = Linear(10*10*128, 512) given the conv stack.
    state = jax.random.normal(k_in, (2, 3, 124, 124), jnp.float32)
    packed, raw = init_params(k_par)

    out = jax.block_until_ready(network_forward(packed, state))
    assert out.shape == (2, ACTION_SIZE), out.shape
    assert bool(jnp.all(jnp.isfinite(out)))

    # Validate against the f32 XLA reference (bf16 operands -> relaxed tol).
    ref = jax.block_until_ready(reference_forward(raw, state))
    err = float(jnp.max(jnp.abs(out - ref)))
    tol = 0.1 * max(1.0, float(jnp.max(jnp.abs(ref))))
    assert err <= tol, (err, tol)

    print("KERNEL_OK")
</pallas_src>

<mosaic_0001>
module attributes {stable_mosaic.version = 11 : i64} {
  func.func @_conv_mm_kernel(%arg0: i32, %arg1: memref<256x192xbf16, #tpu.memory_space<vmem>>, %arg2: memref<192x32xbf16, #tpu.memory_space<vmem>>, %arg3: memref<1x32xf32, #tpu.memory_space<vmem>>, %arg4: memref<256x32xbf16, #tpu.memory_space<vmem>>) attributes {dimension_semantics = [#tpu.dimension_semantics<parallel>], iteration_bounds = array<i64: 8>, scalar_prefetch = 0 : i64, scratch_operands = 0 : i64, tpu.core_type = #tpu.core_type<tc>, window_params = [{transform_indices = @transform_0, window_bounds = array<i64: 256, 192>}, {pipeline_mode = #tpu.pipeline_mode<synchronous>, transform_indices = @transform_1, window_bounds = array<i64: 192, 32>}, {pipeline_mode = #tpu.pipeline_mode<synchronous>, transform_indices = @transform_2, window_bounds = array<i64: 1, 32>}, {transform_indices = @transform_3, window_bounds = array<i64: 256, 32>}]} {
    %c0 = arith.constant 0 : index
    %c0_0 = arith.constant 0 : index
    %0 = vector.load %arg1[%c0, %c0_0] : memref<256x192xbf16, #tpu.memory_space<vmem>>, vector<256x192xbf16>
    %c0_1 = arith.constant 0 : index
    %c0_2 = arith.constant 0 : index
    %1 = vector.load %arg2[%c0_1, %c0_2] : memref<192x32xbf16, #tpu.memory_space<vmem>>, vector<192x32xbf16>
    %cst = arith.constant dense<0.000000e+00> : vector<256x32xf32>
    %2 = tpu.matmul %0, %1, %cst {dimension_numbers = #tpu.dot_dimension_numbers<[1], [0], [0], [1], [0, 0, 1, 1], [], []>} : vector<256x192xbf16>, vector<192x32xbf16>, vector<256x32xf32> -> vector<256x32xf32>
    %c0_3 = arith.constant 0 : index
    %c0_4 = arith.constant 0 : index
    %3 = vector.load %arg3[%c0_3, %c0_4] : memref<1x32xf32, #tpu.memory_space<vmem>>, vector<1x32xf32>
    %4 = vector.broadcast %3 : vector<1x32xf32> to vector<256x32xf32>
    %5 = arith.addf %2, %4 : vector<256x32xf32>
    %cst_5 = arith.constant 0.000000e+00 : f32
    %6 = vector.broadcast %cst_5 : f32 to vector<256x32xf32>
    %7 = arith.maximumf %5, %6 : vector<256x32xf32>
    %8 = arith.truncf %7 : vector<256x32xf32> to vector<256x32xbf16>
    %c0_6 = arith.constant 0 : index
    %c0_7 = arith.constant 0 : index
    %9 = vector.load %arg4[%c0_6, %c0_7] : memref<256x32xbf16, #tpu.memory_space<vmem>>, vector<256x32xbf16>
    tpu.vector_store %arg4[%c0_6, %c0_7], %8 {strides = array<i32>} : memref<256x32xbf16, #tpu.memory_space<vmem>>, vector<256x32xbf16>,
    return
  }
  func.func @transform_0(%arg0: i32) -> (i32, i32) {
    %c0_i32 = arith.constant 0 : i32
    %c0_i32_0 = arith.constant 0 : i32
    return %arg0, %c0_i32 : i32, i32
  }
  func.func @transform_1(%arg0: i32) -> (i32, i32) {
    %c0_i32 = arith.constant 0 : i32
    %c0_i32_0 = arith.constant 0 : i32
    %c0_i32_1 = arith.constant 0 : i32
    return %c0_i32, %c0_i32_0 : i32, i32
  }
  func.func @transform_2(%arg0: i32) -> (i32, i32) {
    %c0_i32 = arith.constant 0 : i32
    %c0_i32_0 = arith.constant 0 : i32
    %c0_i32_1 = arith.constant 0 : i32
    return %c0_i32, %c0_i32_0 : i32, i32
  }
  func.func @transform_3(%arg0: i32) -> (i32, i32) {
    %c0_i32 = arith.constant 0 : i32
    %c0_i32_0 = arith.constant 0 : i32
    return %arg0, %c0_i32 : i32, i32
  }
}

module attributes {stable_mosaic.version = 11 : i64} {
  func.func @_conv_mm_kernel(%arg0: i32, %arg1: memref<256x512xbf16, #tpu.memory_space<vmem>>, %arg2: memref<512x64xbf16, #tpu.memory_space<vmem>>, %arg3: memref<1x64xf32, #tpu.memory_space<vmem>>, %arg4: memref<256x64xbf16, #tpu.memory_space<vmem>>) attributes {dimension_semantics = [#tpu.dimension_semantics<parallel>], iteration_bounds = array<i64: 2>, scalar_prefetch = 0 : i64, scratch_operands = 0 : i64, tpu.core_type = #tpu.core_type<tc>, window_params = [{transform_indices = @transform_0, window_bounds = array<i64: 256, 512>}, {pipeline_mode = #tpu.pipeline_mode<synchronous>, transform_indices = @transform_1, window_bounds = array<i64: 512, 64>}, {pipeline_mode = #tpu.pipeline_mode<synchronous>, transform_indices = @transform_2, window_bounds = array<i64: 1, 64>}, {transform_indices = @transform_3, window_bounds = array<i64: 256, 64>}]} {
    %c0 = arith.constant 0 : index
    %c0_0 = arith.constant 0 : index
    %0 = vector.load %arg1[%c0, %c0_0] : memref<256x512xbf16, #tpu.memory_space<vmem>>, vector<256x512xbf16>
    %c0_1 = arith.constant 0 : index
    %c0_2 = arith.constant 0 : index
    %1 = vector.load %arg2[%c0_1, %c0_2] : memref<512x64xbf16, #tpu.memory_space<vmem>>, vector<512x64xbf16>
    %cst = arith.constant dense<0.000000e+00> : vector<256x64xf32>
    %2 = tpu.matmul %0, %1, %cst {dimension_numbers = #tpu.dot_dimension_numbers<[1], [0], [0], [1], [0, 0, 1, 1], [], []>} : vector<256x512xbf16>, vector<512x64xbf16>, vector<256x64xf32> -> vector<256x64xf32>
    %c0_3 = arith.constant 0 : index
    %c0_4 = arith.constant 0 : index
    %3 = vector.load %arg3[%c0_3, %c0_4] : memref<1x64xf32, #tpu.memory_space<vmem>>, vector<1x64xf32>
    %4 = vector.broadcast %3 : vector<1x64xf32> to vector<256x64xf32>
    %5 = arith.addf %2, %4 : vector<256x64xf32>
    %cst_5 = arith.constant 0.000000e+00 : f32
    %6 = vector.broadcast %cst_5 : f32 to vector<256x64xf32>
    %7 = arith.maximumf %5, %6 : vector<256x64xf32>
    %8 = arith.truncf %7 : vector<256x64xf32> to vector<256x64xbf16>
    %c0_6 = arith.constant 0 : index
    %c0_7 = arith.constant 0 : index
    %9 = vector.load %arg4[%c0_6, %c0_7] : memref<256x64xbf16, #tpu.memory_space<vmem>>, vector<256x64xbf16>
    tpu.vector_store %arg4[%c0_6, %c0_7], %8 {strides = array<i32>} : memref<256x64xbf16, #tpu.memory_space<vmem>>, vector<256x64xbf16>,
    return
  }
  func.func @transform_0(%arg0: i32) -> (i32, i32) {
    %c0_i32 = arith.constant 0 : i32
    %c0_i32_0 = arith.constant 0 : i32
    return %arg0, %c0_i32 : i32, i32
  }
  func.func @transform_1(%arg0: i32) -> (i32, i32) {
    %c0_i32 = arith.constant 0 : i32
    %c0_i32_0 = arith.constant 0 : i32
    %c0_i32_1 = arith.constant 0 : i32
    return %c0_i32, %c0_i32_0 : i32, i32
  }
  func.func @transform_2(%arg0: i32) -> (i32, i32) {
    %c0_i32 = arith.constant 0 : i32
    %c0_i32_0 = arith.constant 0 : i32
    %c0_i32_1 = arith.constant 0 : i32
    return %c0_i32, %c0_i32_0 : i32, i32
  }
  func.func @transform_3(%arg0: i32) -> (i32, i32) {
    %c0_i32 = arith.constant 0 : i32
    %c0_i32_0 = arith.constant 0 : i32
    return %arg0, %c0_i32 : i32, i32
  }
}

module attributes {stable_mosaic.version = 11 : i64} {
  func.func @_conv_mm_kernel(%arg0: i32, %arg1: memref<256x576xbf16, #tpu.memory_space<vmem>>, %arg2: memref<576x64xbf16, #tpu.memory_space<vmem>>, %arg3: memref<1x64xf32, #tpu.memory_space<vmem>>, %arg4: memref<256x64xbf16, #tpu.memory_space<vmem>>) attributes {dimension_semantics = [#tpu.dimension_semantics<parallel>], iteration_bounds = array<i64: 2>, scalar_prefetch = 0 : i64, scratch_operands = 0 : i64, tpu.core_type = #tpu.core_type<tc>, window_params = [{transform_indices = @transform_0, window_bounds = array<i64: 256, 576>}, {pipeline_mode = #tpu.pipeline_mode<synchronous>, transform_indices = @transform_1, window_bounds = array<i64: 576, 64>}, {pipeline_mode = #tpu.pipeline_mode<synchronous>, transform_indices = @transform_2, window_bounds = array<i64: 1, 64>}, {transform_indices = @transform_3, window_bounds = array<i64: 256, 64>}]} {
    %c0 = arith.constant 0 : index
    %c0_0 = arith.constant 0 : index
    %0 = vector.load %arg1[%c0, %c0_0] : memref<256x576xbf16, #tpu.memory_space<vmem>>, vector<256x576xbf16>
    %c0_1 = arith.constant 0 : index
    %c0_2 = arith.constant 0 : index
    %1 = vector.load %arg2[%c0_1, %c0_2] : memref<576x64xbf16, #tpu.memory_space<vmem>>, vector<576x64xbf16>
    %cst = arith.constant dense<0.000000e+00> : vector<256x64xf32>
    %2 = tpu.matmul %0, %1, %cst {dimension_numbers = #tpu.dot_dimension_numbers<[1], [0], [0], [1], [0, 0, 1, 1], [], []>} : vector<256x576xbf16>, vector<576x64xbf16>, vector<256x64xf32> -> vector<256x64xf32>
    %c0_3 = arith.constant 0 : index
    %c0_4 = arith.constant 0 : index
    %3 = vector.load %arg3[%c0_3, %c0_4] : memref<1x64xf32, #tpu.memory_space<vmem>>, vector<1x64xf32>
    %4 = vector.broadcast %3 : vector<1x64xf32> to vector<256x64xf32>
    %5 = arith.addf %2, %4 : vector<256x64xf32>
    %cst_5 = arith.constant 0.000000e+00 : f32
    %6 = vector.broadcast %cst_5 : f32 to vector<256x64xf32>
    %7 = arith.maximumf %5, %6 : vector<256x64xf32>
    %8 = arith.truncf %7 : vector<256x64xf32> to vector<256x64xbf16>
    %c0_6 = arith.constant 0 : index
    %c0_7 = arith.constant 0 : index
    %9 = vector.load %arg4[%c0_6, %c0_7] : memref<256x64xbf16, #tpu.memory_space<vmem>>, vector<256x64xbf16>
    tpu.vector_store %arg4[%c0_6, %c0_7], %8 {strides = array<i32>} : memref<256x64xbf16, #tpu.memory_space<vmem>>, vector<256x64xbf16>,
    return
  }
  func.func @transform_0(%arg0: i32) -> (i32, i32) {
    %c0_i32 = arith.constant 0 : i32
    %c0_i32_0 = arith.constant 0 : i32
    return %arg0, %c0_i32 : i32, i32
  }
  func.func @transform_1(%arg0: i32) -> (i32, i32) {
    %c0_i32 = arith.constant 0 : i32
    %c0_i32_0 = arith.constant 0 : i32
    %c0_i32_1 = arith.constant 0 : i32
    return %c0_i32, %c0_i32_0 : i32, i32
  }
  func.func @transform_2(%arg0: i32) -> (i32, i32) {
    %c0_i32 = arith.constant 0 : i32
    %c0_i32_0 = arith.constant 0 : i32
    %c0_i32_1 = arith.constant 0 : i32
    return %c0_i32, %c0_i32_0 : i32, i32
  }
  func.func @transform_3(%arg0: i32) -> (i32, i32) {
    %c0_i32 = arith.constant 0 : i32
    %c0_i32_0 = arith.constant 0 : i32
    return %arg0, %c0_i32 : i32, i32
  }
}

module attributes {stable_mosaic.version = 11 : i64} {
  func.func @_conv_mm_kernel(%arg0: i32, %arg1: memref<256x576xbf16, #tpu.memory_space<vmem>>, %arg2: memref<576x128xbf16, #tpu.memory_space<vmem>>, %arg3: memref<1x128xf32, #tpu.memory_space<vmem>>, %arg4: memref<256x128xbf16, #tpu.memory_space<vmem>>) attributes {dimension_semantics = [#tpu.dimension_semantics<parallel>], iteration_bounds = array<i64: 1>, scalar_prefetch = 0 : i64, scratch_operands = 0 : i64, tpu.core_type = #tpu.core_type<tc>, window_params = [{transform_indices = @transform_0, window_bounds = array<i64: 256, 576>}, {pipeline_mode = #tpu.pipeline_mode<synchronous>, transform_indices = @transform_1, window_bounds = array<i64: 576, 128>}, {pipeline_mode = #tpu.pipeline_mode<synchronous>, transform_indices = @transform_2, window_bounds = array<i64: 1, 128>}, {transform_indices = @transform_3, window_bounds = array<i64: 256, 128>}]} {
    %c0 = arith.constant 0 : index
    %c0_0 = arith.constant 0 : index
    %0 = vector.load %arg1[%c0, %c0_0] : memref<256x576xbf16, #tpu.memory_space<vmem>>, vector<256x576xbf16>
    %c0_1 = arith.constant 0 : index
    %c0_2 = arith.constant 0 : index
    %1 = vector.load %arg2[%c0_1, %c0_2] : memref<576x128xbf16, #tpu.memory_space<vmem>>, vector<576x128xbf16>
    %cst = arith.constant dense<0.000000e+00> : vector<256x128xf32>
    %2 = tpu.matmul %0, %1, %cst {dimension_numbers = #tpu.dot_dimension_numbers<[1], [0], [0], [1], [0, 0, 1, 1], [], []>} : vector<256x576xbf16>, vector<576x128xbf16>, vector<256x128xf32> -> vector<256x128xf32>
    %c0_3 = arith.constant 0 : index
    %c0_4 = arith.constant 0 : index
    %3 = vector.load %arg3[%c0_3, %c0_4] : memref<1x128xf32, #tpu.memory_space<vmem>>, vector<1x128xf32>
    %4 = vector.broadcast %3 : vector<1x128xf32> to vector<256x128xf32>
    %5 = arith.addf %2, %4 : vector<256x128xf32>
    %cst_5 = arith.constant 0.000000e+00 : f32
    %6 = vector.broadcast %cst_5 : f32 to vector<256x128xf32>
    %7 = arith.maximumf %5, %6 : vector<256x128xf32>
    %8 = arith.truncf %7 : vector<256x128xf32> to vector<256x128xbf16>
    %c0_6 = arith.constant 0 : index
    %c0_7 = arith.constant 0 : index
    %9 = vector.load %arg4[%c0_6, %c0_7] : memref<256x128xbf16, #tpu.memory_space<vmem>>, vector<256x128xbf16>
    tpu.vector_store %arg4[%c0_6, %c0_7], %8 {strides = array<i32>} : memref<256x128xbf16, #tpu.memory_space<vmem>>, vector<256x128xbf16>,
    return
  }
  func.func @transform_0(%arg0: i32) -> (i32, i32) {
    %c0_i32 = arith.constant 0 : i32
    %c0_i32_0 = arith.constant 0 : i32
    return %arg0, %c0_i32 : i32, i32
  }
  func.func @transform_1(%arg0: i32) -> (i32, i32) {
    %c0_i32 = arith.constant 0 : i32
    %c0_i32_0 = arith.constant 0 : i32
    %c0_i32_1 = arith.constant 0 : i32
    return %c0_i32, %c0_i32_0 : i32, i32
  }
  func.func @transform_2(%arg0: i32) -> (i32, i32) {
    %c0_i32 = arith.constant 0 : i32
    %c0_i32_0 = arith.constant 0 : i32
    %c0_i32_1 = arith.constant 0 : i32
    return %c0_i32, %c0_i32_0 : i32, i32
  }
  func.func @transform_3(%arg0: i32) -> (i32, i32) {
    %c0_i32 = arith.constant 0 : i32
    %c0_i32_0 = arith.constant 0 : i32
    return %arg0, %c0_i32 : i32, i32
  }
}

module attributes {stable_mosaic.version = 11 : i64} {
  func.func @_fc_fused_kernel(%arg0: i32, %arg1: memref<16x3200xbf16, #tpu.memory_space<vmem>>, %arg2: memref<3200x512xbf16, #tpu.memory_space<vmem>>, %arg3: memref<1x512xf32, #tpu.memory_space<vmem>>, %arg4: memref<512x256xbf16, #tpu.memory_space<vmem>>, %arg5: memref<1x256xf32, #tpu.memory_space<vmem>>, %arg6: memref<256x128xbf16, #tpu.memory_space<vmem>>, %arg7: memref<1x128xf32, #tpu.memory_space<vmem>>, %arg8: memref<16x128xf32, #tpu.memory_space<vmem>>, %arg9: memref<16x512xf32, #tpu.memory_space<vmem>>) attributes {dimension_semantics = [#tpu.dimension_semantics<arbitrary>], iteration_bounds = array<i64: 4>, scalar_prefetch = 0 : i64, scratch_operands = 1 : i64, tpu.core_type = #tpu.core_type<tc>, window_params = [{transform_indices = @transform_0, window_bounds = array<i64: 16, 3200>}, {transform_indices = @transform_1, window_bounds = array<i64: 3200, 512>}, {pipeline_mode = #tpu.pipeline_mode<synchronous>, transform_indices = @transform_2, window_bounds = array<i64: 1, 512>}, {pipeline_mode = #tpu.pipeline_mode<synchronous>, transform_indices = @transform_3, window_bounds = array<i64: 512, 256>}, {pipeline_mode = #tpu.pipeline_mode<synchronous>, transform_indices = @transform_4, window_bounds = array<i64: 1, 256>}, {pipeline_mode = #tpu.pipeline_mode<synchronous>, transform_indices = @transform_5, window_bounds = array<i64: 256, 128>}, {pipeline_mode = #tpu.pipeline_mode<synchronous>, transform_indices = @transform_6, window_bounds = array<i64: 1, 128>}, {pipeline_mode = #tpu.pipeline_mode<synchronous>, transform_indices = @transform_7, window_bounds = array<i64: 16, 128>}]} {
    %c0_i32 = arith.constant 0 : i32
    %0 = arith.cmpi eq, %arg0, %c0_i32 : i32
    %1 = arith.extui %0 : i1 to i32
    %c0_i32_0 = arith.constant 0 : i32
    %2 = arith.cmpi ne, %1, %c0_i32_0 : i32
    scf.if %2 {
      %cst_9 = arith.constant 0.000000e+00 : f32
      %12 = vector.broadcast %cst_9 : f32 to vector<16x512xf32>
      %c0_10 = arith.constant 0 : index
      %c0_11 = arith.constant 0 : index
      %13 = vector.load %arg9[%c0_10, %c0_11] : memref<16x512xf32, #tpu.memory_space<vmem>>, vector<16x512xf32>
      tpu.vector_store %arg9[%c0_10, %c0_11], %12 {strides = array<i32>} : memref<16x512xf32, #tpu.memory_space<vmem>>, vector<16x512xf32>,
    } else {
    }
    %c0 = arith.constant 0 : index
    %c0_1 = arith.constant 0 : index
    %3 = vector.load %arg9[%c0, %c0_1] : memref<16x512xf32, #tpu.memory_space<vmem>>, vector<16x512xf32>
    %c0_2 = arith.constant 0 : index
    %c0_3 = arith.constant 0 : index
    %4 = vector.load %arg1[%c0_2, %c0_3] : memref<16x3200xbf16, #tpu.memory_space<vmem>>, vector<16x3200xbf16>
    %c0_4 = arith.constant 0 : index
    %c0_5 = arith.constant 0 : index
    %5 = vector.load %arg2[%c0_4, %c0_5] : memref<3200x512xbf16, #tpu.memory_space<vmem>>, vector<3200x512xbf16>
    %cst = arith.constant dense<0.000000e+00> : vector<16x512xf32>
    %6 = tpu.matmul %4, %5, %cst {dimension_numbers = #tpu.dot_dimension_numbers<[1], [0], [0], [1], [0, 0, 1, 1], [], []>} : vector<16x3200xbf16>, vector<3200x512xbf16>, vector<16x512xf32> -> vector<16x512xf32>
    %7 = arith.addf %3, %6 : vector<16x512xf32>
    %c0_6 = arith.constant 0 : index
    %c0_7 = arith.constant 0 : index
    %8 = vector.load %arg9[%c0_6, %c0_7] : memref<16x512xf32, #tpu.memory_space<vmem>>, vector<16x512xf32>
    tpu.vector_store %arg9[%c0_6, %c0_7], %7 {strides = array<i32>} : memref<16x512xf32, #tpu.memory_space<vmem>>, vector<16x512xf32>,
    %c3_i32 = arith.constant 3 : i32
    %9 = arith.cmpi eq, %arg0, %c3_i32 : i32
    %10 = arith.extui %9 : i1 to i32
    %c0_i32_8 = arith.constant 0 : i32
    %11 = arith.cmpi ne, %10, %c0_i32_8 : i32
    scf.if %11 {
      %c0_9 = arith.constant 0 : index
      %c0_10 = arith.constant 0 : index
      %12 = vector.load %arg9[%c0_9, %c0_10] : memref<16x512xf32, #tpu.memory_space<vmem>>, vector<16x512xf32>
      %c0_11 = arith.constant 0 : index
      %c0_12 = arith.constant 0 : index
      %13 = vector.load %arg3[%c0_11, %c0_12] : memref<1x512xf32, #tpu.memory_space<vmem>>, vector<1x512xf32>
      %14 = vector.broadcast %13 : vector<1x512xf32> to vector<16x512xf32>
      %15 = arith.addf %12, %14 : vector<16x512xf32>
      %cst_13 = arith.constant 0.000000e+00 : f32
      %16 = vector.broadcast %cst_13 : f32 to vector<16x512xf32>
      %17 = arith.maximumf %15, %16 : vector<16x512xf32>
      %18 = arith.truncf %17 : vector<16x512xf32> to vector<16x512xbf16>
      %c0_14 = arith.constant 0 : index
      %c0_15 = arith.constant 0 : index
      %19 = vector.load %arg4[%c0_14, %c0_15] : memref<512x256xbf16, #tpu.memory_space<vmem>>, vector<512x256xbf16>
      %cst_16 = arith.constant dense<0.000000e+00> : vector<16x256xf32>
      %20 = tpu.matmul %18, %19, %cst_16 {dimension_numbers = #tpu.dot_dimension_numbers<[1], [0], [0], [1], [0, 0, 1, 1], [], []>} : vector<16x512xbf16>, vector<512x256xbf16>, vector<16x256xf32> -> vector<16x256xf32>
      %c0_17 = arith.constant 0 : index
      %c0_18 = arith.constant 0 : index
      %21 = vector.load %arg5[%c0_17, %c0_18] : memref<1x256xf32, #tpu.memory_space<vmem>>, vector<1x256xf32>
      %22 = vector.broadcast %21 : vector<1x256xf32> to vector<16x256xf32>
      %23 = arith.addf %20, %22 : vector<16x256xf32>
      %cst_19 = arith.constant 0.000000e+00 : f32
      %24 = vector.broadcast %cst_19 : f32 to vector<16x256xf32>
      %25 = arith.maximumf %23, %24 : vector<16x256xf32>
      %26 = arith.truncf %25 : vector<16x256xf32> to vector<16x256xbf16>
      %c0_20 = arith.constant 0 : index
      %c0_21 = arith.constant 0 : index
      %27 = vector.load %arg6[%c0_20, %c0_21] : memref<256x128xbf16, #tpu.memory_space<vmem>>, vector<256x128xbf16>
      %cst_22 = arith.constant dense<0.000000e+00> : vector<16x128xf32>
      %28 = tpu.matmul %26, %27, %cst_22 {dimension_numbers = #tpu.dot_dimension_numbers<[1], [0], [0], [1], [0, 0, 1, 1], [], []>} : vector<16x256xbf16>, vector<256x128xbf16>, vector<16x128xf32> -> vector<16x128xf32>
      %c0_23 = arith.constant 0 : index
      %c0_24 = arith.constant 0 : index
      %29 = vector.load %arg7[%c0_23, %c0_24] : memref<1x128xf32, #tpu.memory_space<vmem>>, vector<1x128xf32>
      %30 = vector.broadcast %29 : vector<1x128xf32> to vector<16x128xf32>
      %31 = arith.addf %28, %30 : vector<16x128xf32>
      %c0_25 = arith.constant 0 : index
      %c0_26 = arith.constant 0 : index
      %32 = vector.load %arg8[%c0_25, %c0_26] : memref<16x128xf32, #tpu.memory_space<vmem>>, vector<16x128xf32>
      tpu.vector_store %arg8[%c0_25, %c0_26], %31 {strides = array<i32>} : memref<16x128xf32, #tpu.memory_space<vmem>>, vector<16x128xf32>,
    } else {
    }
    return
  }
  func.func @transform_0(%arg0: i32) -> (i32, i32) {
    %c0_i32 = arith.constant 0 : i32
    %c0_i32_0 = arith.constant 0 : i32
    return %c0_i32, %arg0 : i32, i32
  }
  func.func @transform_1(%arg0: i32) -> (i32, i32) {
    %c0_i32 = arith.constant 0 : i32
    %c0_i32_0 = arith.constant 0 : i32
    return %arg0, %c0_i32 : i32, i32
  }
  func.func @transform_2(%arg0: i32) -> (i32, i32) {
    %c0_i32 = arith.constant 0 : i32
    %c0_i32_0 = arith.constant 0 : i32
    %c0_i32_1 = arith.constant 0 : i32
    return %c0_i32, %c0_i32_0 : i32, i32
  }
  func.func @transform_3(%arg0: i32) -> (i32, i32) {
    %c0_i32 = arith.constant 0 : i32
    %c0_i32_0 = arith.constant 0 : i32
    %c0_i32_1 = arith.constant 0 : i32
    return %c0_i32, %c0_i32_0 : i32, i32
  }
  func.func @transform_4(%arg0: i32) -> (i32, i32) {
    %c0_i32 = arith.constant 0 : i32
    %c0_i32_0 = arith.constant 0 : i32
    %c0_i32_1 = arith.constant 0 : i32
    return %c0_i32, %c0_i32_0 : i32, i32
  }
  func.func @transform_5(%arg0: i32) -> (i32, i32) {
    %c0_i32 = arith.constant 0 : i32
    %c0_i32_0 = arith.constant 0 : i32
    %c0_i32_1 = arith.constant 0 : i32
    return %c0_i32, %c0_i32_0 : i32, i32
  }
  func.func @transform_6(%arg0: i32) -> (i32, i32) {
    %c0_i32 = arith.constant 0 : i32
    %c0_i32_0 = arith.constant 0 : i32
    %c0_i32_1 = arith.constant 0 : i32
    return %c0_i32, %c0_i32_0 : i32, i32
  }
  func.func @transform_7(%arg0: i32) -> (i32, i32) {
    %c0_i32 = arith.constant 0 : i32
    %c0_i32_0 = arith.constant 0 : i32
    %c0_i32_1 = arith.constant 0 : i32
    return %c0_i32, %c0_i32_0 : i32, i32
  }
}

</mosaic_0001>

<llo_original>
// kernel: network_forward.5
$region0: #{network_forward.5}
  #allocation0 [shape = 'u32[]', space=smem, size = 0x4, offset = 0x4, fixed_abs, tag = 'smem constant byte address 0x4 - core index']
  #allocation1 [shape = 'u32[144,128]{1,0:T(1,128)}', space=vmem, size = 0x12000, scoped, tag = 'internal scratch']
  %s0 = inlined_call_operand.vmem [shape: bf16[2048,192], index: 0, kind: input, shape index: {}]
  %s1 = inlined_call_operand.vmem [shape: bf16[192,32], index: 1, kind: input, shape index: {}]
  %s2 = inlined_call_operand.vmem [shape: f32[1,32], index: 2, kind: input, shape index: {}]
  %s3 = inlined_call_operand.vmem [shape: bf16[2048,32], index: 3, kind: output, shape index: {}]
  %s4 = sld [smem:[#allocation0]]
  $region45: #{network_forward.5} parent=0
    _
  %s6 = ssub.s32 1, %s4
  %s7 = scalar_select 0, %s6, %s4
  loop: start=0, step=1, limit=10
  $region2: #{network_forward.5} parent=0 // loop_pre_header
    _
  $region3: #{network_forward.5} parent=0 // loop_header
    %s9 = sphi 0, %s13
    %p10 = scmp.ge.s32.totalorder %s9, 10
    %s19 = sphi 0, %s21
    %s22 = sphi 0, %s19
    %s23 = sphi 0, %s22
    %s39 = sphi 0, %s23
    %s43 = sphi 0, %s43
    %s45 = sphi 0, %s43
    %s46 = sphi 0, %s45
    %s60 = sphi 0, %s46
    %s64 = sphi 0, %s64
    %s66 = sphi 0, %s64
    %s67 = sphi 0, %s66
    %s81 = sphi 0, %s67
    %s87 = sphi 0, %s89
    %s90 = sphi 0, %s87
    %s91 = sphi 0, %s90
    %s107 = sphi 0, %s91
  $region4: #{network_forward.5} parent=0 // loop_header_branch
    %12 = sbr.rel (%p10) target = $region8
  $region5: #{network_forward.5} parent=0 // loop_body
    %s14 = ssub.s32 %s9, 1
    %s15 = ssub.s32 %s9, 2
    %s16 = sadd.s32 %s9, 1
    %s17 = ssub.s32 %s9, %s16
    %p18 = scmp.eq.s32.totalorder %s17, 0
    %s20 = sadd.s32 %s19, 1
    %s21 = scalar_select %p18, %s19, %s20
    %p24 = pneg %p18
    %p25 = scmp.eq.s32.totalorder %s9, 7
    %p26 = por %p24, %p25
    %p27 = scmp.ne.s32.totalorder %s19, %s22
    %p28 = scmp.eq.s32.totalorder %s9, 0
    %p29 = por %p27, %p28
    %p30 = scmp.ne.s32.totalorder %s19, %s22
    %p31 = scmp.eq.s32.totalorder %s14, 7
    %p32 = por %p30, %p31
    %p33 = scmp.ne.s32.totalorder %s22, %s23
    %p34 = scmp.eq.s32.totalorder %s14, 0
    %p35 = por %p33, %p34
    %p36 = scmp.ne.s32.totalorder %s22, %s23
    %p37 = scmp.eq.s32.totalorder %s15, 7
    %p38 = por %p36, %p37
    %p40 = scmp.ne.s32.totalorder %s23, %s39
    %p41 = scmp.eq.s32.totalorder %s15, 0
    %p42 = por %p40, %p41
    %s44 = sadd.s32 %s43, 1
    %p47 = scmp.eq.s32.totalorder %s9, 7
    %p48 = scmp.ne.s32.totalorder %s43, %s45
    %p49 = scmp.eq.s32.totalorder %s9, 0
    %p50 = por %p48, %p49
    %p51 = scmp.ne.s32.totalorder %s43, %s45
    %p52 = scmp.eq.s32.totalorder %s14, 7
    %p53 = por %p51, %p52
    %p54 = scmp.ne.s32.totalorder %s45, %s46
    %p55 = scmp.eq.s32.totalorder %s14, 0
    %p56 = por %p54, %p55
    %p57 = scmp.ne.s32.totalorder %s45, %s46
    %p58 = scmp.eq.s32.totalorder %s15, 7
    %p59 = por %p57, %p58
    %p61 = scmp.ne.s32.totalorder %s46, %s60
    %p62 = scmp.eq.s32.totalorder %s15, 0
    %p63 = por %p61, %p62
    %s65 = sadd.s32 %s64, 1
    %p68 = scmp.eq.s32.totalorder %s9, 7
    %p69 = scmp.ne.s32.totalorder %s64, %s66
    %p70 = scmp.eq.s32.totalorder %s9, 0
    %p71 = por %p69, %p70
    %p72 = scmp.ne.s32.totalorder %s64, %s66
    %p73 = scmp.eq.s32.totalorder %s14, 7
    %p74 = por %p72, %p73
    %p75 = scmp.ne.s32.totalorder %s66, %s67
    %p76 = scmp.eq.s32.totalorder %s14, 0
    %p77 = por %p75, %p76
    %p78 = scmp.ne.s32.totalorder %s66, %s67
    %p79 = scmp.eq.s32.totalorder %s15, 7
    %p80 = por %p78, %p79
    %p82 = scmp.ne.s32.totalorder %s67, %s81
    %p83 = scmp.eq.s32.totalorder %s15, 0
    %p84 = por %p82, %p83
    %s85 = ssub.s32 %s9, %s16
    %p86 = scmp.eq.s32.totalorder %s85, 0
    %s88 = sadd.s32 %s87, 1
    %s89 = scalar_select %p86, %s87, %s88
    %p92 = pneg %p86
    %p93 = scmp.eq.s32.totalorder %s9, 7
    %p94 = por %p92, %p93
    %p95 = scmp.ne.s32.totalorder %s87, %s90
    %p96 = scmp.eq.s32.totalorder %s9, 0
    %p97 = por %p95, %p96
    %p98 = scmp.ne.s32.totalorder %s87, %s90
    %p99 = scmp.eq.s32.totalorder %s14, 7
    %p100 = por %p98, %p99
    %p101 = scmp.ne.s32.totalorder %s90, %s91
    %p102 = scmp.eq.s32.totalorder %s14, 0
    %p103 = por %p101, %p102
    %p104 = scmp.ne.s32.totalorder %s90, %s91
    %p105 = scmp.eq.s32.totalorder %s15, 7
    %p106 = por %p104, %p105
    %p108 = scmp.ne.s32.totalorder %s91, %s107
    %p109 = scmp.eq.s32.totalorder %s15, 0
    %p110 = por %p108, %p109
    %p111 = scmp.le.s32.totalorder 1, %s9
    %p112 = scmp.lt.s32.totalorder %s9, 9
    %p113 = pnand %p111, %p112
    %p114 = pneg %p113
    // Predicated region
    $region9: #{network_forward.5} parent=5 // pred_check
      _
    $region10: #{network_forward.5} parent=5 // pred_check_branch
      %116 = sbr.rel (%p113) target = $region12
    $region11: #{network_forward.5} parent=5 // pred_region
      %s117 = ssub.s32 %s9, 1
      // Predicated region
      $region13: #{network_forward.5} parent=11 // pred_check
        %p118 = pneg %p56
      $region14: #{network_forward.5} parent=11 // pred_check_branch
        %120 = sbr.rel (%p118) target = $region16
      $region15: #{network_forward.5} parent=11 // pred_region
        _
      $region16: #{network_forward.5} parent=11 // pred_fallthru
        _
      // Predicated region
      $region17: #{network_forward.5} parent=11 // pred_check
        %p121 = pneg %p77
      $region18: #{network_forward.5} parent=11 // pred_check_branch
        %123 = sbr.rel (%p121) target = $region20
      $region19: #{network_forward.5} parent=11 // pred_region
        _
      $region20: #{network_forward.5} parent=11 // pred_fallthru
        _
    $region12: #{network_forward.5} parent=5 // pred_fallthru
      _
    %p124 = scmp.lt.s32.totalorder %s9, 8
    // Predicated region
    $region21: #{network_forward.5} parent=5 // pred_check
      %p125 = pneg %p124
    $region22: #{network_forward.5} parent=5 // pred_check_branch
      %127 = sbr.rel (%p125) target = $region24
    $region23: #{network_forward.5} parent=5 // pred_region
      // Predicated region
      $region25: #{network_forward.5} parent=23 // pred_check
        %p128 = pneg %p29
      $region26: #{network_forward.5} parent=23 // pred_check_branch
        %130 = sbr.rel (%p128) target = $region28
      $region27: #{network_forward.5} parent=23 // pred_region
        %s131 = smul.u32 32, %s9
        %p132 = scmp.lt.s32.totalorder %s131, 255
        %s133 = scalar_select %p132, %s131, 255
        %s134 = smul.addr %s133, 2
        %s135 = smul.addr %s134, 4
        %s136 = scalar_lea.vmem %s0, %s135
        %s137 = smul.u32 32, %s9
      $region28: #{network_forward.5} parent=23 // pred_fallthru
        _
    $region24: #{network_forward.5} parent=5 // pred_fallthru
      _
    %p138 = scmp.le.s32.totalorder 1, %s9
    %p139 = scmp.lt.s32.totalorder %s9, 9
    %p140 = pnand %p138, %p139
    %p141 = pneg %p140
    // Predicated region
    $region29: #{network_forward.5} parent=5 // pred_check
      _
    $region30: #{network_forward.5} parent=5 // pred_check_branch
      %143 = sbr.rel (%p140) target = $region32
    $region31: #{network_forward.5} parent=5 // pred_region
      %s144 = ssub.s32 %s9, 1
      %s145 = smul.u32 32, %s14
      %p146 = scmp.lt.s32.totalorder %s145, 255
      %s147 = scalar_select %p146, %s145, 255
      %s148 = smul.addr %s147, 2
      %s149 = smul.addr %s148, 4
      %s150 = scalar_lea.vmem %s0, %s149
      %p151 = pneg %p35
      %p152 = pneg %p32
      %p153 = pneg %p56
      %p154 = pneg %p53
      %p155 = pneg %p77
      %p156 = pneg %p74
      %p157 = pneg %p103
      %p158 = pneg %p100
      %s159 = smul.u32 32, %s14
      %p160 = scmp.lt.s32.totalorder %s159, 255
      %s161 = scalar_select %p160, %s159, 255
      %s162 = smul.addr %s161, 4
      %s163 = scalar_lea.vmem %s3, %s162
      %s164 = smul.u32 32, %s14
      %p165 = scmp.lt.s32.totalorder %s164, 255
      %s166 = scalar_select %p165, %s164, 255
      %s167 = smul.addr %s166, 2
      %s168 = smul.addr %s167, 4
      %s169 = scalar_lea.vmem %s0, %s168
      %s170 = smul.u32 32, %s14
      %s171 = smul.u32 32, %s14
      %p172 = scmp.lt.s32.totalorder %s171, 255
      %s173 = scalar_select %p172, %s171, 255
      %s174 = smul.addr %s173, 4
      %s175 = scalar_lea.vmem %s3, %s174
      %s176 = smul.u32 32, %s14
      %v178 = vld [vmem:[%s169] sm:$0xff]
      %v179 = vld [vmem:[%s169 + $0x8] sm:$0xff]
      %v180 = vld [vmem:[%s169 + $0x10] sm:$0xff]
      %v181 = vld [vmem:[%s169 + $0x18] sm:$0xff]
      %v182 = vld [vmem:[%s169 + $0x20] sm:$0xff]
      %v183 = vld [vmem:[%s169 + $0x28] sm:$0xff]
      %v184 = vld [vmem:[%s169 + $0x30] sm:$0xff]
      %v185 = vld [vmem:[%s169 + $0x38] sm:$0xff]
      %v186 = vld [vmem:[%s169 + $0x40] sm:$0xff]
      %v187 = vld [vmem:[%s169 + $0x48] sm:$0xff]
      %v188 = vld [vmem:[%s169 + $0x50] sm:$0xff]
      %v189 = vld [vmem:[%s169 + $0x58] sm:$0xff]
      %v190 = vld [vmem:[%s169 + $0x60] sm:$0xff]
      %v191 = vld [vmem:[%s169 + $0x68] sm:$0xff]
      %v192 = vld [vmem:[%s169 + $0x70] sm:$0xff]
      %v193 = vld [vmem:[%s169 + $0x78] sm:$0xff]
      %v194 = vld [vmem:[%s169 + $0x80] sm:$0xff]
      %v195 = vld [vmem:[%s169 + $0x88] sm:$0xff]
      %v196 = vld [vmem:[%s169 + $0x90] sm:$0xff]
      %v197 = vld [vmem:[%s169 + $0x98] sm:$0xff]
      %v198 = vld [vmem:[%s169 + $0xa0] sm:$0xff]
      %v199 = vld [vmem:[%s169 + $0xa8] sm:$0xff]
      %v200 = vld [vmem:[%s169 + $0xb0] sm:$0xff]
      %v201 = vld [vmem:[%s169 + $0xb8] sm:$0xff]
      %v202 = vld [vmem:[%s169 + $0xc0] sm:$0xff]
      %v203 = vld [vmem:[%s169 + $0xc8] sm:$0xff]
      %v204 = vld [vmem:[%s169 + $0xd0] sm:$0xff]
      %v205 = vld [vmem:[%s169 + $0xd8] sm:$0xff]
      %v206 = vld [vmem:[%s169 + $0xe0] sm:$0xff]
      %v207 = vld [vmem:[%s169 + $0xe8] sm:$0xff]
      %v208 = vld [vmem:[%s169 + $0xf0] sm:$0xff]
      %v209 = vld [vmem:[%s169 + $0xf8] sm:$0xff]
      %v210 = vld [vmem:[%s1] sm:$0xf]
      %v211 = vld [vmem:[%s1 + $0x4] sm:$0xf]
      %v212 = vld [vmem:[%s1 + $0x8] sm:$0xf]
      %v213 = vld [vmem:[%s1 + $0xc] sm:$0xf]
      %v214 = vld [vmem:[%s1 + $0x10] sm:$0xf]
      %v215 = vld [vmem:[%s1 + $0x14] sm:$0xf]
      %v216 = vld [vmem:[%s1 + $0x18] sm:$0xf]
      %v217 = vld [vmem:[%s1 + $0x1c] sm:$0xf]
      %v218 = vld [vmem:[%s1 + $0x20] sm:$0xf]
      %v219 = vld [vmem:[%s1 + $0x24] sm:$0xf]
      %v220 = vld [vmem:[%s1 + $0x28] sm:$0xf]
      %v221 = vld [vmem:[%s1 + $0x2c] sm:$0xf]
      %v222 = vld [vmem:[%s1 + $0x30] sm:$0xf]
      %v223 = vld [vmem:[%s1 + $0x34] sm:$0xf]
      %v224 = vld [vmem:[%s1 + $0x38] sm:$0xf]
      %v225 = vld [vmem:[%s1 + $0x3c] sm:$0xf]
      %v226 = vld [vmem:[%s1 + $0x40] sm:$0xf]
      %v227 = vld [vmem:[%s1 + $0x44] sm:$0xf]
      %v228 = vld [vmem:[%s1 + $0x48] sm:$0xf]
      %v229 = vld [vmem:[%s1 + $0x4c] sm:$0xf]
      %v230 = vld [vmem:[%s1 + $0x50] sm:$0xf]
      %v231 = vld [vmem:[%s1 + $0x54] sm:$0xf]
      %v232 = vld [vmem:[%s1 + $0x58] sm:$0xf]
      %v233 = vld [vmem:[%s1 + $0x5c] sm:$0xf]
      %v234 = vld [vmem:[%s2] sm:$0x1]
      %v236 = vlaneseq
      %v237 = vshrl.u32 %v236, 7
      %v238 = vsub.s32 0, %v237
      %v239 = vrot.slane %v234, %v238
      %v273 = vunpack.c.l.b16 %v178
      %v274 = vunpack.c.h.b16 %v178
      %v275 = vunpack.c.l.b16 %v179
      %v276 = vunpack.c.h.b16 %v179
      %v277 = vunpack.c.l.b16 %v180
      %v278 = vunpack.c.h.b16 %v180
      %v279 = vunpack.c.l.b16 %v181
      %v280 = vunpack.c.h.b16 %v181
      %v281 = vunpack.c.l.b16 %v182
      %v282 = vunpack.c.h.b16 %v182
      %v283 = vunpack.c.l.b16 %v183
      %v284 = vunpack.c.h.b16 %v183
      %v285 = vunpack.c.l.b16 %v184
      %v286 = vunpack.c.h.b16 %v184
      %v287 = vunpack.c.l.b16 %v185
      %v288 = vunpack.c.h.b16 %v185
      %v289 = vunpack.c.l.b16 %v186
      %v290 = vunpack.c.h.b16 %v186
      %v291 = vunpack.c.l.b16 %v187
      %v292 = vunpack.c.h.b16 %v187
      %v293 = vunpack.c.l.b16 %v188
      %v294 = vunpack.c.h.b16 %v188
      %v295 = vunpack.c.l.b16 %v189
      %v296 = vunpack.c.h.b16 %v189
      %v297 = vunpack.c.l.b16 %v190
      %v298 = vunpack.c.h.b16 %v190
      %v299 = vunpack.c.l.b16 %v191
      %v300 = vunpack.c.h.b16 %v191
      %v301 = vunpack.c.l.b16 %v192
      %v302 = vunpack.c.h.b16 %v192
      %v303 = vunpack.c.l.b16 %v193
      %v304 = vunpack.c.h.b16 %v193
      %v305 = vunpack.c.l.b16 %v194
      %v306 = vunpack.c.h.b16 %v194
      %v307 = vunpack.c.l.b16 %v195
      %v308 = vunpack.c.h.b16 %v195
      %v309 = vunpack.c.l.b16 %v196
      %v310 = vunpack.c.h.b16 %v196
      %v311 = vunpack.c.l.b16 %v197
      %v312 = vunpack.c.h.b16 %v197
      %v313 = vunpack.c.l.b16 %v198
      %v314 = vunpack.c.h.b16 %v198
      %v315 = vunpack.c.l.b16 %v199
      %v316 = vunpack.c.h.b16 %v199
      %v317 = vunpack.c.l.b16 %v200
      %v318 = vunpack.c.h.b16 %v200
      %v319 = vunpack.c.l.b16 %v201
      %v320 = vunpack.c.h.b16 %v201
      %v321 = vunpack.c.l.b16 %v202
      %v322 = vunpack.c.h.b16 %v202
      %v323 = vunpack.c.l.b16 %v203
      %v324 = vunpack.c.h.b16 %v203
      %v325 = vunpack.c.l.b16 %v204
      %v326 = vunpack.c.h.b16 %v204
      %v327 = vunpack.c.l.b16 %v205
      %v328 = vunpack.c.h.b16 %v205
      %v329 = vunpack.c.l.b16 %v206
      %v330 = vunpack.c.h.b16 %v206
      %v331 = vunpack.c.l.b16 %v207
      %v332 = vunpack.c.h.b16 %v207
      %v333 = vunpack.c.l.b16 %v208
      %v334 = vunpack.c.h.b16 %v208
      %v335 = vunpack.c.l.b16 %v209
      %v336 = vunpack.c.h.b16 %v209
      %v337 = vpack.c.b16 %v275, %v273
      %v338 = vpack.c.b16 %v276, %v274
      %v339 = vpack.c.b16 %v279, %v277
      %v340 = vpack.c.b16 %v280, %v278
      %v341 = vpack.c.b16 %v283, %v281
      %v342 = vpack.c.b16 %v284, %v282
      %v343 = vpack.c.b16 %v287, %v285
      %v344 = vpack.c.b16 %v288, %v286
      %v345 = vpack.c.b16 %v291, %v289
      %v346 = vpack.c.b16 %v292, %v290
      %v347 = vpack.c.b16 %v295, %v293
      %v348 = vpack.c.b16 %v296, %v294
      %v349 = vpack.c.b16 %v299, %v297
      %v350 = vpack.c.b16 %v300, %v298
      %v351 = vpack.c.b16 %v303, %v301
      %v352 = vpack.c.b16 %v304, %v302
      %v353 = vpack.c.b16 %v307, %v305
      %v354 = vpack.c.b16 %v308, %v306
      %v355 = vpack.c.b16 %v311, %v309
      %v356 = vpack.c.b16 %v312, %v310
      %v357 = vpack.c.b16 %v315, %v313
      %v358 = vpack.c.b16 %v316, %v314
      %v359 = vpack.c.b16 %v319, %v317
      %v360 = vpack.c.b16 %v320, %v318
      %v361 = vpack.c.b16 %v323, %v321
      %v362 = vpack.c.b16 %v324, %v322
      %v363 = vpack.c.b16 %v327, %v325
      %v364 = vpack.c.b16 %v328, %v326
      %v365 = vpack.c.b16 %v331, %v329
      %v366 = vpack.c.b16 %v332, %v330
      %v367 = vpack.c.b16 %v335, %v333
      %v368 = vpack.c.b16 %v336, %v334
      %v409 = vunpack.c.l.b16 %v210
      %v410 = vunpack.c.l.b16 %v211
      %v411 = vunpack.c.l.b16 %v212
      %v412 = vunpack.c.l.b16 %v213
      %v413 = vunpack.c.l.b16 %v214
      %v414 = vunpack.c.l.b16 %v215
      %v415 = vunpack.c.l.b16 %v216
      %v416 = vunpack.c.l.b16 %v217
      %v417 = vunpack.c.l.b16 %v218
      %v418 = vunpack.c.l.b16 %v219
      %v419 = vunpack.c.l.b16 %v220
      %v420 = vunpack.c.l.b16 %v221
      %v421 = vunpack.c.l.b16 %v222
      %v422 = vunpack.c.l.b16 %v223
      %v423 = vunpack.c.l.b16 %v224
      %v424 = vunpack.c.l.b16 %v225
      %v425 = vunpack.c.l.b16 %v226
      %v426 = vunpack.c.l.b16 %v227
      %v427 = vunpack.c.l.b16 %v228
      %v428 = vunpack.c.l.b16 %v229
      %v429 = vunpack.c.l.b16 %v230
      %v430 = vunpack.c.l.b16 %v231
      %v431 = vunpack.c.l.b16 %v232
      %v432 = vunpack.c.l.b16 %v233
      %v433 = vpack.c.b16 %v410, %v409
      %v434 = vpack.c.b16 %v412, %v411
      %v435 = vpack.c.b16 %v414, %v413
      %v436 = vpack.c.b16 %v416, %v415
      %v437 = vpack.c.b16 %v418, %v417
      %v438 = vpack.c.b16 %v420, %v419
      %v439 = vpack.c.b16 %v422, %v421
      %v440 = vpack.c.b16 %v424, %v423
      %v441 = vpack.c.b16 %v426, %v425
      %v442 = vpack.c.b16 %v428, %v427
      %v443 = vpack.c.b16 %v430, %v429
      %v444 = vpack.c.b16 %v432, %v431
      %vm457 = vcmask 523264
      %v459 = vsel %vm457, %v338, 0
      %v462 = vsel %vm457, %v340, 0
      %v465 = vsel %vm457, %v342, 0
      %v468 = vsel %vm457, %v344, 0
      %v471 = vsel %vm457, %v346, 0
      %v474 = vsel %vm457, %v348, 0
      %v477 = vsel %vm457, %v350, 0
      %v480 = vsel %vm457, %v352, 0
      %v483 = vsel %vm457, %v354, 0
      %v486 = vsel %vm457, %v356, 0
      %v489 = vsel %vm457, %v358, 0
      %v492 = vsel %vm457, %v360, 0
      %v495 = vsel %vm457, %v362, 0
      %v498 = vsel %vm457, %v364, 0
      %v501 = vsel %vm457, %v366, 0
      %v504 = vsel %vm457, %v368, 0
      %506 = vmatprep.subr.bf16.mxu0 0
      %507 = vmatpush1.bf16.msra.mxu0 %v440
      %508 = vmatprep.subr.bf16.mxu0 0
      %509 = vmatpush1.bf16.msra.mxu0 %v439
      %510 = vmatprep.subr.bf16.mxu0 0
      %511 = vmatpush1.bf16.msra.mxu0 %v438
      %512 = vmatprep.subr.bf16.mxu0 0
      %513 = vmatpush1.bf16.msra.mxu0 %v437
      %514 = vmatprep.subr.bf16.mxu0 0
      %515 = vmatpush1.bf16.msra.mxu0 %v436
      %516 = vmatprep.subr.bf16.mxu0 0
      %517 = vmatpush1.bf16.msra.mxu0 %v435
      %518 = vmatprep.subr.bf16.mxu0 0
      %519 = vmatpush1.bf16.msra.mxu0 %v434
      %520 = vmatprep.subr.bf16.mxu0 0
      %521 = vmatpush1.bf16.msra.mxu0 %v433
      %522 = vmatprep.subr.bf16.mxu0 0
      %523 = vmatpush2.bf16.msra.mxu0 0
      %524 = vmatprep.subr.bf16.mxu0 0
      %525 = vmatpush2.bf16.msra.mxu0 0
      %526 = vmatprep.subr.bf16.mxu0 0
      %527 = vmatpush2.bf16.msra.mxu0 0
      %528 = vmatprep.subr.bf16.mxu0 0
      %529 = vmatpush2.bf16.msra.mxu0 0
      %530 = vmatprep.subr.bf16.mxu0 0
      %531 = vmatpush2.bf16.msra.mxu0 %v444
      %532 = vmatprep.subr.bf16.mxu0 0
      %533 = vmatpush2.bf16.msra.mxu0 %v443
      %534 = vmatprep.subr.bf16.mxu0 0
      %535 = vmatpush2.bf16.msra.mxu0 %v442
      %536 = vmatprep.subr.bf16.mxu0 0
      %537 = vmatpush2.bf16.msra.mxu0 %v441
      %538 = vmatprep.mubr.bf16.mxu0 %v459
      %539 = vmatmul.mubr.bf16.gmra.mxu0 %v337
      %v540 = vpop.f32.mrf.mxu0
      %v541 = vadd.f32 %v239, %v540
      %v542 = vpop.f32.mrf.mxu0
      %v543 = vpop.f32.mrf.mxu0
      %v544 = vadd.f32 %v239, %v543
      %v545 = vpop.f32.mrf.mxu0
      %546 = vmatprep.mubr.bf16.mxu0 %v462
      %547 = vmatmul.mubr.bf16.gmra.mxu0 %v339
      %v548 = vpop.f32.mrf.mxu0
      %v549 = vadd.f32 %v239, %v548
      %v550 = vpop.f32.mrf.mxu0
      %v551 = vpop.f32.mrf.mxu0
      %v552 = vadd.f32 %v239, %v551
      %v553 = vpop.f32.mrf.mxu0
      %554 = vmatprep.mubr.bf16.mxu0 %v465
      %555 = vmatmul.mubr.bf16.gmra.mxu0 %v341
      %v556 = vpop.f32.mrf.mxu0
      %v557 = vadd.f32 %v239, %v556
      %v558 = vpop.f32.mrf.mxu0
      %v559 = vpop.f32.mrf.mxu0
      %v560 = vadd.f32 %v239, %v559
      %v561 = vpop.f32.mrf.mxu0
      %562 = vmatprep.mubr.bf16.mxu0 %v468
      %563 = vmatmul.mubr.bf16.gmra.mxu0 %v343
      %v564 = vpop.f32.mrf.mxu0
      %v565 = vadd.f32 %v239, %v564
      %v566 = vpop.f32.mrf.mxu0
      %v567 = vpop.f32.mrf.mxu0
      %v568 = vadd.f32 %v239, %v567
      %v569 = vpop.f32.mrf.mxu0
      %570 = vmatprep.mubr.bf16.mxu0 %v471
      %571 = vmatmul.mubr.bf16.gmra.mxu0 %v345
      %v572 = vpop.f32.mrf.mxu0
      %v573 = vadd.f32 %v239, %v572
      %v574 = vpop.f32.mrf.mxu0
      %v575 = vpop.f32.mrf.mxu0
      %v576 = vadd.f32 %v239, %v575
      %v577 = vpop.f32.mrf.mxu0
      %578 = vmatprep.mubr.bf16.mxu0 %v474
      %579 = vmatmul.mubr.bf16.gmra.mxu0 %v347
      %v580 = vpop.f32.mrf.mxu0
      %v581 = vadd.f32 %v239, %v580
      %v582 = vpop.f32.mrf.mxu0
      %v583 = vpop.f32.mrf.mxu0
      %v584 = vadd.f32 %v239, %v583
      %v585 = vpop.f32.mrf.mxu0
      %586 = vmatprep.mubr.bf16.mxu0 %v477
      %587 = vmatmul.mubr.bf16.gmra.mxu0 %v349
      %v588 = vpop.f32.mrf.mxu0
      %v589 = vadd.f32 %v239, %v588
      %v590 = vpop.f32.mrf.mxu0
      %v591 = vpop.f32.mrf.mxu0
      %v592 = vadd.f32 %v239, %v591
      %v593 = vpop.f32.mrf.mxu0
      %594 = vmatprep.mubr.bf16.mxu0 %v480
      %595 = vmatmul.mubr.bf16.gmra.mxu0 %v351
      %v596 = vpop.f32.mrf.mxu0
      %v597 = vadd.f32 %v239, %v596
      %v598 = vpop.f32.mrf.mxu0
      %v599 = vpop.f32.mrf.mxu0
      %v600 = vadd.f32 %v239, %v599
      %v601 = vpop.f32.mrf.mxu0
      %602 = vmatprep.mubr.bf16.mxu0 %v483
      %603 = vmatmul.mubr.bf16.gmra.mxu0 %v353
      %v604 = vpop.f32.mrf.mxu0
      %v605 = vadd.f32 %v239, %v604
      %v606 = vpop.f32.mrf.mxu0
      %v607 = vpop.f32.mrf.mxu0
      %v608 = vadd.f32 %v239, %v607
      %v609 = vpop.f32.mrf.mxu0
      %610 = vmatprep.mubr.bf16.mxu0 %v486
      %611 = vmatmul.mubr.bf16.gmra.mxu0 %v355
      %v612 = vpop.f32.mrf.mxu0
      %v613 = vadd.f32 %v239, %v612
      %v614 = vpop.f32.mrf.mxu0
      %v615 = vpop.f32.mrf.mxu0
      %v616 = vadd.f32 %v239, %v615
      %v617 = vpop.f32.mrf.mxu0
      %618 = vmatprep.mubr.bf16.mxu0 %v489
      %619 = vmatmul.mubr.bf16.gmra.mxu0 %v357
      %v620 = vpop.f32.mrf.mxu0
      %v621 = vadd.f32 %v239, %v620
      %v622 = vpop.f32.mrf.mxu0
      %v623 = vpop.f32.mrf.mxu0
      %v624 = vadd.f32 %v239, %v623
      %v625 = vpop.f32.mrf.mxu0
      %626 = vmatprep.mubr.bf16.mxu0 %v492
      %627 = vmatmul.mubr.bf16.gmra.mxu0 %v359
      %v628 = vpop.f32.mrf.mxu0
      %v629 = vadd.f32 %v239, %v628
      %v630 = vpop.f32.mrf.mxu0
      %v631 = vpop.f32.mrf.mxu0
      %v632 = vadd.f32 %v239, %v631
      %v633 = vpop.f32.mrf.mxu0
      %634 = vmatprep.mubr.bf16.mxu0 %v495
      %635 = vmatmul.mubr.bf16.gmra.mxu0 %v361
      %v636 = vpop.f32.mrf.mxu0
      %v637 = vadd.f32 %v239, %v636
      %v638 = vpop.f32.mrf.mxu0
      %v639 = vpop.f32.mrf.mxu0
      %v640 = vadd.f32 %v239, %v639
      %v641 = vpop.f32.mrf.mxu0
      %642 = vmatprep.mubr.bf16.mxu0 %v498
      %643 = vmatmul.mubr.bf16.gmra.mxu0 %v363
      %v644 = vpop.f32.mrf.mxu0
      %v645 = vadd.f32 %v239, %v644
      %v646 = vpop.f32.mrf.mxu0
      %v647 = vpop.f32.mrf.mxu0
      %v648 = vadd.f32 %v239, %v647
      %v649 = vpop.f32.mrf.mxu0
      %650 = vmatprep.mubr.bf16.mxu0 %v501
      %651 = vmatmul.mubr.bf16.gmra.mxu0 %v365
      %v652 = vpop.f32.mrf.mxu0
      %v653 = vadd.f32 %v239, %v652
      %v654 = vpop.f32.mrf.mxu0
      %v655 = vpop.f32.mrf.mxu0
      %v656 = vadd.f32 %v239, %v655
      %v657 = vpop.f32.mrf.mxu0
      %658 = vmatprep.mubr.bf16.mxu0 %v504
      %659 = vmatmul.mubr.bf16.gmra.mxu0 %v367
      %v660 = vpop.f32.mrf.mxu0
      %v661 = vadd.f32 %v239, %v660
      %v662 = vpop.f32.mrf.mxu0
      %v663 = vpop.f32.mrf.mxu0
      %v664 = vadd.f32 %v239, %v663
      %v665 = vpop.f32.mrf.mxu0
      %666 = vdwg.mxu0
      %v667 = vmax.f32 %v541, 0.0
      %v668 = vmax.f32 %v544, 0.0
      %v669 = vmax.f32 %v549, 0.0
      %v670 = vmax.f32 %v552, 0.0
      %v671 = vmax.f32 %v557, 0.0
      %v672 = vmax.f32 %v560, 0.0
      %v673 = vmax.f32 %v565, 0.0
      %v674 = vmax.f32 %v568, 0.0
      %v675 = vmax.f32 %v573, 0.0
      %v676 = vmax.f32 %v576, 0.0
      %v677 = vmax.f32 %v581, 0.0
      %v678 = vmax.f32 %v584, 0.0
      %v679 = vmax.f32 %v589, 0.0
      %v680 = vmax.f32 %v592, 0.0
      %v681 = vmax.f32 %v597, 0.0
      %v682 = vmax.f32 %v600, 0.0
      %v683 = vmax.f32 %v605, 0.0
      %v684 = vmax.f32 %v608, 0.0
      %v685 = vmax.f32 %v613, 0.0
      %v686 = vmax.f32 %v616, 0.0
      %v687 = vmax.f32 %v621, 0.0
      %v688 = vmax.f32 %v624, 0.0
      %v689 = vmax.f32 %v629, 0.0
      %v690 = vmax.f32 %v632, 0.0
      %v691 = vmax.f32 %v637, 0.0
      %v692 = vmax.f32 %v640, 0.0
      %v693 = vmax.f32 %v645, 0.0
      %v694 = vmax.f32 %v648, 0.0
      %v695 = vmax.f32 %v653, 0.0
      %v696 = vmax.f32 %v656, 0.0
      %v697 = vmax.f32 %v661, 0.0
      %v698 = vmax.f32 %v664, 0.0
      %v699 = vpack.c.bf16 %v668, %v667
      %v700 = vpack.c.bf16 %v670, %v669
      %v701 = vpack.c.bf16 %v672, %v671
      %v702 = vpack.c.bf16 %v674, %v673
      %v703 = vpack.c.bf16 %v676, %v675
      %v704 = vpack.c.bf16 %v678, %v677
      %v705 = vpack.c.bf16 %v680, %v679
      %v706 = vpack.c.bf16 %v682, %v681
      %v707 = vpack.c.bf16 %v684, %v683
      %v708 = vpack.c.bf16 %v686, %v685
      %v709 = vpack.c.bf16 %v688, %v687
      %v710 = vpack.c.bf16 %v690, %v689
      %v711 = vpack.c.bf16 %v692, %v691
      %v712 = vpack.c.bf16 %v694, %v693
      %v713 = vpack.c.bf16 %v696, %v695
      %v714 = vpack.c.bf16 %v698, %v697
      %v731 = vunpack.c.l.b16 %v699
      %v732 = vunpack.c.h.b16 %v699
      %v733 = vunpack.c.l.b16 %v700
      %v734 = vunpack.c.h.b16 %v700
      %v735 = vunpack.c.l.b16 %v701
      %v736 = vunpack.c.h.b16 %v701
      %v737 = vunpack.c.l.b16 %v702
      %v738 = vunpack.c.h.b16 %v702
      %v739 = vunpack.c.l.b16 %v703
      %v740 = vunpack.c.h.b16 %v703
      %v741 = vunpack.c.l.b16 %v704
      %v742 = vunpack.c.h.b16 %v704
      %v743 = vunpack.c.l.b16 %v705
      %v744 = vunpack.c.h.b16 %v705
      %v745 = vunpack.c.l.b16 %v706
      %v746 = vunpack.c.h.b16 %v706
      %v747 = vunpack.c.l.b16 %v707
      %v748 = vunpack.c.h.b16 %v707
      %v749 = vunpack.c.l.b16 %v708
      %v750 = vunpack.c.h.b16 %v708
      %v751 = vunpack.c.l.b16 %v709
      %v752 = vunpack.c.h.b16 %v709
      %v753 = vunpack.c.l.b16 %v710
      %v754 = vunpack.c.h.b16 %v710
      %v755 = vunpack.c.l.b16 %v711
      %v756 = vunpack.c.h.b16 %v711
      %v757 = vunpack.c.l.b16 %v712
      %v758 = vunpack.c.h.b16 %v712
      %v759 = vunpack.c.l.b16 %v713
      %v760 = vunpack.c.h.b16 %v713
      %v761 = vunpack.c.l.b16 %v714
      %v762 = vunpack.c.h.b16 %v714
      %v763 = vpack.c.b16 %v731, %v731
      %v764 = vpack.c.b16 %v732, %v732
      %v765 = vpack.c.b16 %v733, %v733
      %v766 = vpack.c.b16 %v734, %v734
      %v767 = vpack.c.b16 %v735, %v735
      %v768 = vpack.c.b16 %v736, %v736
      %v769 = vpack.c.b16 %v737, %v737
      %v770 = vpack.c.b16 %v738, %v738
      %v771 = vpack.c.b16 %v739, %v739
      %v772 = vpack.c.b16 %v740, %v740
      %v773 = vpack.c.b16 %v741, %v741
      %v774 = vpack.c.b16 %v742, %v742
      %v775 = vpack.c.b16 %v743, %v743
      %v776 = vpack.c.b16 %v744, %v744
      %v777 = vpack.c.b16 %v745, %v745
      %v778 = vpack.c.b16 %v746, %v746
      %v779 = vpack.c.b16 %v747, %v747
      %v780 = vpack.c.b16 %v748, %v748
      %v781 = vpack.c.b16 %v749, %v749
      %v782 = vpack.c.b16 %v750, %v750
      %v783 = vpack.c.b16 %v751, %v751
      %v784 = vpack.c.b16 %v752, %v752
      %v785 = vpack.c.b16 %v753, %v753
      %v786 = vpack.c.b16 %v754, %v754
      %v787 = vpack.c.b16 %v755, %v755
      %v788 = vpack.c.b16 %v756, %v756
      %v789 = vpack.c.b16 %v757, %v757
      %v790 = vpack.c.b16 %v758, %v758
      %v791 = vpack.c.b16 %v759, %v759
      %v792 = vpack.c.b16 %v760, %v760
      %v793 = vpack.c.b16 %v761, %v761
      %v794 = vpack.c.b16 %v762, %v762
      %vm827 = vcmask 257024
      %828 = vst.msk [vmem:[%s175] sm:$0xf] %vm827, %v763
      %829 = vst.msk [vmem:[%s175 + $0x4] sm:$0xf] %vm827, %v764
      %830 = vst.msk [vmem:[%s175 + $0x8] sm:$0xf] %vm827, %v765
      %831 = vst.msk [vmem:[%s175 + $0xc] sm:$0xf] %vm827, %v766
      %832 = vst.msk [vmem:[%s175 + $0x10] sm:$0xf] %vm827, %v767
      %833 = vst.msk [vmem:[%s175 + $0x14] sm:$0xf] %vm827, %v768
      %834 = vst.msk [vmem:[%s175 + $0x18] sm:$0xf] %vm827, %v769
      %835 = vst.msk [vmem:[%s175 + $0x1c] sm:$0xf] %vm827, %v770
      %836 = vst.msk [vmem:[%s175 + $0x20] sm:$0xf] %vm827, %v771
      %837 = vst.msk [vmem:[%s175 + $0x24] sm:$0xf] %vm827, %v772
      %838 = vst.msk [vmem:[%s175 + $0x28] sm:$0xf] %vm827, %v773
      %839 = vst.msk [vmem:[%s175 + $0x2c] sm:$0xf] %vm827, %v774
      %840 = vst.msk [vmem:[%s175 + $0x30] sm:$0xf] %vm827, %v775
      %841 = vst.msk [vmem:[%s175 + $0x34] sm:$0xf] %vm827, %v776
      %842 = vst.msk [vmem:[%s175 + $0x38] sm:$0xf] %vm827, %v777
      %843 = vst.msk [vmem:[%s175 + $0x3c] sm:$0xf] %vm827, %v778
      %844 = vst.msk [vmem:[%s175 + $0x40] sm:$0xf] %vm827, %v779
      %845 = vst.msk [vmem:[%s175 + $0x44] sm:$0xf] %vm827, %v780
      %846 = vst.msk [vmem:[%s175 + $0x48] sm:$0xf] %vm827, %v781
      %847 = vst.msk [vmem:[%s175 + $0x4c] sm:$0xf] %vm827, %v782
      %848 = vst.msk [vmem:[%s175 + $0x50] sm:$0xf] %vm827, %v783
      %849 = vst.msk [vmem:[%s175 + $0x54] sm:$0xf] %vm827, %v784
      %850 = vst.msk [vmem:[%s175 + $0x58] sm:$0xf] %vm827, %v785
      %851 = vst.msk [vmem:[%s175 + $0x5c] sm:$0xf] %vm827, %v786
      %852 = vst.msk [vmem:[%s175 + $0x60] sm:$0xf] %vm827, %v787
      %853 = vst.msk [vmem:[%s175 + $0x64] sm:$0xf] %vm827, %v788
      %854 = vst.msk [vmem:[%s175 + $0x68] sm:$0xf] %vm827, %v789
      %855 = vst.msk [vmem:[%s175 + $0x6c] sm:$0xf] %vm827, %v790
      %856 = vst.msk [vmem:[%s175 + $0x70] sm:$0xf] %vm827, %v791
      %857 = vst.msk [vmem:[%s175 + $0x74] sm:$0xf] %vm827, %v792
      %858 = vst.msk [vmem:[%s175 + $0x78] sm:$0xf] %vm827, %v793
      %859 = vst.msk [vmem:[%s175 + $0x7c] sm:$0xf] %vm827, %v794
      %s860 = smul.u32 32, %s14
      %p861 = scmp.lt.s32.totalorder %s860, 255
      %s862 = scalar_select %p861, %s860, 255
      %s863 = smul.addr %s862, 4
      %s864 = scalar_lea.vmem %s3, %s863
      // Predicated region
      $region33: #{network_forward.5} parent=31 // pred_check
        %p865 = pneg %p100
      $region34: #{network_forward.5} parent=31 // pred_check_branch
        %867 = sbr.rel (%p865) target = $region36
      $region35: #{network_forward.5} parent=31 // pred_region
        %s868 = smul.u32 32, %s14
      $region36: #{network_forward.5} parent=31 // pred_fallthru
        _
    $region32: #{network_forward.5} parent=5 // pred_fallthru
      _
    %p869 = scmp.le.s32.totalorder 2, %s9
    // Predicated region
    $region37: #{network_forward.5} parent=5 // pred_check
      %p870 = pneg %p869
    $region38: #{network_forward.5} parent=5 // pred_check_branch
      %872 = sbr.rel (%p870) target = $region40
    $region39: #{network_forward.5} parent=5 // pred_region
      %s873 = ssub.s32 %s9, 2
      // Predicated region
      $region41: #{network_forward.5} parent=39 // pred_check
        %p874 = pneg %p106
      $region42: #{network_forward.5} parent=39 // pred_check_branch
        %876 = sbr.rel (%p874) target = $region44
      $region43: #{network_forward.5} parent=39 // pred_region
        %s877 = smul.u32 32, %s15
        %p878 = scmp.lt.s32.totalorder %s877, 255
        %s879 = scalar_select %p878, %s877, 255
        %s880 = smul.addr %s879, 4
        %s881 = scalar_lea.vmem %s3, %s880
      $region44: #{network_forward.5} parent=39 // pred_fallthru
        _
    $region40: #{network_forward.5} parent=5 // pred_fallthru
      _
  $region6: #{network_forward.5} parent=0 // loop_footer
    %s13 = sadd.s32 1, %s9
  $region7: #{network_forward.5} parent=0 // loop_footer_branch
    %8 = sbr.rel target = $region3
  $region8: #{network_forward.5} parent=0 // loop_exit
    _

// kernel: network_forward.6
$region0: #{network_forward.6}
  #allocation0 [shape = 'u32[]', space=smem, size = 0x4, offset = 0x4, fixed_abs, tag = 'smem constant byte address 0x4 - core index']
  #allocation1 [shape = 'u32[144,128]{1,0:T(1,128)}', space=vmem, size = 0x12000, scoped, tag = 'internal scratch']
  %s0 = inlined_call_operand.vmem [shape: bf16[512,512], index: 0, kind: input, shape index: {}]
  %s1 = inlined_call_operand.vmem [shape: bf16[512,64], index: 1, kind: input, shape index: {}]
  %s2 = inlined_call_operand.vmem [shape: f32[1,64], index: 2, kind: input, shape index: {}]
  %s3 = inlined_call_operand.vmem [shape: bf16[512,64], index: 3, kind: output, shape index: {}]
  %s4 = sld [smem:[#allocation0]]
  $region45: #{network_forward.6} parent=0
    _
  %s6 = ssub.s32 1, %s4
  %s7 = scalar_select 0, %s6, %s4
  loop: start=0, step=1, limit=4
  $region2: #{network_forward.6} parent=0 // loop_pre_header
    _
  $region3: #{network_forward.6} parent=0 // loop_header
    %s9 = sphi 0, %s13
    %p10 = scmp.ge.s32.totalorder %s9, 4
    %s19 = sphi 0, %s21
    %s22 = sphi 0, %s19
    %s23 = sphi 0, %s22
    %s39 = sphi 0, %s23
    %s43 = sphi 0, %s43
    %s45 = sphi 0, %s43
    %s46 = sphi 0, %s45
    %s60 = sphi 0, %s46
    %s64 = sphi 0, %s64
    %s66 = sphi 0, %s64
    %s67 = sphi 0, %s66
    %s81 = sphi 0, %s67
    %s87 = sphi 0, %s89
    %s90 = sphi 0, %s87
    %s91 = sphi 0, %s90
    %s107 = sphi 0, %s91
  $region4: #{network_forward.6} parent=0 // loop_header_branch
    %12 = sbr.rel (%p10) target = $region8
  $region5: #{network_forward.6} parent=0 // loop_body
    %s14 = ssub.s32 %s9, 1
    %s15 = ssub.s32 %s9, 2
    %s16 = sadd.s32 %s9, 1
    %s17 = ssub.s32 %s9, %s16
    %p18 = scmp.eq.s32.totalorder %s17, 0
    %s20 = sadd.s32 %s19, 1
    %s21 = scalar_select %p18, %s19, %s20
    %p24 = pneg %p18
    %p25 = scmp.eq.s32.totalorder %s9, 1
    %p26 = por %p24, %p25
    %p27 = scmp.ne.s32.totalorder %s19, %s22
    %p28 = scmp.eq.s32.totalorder %s9, 0
    %p29 = por %p27, %p28
    %p30 = scmp.ne.s32.totalorder %s19, %s22
    %p31 = scmp.eq.s32.totalorder %s14, 1
    %p32 = por %p30, %p31
    %p33 = scmp.ne.s32.totalorder %s22, %s23
    %p34 = scmp.eq.s32.totalorder %s14, 0
    %p35 = por %p33, %p34
    %p36 = scmp.ne.s32.totalorder %s22, %s23
    %p37 = scmp.eq.s32.totalorder %s15, 1
    %p38 = por %p36, %p37
    %p40 = scmp.ne.s32.totalorder %s23, %s39
    %p41 = scmp.eq.s32.totalorder %s15, 0
    %p42 = por %p40, %p41
    %s44 = sadd.s32 %s43, 1
    %p47 = scmp.eq.s32.totalorder %s9, 1
    %p48 = scmp.ne.s32.totalorder %s43, %s45
    %p49 = scmp.eq.s32.totalorder %s9, 0
    %p50 = por %p48, %p49
    %p51 = scmp.ne.s32.totalorder %s43, %s45
    %p52 = scmp.eq.s32.totalorder %s14, 1
    %p53 = por %p51, %p52
    %p54 = scmp.ne.s32.totalorder %s45, %s46
    %p55 = scmp.eq.s32.totalorder %s14, 0
    %p56 = por %p54, %p55
    %p57 = scmp.ne.s32.totalorder %s45, %s46
    %p58 = scmp.eq.s32.totalorder %s15, 1
    %p59 = por %p57, %p58
    %p61 = scmp.ne.s32.totalorder %s46, %s60
    %p62 = scmp.eq.s32.totalorder %s15, 0
    %p63 = por %p61, %p62
    %s65 = sadd.s32 %s64, 1
    %p68 = scmp.eq.s32.totalorder %s9, 1
    %p69 = scmp.ne.s32.totalorder %s64, %s66
    %p70 = scmp.eq.s32.totalorder %s9, 0
    %p71 = por %p69, %p70
    %p72 = scmp.ne.s32.totalorder %s64, %s66
    %p73 = scmp.eq.s32.totalorder %s14, 1
    %p74 = por %p72, %p73
    %p75 = scmp.ne.s32.totalorder %s66, %s67
    %p76 = scmp.eq.s32.totalorder %s14, 0
    %p77 = por %p75, %p76
    %p78 = scmp.ne.s32.totalorder %s66, %s67
    %p79 = scmp.eq.s32.totalorder %s15, 1
    %p80 = por %p78, %p79
    %p82 = scmp.ne.s32.totalorder %s67, %s81
    %p83 = scmp.eq.s32.totalorder %s15, 0
    %p84 = por %p82, %p83
    %s85 = ssub.s32 %s9, %s16
    %p86 = scmp.eq.s32.totalorder %s85, 0
    %s88 = sadd.s32 %s87, 1
    %s89 = scalar_select %p86, %s87, %s88
    %p92 = pneg %p86
    %p93 = scmp.eq.s32.totalorder %s9, 1
    %p94 = por %p92, %p93
    %p95 = scmp.ne.s32.totalorder %s87, %s90
    %p96 = scmp.eq.s32.totalorder %s9, 0
    %p97 = por %p95, %p96
    %p98 = scmp.ne.s32.totalorder %s87, %s90
    %p99 = scmp.eq.s32.totalorder %s14, 1
    %p100 = por %p98, %p99
    %p101 = scmp.ne.s32.totalorder %s90, %s91
    %p102 = scmp.eq.s32.totalorder %s14, 0
    %p103 = por %p101, %p102
    %p104 = scmp.ne.s32.totalorder %s90, %s91
    %p105 = scmp.eq.s32.totalorder %s15, 1
    %p106 = por %p104, %p105
    %p108 = scmp.ne.s32.totalorder %s91, %s107
    %p109 = scmp.eq.s32.totalorder %s15, 0
    %p110 = por %p108, %p109
    %p111 = scmp.le.s32.totalorder 1, %s9
    %p112 = scmp.lt.s32.totalorder %s9, 3
    %p113 = pnand %p111, %p112
    %p114 = pneg %p113
    // Predicated region
    $region9: #{network_forward.6} parent=5 // pred_check
      _
    $region10: #{network_forward.6} parent=5 // pred_check_branch
      %116 = sbr.rel (%p113) target = $region12
    $region11: #{network_forward.6} parent=5 // pred_region
      %s117 = ssub.s32 %s9, 1
      // Predicated region
      $region13: #{network_forward.6} parent=11 // pred_check
        %p118 = pneg %p56
      $region14: #{network_forward.6} parent=11 // pred_check_branch
        %120 = sbr.rel (%p118) target = $region16
      $region15: #{network_forward.6} parent=11 // pred_region
        _
      $region16: #{network_forward.6} parent=11 // pred_fallthru
        _
      // Predicated region
      $region17: #{network_forward.6} parent=11 // pred_check
        %p121 = pneg %p77
      $region18: #{network_forward.6} parent=11 // pred_check_branch
        %123 = sbr.rel (%p121) target = $region20
      $region19: #{network_forward.6} parent=11 // pred_region
        _
      $region20: #{network_forward.6} parent=11 // pred_fallthru
        _
    $region12: #{network_forward.6} parent=5 // pred_fallthru
      _
    %p124 = scmp.lt.s32.totalorder %s9, 2
    // Predicated region
    $region21: #{network_forward.6} parent=5 // pred_check
      %p125 = pneg %p124
    $region22: #{network_forward.6} parent=5 // pred_check_branch
      %127 = sbr.rel (%p125) target = $region24
    $region23: #{network_forward.6} parent=5 // pred_region
      // Predicated region
      $region25: #{network_forward.6} parent=23 // pred_check
        %p128 = pneg %p29
      $region26: #{network_forward.6} parent=23 // pred_check_branch
        %130 = sbr.rel (%p128) target = $region28
      $region27: #{network_forward.6} parent=23 // pred_region
        %s131 = smul.u32 32, %s9
        %p132 = scmp.lt.s32.totalorder %s131, 63
        %s133 = scalar_select %p132, %s131, 63
        %s134 = smul.addr %s133, 4
        %s135 = smul.addr %s134, 4
        %s136 = scalar_lea.vmem %s0, %s135
        %s137 = smul.u32 32, %s9
      $region28: #{network_forward.6} parent=23 // pred_fallthru
        _
    $region24: #{network_forward.6} parent=5 // pred_fallthru
      _
    %p138 = scmp.le.s32.totalorder 1, %s9
    %p139 = scmp.lt.s32.totalorder %s9, 3
    %p140 = pnand %p138, %p139
    %p141 = pneg %p140
    // Predicated region
    $region29: #{network_forward.6} parent=5 // pred_check
      _
    $region30: #{network_forward.6} parent=5 // pred_check_branch
      %143 = sbr.rel (%p140) target = $region32
    $region31: #{network_forward.6} parent=5 // pred_region
      %s144 = ssub.s32 %s9, 1
      %s145 = smul.u32 32, %s14
      %p146 = scmp.lt.s32.totalorder %s145, 63
      %s147 = scalar_select %p146, %s145, 63
      %s148 = smul.addr %s147, 4
      %s149 = smul.addr %s148, 4
      %s150 = scalar_lea.vmem %s0, %s149
      %p151 = pneg %p35
      %p152 = pneg %p32
      %p153 = pneg %p56
      %p154 = pneg %p53
      %p155 = pneg %p77
      %p156 = pneg %p74
      %p157 = pneg %p103
      %p158 = pneg %p100
      %s159 = smul.u32 32, %s14
      %p160 = scmp.lt.s32.totalorder %s159, 63
      %s161 = scalar_select %p160, %s159, 63
      %s162 = smul.addr %s161, 4
      %s163 = scalar_lea.vmem %s3, %s162
      %s164 = smul.u32 32, %s14
      %p165 = scmp.lt.s32.totalorder %s164, 63
      %s166 = scalar_select %p165, %s164, 63
      %s167 = smul.addr %s166, 4
      %s168 = smul.addr %s167, 4
      %s169 = scalar_lea.vmem %s0, %s168
      %s170 = smul.u32 32, %s14
      %s171 = smul.u32 32, %s14
      %p172 = scmp.lt.s32.totalorder %s171, 63
      %s173 = scalar_select %p172, %s171, 63
      %s174 = smul.addr %s173, 4
      %s175 = scalar_lea.vmem %s3, %s174
      %s176 = smul.u32 32, %s14
      %v178 = vld [vmem:[%s169] sm:$0xff]
      %v179 = vld [vmem:[%s169 + $0x8] sm:$0xff]
      %v180 = vld [vmem:[%s169 + $0x10] sm:$0xff]
      %v181 = vld [vmem:[%s169 + $0x18] sm:$0xff]
      %v182 = vld [vmem:[%s169 + $0x20] sm:$0xff]
      %v183 = vld [vmem:[%s169 + $0x28] sm:$0xff]
      %v184 = vld [vmem:[%s169 + $0x30] sm:$0xff]
      %v185 = vld [vmem:[%s169 + $0x38] sm:$0xff]
      %v186 = vld [vmem:[%s169 + $0x40] sm:$0xff]
      %v187 = vld [vmem:[%s169 + $0x48] sm:$0xff]
      %v188 = vld [vmem:[%s169 + $0x50] sm:$0xff]
      %v189 = vld [vmem:[%s169 + $0x58] sm:$0xff]
      %v190 = vld [vmem:[%s169 + $0x60] sm:$0xff]
      %v191 = vld [vmem:[%s169 + $0x68] sm:$0xff]
      %v192 = vld [vmem:[%s169 + $0x70] sm:$0xff]
      %v193 = vld [vmem:[%s169 + $0x78] sm:$0xff]
      %v194 = vld [vmem:[%s169 + $0x80] sm:$0xff]
      %v195 = vld [vmem:[%s169 + $0x88] sm:$0xff]
      %v196 = vld [vmem:[%s169 + $0x90] sm:$0xff]
      %v197 = vld [vmem:[%s169 + $0x98] sm:$0xff]
      %v198 = vld [vmem:[%s169 + $0xa0] sm:$0xff]
      %v199 = vld [vmem:[%s169 + $0xa8] sm:$0xff]
      %v200 = vld [vmem:[%s169 + $0xb0] sm:$0xff]
      %v201 = vld [vmem:[%s169 + $0xb8] sm:$0xff]
      %v202 = vld [vmem:[%s169 + $0xc0] sm:$0xff]
      %v203 = vld [vmem:[%s169 + $0xc8] sm:$0xff]
      %v204 = vld [vmem:[%s169 + $0xd0] sm:$0xff]
      %v205 = vld [vmem:[%s169 + $0xd8] sm:$0xff]
      %v206 = vld [vmem:[%s169 + $0xe0] sm:$0xff]
      %v207 = vld [vmem:[%s169 + $0xe8] sm:$0xff]
      %v208 = vld [vmem:[%s169 + $0xf0] sm:$0xff]
      %v209 = vld [vmem:[%s169 + $0xf8] sm:$0xff]
      %v210 = vld [vmem:[%s169 + $0x100] sm:$0xff]
      %v211 = vld [vmem:[%s169 + $0x108] sm:$0xff]
      %v212 = vld [vmem:[%s169 + $0x110] sm:$0xff]
      %v213 = vld [vmem:[%s169 + $0x118] sm:$0xff]
      %v214 = vld [vmem:[%s169 + $0x120] sm:$0xff]
      %v215 = vld [vmem:[%s169 + $0x128] sm:$0xff]
      %v216 = vld [vmem:[%s169 + $0x130] sm:$0xff]
      %v217 = vld [vmem:[%s169 + $0x138] sm:$0xff]
      %v218 = vld [vmem:[%s169 + $0x140] sm:$0xff]
      %v219 = vld [vmem:[%s169 + $0x148] sm:$0xff]
      %v220 = vld [vmem:[%s169 + $0x150] sm:$0xff]
      %v221 = vld [vmem:[%s169 + $0x158] sm:$0xff]
      %v222 = vld [vmem:[%s169 + $0x160] sm:$0xff]
      %v223 = vld [vmem:[%s169 + $0x168] sm:$0xff]
      %v224 = vld [vmem:[%s169 + $0x170] sm:$0xff]
      %v225 = vld [vmem:[%s169 + $0x178] sm:$0xff]
      %v226 = vld [vmem:[%s169 + $0x180] sm:$0xff]
      %v227 = vld [vmem:[%s169 + $0x188] sm:$0xff]
      %v228 = vld [vmem:[%s169 + $0x190] sm:$0xff]
      %v229 = vld [vmem:[%s169 + $0x198] sm:$0xff]
      %v230 = vld [vmem:[%s169 + $0x1a0] sm:$0xff]
      %v231 = vld [vmem:[%s169 + $0x1a8] sm:$0xff]
      %v232 = vld [vmem:[%s169 + $0x1b0] sm:$0xff]
      %v233 = vld [vmem:[%s169 + $0x1b8] sm:$0xff]
      %v234 = vld [vmem:[%s169 + $0x1c0] sm:$0xff]
      %v235 = vld [vmem:[%s169 + $0x1c8] sm:$0xff]
      %v236 = vld [vmem:[%s169 + $0x1d0] sm:$0xff]
      %v237 = vld [vmem:[%s169 + $0x1d8] sm:$0xff]
      %v238 = vld [vmem:[%s169 + $0x1e0] sm:$0xff]
      %v239 = vld [vmem:[%s169 + $0x1e8] sm:$0xff]
      %v240 = vld [vmem:[%s169 + $0x1f0] sm:$0xff]
      %v241 = vld [vmem:[%s169 + $0x1f8] sm:$0xff]
      %v242 = vld [vmem:[%s1] sm:$0xf]
      %v243 = vld [vmem:[%s1 + $0x4] sm:$0xf]
      %v244 = vld [vmem:[%s1 + $0x8] sm:$0xf]
      %v245 = vld [vmem:[%s1 + $0xc] sm:$0xf]
      %v246 = vld [vmem:[%s1 + $0x10] sm:$0xf]
      %v247 = vld [vmem:[%s1 + $0x14] sm:$0xf]
      %v248 = vld [vmem:[%s1 + $0x18] sm:$0xf]
      %v249 = vld [vmem:[%s1 + $0x1c] sm:$0xf]
      %v250 = vld [vmem:[%s1 + $0x20] sm:$0xf]
      %v251 = vld [vmem:[%s1 + $0x24] sm:$0xf]
      %v252 = vld [vmem:[%s1 + $0x28] sm:$0xf]
      %v253 = vld [vmem:[%s1 + $0x2c] sm:$0xf]
      %v254 = vld [vmem:[%s1 + $0x30] sm:$0xf]
      %v255 = vld [vmem:[%s1 + $0x34] sm:$0xf]
      %v256 = vld [vmem:[%s1 + $0x38] sm:$0xf]
      %v257 = vld [vmem:[%s1 + $0x3c] sm:$0xf]
      %v258 = vld [vmem:[%s1 + $0x40] sm:$0xf]
      %v259 = vld [vmem:[%s1 + $0x44] sm:$0xf]
      %v260 = vld [vmem:[%s1 + $0x48] sm:$0xf]
      %v261 = vld [vmem:[%s1 + $0x4c] sm:$0xf]
      %v262 = vld [vmem:[%s1 + $0x50] sm:$0xf]
      %v263 = vld [vmem:[%s1 + $0x54] sm:$0xf]
      %v264 = vld [vmem:[%s1 + $0x58] sm:$0xf]
      %v265 = vld [vmem:[%s1 + $0x5c] sm:$0xf]
      %v266 = vld [vmem:[%s1 + $0x60] sm:$0xf]
      %v267 = vld [vmem:[%s1 + $0x64] sm:$0xf]
      %v268 = vld [vmem:[%s1 + $0x68] sm:$0xf]
      %v269 = vld [vmem:[%s1 + $0x6c] sm:$0xf]
      %v270 = vld [vmem:[%s1 + $0x70] sm:$0xf]
      %v271 = vld [vmem:[%s1 + $0x74] sm:$0xf]
      %v272 = vld [vmem:[%s1 + $0x78] sm:$0xf]
      %v273 = vld [vmem:[%s1 + $0x7c] sm:$0xf]
      %v274 = vld [vmem:[%s1 + $0x80] sm:$0xf]
      %v275 = vld [vmem:[%s1 + $0x84] sm:$0xf]
      %v276 = vld [vmem:[%s1 + $0x88] sm:$0xf]
      %v277 = vld [vmem:[%s1 + $0x8c] sm:$0xf]
      %v278 = vld [vmem:[%s1 + $0x90] sm:$0xf]
      %v279 = vld [vmem:[%s1 + $0x94] sm:$0xf]
      %v280 = vld [vmem:[%s1 + $0x98] sm:$0xf]
      %v281 = vld [vmem:[%s1 + $0x9c] sm:$0xf]
      %v282 = vld [vmem:[%s1 + $0xa0] sm:$0xf]
      %v283 = vld [vmem:[%s1 + $0xa4] sm:$0xf]
      %v284 = vld [vmem:[%s1 + $0xa8] sm:$0xf]
      %v285 = vld [vmem:[%s1 + $0xac] sm:$0xf]
      %v286 = vld [vmem:[%s1 + $0xb0] sm:$0xf]
      %v287 = vld [vmem:[%s1 + $0xb4] sm:$0xf]
      %v288 = vld [vmem:[%s1 + $0xb8] sm:$0xf]
      %v289 = vld [vmem:[%s1 + $0xbc] sm:$0xf]
      %v290 = vld [vmem:[%s1 + $0xc0] sm:$0xf]
      %v291 = vld [vmem:[%s1 + $0xc4] sm:$0xf]
      %v292 = vld [vmem:[%s1 + $0xc8] sm:$0xf]
      %v293 = vld [vmem:[%s1 + $0xcc] sm:$0xf]
      %v294 = vld [vmem:[%s1 + $0xd0] sm:$0xf]
      %v295 = vld [vmem:[%s1 + $0xd4] sm:$0xf]
      %v296 = vld [vmem:[%s1 + $0xd8] sm:$0xf]
      %v297 = vld [vmem:[%s1 + $0xdc] sm:$0xf]
      %v298 = vld [vmem:[%s1 + $0xe0] sm:$0xf]
      %v299 = vld [vmem:[%s1 + $0xe4] sm:$0xf]
      %v300 = vld [vmem:[%s1 + $0xe8] sm:$0xf]
      %v301 = vld [vmem:[%s1 + $0xec] sm:$0xf]
      %v302 = vld [vmem:[%s1 + $0xf0] sm:$0xf]
      %v303 = vld [vmem:[%s1 + $0xf4] sm:$0xf]
      %v304 = vld [vmem:[%s1 + $0xf8] sm:$0xf]
      %v305 = vld [vmem:[%s1 + $0xfc] sm:$0xf]
      %v306 = vld [vmem:[%s2] sm:$0x1]
      %v308 = vlaneseq
      %v309 = vshrl.u32 %v308, 7
      %v310 = vsub.s32 0, %v309
      %v311 = vrot.slane %v306, %v310
      %v377 = vunpack.c.l.b16 %v178
      %v378 = vunpack.c.h.b16 %v178
      %v379 = vunpack.c.l.b16 %v179
      %v380 = vunpack.c.h.b16 %v179
      %v381 = vunpack.c.l.b16 %v180
      %v382 = vunpack.c.h.b16 %v180
      %v383 = vunpack.c.l.b16 %v181
      %v384 = vunpack.c.h.b16 %v181
      %v385 = vunpack.c.l.b16 %v182
      %v386 = vunpack.c.h.b16 %v182
      %v387 = vunpack.c.l.b16 %v183
      %v388 = vunpack.c.h.b16 %v183
      %v389 = vunpack.c.l.b16 %v184
      %v390 = vunpack.c.h.b16 %v184
      %v391 = vunpack.c.l.b16 %v185
      %v392 = vunpack.c.h.b16 %v185
      %v393 = vunpack.c.l.b16 %v186
      %v394 = vunpack.c.h.b16 %v186
      %v395 = vunpack.c.l.b16 %v187
      %v396 = vunpack.c.h.b16 %v187
      %v397 = vunpack.c.l.b16 %v188
      %v398 = vunpack.c.h.b16 %v188
      %v399 = vunpack.c.l.b16 %v189
      %v400 = vunpack.c.h.b16 %v189
      %v401 = vunpack.c.l.b16 %v190
      %v402 = vunpack.c.h.b16 %v190
      %v403 = vunpack.c.l.b16 %v191
      %v404 = vunpack.c.h.b16 %v191
      %v405 = vunpack.c.l.b16 %v192
      %v406 = vunpack.c.h.b16 %v192
      %v407 = vunpack.c.l.b16 %v193
      %v408 = vunpack.c.h.b16 %v193
      %v409 = vunpack.c.l.b16 %v194
      %v410 = vunpack.c.h.b16 %v194
      %v411 = vunpack.c.l.b16 %v195
      %v412 = vunpack.c.h.b16 %v195
      %v413 = vunpack.c.l.b16 %v196
      %v414 = vunpack.c.h.b16 %v196
      %v415 = vunpack.c.l.b16 %v197
      %v416 = vunpack.c.h.b16 %v197
      %v417 = vunpack.c.l.b16 %v198
      %v418 = vunpack.c.h.b16 %v198
      %v419 = vunpack.c.l.b16 %v199
      %v420 = vunpack.c.h.b16 %v199
      %v421 = vunpack.c.l.b16 %v200
      %v422 = vunpack.c.h.b16 %v200
      %v423 = vunpack.c.l.b16 %v201
      %v424 = vunpack.c.h.b16 %v201
      %v425 = vunpack.c.l.b16 %v202
      %v426 = vunpack.c.h.b16 %v202
      %v427 = vunpack.c.l.b16 %v203
      %v428 = vunpack.c.h.b16 %v203
      %v429 = vunpack.c.l.b16 %v204
      %v430 = vunpack.c.h.b16 %v204
      %v431 = vunpack.c.l.b16 %v205
      %v432 = vunpack.c.h.b16 %v205
      %v433 = vunpack.c.l.b16 %v206
      %v434 = vunpack.c.h.b16 %v206
      %v435 = vunpack.c.l.b16 %v207
      %v436 = vunpack.c.h.b16 %v207
      %v437 = vunpack.c.l.b16 %v208
      %v438 = vunpack.c.h.b16 %v208
      %v439 = vunpack.c.l.b16 %v209
      %v440 = vunpack.c.h.b16 %v209
      %v441 = vunpack.c.l.b16 %v210
      %v442 = vunpack.c.h.b16 %v210
      %v443 = vunpack.c.l.b16 %v211
      %v444 = vunpack.c.h.b16 %v211
      %v445 = vunpack.c.l.b16 %v212
      %v446 = vunpack.c.h.b16 %v212
      %v447 = vunpack.c.l.b16 %v213
      %v448 = vunpack.c.h.b16 %v213
      %v449 = vunpack.c.l.b16 %v214
      %v450 = vunpack.c.h.b16 %v214
      %v451 = vunpack.c.l.b16 %v215
      %v452 = vunpack.c.h.b16 %v215
      %v453 = vunpack.c.l.b16 %v216
      %v454 = vunpack.c.h.b16 %v216
      %v455 = vunpack.c.l.b16 %v217
      %v456 = vunpack.c.h.b16 %v217
      %v457 = vunpack.c.l.b16 %v218
      %v458 = vunpack.c.h.b16 %v218
      %v459 = vunpack.c.l.b16 %v219
      %v460 = vunpack.c.h.b16 %v219
      %v461 = vunpack.c.l.b16 %v220
      %v462 = vunpack.c.h.b16 %v220
      %v463 = vunpack.c.l.b16 %v221
      %v464 = vunpack.c.h.b16 %v221
      %v465 = vunpack.c.l.b16 %v222
      %v466 = vunpack.c.h.b16 %v222
      %v467 = vunpack.c.l.b16 %v223
      %v468 = vunpack.c.h.b16 %v223
      %v469 = vunpack.c.l.b16 %v224
      %v470 = vunpack.c.h.b16 %v224
      %v471 = vunpack.c.l.b16 %v225
      %v472 = vunpack.c.h.b16 %v225
      %v473 = vunpack.c.l.b16 %v226
      %v474 = vunpack.c.h.b16 %v226
      %v475 = vunpack.c.l.b16 %v227
      %v476 = vunpack.c.h.b16 %v227
      %v477 = vunpack.c.l.b16 %v228
      %v478 = vunpack.c.h.b16 %v228
      %v479 = vunpack.c.l.b16 %v229
      %v480 = vunpack.c.h.b16 %v229
      %v481 = vunpack.c.l.b16 %v230
      %v482 = vunpack.c.h.b16 %v230
      %v483 = vunpack.c.l.b16 %v231
      %v484 = vunpack.c.h.b16 %v231
      %v485 = vunpack.c.l.b16 %v232
      %v486 = vunpack.c.h.b16 %v232
      %v487 = vunpack.c.l.b16 %v233
      %v488 = vunpack.c.h.b16 %v233
      %v489 = vunpack.c.l.b16 %v234
      %v490 = vunpack.c.h.b16 %v234
      %v491 = vunpack.c.l.b16 %v235
      %v492 = vunpack.c.h.b16 %v235
      %v493 = vunpack.c.l.b16 %v236
      %v494 = vunpack.c.h.b16 %v236
      %v495 = vunpack.c.l.b16 %v237
      %v496 = vunpack.c.h.b16 %v237
      %v497 = vunpack.c.l.b16 %v238
      %v498 = vunpack.c.h.b16 %v238
      %v499 = vunpack.c.l.b16 %v239
      %v500 = vunpack.c.h.b16 %v239
      %v501 = vunpack.c.l.b16 %v240
      %v502 = vunpack.c.h.b16 %v240
      %v503 = vunpack.c.l.b16 %v241
      %v504 = vunpack.c.h.b16 %v241
      %v505 = vpack.c.b16 %v381, %v377
      %v506 = vpack.c.b16 %v382, %v378
      %v507 = vpack.c.b16 %v383, %v379
      %v508 = vpack.c.b16 %v384, %v380
      %v509 = vpack.c.b16 %v389, %v385
      %v510 = vpack.c.b16 %v390, %v386
      %v511 = vpack.c.b16 %v391, %v387
      %v512 = vpack.c.b16 %v392, %v388
      %v513 = vpack.c.b16 %v397, %v393
      %v514 = vpack.c.b16 %v398, %v394
      %v515 = vpack.c.b16 %v399, %v395
      %v516 = vpack.c.b16 %v400, %v396
      %v517 = vpack.c.b16 %v405, %v401
      %v518 = vpack.c.b16 %v406, %v402
      %v519 = vpack.c.b16 %v407, %v403
      %v520 = vpack.c.b16 %v408, %v404
      %v521 = vpack.c.b16 %v413, %v409
      %v522 = vpack.c.b16 %v414, %v410
      %v523 = vpack.c.b16 %v415, %v411
      %v524 = vpack.c.b16 %v416, %v412
      %v525 = vpack.c.b16 %v421, %v417
      %v526 = vpack.c.b16 %v422, %v418
      %v527 = vpack.c.b16 %v423, %v419
      %v528 = vpack.c.b16 %v424, %v420
      %v529 = vpack.c.b16 %v429, %v425
      %v530 = vpack.c.b16 %v430, %v426
      %v531 = vpack.c.b16 %v431, %v427
      %v532 = vpack.c.b16 %v432, %v428
      %v533 = vpack.c.b16 %v437, %v433
      %v534 = vpack.c.b16 %v438, %v434
      %v535 = vpack.c.b16 %v439, %v435
      %v536 = vpack.c.b16 %v440, %v436
      %v537 = vpack.c.b16 %v445, %v441
      %v538 = vpack.c.b16 %v446, %v442
      %v539 = vpack.c.b16 %v447, %v443
      %v540 = vpack.c.b16 %v448, %v444
      %v541 = vpack.c.b16 %v453, %v449
      %v542 = vpack.c.b16 %v454, %v450
      %v543 = vpack.c.b16 %v455, %v451
      %v544 = vpack.c.b16 %v456, %v452
      %v545 = vpack.c.b16 %v461, %v457
      %v546 = vpack.c.b16 %v462, %v458
      %v547 = vpack.c.b16 %v463, %v459
      %v548 = vpack.c.b16 %v464, %v460
      %v549 = vpack.c.b16 %v469, %v465
      %v550 = vpack.c.b16 %v470, %v466
      %v551 = vpack.c.b16 %v471, %v467
      %v552 = vpack.c.b16 %v472, %v468
      %v553 = vpack.c.b16 %v477, %v473
      %v554 = vpack.c.b16 %v478, %v474
      %v555 = vpack.c.b16 %v479, %v475
      %v556 = vpack.c.b16 %v480, %v476
      %v557 = vpack.c.b16 %v485, %v481
      %v558 = vpack.c.b16 %v486, %v482
      %v559 = vpack.c.b16 %v487, %v483
      %v560 = vpack.c.b16 %v488, %v484
      %v561 = vpack.c.b16 %v493, %v489
      %v562 = vpack.c.b16 %v494, %v490
      %v563 = vpack.c.b16 %v495, %v491
      %v564 = vpack.c.b16 %v496, %v492
      %v565 = vpack.c.b16 %v501, %v497
      %v566 = vpack.c.b16 %v502, %v498
      %v567 = vpack.c.b16 %v503, %v499
      %v568 = vpack.c.b16 %v504, %v500
      %v697 = vunpack.c.l.b16 %v242
      %v698 = vunpack.c.l.b16 %v243
      %v699 = vunpack.c.l.b16 %v244
      %v700 = vunpack.c.l.b16 %v245
      %v701 = vunpack.c.l.b16 %v246
      %v702 = vunpack.c.l.b16 %v247
      %v703 = vunpack.c.l.b16 %v248
      %v704 = vunpack.c.l.b16 %v249
      %v705 = vunpack.c.l.b16 %v250
      %v706 = vunpack.c.l.b16 %v251
      %v707 = vunpack.c.l.b16 %v252
      %v708 = vunpack.c.l.b16 %v253
      %v709 = vunpack.c.l.b16 %v254
      %v710 = vunpack.c.l.b16 %v255
      %v711 = vunpack.c.l.b16 %v256
      %v712 = vunpack.c.l.b16 %v257
      %v713 = vunpack.c.l.b16 %v258
      %v714 = vunpack.c.l.b16 %v259
      %v715 = vunpack.c.l.b16 %v260
      %v716 = vunpack.c.l.b16 %v261
      %v717 = vunpack.c.l.b16 %v262
      %v718 = vunpack.c.l.b16 %v263
      %v719 = vunpack.c.l.b16 %v264
      %v720 = vunpack.c.l.b16 %v265
      %v721 = vunpack.c.l.b16 %v266
      %v722 = vunpack.c.l.b16 %v267
      %v723 = vunpack.c.l.b16 %v268
      %v724 = vunpack.c.l.b16 %v269
      %v725 = vunpack.c.l.b16 %v270
      %v726 = vunpack.c.l.b16 %v271
      %v727 = vunpack.c.l.b16 %v272
      %v728 = vunpack.c.l.b16 %v273
      %v729 = vunpack.c.l.b16 %v274
      %v730 = vunpack.c.l.b16 %v275
      %v731 = vunpack.c.l.b16 %v276
      %v732 = vunpack.c.l.b16 %v277
      %v733 = vunpack.c.l.b16 %v278
      %v734 = vunpack.c.l.b16 %v279
      %v735 = vunpack.c.l.b16 %v280
      %v736 = vunpack.c.l.b16 %v281
      %v737 = vunpack.c.l.b16 %v282
      %v738 = vunpack.c.l.b16 %v283
      %v739 = vunpack.c.l.b16 %v284
      %v740 = vunpack.c.l.b16 %v285
      %v741 = vunpack.c.l.b16 %v286
      %v742 = vunpack.c.l.b16 %v287
      %v743 = vunpack.c.l.b16 %v288
      %v744 = vunpack.c.l.b16 %v289
      %v745 = vunpack.c.l.b16 %v290
      %v746 = vunpack.c.l.b16 %v291
      %v747 = vunpack.c.l.b16 %v292
      %v748 = vunpack.c.l.b16 %v293
      %v749 = vunpack.c.l.b16 %v294
      %v750 = vunpack.c.l.b16 %v295
      %v751 = vunpack.c.l.b16 %v296
      %v752 = vunpack.c.l.b16 %v297
      %v753 = vunpack.c.l.b16 %v298
      %v754 = vunpack.c.l.b16 %v299
      %v755 = vunpack.c.l.b16 %v300
      %v756 = vunpack.c.l.b16 %v301
      %v757 = vunpack.c.l.b16 %v302
      %v758 = vunpack.c.l.b16 %v303
      %v759 = vunpack.c.l.b16 %v304
      %v760 = vunpack.c.l.b16 %v305
      %v761 = vpack.c.b16 %v698, %v697
      %v762 = vpack.c.b16 %v700, %v699
      %v763 = vpack.c.b16 %v702, %v701
      %v764 = vpack.c.b16 %v704, %v703
      %v765 = vpack.c.b16 %v706, %v705
      %v766 = vpack.c.b16 %v708, %v707
      %v767 = vpack.c.b16 %v710, %v709
      %v768 = vpack.c.b16 %v712, %v711
      %v769 = vpack.c.b16 %v714, %v713
      %v770 = vpack.c.b16 %v716, %v715
      %v771 = vpack.c.b16 %v718, %v717
      %v772 = vpack.c.b16 %v720, %v719
      %v773 = vpack.c.b16 %v722, %v721
      %v774 = vpack.c.b16 %v724, %v723
      %v775 = vpack.c.b16 %v726, %v725
      %v776 = vpack.c.b16 %v728, %v727
      %v777 = vpack.c.b16 %v730, %v729
      %v778 = vpack.c.b16 %v732, %v731
      %v779 = vpack.c.b16 %v734, %v733
      %v780 = vpack.c.b16 %v736, %v735
      %v781 = vpack.c.b16 %v738, %v737
      %v782 = vpack.c.b16 %v740, %v739
      %v783 = vpack.c.b16 %v742, %v741
      %v784 = vpack.c.b16 %v744, %v743
      %v785 = vpack.c.b16 %v746, %v745
      %v786 = vpack.c.b16 %v748, %v747
      %v787 = vpack.c.b16 %v750, %v749
      %v788 = vpack.c.b16 %v752, %v751
      %v789 = vpack.c.b16 %v754, %v753
      %v790 = vpack.c.b16 %v756, %v755
      %v791 = vpack.c.b16 %v758, %v757
      %v792 = vpack.c.b16 %v760, %v759
      %825 = vmatprep.subr.bf16.mxu0 0
      %826 = vmatpush1.bf16.msra.mxu0 %v768
      %827 = vmatprep.subr.bf16.mxu0 0
      %828 = vmatpush1.bf16.msra.mxu0 %v767
      %829 = vmatprep.subr.bf16.mxu0 0
      %830 = vmatpush1.bf16.msra.mxu0 %v766
      %831 = vmatprep.subr.bf16.mxu0 0
      %832 = vmatpush1.bf16.msra.mxu0 %v765
      %833 = vmatprep.subr.bf16.mxu0 0
      %834 = vmatpush1.bf16.msra.mxu0 %v764
      %835 = vmatprep.subr.bf16.mxu0 0
      %836 = vmatpush1.bf16.msra.mxu0 %v763
      %837 = vmatprep.subr.bf16.mxu0 0
      %838 = vmatpush1.bf16.msra.mxu0 %v762
      %839 = vmatprep.subr.bf16.mxu0 0
      %840 = vmatpush1.bf16.msra.mxu0 %v761
      %841 = vmatprep.subr.bf16.mxu0 0
      %842 = vmatpush2.bf16.msra.mxu0 %v776
      %843 = vmatprep.subr.bf16.mxu0 0
      %844 = vmatpush2.bf16.msra.mxu0 %v775
      %845 = vmatprep.subr.bf16.mxu0 0
      %846 = vmatpush2.bf16.msra.mxu0 %v774
      %847 = vmatprep.subr.bf16.mxu0 0
      %848 = vmatpush2.bf16.msra.mxu0 %v773
      %849 = vmatprep.subr.bf16.mxu0 0
      %850 = vmatpush2.bf16.msra.mxu0 %v772
      %851 = vmatprep.subr.bf16.mxu0 0
      %852 = vmatpush2.bf16.msra.mxu0 %v771
      %853 = vmatprep.subr.bf16.mxu0 0
      %854 = vmatpush2.bf16.msra.mxu0 %v770
      %855 = vmatprep.subr.bf16.mxu0 0
      %856 = vmatpush2.bf16.msra.mxu0 %v769
      %857 = vmatprep.mubr.bf16.mxu0 %v506
      %858 = vmatmul.mubr.bf16.gmra.mxu0 %v505
      %v859 = vpop.f32.mrf.mxu0
      %v860 = vadd.f32 %v311, %v859
      %v861 = vpop.f32.mrf.mxu0
      %v862 = vpop.f32.mrf.mxu0
      %v863 = vadd.f32 %v311, %v862
      %v864 = vpop.f32.mrf.mxu0
      %865 = vmatprep.mubr.bf16.mxu0 %v510
      %866 = vmatmul.mubr.bf16.gmra.mxu0 %v509
      %v867 = vpop.f32.mrf.mxu0
      %v868 = vadd.f32 %v311, %v867
      %v869 = vpop.f32.mrf.mxu0
      %v870 = vpop.f32.mrf.mxu0
      %v871 = vadd.f32 %v311, %v870
      %v872 = vpop.f32.mrf.mxu0
      %873 = vmatprep.mubr.bf16.mxu0 %v514
      %874 = vmatmul.mubr.bf16.gmra.mxu0 %v513
      %v875 = vpop.f32.mrf.mxu0
      %v876 = vadd.f32 %v311, %v875
      %v877 = vpop.f32.mrf.mxu0
      %v878 = vpop.f32.mrf.mxu0
      %v879 = vadd.f32 %v311, %v878
      %v880 = vpop.f32.mrf.mxu0
      %881 = vmatprep.mubr.bf16.mxu0 %v518
      %882 = vmatmul.mubr.bf16.gmra.mxu0 %v517
      %v883 = vpop.f32.mrf.mxu0
      %v884 = vadd.f32 %v311, %v883
      %v885 = vpop.f32.mrf.mxu0
      %v886 = vpop.f32.mrf.mxu0
      %v887 = vadd.f32 %v311, %v886
      %v888 = vpop.f32.mrf.mxu0
      %889 = vmatprep.mubr.bf16.mxu0 %v522
      %890 = vmatmul.mubr.bf16.gmra.mxu0 %v521
      %v891 = vpop.f32.mrf.mxu0
      %v892 = vadd.f32 %v311, %v891
      %v893 = vpop.f32.mrf.mxu0
      %v894 = vpop.f32.mrf.mxu0
      %v895 = vadd.f32 %v311, %v894
      %v896 = vpop.f32.mrf.mxu0
      %897 = vmatprep.mubr.bf16.mxu0 %v526
      %898 = vmatmul.mubr.bf16.gmra.mxu0 %v525
      %v899 = vpop.f32.mrf.mxu0
      %v900 = vadd.f32 %v311, %v899
      %v901 = vpop.f32.mrf.mxu0
      %v902 = vpop.f32.mrf.mxu0
      %v903 = vadd.f32 %v311, %v902
      %v904 = vpop.f32.mrf.mxu0
      %905 = vmatprep.mubr.bf16.mxu0 %v530
      %906 = vmatmul.mubr.bf16.gmra.mxu0 %v529
      %v907 = vpop.f32.mrf.mxu0
      %v908 = vadd.f32 %v311, %v907
      %v909 = vpop.f32.mrf.mxu0
      %v910 = vpop.f32.mrf.mxu0
      %v911 = vadd.f32 %v311, %v910
      %v912 = vpop.f32.mrf.mxu0
      %913 = vmatprep.mubr.bf16.mxu0 %v534
      %914 = vmatmul.mubr.bf16.gmra.mxu0 %v533
      %v915 = vpop.f32.mrf.mxu0
      %v916 = vadd.f32 %v311, %v915
      %v917 = vpop.f32.mrf.mxu0
      %v918 = vpop.f32.mrf.mxu0
      %v919 = vadd.f32 %v311, %v918
      %v920 = vpop.f32.mrf.mxu0
      %921 = vmatprep.mubr.bf16.mxu0 %v538
      %922 = vmatmul.mubr.bf16.gmra.mxu0 %v537
      %v923 = vpop.f32.mrf.mxu0
      %v924 = vadd.f32 %v311, %v923
      %v925 = vpop.f32.mrf.mxu0
      %v926 = vpop.f32.mrf.mxu0
      %v927 = vadd.f32 %v311, %v926
      %v928 = vpop.f32.mrf.mxu0
      %929 = vmatprep.mubr.bf16.mxu0 %v542
      %930 = vmatmul.mubr.bf16.gmra.mxu0 %v541
      %v931 = vpop.f32.mrf.mxu0
      %v932 = vadd.f32 %v311, %v931
      %v933 = vpop.f32.mrf.mxu0
      %v934 = vpop.f32.mrf.mxu0
      %v935 = vadd.f32 %v311, %v934
      %v936 = vpop.f32.mrf.mxu0
      %937 = vmatprep.mubr.bf16.mxu0 %v546
      %938 = vmatmul.mubr.bf16.gmra.mxu0 %v545
      %v939 = vpop.f32.mrf.mxu0
      %v940 = vadd.f32 %v311, %v939
      %v941 = vpop.f32.mrf.mxu0
      %v942 = vpop.f32.mrf.mxu0
      %v943 = vadd.f32 %v311, %v942
      %v944 = vpop.f32.mrf.mxu0
      %945 = vmatprep.mubr.bf16.mxu0 %v550
      %946 = vmatmul.mubr.bf16.gmra.mxu0 %v549
      %v947 = vpop.f32.mrf.mxu0
      %v948 = vadd.f32 %v311, %v947
      %v949 = vpop.f32.mrf.mxu0
      %v950 = vpop.f32.mrf.mxu0
      %v951 = vadd.f32 %v311, %v950
      %v952 = vpop.f32.mrf.mxu0
      %953 = vmatprep.mubr.bf16.mxu0 %v554
      %954 = vmatmul.mubr.bf16.gmra.mxu0 %v553
      %v955 = vpop.f32.mrf.mxu0
      %v956 = vadd.f32 %v311, %v955
      %v957 = vpop.f32.mrf.mxu0
      %v958 = vpop.f32.mrf.mxu0
      %v959 = vadd.f32 %v311, %v958
      %v960 = vpop.f32.mrf.mxu0
      %961 = vmatprep.mubr.bf16.mxu0 %v558
      %962 = vmatmul.mubr.bf16.gmra.mxu0 %v557
      %v963 = vpop.f32.mrf.mxu0
      %v964 = vadd.f32 %v311, %v963
      %v965 = vpop.f32.mrf.mxu0
      %v966 = vpop.f32.mrf.mxu0
      %v967 = vadd.f32 %v311, %v966
      %v968 = vpop.f32.mrf.mxu0
      %969 = vmatprep.mubr.bf16.mxu0 %v562
      %970 = vmatmul.mubr.bf16.gmra.mxu0 %v561
      %v971 = vpop.f32.mrf.mxu0
      %v972 = vadd.f32 %v311, %v971
      %v973 = vpop.f32.mrf.mxu0
      %v974 = vpop.f32.mrf.mxu0
      %v975 = vadd.f32 %v311, %v974
      %v976 = vpop.f32.mrf.mxu0
      %977 = vmatprep.mubr.bf16.mxu0 %v566
      %978 = vmatmul.mubr.bf16.gmra.mxu0 %v565
      %v979 = vpop.f32.mrf.mxu0
      %v980 = vadd.f32 %v311, %v979
      %v981 = vpop.f32.mrf.mxu0
      %v982 = vpop.f32.mrf.mxu0
      %v983 = vadd.f32 %v311, %v982
      %v984 = vpop.f32.mrf.mxu0
      %985 = vdwg.mxu0
      %986 = vmatprep.subr.bf16.mxu0 0
      %987 = vmatpush1.bf16.msra.mxu0 %v784
      %988 = vmatprep.subr.bf16.mxu0 0
      %989 = vmatpush1.bf16.msra.mxu0 %v783
      %990 = vmatprep.subr.bf16.mxu0 0
      %991 = vmatpush1.bf16.msra.mxu0 %v782
      %992 = vmatprep.subr.bf16.mxu0 0
      %993 = vmatpush1.bf16.msra.mxu0 %v781
      %994 = vmatprep.subr.bf16.mxu0 0
      %995 = vmatpush1.bf16.msra.mxu0 %v780
      %996 = vmatprep.subr.bf16.mxu0 0
      %997 = vmatpush1.bf16.msra.mxu0 %v779
      %998 = vmatprep.subr.bf16.mxu0 0
      %999 = vmatpush1.bf16.msra.mxu0 %v778
      %1000 = vmatprep.subr.bf16.mxu0 0
      %1001 = vmatpush1.bf16.msra.mxu0 %v777
      %1002 = vmatprep.subr.bf16.mxu0 0
      %1003 = vmatpush2.bf16.msra.mxu0 %v792
      %1004 = vmatprep.subr.bf16.mxu0 0
      %1005 = vmatpush2.bf16.msra.mxu0 %v791
      %1006 = vmatprep.subr.bf16.mxu0 0
      %1007 = vmatpush2.bf16.msra.mxu0 %v790
      %1008 = vmatprep.subr.bf16.mxu0 0
      %1009 = vmatpush2.bf16.msra.mxu0 %v789
      %1010 = vmatprep.subr.bf16.mxu0 0
      %1011 = vmatpush2.bf16.msra.mxu0 %v788
      %1012 = vmatprep.subr.bf16.mxu0 0
      %1013 = vmatpush2.bf16.msra.mxu0 %v787
      %1014 = vmatprep.subr.bf16.mxu0 0
      %1015 = vmatpush2.bf16.msra.mxu0 %v786
      %1016 = vmatprep.subr.bf16.mxu0 0
      %1017 = vmatpush2.bf16.msra.mxu0 %v785
      %1018 = vmatprep.mubr.bf16.mxu0 %v508
      %1019 = vmatmul.mubr.bf16.gmra.mxu0 %v507
      %v1020 = vpop.f32.mrf.mxu0
      %v1021 = vadd.f32 %v860, %v1020
      %v1022 = vpop.f32.mrf.mxu0
      %v1023 = vpop.f32.mrf.mxu0
      %v1024 = vadd.f32 %v863, %v1023
      %v1025 = vpop.f32.mrf.mxu0
      %1026 = vmatprep.mubr.bf16.mxu0 %v512
      %1027 = vmatmul.mubr.bf16.gmra.mxu0 %v511
      %v1028 = vpop.f32.mrf.mxu0
      %v1029 = vadd.f32 %v868, %v1028
      %v1030 = vpop.f32.mrf.mxu0
      %v1031 = vpop.f32.mrf.mxu0
      %v1032 = vadd.f32 %v871, %v1031
      %v1033 = vpop.f32.mrf.mxu0
      %1034 = vmatprep.mubr.bf16.mxu0 %v516
      %1035 = vmatmul.mubr.bf16.gmra.mxu0 %v515
      %v1036 = vpop.f32.mrf.mxu0
      %v1037 = vadd.f32 %v876, %v1036
      %v1038 = vpop.f32.mrf.mxu0
      %v1039 = vpop.f32.mrf.mxu0
      %v1040 = vadd.f32 %v879, %v1039
      %v1041 = vpop.f32.mrf.mxu0
      %1042 = vmatprep.mubr.bf16.mxu0 %v520
      %1043 = vmatmul.mubr.bf16.gmra.mxu0 %v519
      %v1044 = vpop.f32.mrf.mxu0
      %v1045 = vadd.f32 %v884, %v1044
      %v1046 = vpop.f32.mrf.mxu0
      %v1047 = vpop.f32.mrf.mxu0
      %v1048 = vadd.f32 %v887, %v1047
      %v1049 = vpop.f32.mrf.mxu0
      %1050 = vmatprep.mubr.bf16.mxu0 %v524
      %1051 = vmatmul.mubr.bf16.gmra.mxu0 %v523
      %v1052 = vpop.f32.mrf.mxu0
      %v1053 = vadd.f32 %v892, %v1052
      %v1054 = vpop.f32.mrf.mxu0
      %v1055 = vpop.f32.mrf.mxu0
      %v1056 = vadd.f32 %v895, %v1055
      %v1057 = vpop.f32.mrf.mxu0
      %1058 = vmatprep.mubr.bf16.mxu0 %v528
      %1059 = vmatmul.mubr.bf16.gmra.mxu0 %v527
      %v1060 = vpop.f32.mrf.mxu0
      %v1061 = vadd.f32 %v900, %v1060
      %v1062 = vpop.f32.mrf.mxu0
      %v1063 = vpop.f32.mrf.mxu0
      %v1064 = vadd.f32 %v903, %v1063
      %v1065 = vpop.f32.mrf.mxu0
      %1066 = vmatprep.mubr.bf16.mxu0 %v532
      %1067 = vmatmul.mubr.bf16.gmra.mxu0 %v531
      %v1068 = vpop.f32.mrf.mxu0
      %v1069 = vadd.f32 %v908, %v1068
      %v1070 = vpop.f32.mrf.mxu0
      %v1071 = vpop.f32.mrf.mxu0
      %v1072 = vadd.f32 %v911, %v1071
      %v1073 = vpop.f32.mrf.mxu0
      %1074 = vmatprep.mubr.bf16.mxu0 %v536
      %1075 = vmatmul.mubr.bf16.gmra.mxu0 %v535
      %v1076 = vpop.f32.mrf.mxu0
      %v1077 = vadd.f32 %v916, %v1076
      %v1078 = vpop.f32.mrf.mxu0
      %v1079 = vpop.f32.mrf.mxu0
      %v1080 = vadd.f32 %v919, %v1079
      %v1081 = vpop.f32.mrf.mxu0
      %1082 = vmatprep.mubr.bf16.mxu0 %v540
      %1083 = vmatmul.mubr.bf16.gmra.mxu0 %v539
      %v1084 = vpop.f32.mrf.mxu0
      %v1085 = vadd.f32 %v924, %v1084
      %v1086 = vpop.f32.mrf.mxu0
      %v1087 = vpop.f32.mrf.mxu0
      %v1088 = vadd.f32 %v927, %v1087
      %v1089 = vpop.f32.mrf.mxu0
      %1090 = vmatprep.mubr.bf16.mxu0 %v544
      %1091 = vmatmul.mubr.bf16.gmra.mxu0 %v543
      %v1092 = vpop.f32.mrf.mxu0
      %v1093 = vadd.f32 %v932, %v1092
      %v1094 = vpop.f32.mrf.mxu0
      %v1095 = vpop.f32.mrf.mxu0
      %v1096 = vadd.f32 %v935, %v1095
      %v1097 = vpop.f32.mrf.mxu0
      %1098 = vmatprep.mubr.bf16.mxu0 %v548
      %1099 = vmatmul.mubr.bf16.gmra.mxu0 %v547
      %v1100 = vpop.f32.mrf.mxu0
      %v1101 = vadd.f32 %v940, %v1100
      %v1102 = vpop.f32.mrf.mxu0
      %v1103 = vpop.f32.mrf.mxu0
      %v1104 = vadd.f32 %v943, %v1103
      %v1105 = vpop.f32.mrf.mxu0
      %1106 = vmatprep.mubr.bf16.mxu0 %v552
      %1107 = vmatmul.mubr.bf16.gmra.mxu0 %v551
      %v1108 = vpop.f32.mrf.mxu0
      %v1109 = vadd.f32 %v948, %v1108
      %v1110 = vpop.f32.mrf.mxu0
      %v1111 = vpop.f32.mrf.mxu0
      %v1112 = vadd.f32 %v951, %v1111
      %v1113 = vpop.f32.mrf.mxu0
      %1114 = vmatprep.mubr.bf16.mxu0 %v556
      %1115 = vmatmul.mubr.bf16.gmra.mxu0 %v555
      %v1116 = vpop.f32.mrf.mxu0
      %v1117 = vadd.f32 %v956, %v1116
      %v1118 = vpop.f32.mrf.mxu0
      %v1119 = vpop.f32.mrf.mxu0
      %v1120 = vadd.f32 %v959, %v1119
      %v1121 = vpop.f32.mrf.mxu0
      %1122 = vmatprep.mubr.bf16.mxu0 %v560
      %1123 = vmatmul.mubr.bf16.gmra.mxu0 %v559
      %v1124 = vpop.f32.mrf.mxu0
      %v1125 = vadd.f32 %v964, %v1124
      %v1126 = vpop.f32.mrf.mxu0
      %v1127 = vpop.f32.mrf.mxu0
      %v1128 = vadd.f32 %v967, %v1127
      %v1129 = vpop.f32.mrf.mxu0
      %1130 = vmatprep.mubr.bf16.mxu0 %v564
      %1131 = vmatmul.mubr.bf16.gmra.mxu0 %v563
      %v1132 = vpop.f32.mrf.mxu0
      %v1133 = vadd.f32 %v972, %v1132
      %v1134 = vpop.f32.mrf.mxu0
      %v1135 = vpop.f32.mrf.mxu0
      %v1136 = vadd.f32 %v975, %v1135
      %v1137 = vpop.f32.mrf.mxu0
      %1138 = vmatprep.mubr.bf16.mxu0 %v568
      %1139 = vmatmul.mubr.bf16.gmra.mxu0 %v567
      %v1140 = vpop.f32.mrf.mxu0
      %v1141 = vadd.f32 %v980, %v1140
      %v1142 = vpop.f32.mrf.mxu0
      %v1143 = vpop.f32.mrf.mxu0
      %v1144 = vadd.f32 %v983, %v1143
      %v1145 = vpop.f32.mrf.mxu0
      %1146 = vdwg.mxu0
      %v1147 = vmax.f32 %v1021, 0.0
      %v1148 = vmax.f32 %v1024, 0.0
      %v1149 = vmax.f32 %v1029, 0.0
      %v1150 = vmax.f32 %v1032, 0.0
      %v1151 = vmax.f32 %v1037, 0.0
      %v1152 = vmax.f32 %v1040, 0.0
      %v1153 = vmax.f32 %v1045, 0.0
      %v1154 = vmax.f32 %v1048, 0.0
      %v1155 = vmax.f32 %v1053, 0.0
      %v1156 = vmax.f32 %v1056, 0.0
      %v1157 = vmax.f32 %v1061, 0.0
      %v1158 = vmax.f32 %v1064, 0.0
      %v1159 = vmax.f32 %v1069, 0.0
      %v1160 = vmax.f32 %v1072, 0.0
      %v1161 = vmax.f32 %v1077, 0.0
      %v1162 = vmax.f32 %v1080, 0.0
      %v1163 = vmax.f32 %v1085, 0.0
      %v1164 = vmax.f32 %v1088, 0.0
      %v1165 = vmax.f32 %v1093, 0.0
      %v1166 = vmax.f32 %v1096, 0.0
      %v1167 = vmax.f32 %v1101, 0.0
      %v1168 = vmax.f32 %v1104, 0.0
      %v1169 = vmax.f32 %v1109, 0.0
      %v1170 = vmax.f32 %v1112, 0.0
      %v1171 = vmax.f32 %v1117, 0.0
      %v1172 = vmax.f32 %v1120, 0.0
      %v1173 = vmax.f32 %v1125, 0.0
      %v1174 = vmax.f32 %v1128, 0.0
      %v1175 = vmax.f32 %v1133, 0.0
      %v1176 = vmax.f32 %v1136, 0.0
      %v1177 = vmax.f32 %v1141, 0.0
      %v1178 = vmax.f32 %v1144, 0.0
      %v1179 = vpack.c.bf16 %v1148, %v1147
      %v1180 = vpack.c.bf16 %v1150, %v1149
      %v1181 = vpack.c.bf16 %v1152, %v1151
      %v1182 = vpack.c.bf16 %v1154, %v1153
      %v1183 = vpack.c.bf16 %v1156, %v1155
      %v1184 = vpack.c.bf16 %v1158, %v1157
      %v1185 = vpack.c.bf16 %v1160, %v1159
      %v1186 = vpack.c.bf16 %v1162, %v1161
      %v1187 = vpack.c.bf16 %v1164, %v1163
      %v1188 = vpack.c.bf16 %v1166, %v1165
      %v1189 = vpack.c.bf16 %v1168, %v1167
      %v1190 = vpack.c.bf16 %v1170, %v1169
      %v1191 = vpack.c.bf16 %v1172, %v1171
      %v1192 = vpack.c.bf16 %v1174, %v1173
      %v1193 = vpack.c.bf16 %v1176, %v1175
      %v1194 = vpack.c.bf16 %v1178, %v1177
      %v1211 = vunpack.c.l.b16 %v1179
      %v1212 = vunpack.c.h.b16 %v1179
      %v1213 = vunpack.c.l.b16 %v1180
      %v1214 = vunpack.c.h.b16 %v1180
      %v1215 = vunpack.c.l.b16 %v1181
      %v1216 = vunpack.c.h.b16 %v1181
      %v1217 = vunpack.c.l.b16 %v1182
      %v1218 = vunpack.c.h.b16 %v1182
      %v1219 = vunpack.c.l.b16 %v1183
      %v1220 = vunpack.c.h.b16 %v1183
      %v1221 = vunpack.c.l.b16 %v1184
      %v1222 = vunpack.c.h.b16 %v1184
      %v1223 = vunpack.c.l.b16 %v1185
      %v1224 = vunpack.c.h.b16 %v1185
      %v1225 = vunpack.c.l.b16 %v1186
      %v1226 = vunpack.c.h.b16 %v1186
      %v1227 = vunpack.c.l.b16 %v1187
      %v1228 = vunpack.c.h.b16 %v1187
      %v1229 = vunpack.c.l.b16 %v1188
      %v1230 = vunpack.c.h.b16 %v1188
      %v1231 = vunpack.c.l.b16 %v1189
      %v1232 = vunpack.c.h.b16 %v1189
      %v1233 = vunpack.c.l.b16 %v1190
      %v1234 = vunpack.c.h.b16 %v1190
      %v1235 = vunpack.c.l.b16 %v1191
      %v1236 = vunpack.c.h.b16 %v1191
      %v1237 = vunpack.c.l.b16 %v1192
      %v1238 = vunpack.c.h.b16 %v1192
      %v1239 = vunpack.c.l.b16 %v1193
      %v1240 = vunpack.c.h.b16 %v1193
      %v1241 = vunpack.c.l.b16 %v1194
      %v1242 = vunpack.c.h.b16 %v1194
      %v1243 = vpack.c.b16 %v1211, %v1211
      %v1244 = vpack.c.b16 %v1212, %v1212
      %v1245 = vpack.c.b16 %v1213, %v1213
      %v1246 = vpack.c.b16 %v1214, %v1214
      %v1247 = vpack.c.b16 %v1215, %v1215
      %v1248 = vpack.c.b16 %v1216, %v1216
      %v1249 = vpack.c.b16 %v1217, %v1217
      %v1250 = vpack.c.b16 %v1218, %v1218
      %v1251 = vpack.c.b16 %v1219, %v1219
      %v1252 = vpack.c.b16 %v1220, %v1220
      %v1253 = vpack.c.b16 %v1221, %v1221
      %v1254 = vpack.c.b16 %v1222, %v1222
      %v1255 = vpack.c.b16 %v1223, %v1223
      %v1256 = vpack.c.b16 %v1224, %v1224
      %v1257 = vpack.c.b16 %v1225, %v1225
      %v1258 = vpack.c.b16 %v1226, %v1226
      %v1259 = vpack.c.b16 %v1227, %v1227
      %v1260 = vpack.c.b16 %v1228, %v1228
      %v1261 = vpack.c.b16 %v1229, %v1229
      %v1262 = vpack.c.b16 %v1230, %v1230
      %v1263 = vpack.c.b16 %v1231, %v1231
      %v1264 = vpack.c.b16 %v1232, %v1232
      %v1265 = vpack.c.b16 %v1233, %v1233
      %v1266 = vpack.c.b16 %v1234, %v1234
      %v1267 = vpack.c.b16 %v1235, %v1235
      %v1268 = vpack.c.b16 %v1236, %v1236
      %v1269 = vpack.c.b16 %v1237, %v1237
      %v1270 = vpack.c.b16 %v1238, %v1238
      %v1271 = vpack.c.b16 %v1239, %v1239
      %v1272 = vpack.c.b16 %v1240, %v1240
      %v1273 = vpack.c.b16 %v1241, %v1241
      %v1274 = vpack.c.b16 %v1242, %v1242
      %vm1307 = vcmask 519168
      %1308 = vst.msk [vmem:[%s175] sm:$0xf] %vm1307, %v1243
      %1309 = vst.msk [vmem:[%s175 + $0x4] sm:$0xf] %vm1307, %v1244
      %1310 = vst.msk [vmem:[%s175 + $0x8] sm:$0xf] %vm1307, %v1245
      %1311 = vst.msk [vmem:[%s175 + $0xc] sm:$0xf] %vm1307, %v1246
      %1312 = vst.msk [vmem:[%s175 + $0x10] sm:$0xf] %vm1307, %v1247
      %1313 = vst.msk [vmem:[%s175 + $0x14] sm:$0xf] %vm1307, %v1248
      %1314 = vst.msk [vmem:[%s175 + $0x18] sm:$0xf] %vm1307, %v1249
      %1315 = vst.msk [vmem:[%s175 + $0x1c] sm:$0xf] %vm1307, %v1250
      %1316 = vst.msk [vmem:[%s175 + $0x20] sm:$0xf] %vm1307, %v1251
      %1317 = vst.msk [vmem:[%s175 + $0x24] sm:$0xf] %vm1307, %v1252
      %1318 = vst.msk [vmem:[%s175 + $0x28] sm:$0xf] %vm1307, %v1253
      %1319 = vst.msk [vmem:[%s175 + $0x2c] sm:$0xf] %vm1307, %v1254
      %1320 = vst.msk [vmem:[%s175 + $0x30] sm:$0xf] %vm1307, %v1255
      %1321 = vst.msk [vmem:[%s175 + $0x34] sm:$0xf] %vm1307, %v1256
      %1322 = vst.msk [vmem:[%s175 + $0x38] sm:$0xf] %vm1307, %v1257
      %1323 = vst.msk [vmem:[%s175 + $0x3c] sm:$0xf] %vm1307, %v1258
      %1324 = vst.msk [vmem:[%s175 + $0x40] sm:$0xf] %vm1307, %v1259
      %1325 = vst.msk [vmem:[%s175 + $0x44] sm:$0xf] %vm1307, %v1260
      %1326 = vst.msk [vmem:[%s175 + $0x48] sm:$0xf] %vm1307, %v1261
      %1327 = vst.msk [vmem:[%s175 + $0x4c] sm:$0xf] %vm1307, %v1262
      %1328 = vst.msk [vmem:[%s175 + $0x50] sm:$0xf] %vm1307, %v1263
      %1329 = vst.msk [vmem:[%s175 + $0x54] sm:$0xf] %vm1307, %v1264
      %1330 = vst.msk [vmem:[%s175 + $0x58] sm:$0xf] %vm1307, %v1265
      %1331 = vst.msk [vmem:[%s175 + $0x5c] sm:$0xf] %vm1307, %v1266
      %1332 = vst.msk [vmem:[%s175 + $0x60] sm:$0xf] %vm1307, %v1267
      %1333 = vst.msk [vmem:[%s175 + $0x64] sm:$0xf] %vm1307, %v1268
      %1334 = vst.msk [vmem:[%s175 + $0x68] sm:$0xf] %vm1307, %v1269
      %1335 = vst.msk [vmem:[%s175 + $0x6c] sm:$0xf] %vm1307, %v1270
      %1336 = vst.msk [vmem:[%s175 + $0x70] sm:$0xf] %vm1307, %v1271
      %1337 = vst.msk [vmem:[%s175 + $0x74] sm:$0xf] %vm1307, %v1272
      %1338 = vst.msk [vmem:[%s175 + $0x78] sm:$0xf] %vm1307, %v1273
      %1339 = vst.msk [vmem:[%s175 + $0x7c] sm:$0xf] %vm1307, %v1274
      %s1340 = smul.u32 32, %s14
      %p1341 = scmp.lt.s32.totalorder %s1340, 63
      %s1342 = scalar_select %p1341, %s1340, 63
      %s1343 = smul.addr %s1342, 4
      %s1344 = scalar_lea.vmem %s3, %s1343
      // Predicated region
      $region33: #{network_forward.6} parent=31 // pred_check
        %p1345 = pneg %p100
      $region34: #{network_forward.6} parent=31 // pred_check_branch
        %1347 = sbr.rel (%p1345) target = $region36
      $region35: #{network_forward.6} parent=31 // pred_region
        %s1348 = smul.u32 32, %s14
      $region36: #{network_forward.6} parent=31 // pred_fallthru
        _
    $region32: #{network_forward.6} parent=5 // pred_fallthru
      _
    %p1349 = scmp.le.s32.totalorder 2, %s9
    // Predicated region
    $region37: #{network_forward.6} parent=5 // pred_check
      %p1350 = pneg %p1349
    $region38: #{network_forward.6} parent=5 // pred_check_branch
      %1352 = sbr.rel (%p1350) target = $region40
    $region39: #{network_forward.6} parent=5 // pred_region
      %s1353 = ssub.s32 %s9, 2
      // Predicated region
      $region41: #{network_forward.6} parent=39 // pred_check
        %p1354 = pneg %p106
      $region42: #{network_forward.6} parent=39 // pred_check_branch
        %1356 = sbr.rel (%p1354) target = $region44
      $region43: #{network_forward.6} parent=39 // pred_region
        %s1357 = smul.u32 32, %s15
        %p1358 = scmp.lt.s32.totalorder %s1357, 63
        %s1359 = scalar_select %p1358, %s1357, 63
        %s1360 = smul.addr %s1359, 4
        %s1361 = scalar_lea.vmem %s3, %s1360
      $region44: #{network_forward.6} parent=39 // pred_fallthru
        _
    $region40: #{network_forward.6} parent=5 // pred_fallthru
      _
  $region6: #{network_forward.6} parent=0 // loop_footer
    %s13 = sadd.s32 1, %s9
  $region7: #{network_forward.6} parent=0 // loop_footer_branch
    %8 = sbr.rel target = $region3
  $region8: #{network_forward.6} parent=0 // loop_exit
    _

// kernel: network_forward.7
$region0: #{network_forward.7}
  #allocation0 [shape = 'u32[]', space=smem, size = 0x4, offset = 0x4, fixed_abs, tag = 'smem constant byte address 0x4 - core index']
  #allocation1 [shape = 'u32[144,128]{1,0:T(1,128)}', space=vmem, size = 0x12000, scoped, tag = 'internal scratch']
  %s0 = inlined_call_operand.vmem [shape: bf16[512,576], index: 0, kind: input, shape index: {}]
  %s1 = inlined_call_operand.vmem [shape: bf16[576,64], index: 1, kind: input, shape index: {}]
  %s2 = inlined_call_operand.vmem [shape: f32[1,64], index: 2, kind: input, shape index: {}]
  %s3 = inlined_call_operand.vmem [shape: bf16[512,64], index: 3, kind: output, shape index: {}]
  %s4 = sld [smem:[#allocation0]]
  $region45: #{network_forward.7} parent=0
    _
  %s6 = ssub.s32 1, %s4
  %s7 = scalar_select 0, %s6, %s4
  loop: start=0, step=1, limit=4
  $region2: #{network_forward.7} parent=0 // loop_pre_header
    _
  $region3: #{network_forward.7} parent=0 // loop_header
    %s9 = sphi 0, %s13
    %p10 = scmp.ge.s32.totalorder %s9, 4
    %s19 = sphi 0, %s21
    %s22 = sphi 0, %s19
    %s23 = sphi 0, %s22
    %s39 = sphi 0, %s23
    %s43 = sphi 0, %s43
    %s45 = sphi 0, %s43
    %s46 = sphi 0, %s45
    %s60 = sphi 0, %s46
    %s64 = sphi 0, %s64
    %s66 = sphi 0, %s64
    %s67 = sphi 0, %s66
    %s81 = sphi 0, %s67
    %s87 = sphi 0, %s89
    %s90 = sphi 0, %s87
    %s91 = sphi 0, %s90
    %s107 = sphi 0, %s91
  $region4: #{network_forward.7} parent=0 // loop_header_branch
    %12 = sbr.rel (%p10) target = $region8
  $region5: #{network_forward.7} parent=0 // loop_body
    %s14 = ssub.s32 %s9, 1
    %s15 = ssub.s32 %s9, 2
    %s16 = sadd.s32 %s9, 1
    %s17 = ssub.s32 %s9, %s16
    %p18 = scmp.eq.s32.totalorder %s17, 0
    %s20 = sadd.s32 %s19, 1
    %s21 = scalar_select %p18, %s19, %s20
    %p24 = pneg %p18
    %p25 = scmp.eq.s32.totalorder %s9, 1
    %p26 = por %p24, %p25
    %p27 = scmp.ne.s32.totalorder %s19, %s22
    %p28 = scmp.eq.s32.totalorder %s9, 0
    %p29 = por %p27, %p28
    %p30 = scmp.ne.s32.totalorder %s19, %s22
    %p31 = scmp.eq.s32.totalorder %s14, 1
    %p32 = por %p30, %p31
    %p33 = scmp.ne.s32.totalorder %s22, %s23
    %p34 = scmp.eq.s32.totalorder %s14, 0
    %p35 = por %p33, %p34
    %p36 = scmp.ne.s32.totalorder %s22, %s23
    %p37 = scmp.eq.s32.totalorder %s15, 1
    %p38 = por %p36, %p37
    %p40 = scmp.ne.s32.totalorder %s23, %s39
    %p41 = scmp.eq.s32.totalorder %s15, 0
    %p42 = por %p40, %p41
    %s44 = sadd.s32 %s43, 1
    %p47 = scmp.eq.s32.totalorder %s9, 1
    %p48 = scmp.ne.s32.totalorder %s43, %s45
    %p49 = scmp.eq.s32.totalorder %s9, 0
    %p50 = por %p48, %p49
    %p51 = scmp.ne.s32.totalorder %s43, %s45
    %p52 = scmp.eq.s32.totalorder %s14, 1
    %p53 = por %p51, %p52
    %p54 = scmp.ne.s32.totalorder %s45, %s46
    %p55 = scmp.eq.s32.totalorder %s14, 0
    %p56 = por %p54, %p55
    %p57 = scmp.ne.s32.totalorder %s45, %s46
    %p58 = scmp.eq.s32.totalorder %s15, 1
    %p59 = por %p57, %p58
    %p61 = scmp.ne.s32.totalorder %s46, %s60
    %p62 = scmp.eq.s32.totalorder %s15, 0
    %p63 = por %p61, %p62
    %s65 = sadd.s32 %s64, 1
    %p68 = scmp.eq.s32.totalorder %s9, 1
    %p69 = scmp.ne.s32.totalorder %s64, %s66
    %p70 = scmp.eq.s32.totalorder %s9, 0
    %p71 = por %p69, %p70
    %p72 = scmp.ne.s32.totalorder %s64, %s66
    %p73 = scmp.eq.s32.totalorder %s14, 1
    %p74 = por %p72, %p73
    %p75 = scmp.ne.s32.totalorder %s66, %s67
    %p76 = scmp.eq.s32.totalorder %s14, 0
    %p77 = por %p75, %p76
    %p78 = scmp.ne.s32.totalorder %s66, %s67
    %p79 = scmp.eq.s32.totalorder %s15, 1
    %p80 = por %p78, %p79
    %p82 = scmp.ne.s32.totalorder %s67, %s81
    %p83 = scmp.eq.s32.totalorder %s15, 0
    %p84 = por %p82, %p83
    %s85 = ssub.s32 %s9, %s16
    %p86 = scmp.eq.s32.totalorder %s85, 0
    %s88 = sadd.s32 %s87, 1
    %s89 = scalar_select %p86, %s87, %s88
    %p92 = pneg %p86
    %p93 = scmp.eq.s32.totalorder %s9, 1
    %p94 = por %p92, %p93
    %p95 = scmp.ne.s32.totalorder %s87, %s90
    %p96 = scmp.eq.s32.totalorder %s9, 0
    %p97 = por %p95, %p96
    %p98 = scmp.ne.s32.totalorder %s87, %s90
    %p99 = scmp.eq.s32.totalorder %s14, 1
    %p100 = por %p98, %p99
    %p101 = scmp.ne.s32.totalorder %s90, %s91
    %p102 = scmp.eq.s32.totalorder %s14, 0
    %p103 = por %p101, %p102
    %p104 = scmp.ne.s32.totalorder %s90, %s91
    %p105 = scmp.eq.s32.totalorder %s15, 1
    %p106 = por %p104, %p105
    %p108 = scmp.ne.s32.totalorder %s91, %s107
    %p109 = scmp.eq.s32.totalorder %s15, 0
    %p110 = por %p108, %p109
    %p111 = scmp.le.s32.totalorder 1, %s9
    %p112 = scmp.lt.s32.totalorder %s9, 3
    %p113 = pnand %p111, %p112
    %p114 = pneg %p113
    // Predicated region
    $region9: #{network_forward.7} parent=5 // pred_check
      _
    $region10: #{network_forward.7} parent=5 // pred_check_branch
      %116 = sbr.rel (%p113) target = $region12
    $region11: #{network_forward.7} parent=5 // pred_region
      %s117 = ssub.s32 %s9, 1
      // Predicated region
      $region13: #{network_forward.7} parent=11 // pred_check
        %p118 = pneg %p56
      $region14: #{network_forward.7} parent=11 // pred_check_branch
        %120 = sbr.rel (%p118) target = $region16
      $region15: #{network_forward.7} parent=11 // pred_region
        _
      $region16: #{network_forward.7} parent=11 // pred_fallthru
        _
      // Predicated region
      $region17: #{network_forward.7} parent=11 // pred_check
        %p121 = pneg %p77
      $region18: #{network_forward.7} parent=11 // pred_check_branch
        %123 = sbr.rel (%p121) target = $region20
      $region19: #{network_forward.7} parent=11 // pred_region
        _
      $region20: #{network_forward.7} parent=11 // pred_fallthru
        _
    $region12: #{network_forward.7} parent=5 // pred_fallthru
      _
    %p124 = scmp.lt.s32.totalorder %s9, 2
    // Predicated region
    $region21: #{network_forward.7} parent=5 // pred_check
      %p125 = pneg %p124
    $region22: #{network_forward.7} parent=5 // pred_check_branch
      %127 = sbr.rel (%p125) target = $region24
    $region23: #{network_forward.7} parent=5 // pred_region
      // Predicated region
      $region25: #{network_forward.7} parent=23 // pred_check
        %p128 = pneg %p29
      $region26: #{network_forward.7} parent=23 // pred_check_branch
        %130 = sbr.rel (%p128) target = $region28
      $region27: #{network_forward.7} parent=23 // pred_region
        %s131 = smul.u32 32, %s9
        %p132 = scmp.lt.s32.totalorder %s131, 63
        %s133 = scalar_select %p132, %s131, 63
        %s134 = smul.addr %s133, 5
        %s135 = smul.addr %s134, 4
        %s136 = scalar_lea.vmem %s0, %s135
        %s137 = smul.u32 32, %s9
      $region28: #{network_forward.7} parent=23 // pred_fallthru
        _
    $region24: #{network_forward.7} parent=5 // pred_fallthru
      _
    %p138 = scmp.le.s32.totalorder 1, %s9
    %p139 = scmp.lt.s32.totalorder %s9, 3
    %p140 = pnand %p138, %p139
    %p141 = pneg %p140
    // Predicated region
    $region29: #{network_forward.7} parent=5 // pred_check
      _
    $region30: #{network_forward.7} parent=5 // pred_check_branch
      %143 = sbr.rel (%p140) target = $region32
    $region31: #{network_forward.7} parent=5 // pred_region
      %s144 = ssub.s32 %s9, 1
      %s145 = smul.u32 32, %s14
      %p146 = scmp.lt.s32.totalorder %s145, 63
      %s147 = scalar_select %p146, %s145, 63
      %s148 = smul.addr %s147, 5
      %s149 = smul.addr %s148, 4
      %s150 = scalar_lea.vmem %s0, %s149
      %p151 = pneg %p35
      %p152 = pneg %p32
      %p153 = pneg %p56
      %p154 = pneg %p53
      %p155 = pneg %p77
      %p156 = pneg %p74
      %p157 = pneg %p103
      %p158 = pneg %p100
      %s159 = smul.u32 32, %s14
      %p160 = scmp.lt.s32.totalorder %s159, 63
      %s161 = scalar_select %p160, %s159, 63
      %s162 = smul.addr %s161, 4
      %s163 = scalar_lea.vmem %s3, %s162
      %s164 = smul.u32 32, %s14
      %p165 = scmp.lt.s32.totalorder %s164, 63
      %s166 = scalar_select %p165, %s164, 63
      %s167 = smul.addr %s166, 5
      %s168 = smul.addr %s167, 4
      %s169 = scalar_lea.vmem %s0, %s168
      %s170 = smul.u32 32, %s14
      %s171 = smul.u32 32, %s14
      %p172 = scmp.lt.s32.totalorder %s171, 63
      %s173 = scalar_select %p172, %s171, 63
      %s174 = smul.addr %s173, 4
      %s175 = scalar_lea.vmem %s3, %s174
      %s176 = smul.u32 32, %s14
      %v178 = vld [vmem:[%s169] sm:$0xff]
      %v179 = vld [vmem:[%s169 + $0x8] sm:$0xff]
      %v180 = vld [vmem:[%s169 + $0x10] sm:$0xf]
      %v181 = vld [vmem:[%s169 + $0x14] sm:$0xff]
      %v182 = vld [vmem:[%s169 + $0x1c] sm:$0xff]
      %v183 = vld [vmem:[%s169 + $0x24] sm:$0xf]
      %v184 = vld [vmem:[%s169 + $0x28] sm:$0xff]
      %v185 = vld [vmem:[%s169 + $0x30] sm:$0xff]
      %v186 = vld [vmem:[%s169 + $0x38] sm:$0xf]
      %v187 = vld [vmem:[%s169 + $0x3c] sm:$0xff]
      %v188 = vld [vmem:[%s169 + $0x44] sm:$0xff]
      %v189 = vld [vmem:[%s169 + $0x4c] sm:$0xf]
      %v190 = vld [vmem:[%s169 + $0x50] sm:$0xff]
      %v191 = vld [vmem:[%s169 + $0x58] sm:$0xff]
      %v192 = vld [vmem:[%s169 + $0x60] sm:$0xf]
      %v193 = vld [vmem:[%s169 + $0x64] sm:$0xff]
      %v194 = vld [vmem:[%s169 + $0x6c] sm:$0xff]
      %v195 = vld [vmem:[%s169 + $0x74] sm:$0xf]
      %v196 = vld [vmem:[%s169 + $0x78] sm:$0xff]
      %v197 = vld [vmem:[%s169 + $0x80] sm:$0xff]
      %v198 = vld [vmem:[%s169 + $0x88] sm:$0xf]
      %v199 = vld [vmem:[%s169 + $0x8c] sm:$0xff]
      %v200 = vld [vmem:[%s169 + $0x94] sm:$0xff]
      %v201 = vld [vmem:[%s169 + $0x9c] sm:$0xf]
      %v202 = vld [vmem:[%s169 + $0xa0] sm:$0xff]
      %v203 = vld [vmem:[%s169 + $0xa8] sm:$0xff]
      %v204 = vld [vmem:[%s169 + $0xb0] sm:$0xf]
      %v205 = vld [vmem:[%s169 + $0xb4] sm:$0xff]
      %v206 = vld [vmem:[%s169 + $0xbc] sm:$0xff]
      %v207 = vld [vmem:[%s169 + $0xc4] sm:$0xf]
      %v208 = vld [vmem:[%s169 + $0xc8] sm:$0xff]
      %v209 = vld [vmem:[%s169 + $0xd0] sm:$0xff]
      %v210 = vld [vmem:[%s169 + $0xd8] sm:$0xf]
      %v211 = vld [vmem:[%s169 + $0xdc] sm:$0xff]
      %v212 = vld [vmem:[%s169 + $0xe4] sm:$0xff]
      %v213 = vld [vmem:[%s169 + $0xec] sm:$0xf]
      %v214 = vld [vmem:[%s169 + $0xf0] sm:$0xff]
      %v215 = vld [vmem:[%s169 + $0xf8] sm:$0xff]
      %v216 = vld [vmem:[%s169 + $0x100] sm:$0xf]
      %v217 = vld [vmem:[%s169 + $0x104] sm:$0xff]
      %v218 = vld [vmem:[%s169 + $0x10c] sm:$0xff]
      %v219 = vld [vmem:[%s169 + $0x114] sm:$0xf]
      %v220 = vld [vmem:[%s169 + $0x118] sm:$0xff]
      %v221 = vld [vmem:[%s169 + $0x120] sm:$0xff]
      %v222 = vld [vmem:[%s169 + $0x128] sm:$0xf]
      %v223 = vld [vmem:[%s169 + $0x12c] sm:$0xff]
      %v224 = vld [vmem:[%s169 + $0x134] sm:$0xff]
      %v225 = vld [vmem:[%s169 + $0x13c] sm:$0xf]
      %v226 = vld [vmem:[%s169 + $0x140] sm:$0xff]
      %v227 = vld [vmem:[%s169 + $0x148] sm:$0xff]
      %v228 = vld [vmem:[%s169 + $0x150] sm:$0xf]
      %v229 = vld [vmem:[%s169 + $0x154] sm:$0xff]
      %v230 = vld [vmem:[%s169 + $0x15c] sm:$0xff]
      %v231 = vld [vmem:[%s169 + $0x164] sm:$0xf]
      %v232 = vld [vmem:[%s169 + $0x168] sm:$0xff]
      %v233 = vld [vmem:[%s169 + $0x170] sm:$0xff]
      %v234 = vld [vmem:[%s169 + $0x178] sm:$0xf]
      %v235 = vld [vmem:[%s169 + $0x17c] sm:$0xff]
      %v236 = vld [vmem:[%s169 + $0x184] sm:$0xff]
      %v237 = vld [vmem:[%s169 + $0x18c] sm:$0xf]
      %v238 = vld [vmem:[%s169 + $0x190] sm:$0xff]
      %v239 = vld [vmem:[%s169 + $0x198] sm:$0xff]
      %v240 = vld [vmem:[%s169 + $0x1a0] sm:$0xf]
      %v241 = vld [vmem:[%s169 + $0x1a4] sm:$0xff]
      %v242 = vld [vmem:[%s169 + $0x1ac] sm:$0xff]
      %v243 = vld [vmem:[%s169 + $0x1b4] sm:$0xf]
      %v244 = vld [vmem:[%s169 + $0x1b8] sm:$0xff]
      %v245 = vld [vmem:[%s169 + $0x1c0] sm:$0xff]
      %v246 = vld [vmem:[%s169 + $0x1c8] sm:$0xf]
      %v247 = vld [vmem:[%s169 + $0x1cc] sm:$0xff]
      %v248 = vld [vmem:[%s169 + $0x1d4] sm:$0xff]
      %v249 = vld [vmem:[%s169 + $0x1dc] sm:$0xf]
      %v250 = vld [vmem:[%s169 + $0x1e0] sm:$0xff]
      %v251 = vld [vmem:[%s169 + $0x1e8] sm:$0xff]
      %v252 = vld [vmem:[%s169 + $0x1f0] sm:$0xf]
      %v253 = vld [vmem:[%s169 + $0x1f4] sm:$0xff]
      %v254 = vld [vmem:[%s169 + $0x1fc] sm:$0xff]
      %v255 = vld [vmem:[%s169 + $0x204] sm:$0xf]
      %v256 = vld [vmem:[%s169 + $0x208] sm:$0xff]
      %v257 = vld [vmem:[%s169 + $0x210] sm:$0xff]
      %v258 = vld [vmem:[%s169 + $0x218] sm:$0xf]
      %v259 = vld [vmem:[%s169 + $0x21c] sm:$0xff]
      %v260 = vld [vmem:[%s169 + $0x224] sm:$0xff]
      %v261 = vld [vmem:[%s169 + $0x22c] sm:$0xf]
      %v262 = vld [vmem:[%s169 + $0x230] sm:$0xff]
      %v263 = vld [vmem:[%s169 + $0x238] sm:$0xff]
      %v264 = vld [vmem:[%s169 + $0x240] sm:$0xf]
      %v265 = vld [vmem:[%s169 + $0x244] sm:$0xff]
      %v266 = vld [vmem:[%s169 + $0x24c] sm:$0xff]
      %v267 = vld [vmem:[%s169 + $0x254] sm:$0xf]
      %v268 = vld [vmem:[%s169 + $0x258] sm:$0xff]
      %v269 = vld [vmem:[%s169 + $0x260] sm:$0xff]
      %v270 = vld [vmem:[%s169 + $0x268] sm:$0xf]
      %v271 = vld [vmem:[%s169 + $0x26c] sm:$0xff]
      %v272 = vld [vmem:[%s169 + $0x274] sm:$0xff]
      %v273 = vld [vmem:[%s169 + $0x27c] sm:$0xf]
      %v274 = vld [vmem:[%s1] sm:$0xf]
      %v275 = vld [vmem:[%s1 + $0x4] sm:$0xf]
      %v276 = vld [vmem:[%s1 + $0x8] sm:$0xf]
      %v277 = vld [vmem:[%s1 + $0xc] sm:$0xf]
      %v278 = vld [vmem:[%s1 + $0x10] sm:$0xf]
      %v279 = vld [vmem:[%s1 + $0x14] sm:$0xf]
      %v280 = vld [vmem:[%s1 + $0x18] sm:$0xf]
      %v281 = vld [vmem:[%s1 + $0x1c] sm:$0xf]
      %v282 = vld [vmem:[%s1 + $0x20] sm:$0xf]
      %v283 = vld [vmem:[%s1 + $0x24] sm:$0xf]
      %v284 = vld [vmem:[%s1 + $0x28] sm:$0xf]
      %v285 = vld [vmem:[%s1 + $0x2c] sm:$0xf]
      %v286 = vld [vmem:[%s1 + $0x30] sm:$0xf]
      %v287 = vld [vmem:[%s1 + $0x34] sm:$0xf]
      %v288 = vld [vmem:[%s1 + $0x38] sm:$0xf]
      %v289 = vld [vmem:[%s1 + $0x3c] sm:$0xf]
      %v290 = vld [vmem:[%s1 + $0x40] sm:$0xf]
      %v291 = vld [vmem:[%s1 + $0x44] sm:$0xf]
      %v292 = vld [vmem:[%s1 + $0x48] sm:$0xf]
      %v293 = vld [vmem:[%s1 + $0x4c] sm:$0xf]
      %v294 = vld [vmem:[%s1 + $0x50] sm:$0xf]
      %v295 = vld [vmem:[%s1 + $0x54] sm:$0xf]
      %v296 = vld [vmem:[%s1 + $0x58] sm:$0xf]
      %v297 = vld [vmem:[%s1 + $0x5c] sm:$0xf]
      %v298 = vld [vmem:[%s1 + $0x60] sm:$0xf]
      %v299 = vld [vmem:[%s1 + $0x64] sm:$0xf]
      %v300 = vld [vmem:[%s1 + $0x68] sm:$0xf]
      %v301 = vld [vmem:[%s1 + $0x6c] sm:$0xf]
      %v302 = vld [vmem:[%s1 + $0x70] sm:$0xf]
      %v303 = vld [vmem:[%s1 + $0x74] sm:$0xf]
      %v304 = vld [vmem:[%s1 + $0x78] sm:$0xf]
      %v305 = vld [vmem:[%s1 + $0x7c] sm:$0xf]
      %v306 = vld [vmem:[%s1 + $0x80] sm:$0xf]
      %v307 = vld [vmem:[%s1 + $0x84] sm:$0xf]
      %v308 = vld [vmem:[%s1 + $0x88] sm:$0xf]
      %v309 = vld [vmem:[%s1 + $0x8c] sm:$0xf]
      %v310 = vld [vmem:[%s1 + $0x90] sm:$0xf]
      %v311 = vld [vmem:[%s1 + $0x94] sm:$0xf]
      %v312 = vld [vmem:[%s1 + $0x98] sm:$0xf]
      %v313 = vld [vmem:[%s1 + $0x9c] sm:$0xf]
      %v314 = vld [vmem:[%s1 + $0xa0] sm:$0xf]
      %v315 = vld [vmem:[%s1 + $0xa4] sm:$0xf]
      %v316 = vld [vmem:[%s1 + $0xa8] sm:$0xf]
      %v317 = vld [vmem:[%s1 + $0xac] sm:$0xf]
      %v318 = vld [vmem:[%s1 + $0xb0] sm:$0xf]
      %v319 = vld [vmem:[%s1 + $0xb4] sm:$0xf]
      %v320 = vld [vmem:[%s1 + $0xb8] sm:$0xf]
      %v321 = vld [vmem:[%s1 + $0xbc] sm:$0xf]
      %v322 = vld [vmem:[%s1 + $0xc0] sm:$0xf]
      %v323 = vld [vmem:[%s1 + $0xc4] sm:$0xf]
      %v324 = vld [vmem:[%s1 + $0xc8] sm:$0xf]
      %v325 = vld [vmem:[%s1 + $0xcc] sm:$0xf]
      %v326 = vld [vmem:[%s1 + $0xd0] sm:$0xf]
      %v327 = vld [vmem:[%s1 + $0xd4] sm:$0xf]
      %v328 = vld [vmem:[%s1 + $0xd8] sm:$0xf]
      %v329 = vld [vmem:[%s1 + $0xdc] sm:$0xf]
      %v330 = vld [vmem:[%s1 + $0xe0] sm:$0xf]
      %v331 = vld [vmem:[%s1 + $0xe4] sm:$0xf]
      %v332 = vld [vmem:[%s1 + $0xe8] sm:$0xf]
      %v333 = vld [vmem:[%s1 + $0xec] sm:$0xf]
      %v334 = vld [vmem:[%s1 + $0xf0] sm:$0xf]
      %v335 = vld [vmem:[%s1 + $0xf4] sm:$0xf]
      %v336 = vld [vmem:[%s1 + $0xf8] sm:$0xf]
      %v337 = vld [vmem:[%s1 + $0xfc] sm:$0xf]
      %v338 = vld [vmem:[%s1 + $0x100] sm:$0xf]
      %v339 = vld [vmem:[%s1 + $0x104] sm:$0xf]
      %v340 = vld [vmem:[%s1 + $0x108] sm:$0xf]
      %v341 = vld [vmem:[%s1 + $0x10c] sm:$0xf]
      %v342 = vld [vmem:[%s1 + $0x110] sm:$0xf]
      %v343 = vld [vmem:[%s1 + $0x114] sm:$0xf]
      %v344 = vld [vmem:[%s1 + $0x118] sm:$0xf]
      %v345 = vld [vmem:[%s1 + $0x11c] sm:$0xf]
      %v346 = vld [vmem:[%s2] sm:$0x1]
      %v348 = vlaneseq
      %v349 = vshrl.u32 %v348, 7
      %v350 = vsub.s32 0, %v349
      %v351 = vrot.slane %v346, %v350
      %v449 = vunpack.c.l.b16 %v178
      %v450 = vunpack.c.h.b16 %v178
      %v451 = vunpack.c.l.b16 %v179
      %v452 = vunpack.c.h.b16 %v179
      %v453 = vunpack.c.l.b16 %v180
      %v454 = vunpack.c.l.b16 %v181
      %v455 = vunpack.c.h.b16 %v181
      %v456 = vunpack.c.l.b16 %v182
      %v457 = vunpack.c.h.b16 %v182
      %v458 = vunpack.c.l.b16 %v183
      %v459 = vunpack.c.l.b16 %v184
      %v460 = vunpack.c.h.b16 %v184
      %v461 = vunpack.c.l.b16 %v185
      %v462 = vunpack.c.h.b16 %v185
      %v463 = vunpack.c.l.b16 %v186
      %v464 = vunpack.c.l.b16 %v187
      %v465 = vunpack.c.h.b16 %v187
      %v466 = vunpack.c.l.b16 %v188
      %v467 = vunpack.c.h.b16 %v188
      %v468 = vunpack.c.l.b16 %v189
      %v469 = vunpack.c.l.b16 %v190
      %v470 = vunpack.c.h.b16 %v190
      %v471 = vunpack.c.l.b16 %v191
      %v472 = vunpack.c.h.b16 %v191
      %v473 = vunpack.c.l.b16 %v192
      %v474 = vunpack.c.l.b16 %v193
      %v475 = vunpack.c.h.b16 %v193
      %v476 = vunpack.c.l.b16 %v194
      %v477 = vunpack.c.h.b16 %v194
      %v478 = vunpack.c.l.b16 %v195
      %v479 = vunpack.c.l.b16 %v196
      %v480 = vunpack.c.h.b16 %v196
      %v481 = vunpack.c.l.b16 %v197
      %v482 = vunpack.c.h.b16 %v197
      %v483 = vunpack.c.l.b16 %v198
      %v484 = vunpack.c.l.b16 %v199
      %v485 = vunpack.c.h.b16 %v199
      %v486 = vunpack.c.l.b16 %v200
      %v487 = vunpack.c.h.b16 %v200
      %v488 = vunpack.c.l.b16 %v201
      %v489 = vunpack.c.l.b16 %v202
      %v490 = vunpack.c.h.b16 %v202
      %v491 = vunpack.c.l.b16 %v203
      %v492 = vunpack.c.h.b16 %v203
      %v493 = vunpack.c.l.b16 %v204
      %v494 = vunpack.c.l.b16 %v205
      %v495 = vunpack.c.h.b16 %v205
      %v496 = vunpack.c.l.b16 %v206
      %v497 = vunpack.c.h.b16 %v206
      %v498 = vunpack.c.l.b16 %v207
      %v499 = vunpack.c.l.b16 %v208
      %v500 = vunpack.c.h.b16 %v208
      %v501 = vunpack.c.l.b16 %v209
      %v502 = vunpack.c.h.b16 %v209
      %v503 = vunpack.c.l.b16 %v210
      %v504 = vunpack.c.l.b16 %v211
      %v505 = vunpack.c.h.b16 %v211
      %v506 = vunpack.c.l.b16 %v212
      %v507 = vunpack.c.h.b16 %v212
      %v508 = vunpack.c.l.b16 %v213
      %v509 = vunpack.c.l.b16 %v214
      %v510 = vunpack.c.h.b16 %v214
      %v511 = vunpack.c.l.b16 %v215
      %v512 = vunpack.c.h.b16 %v215
      %v513 = vunpack.c.l.b16 %v216
      %v514 = vunpack.c.l.b16 %v217
      %v515 = vunpack.c.h.b16 %v217
      %v516 = vunpack.c.l.b16 %v218
      %v517 = vunpack.c.h.b16 %v218
      %v518 = vunpack.c.l.b16 %v219
      %v519 = vunpack.c.l.b16 %v220
      %v520 = vunpack.c.h.b16 %v220
      %v521 = vunpack.c.l.b16 %v221
      %v522 = vunpack.c.h.b16 %v221
      %v523 = vunpack.c.l.b16 %v222
      %v524 = vunpack.c.l.b16 %v223
      %v525 = vunpack.c.h.b16 %v223
      %v526 = vunpack.c.l.b16 %v224
      %v527 = vunpack.c.h.b16 %v224
      %v528 = vunpack.c.l.b16 %v225
      %v529 = vunpack.c.l.b16 %v226
      %v530 = vunpack.c.h.b16 %v226
      %v531 = vunpack.c.l.b16 %v227
      %v532 = vunpack.c.h.b16 %v227
      %v533 = vunpack.c.l.b16 %v228
      %v534 = vunpack.c.l.b16 %v229
      %v535 = vunpack.c.h.b16 %v229
      %v536 = vunpack.c.l.b16 %v230
      %v537 = vunpack.c.h.b16 %v230
      %v538 = vunpack.c.l.b16 %v231
      %v539 = vunpack.c.l.b16 %v232
      %v540 = vunpack.c.h.b16 %v232
      %v541 = vunpack.c.l.b16 %v233
      %v542 = vunpack.c.h.b16 %v233
      %v543 = vunpack.c.l.b16 %v234
      %v544 = vunpack.c.l.b16 %v235
      %v545 = vunpack.c.h.b16 %v235
      %v546 = vunpack.c.l.b16 %v236
      %v547 = vunpack.c.h.b16 %v236
      %v548 = vunpack.c.l.b16 %v237
      %v549 = vunpack.c.l.b16 %v238
      %v550 = vunpack.c.h.b16 %v238
      %v551 = vunpack.c.l.b16 %v239
      %v552 = vunpack.c.h.b16 %v239
      %v553 = vunpack.c.l.b16 %v240
      %v554 = vunpack.c.l.b16 %v241
      %v555 = vunpack.c.h.b16 %v241
      %v556 = vunpack.c.l.b16 %v242
      %v557 = vunpack.c.h.b16 %v242
      %v558 = vunpack.c.l.b16 %v243
      %v559 = vunpack.c.l.b16 %v244
      %v560 = vunpack.c.h.b16 %v244
      %v561 = vunpack.c.l.b16 %v245
      %v562 = vunpack.c.h.b16 %v245
      %v563 = vunpack.c.l.b16 %v246
      %v564 = vunpack.c.l.b16 %v247
      %v565 = vunpack.c.h.b16 %v247
      %v566 = vunpack.c.l.b16 %v248
      %v567 = vunpack.c.h.b16 %v248
      %v568 = vunpack.c.l.b16 %v249
      %v569 = vunpack.c.l.b16 %v250
      %v570 = vunpack.c.h.b16 %v250
      %v571 = vunpack.c.l.b16 %v251
      %v572 = vunpack.c.h.b16 %v251
      %v573 = vunpack.c.l.b16 %v252
      %v574 = vunpack.c.l.b16 %v253
      %v575 = vunpack.c.h.b16 %v253
      %v576 = vunpack.c.l.b16 %v254
      %v577 = vunpack.c.h.b16 %v254
      %v578 = vunpack.c.l.b16 %v255
      %v579 = vunpack.c.l.b16 %v256
      %v580 = vunpack.c.h.b16 %v256
      %v581 = vunpack.c.l.b16 %v257
      %v582 = vunpack.c.h.b16 %v257
      %v583 = vunpack.c.l.b16 %v258
      %v584 = vunpack.c.l.b16 %v259
      %v585 = vunpack.c.h.b16 %v259
      %v586 = vunpack.c.l.b16 %v260
      %v587 = vunpack.c.h.b16 %v260
      %v588 = vunpack.c.l.b16 %v261
      %v589 = vunpack.c.l.b16 %v262
      %v590 = vunpack.c.h.b16 %v262
      %v591 = vunpack.c.l.b16 %v263
      %v592 = vunpack.c.h.b16 %v263
      %v593 = vunpack.c.l.b16 %v264
      %v594 = vunpack.c.l.b16 %v265
      %v595 = vunpack.c.h.b16 %v265
      %v596 = vunpack.c.l.b16 %v266
      %v597 = vunpack.c.h.b16 %v266
      %v598 = vunpack.c.l.b16 %v267
      %v599 = vunpack.c.l.b16 %v268
      %v600 = vunpack.c.h.b16 %v268
      %v601 = vunpack.c.l.b16 %v269
      %v602 = vunpack.c.h.b16 %v269
      %v603 = vunpack.c.l.b16 %v270
      %v604 = vunpack.c.l.b16 %v271
      %v605 = vunpack.c.h.b16 %v271
      %v606 = vunpack.c.l.b16 %v272
      %v607 = vunpack.c.h.b16 %v272
      %v608 = vunpack.c.l.b16 %v273
      %v609 = vpack.c.b16 %v454, %v449
      %v610 = vpack.c.b16 %v455, %v450
      %v611 = vpack.c.b16 %v456, %v451
      %v612 = vpack.c.b16 %v457, %v452
      %v613 = vpack.c.b16 %v458, %v453
      %v614 = vpack.c.b16 %v464, %v459
      %v615 = vpack.c.b16 %v465, %v460
      %v616 = vpack.c.b16 %v466, %v461
      %v617 = vpack.c.b16 %v467, %v462
      %v618 = vpack.c.b16 %v468, %v463
      %v619 = vpack.c.b16 %v474, %v469
      %v620 = vpack.c.b16 %v475, %v470
      %v621 = vpack.c.b16 %v476, %v471
      %v622 = vpack.c.b16 %v477, %v472
      %v623 = vpack.c.b16 %v478, %v473
      %v624 = vpack.c.b16 %v484, %v479
      %v625 = vpack.c.b16 %v485, %v480
      %v626 = vpack.c.b16 %v486, %v481
      %v627 = vpack.c.b16 %v487, %v482
      %v628 = vpack.c.b16 %v488, %v483
      %v629 = vpack.c.b16 %v494, %v489
      %v630 = vpack.c.b16 %v495, %v490
      %v631 = vpack.c.b16 %v496, %v491
      %v632 = vpack.c.b16 %v497, %v492
      %v633 = vpack.c.b16 %v498, %v493
      %v634 = vpack.c.b16 %v504, %v499
      %v635 = vpack.c.b16 %v505, %v500
      %v636 = vpack.c.b16 %v506, %v501
      %v637 = vpack.c.b16 %v507, %v502
      %v638 = vpack.c.b16 %v508, %v503
      %v639 = vpack.c.b16 %v514, %v509
      %v640 = vpack.c.b16 %v515, %v510
      %v641 = vpack.c.b16 %v516, %v511
      %v642 = vpack.c.b16 %v517, %v512
      %v643 = vpack.c.b16 %v518, %v513
      %v644 = vpack.c.b16 %v524, %v519
      %v645 = vpack.c.b16 %v525, %v520
      %v646 = vpack.c.b16 %v526, %v521
      %v647 = vpack.c.b16 %v527, %v522
      %v648 = vpack.c.b16 %v528, %v523
      %v649 = vpack.c.b16 %v534, %v529
      %v650 = vpack.c.b16 %v535, %v530
      %v651 = vpack.c.b16 %v536, %v531
      %v652 = vpack.c.b16 %v537, %v532
      %v653 = vpack.c.b16 %v538, %v533
      %v654 = vpack.c.b16 %v544, %v539
      %v655 = vpack.c.b16 %v545, %v540
      %v656 = vpack.c.b16 %v546, %v541
      %v657 = vpack.c.b16 %v547, %v542
      %v658 = vpack.c.b16 %v548, %v543
      %v659 = vpack.c.b16 %v554, %v549
      %v660 = vpack.c.b16 %v555, %v550
      %v661 = vpack.c.b16 %v556, %v551
      %v662 = vpack.c.b16 %v557, %v552
      %v663 = vpack.c.b16 %v558, %v553
      %v664 = vpack.c.b16 %v564, %v559
      %v665 = vpack.c.b16 %v565, %v560
      %v666 = vpack.c.b16 %v566, %v561
      %v667 = vpack.c.b16 %v567, %v562
      %v668 = vpack.c.b16 %v568, %v563
      %v669 = vpack.c.b16 %v574, %v569
      %v670 = vpack.c.b16 %v575, %v570
      %v671 = vpack.c.b16 %v576, %v571
      %v672 = vpack.c.b16 %v577, %v572
      %v673 = vpack.c.b16 %v578, %v573
      %v674 = vpack.c.b16 %v584, %v579
      %v675 = vpack.c.b16 %v585, %v580
      %v676 = vpack.c.b16 %v586, %v581
      %v677 = vpack.c.b16 %v587, %v582
      %v678 = vpack.c.b16 %v588, %v583
      %v679 = vpack.c.b16 %v594, %v589
      %v680 = vpack.c.b16 %v595, %v590
      %v681 = vpack.c.b16 %v596, %v591
      %v682 = vpack.c.b16 %v597, %v592
      %v683 = vpack.c.b16 %v598, %v593
      %v684 = vpack.c.b16 %v604, %v599
      %v685 = vpack.c.b16 %v605, %v600
      %v686 = vpack.c.b16 %v606, %v601
      %v687 = vpack.c.b16 %v607, %v602
      %v688 = vpack.c.b16 %v608, %v603
      %v825 = vunpack.c.l.b16 %v274
      %v826 = vunpack.c.l.b16 %v275
      %v827 = vunpack.c.l.b16 %v276
      %v828 = vunpack.c.l.b16 %v277
      %v829 = vunpack.c.l.b16 %v278
      %v830 = vunpack.c.l.b16 %v279
      %v831 = vunpack.c.l.b16 %v280
      %v832 = vunpack.c.l.b16 %v281
      %v833 = vunpack.c.l.b16 %v282
      %v834 = vunpack.c.l.b16 %v283
      %v835 = vunpack.c.l.b16 %v284
      %v836 = vunpack.c.l.b16 %v285
      %v837 = vunpack.c.l.b16 %v286
      %v838 = vunpack.c.l.b16 %v287
      %v839 = vunpack.c.l.b16 %v288
      %v840 = vunpack.c.l.b16 %v289
      %v841 = vunpack.c.l.b16 %v290
      %v842 = vunpack.c.l.b16 %v291
      %v843 = vunpack.c.l.b16 %v292
      %v844 = vunpack.c.l.b16 %v293
      %v845 = vunpack.c.l.b16 %v294
      %v846 = vunpack.c.l.b16 %v295
      %v847 = vunpack.c.l.b16 %v296
      %v848 = vunpack.c.l.b16 %v297
      %v849 = vunpack.c.l.b16 %v298
      %v850 = vunpack.c.l.b16 %v299
      %v851 = vunpack.c.l.b16 %v300
      %v852 = vunpack.c.l.b16 %v301
      %v853 = vunpack.c.l.b16 %v302
      %v854 = vunpack.c.l.b16 %v303
      %v855 = vunpack.c.l.b16 %v304
      %v856 = vunpack.c.l.b16 %v305
      %v857 = vunpack.c.l.b16 %v306
      %v858 = vunpack.c.l.b16 %v307
      %v859 = vunpack.c.l.b16 %v308
      %v860 = vunpack.c.l.b16 %v309
      %v861 = vunpack.c.l.b16 %v310
      %v862 = vunpack.c.l.b16 %v311
      %v863 = vunpack.c.l.b16 %v312
      %v864 = vunpack.c.l.b16 %v313
      %v865 = vunpack.c.l.b16 %v314
      %v866 = vunpack.c.l.b16 %v315
      %v867 = vunpack.c.l.b16 %v316
      %v868 = vunpack.c.l.b16 %v317
      %v869 = vunpack.c.l.b16 %v318
      %v870 = vunpack.c.l.b16 %v319
      %v871 = vunpack.c.l.b16 %v320
      %v872 = vunpack.c.l.b16 %v321
      %v873 = vunpack.c.l.b16 %v322
      %v874 = vunpack.c.l.b16 %v323
      %v875 = vunpack.c.l.b16 %v324
      %v876 = vunpack.c.l.b16 %v325
      %v877 = vunpack.c.l.b16 %v326
      %v878 = vunpack.c.l.b16 %v327
      %v879 = vunpack.c.l.b16 %v328
      %v880 = vunpack.c.l.b16 %v329
      %v881 = vunpack.c.l.b16 %v330
      %v882 = vunpack.c.l.b16 %v331
      %v883 = vunpack.c.l.b16 %v332
      %v884 = vunpack.c.l.b16 %v333
      %v885 = vunpack.c.l.b16 %v334
      %v886 = vunpack.c.l.b16 %v335
      %v887 = vunpack.c.l.b16 %v336
      %v888 = vunpack.c.l.b16 %v337
      %v889 = vunpack.c.l.b16 %v338
      %v890 = vunpack.c.l.b16 %v339
      %v891 = vunpack.c.l.b16 %v340
      %v892 = vunpack.c.l.b16 %v341
      %v893 = vunpack.c.l.b16 %v342
      %v894 = vunpack.c.l.b16 %v343
      %v895 = vunpack.c.l.b16 %v344
      %v896 = vunpack.c.l.b16 %v345
      %v897 = vpack.c.b16 %v826, %v825
      %v898 = vpack.c.b16 %v828, %v827
      %v899 = vpack.c.b16 %v830, %v829
      %v900 = vpack.c.b16 %v832, %v831
      %v901 = vpack.c.b16 %v834, %v833
      %v902 = vpack.c.b16 %v836, %v835
      %v903 = vpack.c.b16 %v838, %v837
      %v904 = vpack.c.b16 %v840, %v839
      %v905 = vpack.c.b16 %v842, %v841
      %v906 = vpack.c.b16 %v844, %v843
      %v907 = vpack.c.b16 %v846, %v845
      %v908 = vpack.c.b16 %v848, %v847
      %v909 = vpack.c.b16 %v850, %v849
      %v910 = vpack.c.b16 %v852, %v851
      %v911 = vpack.c.b16 %v854, %v853
      %v912 = vpack.c.b16 %v856, %v855
      %v913 = vpack.c.b16 %v858, %v857
      %v914 = vpack.c.b16 %v860, %v859
      %v915 = vpack.c.b16 %v862, %v861
      %v916 = vpack.c.b16 %v864, %v863
      %v917 = vpack.c.b16 %v866, %v865
      %v918 = vpack.c.b16 %v868, %v867
      %v919 = vpack.c.b16 %v870, %v869
      %v920 = vpack.c.b16 %v872, %v871
      %v921 = vpack.c.b16 %v874, %v873
      %v922 = vpack.c.b16 %v876, %v875
      %v923 = vpack.c.b16 %v878, %v877
      %v924 = vpack.c.b16 %v880, %v879
      %v925 = vpack.c.b16 %v882, %v881
      %v926 = vpack.c.b16 %v884, %v883
      %v927 = vpack.c.b16 %v886, %v885
      %v928 = vpack.c.b16 %v888, %v887
      %v929 = vpack.c.b16 %v890, %v889
      %v930 = vpack.c.b16 %v892, %v891
      %v931 = vpack.c.b16 %v894, %v893
      %v932 = vpack.c.b16 %v896, %v895
      %vm969 = vcmask 523264
      %v971 = vsel %vm969, %v613, 0
      %v974 = vsel %vm969, %v618, 0
      %v977 = vsel %vm969, %v623, 0
      %v980 = vsel %vm969, %v628, 0
      %v983 = vsel %vm969, %v633, 0
      %v986 = vsel %vm969, %v638, 0
      %v989 = vsel %vm969, %v643, 0
      %v992 = vsel %vm969, %v648, 0
      %v995 = vsel %vm969, %v653, 0
      %v998 = vsel %vm969, %v658, 0
      %v1001 = vsel %vm969, %v663, 0
      %v1004 = vsel %vm969, %v668, 0
      %v1007 = vsel %vm969, %v673, 0
      %v1010 = vsel %vm969, %v678, 0
      %v1013 = vsel %vm969, %v683, 0
      %v1016 = vsel %vm969, %v688, 0
      %1018 = vmatprep.subr.bf16.mxu0 0
      %1019 = vmatpush1.bf16.msra.mxu0 %v904
      %1020 = vmatprep.subr.bf16.mxu0 0
      %1021 = vmatpush1.bf16.msra.mxu0 %v903
      %1022 = vmatprep.subr.bf16.mxu0 0
      %1023 = vmatpush1.bf16.msra.mxu0 %v902
      %1024 = vmatprep.subr.bf16.mxu0 0
      %1025 = vmatpush1.bf16.msra.mxu0 %v901
      %1026 = vmatprep.subr.bf16.mxu0 0
      %1027 = vmatpush1.bf16.msra.mxu0 %v900
      %1028 = vmatprep.subr.bf16.mxu0 0
      %1029 = vmatpush1.bf16.msra.mxu0 %v899
      %1030 = vmatprep.subr.bf16.mxu0 0
      %1031 = vmatpush1.bf16.msra.mxu0 %v898
      %1032 = vmatprep.subr.bf16.mxu0 0
      %1033 = vmatpush1.bf16.msra.mxu0 %v897
      %1034 = vmatprep.subr.bf16.mxu0 0
      %1035 = vmatpush2.bf16.msra.mxu0 %v912
      %1036 = vmatprep.subr.bf16.mxu0 0
      %1037 = vmatpush2.bf16.msra.mxu0 %v911
      %1038 = vmatprep.subr.bf16.mxu0 0
      %1039 = vmatpush2.bf16.msra.mxu0 %v910
      %1040 = vmatprep.subr.bf16.mxu0 0
      %1041 = vmatpush2.bf16.msra.mxu0 %v909
      %1042 = vmatprep.subr.bf16.mxu0 0
      %1043 = vmatpush2.bf16.msra.mxu0 %v908
      %1044 = vmatprep.subr.bf16.mxu0 0
      %1045 = vmatpush2.bf16.msra.mxu0 %v907
      %1046 = vmatprep.subr.bf16.mxu0 0
      %1047 = vmatpush2.bf16.msra.mxu0 %v906
      %1048 = vmatprep.subr.bf16.mxu0 0
      %1049 = vmatpush2.bf16.msra.mxu0 %v905
      %1050 = vmatprep.mubr.bf16.mxu0 %v610
      %1051 = vmatmul.mubr.bf16.gmra.mxu0 %v609
      %v1052 = vpop.f32.mrf.mxu0
      %v1053 = vadd.f32 %v351, %v1052
      %v1054 = vpop.f32.mrf.mxu0
      %v1055 = vpop.f32.mrf.mxu0
      %v1056 = vadd.f32 %v351, %v1055
      %v1057 = vpop.f32.mrf.mxu0
      %1058 = vmatprep.mubr.bf16.mxu0 %v615
      %1059 = vmatmul.mubr.bf16.gmra.mxu0 %v614
      %v1060 = vpop.f32.mrf.mxu0
      %v1061 = vadd.f32 %v351, %v1060
      %v1062 = vpop.f32.mrf.mxu0
      %v1063 = vpop.f32.mrf.mxu0
      %v1064 = vadd.f32 %v351, %v1063
      %v1065 = vpop.f32.mrf.mxu0
      %1066 = vmatprep.mubr.bf16.mxu0 %v620
      %1067 = vmatmul.mubr.bf16.gmra.mxu0 %v619
      %v1068 = vpop.f32.mrf.mxu0
      %v1069 = vadd.f32 %v351, %v1068
      %v1070 = vpop.f32.mrf.mxu0
      %v1071 = vpop.f32.mrf.mxu0
      %v1072 = vadd.f32 %v351, %v1071
      %v1073 = vpop.f32.mrf.mxu0
      %1074 = vmatprep.mubr.bf16.mxu0 %v625
      %1075 = vmatmul.mubr.bf16.gmra.mxu0 %v624
      %v1076 = vpop.f32.mrf.mxu0
      %v1077 = vadd.f32 %v351, %v1076
      %v1078 = vpop.f32.mrf.mxu0
      %v1079 = vpop.f32.mrf.mxu0
      %v1080 = vadd.f32 %v351, %v1079
      %v1081 = vpop.f32.mrf.mxu0
      %1082 = vmatprep.mubr.bf16.mxu0 %v630
      %1083 = vmatmul.mubr.bf16.gmra.mxu0 %v629
      %v1084 = vpop.f32.mrf.mxu0
      %v1085 = vadd.f32 %v351, %v1084
      %v1086 = vpop.f32.mrf.mxu0
      %v1087 = vpop.f32.mrf.mxu0
      %v1088 = vadd.f32 %v351, %v1087
      %v1089 = vpop.f32.mrf.mxu0
      %1090 = vmatprep.mubr.bf16.mxu0 %v635
      %1091 = vmatmul.mubr.bf16.gmra.mxu0 %v634
      %v1092 = vpop.f32.mrf.mxu0
      %v1093 = vadd.f32 %v351, %v1092
      %v1094 = vpop.f32.mrf.mxu0
      %v1095 = vpop.f32.mrf.mxu0
      %v1096 = vadd.f32 %v351, %v1095
      %v1097 = vpop.f32.mrf.mxu0
      %1098 = vmatprep.mubr.bf16.mxu0 %v640
      %1099 = vmatmul.mubr.bf16.gmra.mxu0 %v639
      %v1100 = vpop.f32.mrf.mxu0
      %v1101 = vadd.f32 %v351, %v1100
      %v1102 = vpop.f32.mrf.mxu0
      %v1103 = vpop.f32.mrf.mxu0
      %v1104 = vadd.f32 %v351, %v1103
      %v1105 = vpop.f32.mrf.mxu0
      %1106 = vmatprep.mubr.bf16.mxu0 %v645
      %1107 = vmatmul.mubr.bf16.gmra.mxu0 %v644
      %v1108 = vpop.f32.mrf.mxu0
      %v1109 = vadd.f32 %v351, %v1108
      %v1110 = vpop.f32.mrf.mxu0
      %v1111 = vpop.f32.mrf.mxu0
      %v1112 = vadd.f32 %v351, %v1111
      %v1113 = vpop.f32.mrf.mxu0
      %1114 = vmatprep.mubr.bf16.mxu0 %v650
      %1115 = vmatmul.mubr.bf16.gmra.mxu0 %v649
      %v1116 = vpop.f32.mrf.mxu0
      %v1117 = vadd.f32 %v351, %v1116
      %v1118 = vpop.f32.mrf.mxu0
      %v1119 = vpop.f32.mrf.mxu0
      %v1120 = vadd.f32 %v351, %v1119
      %v1121 = vpop.f32.mrf.mxu0
      %1122 = vmatprep.mubr.bf16.mxu0 %v655
      %1123 = vmatmul.mubr.bf16.gmra.mxu0 %v654
      %v1124 = vpop.f32.mrf.mxu0
      %v1125 = vadd.f32 %v351, %v1124
      %v1126 = vpop.f32.mrf.mxu0
      %v1127 = vpop.f32.mrf.mxu0
      %v1128 = vadd.f32 %v351, %v1127
      %v1129 = vpop.f32.mrf.mxu0
      %1130 = vmatprep.mubr.bf16.mxu0 %v660
      %1131 = vmatmul.mubr.bf16.gmra.mxu0 %v659
      %v1132 = vpop.f32.mrf.mxu0
      %v1133 = vadd.f32 %v351, %v1132
      %v1134 = vpop.f32.mrf.mxu0
      %v1135 = vpop.f32.mrf.mxu0
      %v1136 = vadd.f32 %v351, %v1135
      %v1137 = vpop.f32.mrf.mxu0
      %1138 = vmatprep.mubr.bf16.mxu0 %v665
      %1139 = vmatmul.mubr.bf16.gmra.mxu0 %v664
      %v1140 = vpop.f32.mrf.mxu0
      %v1141 = vadd.f32 %v351, %v1140
      %v1142 = vpop.f32.mrf.mxu0
      %v1143 = vpop.f32.mrf.mxu0
      %v1144 = vadd.f32 %v351, %v1143
      %v1145 = vpop.f32.mrf.mxu0
      %1146 = vmatprep.mubr.bf16.mxu0 %v670
      %1147 = vmatmul.mubr.bf16.gmra.mxu0 %v669
      %v1148 = vpop.f32.mrf.mxu0
      %v1149 = vadd.f32 %v351, %v1148
      %v1150 = vpop.f32.mrf.mxu0
      %v1151 = vpop.f32.mrf.mxu0
      %v1152 = vadd.f32 %v351, %v1151
      %v1153 = vpop.f32.mrf.mxu0
      %1154 = vmatprep.mubr.bf16.mxu0 %v675
      %1155 = vmatmul.mubr.bf16.gmra.mxu0 %v674
      %v1156 = vpop.f32.mrf.mxu0
      %v1157 = vadd.f32 %v351, %v1156
      %v1158 = vpop.f32.mrf.mxu0
      %v1159 = vpop.f32.mrf.mxu0
      %v1160 = vadd.f32 %v351, %v1159
      %v1161 = vpop.f32.mrf.mxu0
      %1162 = vmatprep.mubr.bf16.mxu0 %v680
      %1163 = vmatmul.mubr.bf16.gmra.mxu0 %v679
      %v1164 = vpop.f32.mrf.mxu0
      %v1165 = vadd.f32 %v351, %v1164
      %v1166 = vpop.f32.mrf.mxu0
      %v1167 = vpop.f32.mrf.mxu0
      %v1168 = vadd.f32 %v351, %v1167
      %v1169 = vpop.f32.mrf.mxu0
      %1170 = vmatprep.mubr.bf16.mxu0 %v685
      %1171 = vmatmul.mubr.bf16.gmra.mxu0 %v684
      %v1172 = vpop.f32.mrf.mxu0
      %v1173 = vadd.f32 %v351, %v1172
      %v1174 = vpop.f32.mrf.mxu0
      %v1175 = vpop.f32.mrf.mxu0
      %v1176 = vadd.f32 %v351, %v1175
      %v1177 = vpop.f32.mrf.mxu0
      %1178 = vdwg.mxu0
      %1179 = vmatprep.subr.bf16.mxu0 0
      %1180 = vmatpush1.bf16.msra.mxu0 %v920
      %1181 = vmatprep.subr.bf16.mxu0 0
      %1182 = vmatpush1.bf16.msra.mxu0 %v919
      %1183 = vmatprep.subr.bf16.mxu0 0
      %1184 = vmatpush1.bf16.msra.mxu0 %v918
      %1185 = vmatprep.subr.bf16.mxu0 0
      %1186 = vmatpush1.bf16.msra.mxu0 %v917
      %1187 = vmatprep.subr.bf16.mxu0 0
      %1188 = vmatpush1.bf16.msra.mxu0 %v916
      %1189 = vmatprep.subr.bf16.mxu0 0
      %1190 = vmatpush1.bf16.msra.mxu0 %v915
      %1191 = vmatprep.subr.bf16.mxu0 0
      %1192 = vmatpush1.bf16.msra.mxu0 %v914
      %1193 = vmatprep.subr.bf16.mxu0 0
      %1194 = vmatpush1.bf16.msra.mxu0 %v913
      %1195 = vmatprep.subr.bf16.mxu0 0
      %1196 = vmatpush2.bf16.msra.mxu0 %v928
      %1197 = vmatprep.subr.bf16.mxu0 0
      %1198 = vmatpush2.bf16.msra.mxu0 %v927
      %1199 = vmatprep.subr.bf16.mxu0 0
      %1200 = vmatpush2.bf16.msra.mxu0 %v926
      %1201 = vmatprep.subr.bf16.mxu0 0
      %1202 = vmatpush2.bf16.msra.mxu0 %v925
      %1203 = vmatprep.subr.bf16.mxu0 0
      %1204 = vmatpush2.bf16.msra.mxu0 %v924
      %1205 = vmatprep.subr.bf16.mxu0 0
      %1206 = vmatpush2.bf16.msra.mxu0 %v923
      %1207 = vmatprep.subr.bf16.mxu0 0
      %1208 = vmatpush2.bf16.msra.mxu0 %v922
      %1209 = vmatprep.subr.bf16.mxu0 0
      %1210 = vmatpush2.bf16.msra.mxu0 %v921
      %1211 = vmatprep.mubr.bf16.mxu0 %v612
      %1212 = vmatmul.mubr.bf16.gmra.mxu0 %v611
      %v1213 = vpop.f32.mrf.mxu0
      %v1214 = vadd.f32 %v1053, %v1213
      %v1215 = vpop.f32.mrf.mxu0
      %v1216 = vpop.f32.mrf.mxu0
      %v1217 = vadd.f32 %v1056, %v1216
      %v1218 = vpop.f32.mrf.mxu0
      %1219 = vmatprep.mubr.bf16.mxu0 %v617
      %1220 = vmatmul.mubr.bf16.gmra.mxu0 %v616
      %v1221 = vpop.f32.mrf.mxu0
      %v1222 = vadd.f32 %v1061, %v1221
      %v1223 = vpop.f32.mrf.mxu0
      %v1224 = vpop.f32.mrf.mxu0
      %v1225 = vadd.f32 %v1064, %v1224
      %v1226 = vpop.f32.mrf.mxu0
      %1227 = vmatprep.mubr.bf16.mxu0 %v622
      %1228 = vmatmul.mubr.bf16.gmra.mxu0 %v621
      %v1229 = vpop.f32.mrf.mxu0
      %v1230 = vadd.f32 %v1069, %v1229
      %v1231 = vpop.f32.mrf.mxu0
      %v1232 = vpop.f32.mrf.mxu0
      %v1233 = vadd.f32 %v1072, %v1232
      %v1234 = vpop.f32.mrf.mxu0
      %1235 = vmatprep.mubr.bf16.mxu0 %v627
      %1236 = vmatmul.mubr.bf16.gmra.mxu0 %v626
      %v1237 = vpop.f32.mrf.mxu0
      %v1238 = vadd.f32 %v1077, %v1237
      %v1239 = vpop.f32.mrf.mxu0
      %v1240 = vpop.f32.mrf.mxu0
      %v1241 = vadd.f32 %v1080, %v1240
      %v1242 = vpop.f32.mrf.mxu0
      %1243 = vmatprep.mubr.bf16.mxu0 %v632
      %1244 = vmatmul.mubr.bf16.gmra.mxu0 %v631
      %v1245 = vpop.f32.mrf.mxu0
      %v1246 = vadd.f32 %v1085, %v1245
      %v1247 = vpop.f32.mrf.mxu0
      %v1248 = vpop.f32.mrf.mxu0
      %v1249 = vadd.f32 %v1088, %v1248
      %v1250 = vpop.f32.mrf.mxu0
      %1251 = vmatprep.mubr.bf16.mxu0 %v637
      %1252 = vmatmul.mubr.bf16.gmra.mxu0 %v636
      %v1253 = vpop.f32.mrf.mxu0
      %v1254 = vadd.f32 %v1093, %v1253
      %v1255 = vpop.f32.mrf.mxu0
      %v1256 = vpop.f32.mrf.mxu0
      %v1257 = vadd.f32 %v1096, %v1256
      %v1258 = vpop.f32.mrf.mxu0
      %1259 = vmatprep.mubr.bf16.mxu0 %v642
      %1260 = vmatmul.mubr.bf16.gmra.mxu0 %v641
      %v1261 = vpop.f32.mrf.mxu0
      %v1262 = vadd.f32 %v1101, %v1261
      %v1263 = vpop.f32.mrf.mxu0
      %v1264 = vpop.f32.mrf.mxu0
      %v1265 = vadd.f32 %v1104, %v1264
      %v1266 = vpop.f32.mrf.mxu0
      %1267 = vmatprep.mubr.bf16.mxu0 %v647
      %1268 = vmatmul.mubr.bf16.gmra.mxu0 %v646
      %v1269 = vpop.f32.mrf.mxu0
      %v1270 = vadd.f32 %v1109, %v1269
      %v1271 = vpop.f32.mrf.mxu0
      %v1272 = vpop.f32.mrf.mxu0
      %v1273 = vadd.f32 %v1112, %v1272
      %v1274 = vpop.f32.mrf.mxu0
      %1275 = vmatprep.mubr.bf16.mxu0 %v652
      %1276 = vmatmul.mubr.bf16.gmra.mxu0 %v651
      %v1277 = vpop.f32.mrf.mxu0
      %v1278 = vadd.f32 %v1117, %v1277
      %v1279 = vpop.f32.mrf.mxu0
      %v1280 = vpop.f32.mrf.mxu0
      %v1281 = vadd.f32 %v1120, %v1280
      %v1282 = vpop.f32.mrf.mxu0
      %1283 = vmatprep.mubr.bf16.mxu0 %v657
      %1284 = vmatmul.mubr.bf16.gmra.mxu0 %v656
      %v1285 = vpop.f32.mrf.mxu0
      %v1286 = vadd.f32 %v1125, %v1285
      %v1287 = vpop.f32.mrf.mxu0
      %v1288 = vpop.f32.mrf.mxu0
      %v1289 = vadd.f32 %v1128, %v1288
      %v1290 = vpop.f32.mrf.mxu0
      %1291 = vmatprep.mubr.bf16.mxu0 %v662
      %1292 = vmatmul.mubr.bf16.gmra.mxu0 %v661
      %v1293 = vpop.f32.mrf.mxu0
      %v1294 = vadd.f32 %v1133, %v1293
      %v1295 = vpop.f32.mrf.mxu0
      %v1296 = vpop.f32.mrf.mxu0
      %v1297 = vadd.f32 %v1136, %v1296
      %v1298 = vpop.f32.mrf.mxu0
      %1299 = vmatprep.mubr.bf16.mxu0 %v667
      %1300 = vmatmul.mubr.bf16.gmra.mxu0 %v666
      %v1301 = vpop.f32.mrf.mxu0
      %v1302 = vadd.f32 %v1141, %v1301
      %v1303 = vpop.f32.mrf.mxu0
      %v1304 = vpop.f32.mrf.mxu0
      %v1305 = vadd.f32 %v1144, %v1304
      %v1306 = vpop.f32.mrf.mxu0
      %1307 = vmatprep.mubr.bf16.mxu0 %v672
      %1308 = vmatmul.mubr.bf16.gmra.mxu0 %v671
      %v1309 = vpop.f32.mrf.mxu0
      %v1310 = vadd.f32 %v1149, %v1309
      %v1311 = vpop.f32.mrf.mxu0
      %v1312 = vpop.f32.mrf.mxu0
      %v1313 = vadd.f32 %v1152, %v1312
      %v1314 = vpop.f32.mrf.mxu0
      %1315 = vmatprep.mubr.bf16.mxu0 %v677
      %1316 = vmatmul.mubr.bf16.gmra.mxu0 %v676
      %v1317 = vpop.f32.mrf.mxu0
      %v1318 = vadd.f32 %v1157, %v1317
      %v1319 = vpop.f32.mrf.mxu0
      %v1320 = vpop.f32.mrf.mxu0
      %v1321 = vadd.f32 %v1160, %v1320
      %v1322 = vpop.f32.mrf.mxu0
      %1323 = vmatprep.mubr.bf16.mxu0 %v682
      %1324 = vmatmul.mubr.bf16.gmra.mxu0 %v681
      %v1325 = vpop.f32.mrf.mxu0
      %v1326 = vadd.f32 %v1165, %v1325
      %v1327 = vpop.f32.mrf.mxu0
      %v1328 = vpop.f32.mrf.mxu0
      %v1329 = vadd.f32 %v1168, %v1328
      %v1330 = vpop.f32.mrf.mxu0
      %1331 = vmatprep.mubr.bf16.mxu0 %v687
      %1332 = vmatmul.mubr.bf16.gmra.mxu0 %v686
      %v1333 = vpop.f32.mrf.mxu0
      %v1334 = vadd.f32 %v1173, %v1333
      %v1335 = vpop.f32.mrf.mxu0
      %v1336 = vpop.f32.mrf.mxu0
      %v1337 = vadd.f32 %v1176, %v1336
      %v1338 = vpop.f32.mrf.mxu0
      %1339 = vdwg.mxu0
      %1340 = vmatprep.subr.bf16.mxu0 0
      %1341 = vmatpush1.bf16.msra.mxu0 0
      %1342 = vmatprep.subr.bf16.mxu0 0
      %1343 = vmatpush1.bf16.msra.mxu0 0
      %1344 = vmatprep.subr.bf16.mxu0 0
      %1345 = vmatpush1.bf16.msra.mxu0 0
      %1346 = vmatprep.subr.bf16.mxu0 0
      %1347 = vmatpush1.bf16.msra.mxu0 0
      %1348 = vmatprep.subr.bf16.mxu0 0
      %1349 = vmatpush1.bf16.msra.mxu0 %v932
      %1350 = vmatprep.subr.bf16.mxu0 0
      %1351 = vmatpush1.bf16.msra.mxu0 %v931
      %1352 = vmatprep.subr.bf16.mxu0 0
      %1353 = vmatpush1.bf16.msra.mxu0 %v930
      %1354 = vmatprep.subr.bf16.mxu0 0
      %1355 = vmatpush1.bf16.msra.mxu0 %v929
      %1356 = vmatprep.subr.bf16.mxu0 0
      %1357 = vmatpush2.bf16.msra.mxu0 0
      %1358 = vmatprep.subr.bf16.mxu0 0
      %1359 = vmatpush2.bf16.msra.mxu0 0
      %1360 = vmatprep.subr.bf16.mxu0 0
      %1361 = vmatpush2.bf16.msra.mxu0 0
      %1362 = vmatprep.subr.bf16.mxu0 0
      %1363 = vmatpush2.bf16.msra.mxu0 0
      %1364 = vmatprep.subr.bf16.mxu0 0
      %1365 = vmatpush2.bf16.msra.mxu0 0
      %1366 = vmatprep.subr.bf16.mxu0 0
      %1367 = vmatpush2.bf16.msra.mxu0 0
      %1368 = vmatprep.subr.bf16.mxu0 0
      %1369 = vmatpush2.bf16.msra.mxu0 0
      %1370 = vmatprep.subr.bf16.mxu0 0
      %1371 = vmatpush2.bf16.msra.mxu0 0
      %1372 = vmatprep.mubr.bf16.mxu0 0
      %1373 = vmatmul.mubr.bf16.gmra.mxu0 %v971
      %v1374 = vpop.f32.mrf.mxu0
      %v1375 = vadd.f32 %v1214, %v1374
      %v1376 = vpop.f32.mrf.mxu0
      %v1377 = vpop.f32.mrf.mxu0
      %v1378 = vadd.f32 %v1217, %v1377
      %v1379 = vpop.f32.mrf.mxu0
      %1380 = vmatprep.mubr.bf16.mxu0 0
      %1381 = vmatmul.mubr.bf16.gmra.mxu0 %v974
      %v1382 = vpop.f32.mrf.mxu0
      %v1383 = vadd.f32 %v1222, %v1382
      %v1384 = vpop.f32.mrf.mxu0
      %v1385 = vpop.f32.mrf.mxu0
      %v1386 = vadd.f32 %v1225, %v1385
      %v1387 = vpop.f32.mrf.mxu0
      %1388 = vmatprep.mubr.bf16.mxu0 0
      %1389 = vmatmul.mubr.bf16.gmra.mxu0 %v977
      %v1390 = vpop.f32.mrf.mxu0
      %v1391 = vadd.f32 %v1230, %v1390
      %v1392 = vpop.f32.mrf.mxu0
      %v1393 = vpop.f32.mrf.mxu0
      %v1394 = vadd.f32 %v1233, %v1393
      %v1395 = vpop.f32.mrf.mxu0
      %1396 = vmatprep.mubr.bf16.mxu0 0
      %1397 = vmatmul.mubr.bf16.gmra.mxu0 %v980
      %v1398 = vpop.f32.mrf.mxu0
      %v1399 = vadd.f32 %v1238, %v1398
      %v1400 = vpop.f32.mrf.mxu0
      %v1401 = vpop.f32.mrf.mxu0
      %v1402 = vadd.f32 %v1241, %v1401
      %v1403 = vpop.f32.mrf.mxu0
      %1404 = vmatprep.mubr.bf16.mxu0 0
      %1405 = vmatmul.mubr.bf16.gmra.mxu0 %v983
      %v1406 = vpop.f32.mrf.mxu0
      %v1407 = vadd.f32 %v1246, %v1406
      %v1408 = vpop.f32.mrf.mxu0
      %v1409 = vpop.f32.mrf.mxu0
      %v1410 = vadd.f32 %v1249, %v1409
      %v1411 = vpop.f32.mrf.mxu0
      %1412 = vmatprep.mubr.bf16.mxu0 0
      %1413 = vmatmul.mubr.bf16.gmra.mxu0 %v986
      %v1414 = vpop.f32.mrf.mxu0
      %v1415 = vadd.f32 %v1254, %v1414
      %v1416 = vpop.f32.mrf.mxu0
      %v1417 = vpop.f32.mrf.mxu0
      %v1418 = vadd.f32 %v1257, %v1417
      %v1419 = vpop.f32.mrf.mxu0
      %1420 = vmatprep.mubr.bf16.mxu0 0
      %1421 = vmatmul.mubr.bf16.gmra.mxu0 %v989
      %v1422 = vpop.f32.mrf.mxu0
      %v1423 = vadd.f32 %v1262, %v1422
      %v1424 = vpop.f32.mrf.mxu0
      %v1425 = vpop.f32.mrf.mxu0
      %v1426 = vadd.f32 %v1265, %v1425
      %v1427 = vpop.f32.mrf.mxu0
      %1428 = vmatprep.mubr.bf16.mxu0 0
      %1429 = vmatmul.mubr.bf16.gmra.mxu0 %v992
      %v1430 = vpop.f32.mrf.mxu0
      %v1431 = vadd.f32 %v1270, %v1430
      %v1432 = vpop.f32.mrf.mxu0
      %v1433 = vpop.f32.mrf.mxu0
      %v1434 = vadd.f32 %v1273, %v1433
      %v1435 = vpop.f32.mrf.mxu0
      %1436 = vmatprep.mubr.bf16.mxu0 0
      %1437 = vmatmul.mubr.bf16.gmra.mxu0 %v995
      %v1438 = vpop.f32.mrf.mxu0
      %v1439 = vadd.f32 %v1278, %v1438
      %v1440 = vpop.f32.mrf.mxu0
      %v1441 = vpop.f32.mrf.mxu0
      %v1442 = vadd.f32 %v1281, %v1441
      %v1443 = vpop.f32.mrf.mxu0
      %1444 = vmatprep.mubr.bf16.mxu0 0
      %1445 = vmatmul.mubr.bf16.gmra.mxu0 %v998
      %v1446 = vpop.f32.mrf.mxu0
      %v1447 = vadd.f32 %v1286, %v1446
      %v1448 = vpop.f32.mrf.mxu0
      %v1449 = vpop.f32.mrf.mxu0
      %v1450 = vadd.f32 %v1289, %v1449
      %v1451 = vpop.f32.mrf.mxu0
      %1452 = vmatprep.mubr.bf16.mxu0 0
      %1453 = vmatmul.mubr.bf16.gmra.mxu0 %v1001
      %v1454 = vpop.f32.mrf.mxu0
      %v1455 = vadd.f32 %v1294, %v1454
      %v1456 = vpop.f32.mrf.mxu0
      %v1457 = vpop.f32.mrf.mxu0
      %v1458 = vadd.f32 %v1297, %v1457
      %v1459 = vpop.f32.mrf.mxu0
      %1460 = vmatprep.mubr.bf16.mxu0 0
      %1461 = vmatmul.mubr.bf16.gmra.mxu0 %v1004
      %v1462 = vpop.f32.mrf.mxu0
      %v1463 = vadd.f32 %v1302, %v1462
      %v1464 = vpop.f32.mrf.mxu0
      %v1465 = vpop.f32.mrf.mxu0
      %v1466 = vadd.f32 %v1305, %v1465
      %v1467 = vpop.f32.mrf.mxu0
      %1468 = vmatprep.mubr.bf16.mxu0 0
      %1469 = vmatmul.mubr.bf16.gmra.mxu0 %v1007
      %v1470 = vpop.f32.mrf.mxu0
      %v1471 = vadd.f32 %v1310, %v1470
      %v1472 = vpop.f32.mrf.mxu0
      %v1473 = vpop.f32.mrf.mxu0
      %v1474 = vadd.f32 %v1313, %v1473
      %v1475 = vpop.f32.mrf.mxu0
      %1476 = vmatprep.mubr.bf16.mxu0 0
      %1477 = vmatmul.mubr.bf16.gmra.mxu0 %v1010
      %v1478 = vpop.f32.mrf.mxu0
      %v1479 = vadd.f32 %v1318, %v1478
      %v1480 = vpop.f32.mrf.mxu0
      %v1481 = vpop.f32.mrf.mxu0
      %v1482 = vadd.f32 %v1321, %v1481
      %v1483 = vpop.f32.mrf.mxu0
      %1484 = vmatprep.mubr.bf16.mxu0 0
      %1485 = vmatmul.mubr.bf16.gmra.mxu0 %v1013
      %v1486 = vpop.f32.mrf.mxu0
      %v1487 = vadd.f32 %v1326, %v1486
      %v1488 = vpop.f32.mrf.mxu0
      %v1489 = vpop.f32.mrf.mxu0
      %v1490 = vadd.f32 %v1329, %v1489
      %v1491 = vpop.f32.mrf.mxu0
      %1492 = vmatprep.mubr.bf16.mxu0 0
      %1493 = vmatmul.mubr.bf16.gmra.mxu0 %v1016
      %v1494 = vpop.f32.mrf.mxu0
      %v1495 = vadd.f32 %v1334, %v1494
      %v1496 = vpop.f32.mrf.mxu0
      %v1497 = vpop.f32.mrf.mxu0
      %v1498 = vadd.f32 %v1337, %v1497
      %v1499 = vpop.f32.mrf.mxu0
      %1500 = vdwg.mxu0
      %v1501 = vmax.f32 %v1375, 0.0
      %v1502 = vmax.f32 %v1378, 0.0
      %v1503 = vmax.f32 %v1383, 0.0
      %v1504 = vmax.f32 %v1386, 0.0
      %v1505 = vmax.f32 %v1391, 0.0
      %v1506 = vmax.f32 %v1394, 0.0
      %v1507 = vmax.f32 %v1399, 0.0
      %v1508 = vmax.f32 %v1402, 0.0
      %v1509 = vmax.f32 %v1407, 0.0
      %v1510 = vmax.f32 %v1410, 0.0
      %v1511 = vmax.f32 %v1415, 0.0
      %v1512 = vmax.f32 %v1418, 0.0
      %v1513 = vmax.f32 %v1423, 0.0
      %v1514 = vmax.f32 %v1426, 0.0
      %v1515 = vmax.f32 %v1431, 0.0
      %v1516 = vmax.f32 %v1434, 0.0
      %v1517 = vmax.f32 %v1439, 0.0
      %v1518 = vmax.f32 %v1442, 0.0
      %v1519 = vmax.f32 %v1447, 0.0
      %v1520 = vmax.f32 %v1450, 0.0
      %v1521 = vmax.f32 %v1455, 0.0
      %v1522 = vmax.f32 %v1458, 0.0
      %v1523 = vmax.f32 %v1463, 0.0
      %v1524 = vmax.f32 %v1466, 0.0
      %v1525 = vmax.f32 %v1471, 0.0
      %v1526 = vmax.f32 %v1474, 0.0
      %v1527 = vmax.f32 %v1479, 0.0
      %v1528 = vmax.f32 %v1482, 0.0
      %v1529 = vmax.f32 %v1487, 0.0
      %v1530 = vmax.f32 %v1490, 0.0
      %v1531 = vmax.f32 %v1495, 0.0
      %v1532 = vmax.f32 %v1498, 0.0
      %v1533 = vpack.c.bf16 %v1502, %v1501
      %v1534 = vpack.c.bf16 %v1504, %v1503
      %v1535 = vpack.c.bf16 %v1506, %v1505
      %v1536 = vpack.c.bf16 %v1508, %v1507
      %v1537 = vpack.c.bf16 %v1510, %v1509
      %v1538 = vpack.c.bf16 %v1512, %v1511
      %v1539 = vpack.c.bf16 %v1514, %v1513
      %v1540 = vpack.c.bf16 %v1516, %v1515
      %v1541 = vpack.c.bf16 %v1518, %v1517
      %v1542 = vpack.c.bf16 %v1520, %v1519
      %v1543 = vpack.c.bf16 %v1522, %v1521
      %v1544 = vpack.c.bf16 %v1524, %v1523
      %v1545 = vpack.c.bf16 %v1526, %v1525
      %v1546 = vpack.c.bf16 %v1528, %v1527
      %v1547 = vpack.c.bf16 %v1530, %v1529
      %v1548 = vpack.c.bf16 %v1532, %v1531
      %v1565 = vunpack.c.l.b16 %v1533
      %v1566 = vunpack.c.h.b16 %v1533
      %v1567 = vunpack.c.l.b16 %v1534
      %v1568 = vunpack.c.h.b16 %v1534
      %v1569 = vunpack.c.l.b16 %v1535
      %v1570 = vunpack.c.h.b16 %v1535
      %v1571 = vunpack.c.l.b16 %v1536
      %v1572 = vunpack.c.h.b16 %v1536
      %v1573 = vunpack.c.l.b16 %v1537
      %v1574 = vunpack.c.h.b16 %v1537
      %v1575 = vunpack.c.l.b16 %v1538
      %v1576 = vunpack.c.h.b16 %v1538
      %v1577 = vunpack.c.l.b16 %v1539
      %v1578 = vunpack.c.h.b16 %v1539
      %v1579 = vunpack.c.l.b16 %v1540
      %v1580 = vunpack.c.h.b16 %v1540
      %v1581 = vunpack.c.l.b16 %v1541
      %v1582 = vunpack.c.h.b16 %v1541
      %v1583 = vunpack.c.l.b16 %v1542
      %v1584 = vunpack.c.h.b16 %v1542
      %v1585 = vunpack.c.l.b16 %v1543
      %v1586 = vunpack.c.h.b16 %v1543
      %v1587 = vunpack.c.l.b16 %v1544
      %v1588 = vunpack.c.h.b16 %v1544
      %v1589 = vunpack.c.l.b16 %v1545
      %v1590 = vunpack.c.h.b16 %v1545
      %v1591 = vunpack.c.l.b16 %v1546
      %v1592 = vunpack.c.h.b16 %v1546
      %v1593 = vunpack.c.l.b16 %v1547
      %v1594 = vunpack.c.h.b16 %v1547
      %v1595 = vunpack.c.l.b16 %v1548
      %v1596 = vunpack.c.h.b16 %v1548
      %v1597 = vpack.c.b16 %v1565, %v1565
      %v1598 = vpack.c.b16 %v1566, %v1566
      %v1599 = vpack.c.b16 %v1567, %v1567
      %v1600 = vpack.c.b16 %v1568, %v1568
      %v1601 = vpack.c.b16 %v1569, %v1569
      %v1602 = vpack.c.b16 %v1570, %v1570
      %v1603 = vpack.c.b16 %v1571, %v1571
      %v1604 = vpack.c.b16 %v1572, %v1572
      %v1605 = vpack.c.b16 %v1573, %v1573
      %v1606 = vpack.c.b16 %v1574, %v1574
      %v1607 = vpack.c.b16 %v1575, %v1575
      %v1608 = vpack.c.b16 %v1576, %v1576
      %v1609 = vpack.c.b16 %v1577, %v1577
      %v1610 = vpack.c.b16 %v1578, %v1578
      %v1611 = vpack.c.b16 %v1579, %v1579
      %v1612 = vpack.c.b16 %v1580, %v1580
      %v1613 = vpack.c.b16 %v1581, %v1581
      %v1614 = vpack.c.b16 %v1582, %v1582
      %v1615 = vpack.c.b16 %v1583, %v1583
      %v1616 = vpack.c.b16 %v1584, %v1584
      %v1617 = vpack.c.b16 %v1585, %v1585
      %v1618 = vpack.c.b16 %v1586, %v1586
      %v1619 = vpack.c.b16 %v1587, %v1587
      %v1620 = vpack.c.b16 %v1588, %v1588
      %v1621 = vpack.c.b16 %v1589, %v1589
      %v1622 = vpack.c.b16 %v1590, %v1590
      %v1623 = vpack.c.b16 %v1591, %v1591
      %v1624 = vpack.c.b16 %v1592, %v1592
      %v1625 = vpack.c.b16 %v1593, %v1593
      %v1626 = vpack.c.b16 %v1594, %v1594
      %v1627 = vpack.c.b16 %v1595, %v1595
      %v1628 = vpack.c.b16 %v1596, %v1596
      %vm1661 = vcmask 519168
      %1662 = vst.msk [vmem:[%s175] sm:$0xf] %vm1661, %v1597
      %1663 = vst.msk [vmem:[%s175 + $0x4] sm:$0xf] %vm1661, %v1598
      %1664 = vst.msk [vmem:[%s175 + $0x8] sm:$0xf] %vm1661, %v1599
      %1665 = vst.msk [vmem:[%s175 + $0xc] sm:$0xf] %vm1661, %v1600
      %1666 = vst.msk [vmem:[%s175 + $0x10] sm:$0xf] %vm1661, %v1601
      %1667 = vst.msk [vmem:[%s175 + $0x14] sm:$0xf] %vm1661, %v1602
      %1668 = vst.msk [vmem:[%s175 + $0x18] sm:$0xf] %vm1661, %v1603
      %1669 = vst.msk [vmem:[%s175 + $0x1c] sm:$0xf] %vm1661, %v1604
      %1670 = vst.msk [vmem:[%s175 + $0x20] sm:$0xf] %vm1661, %v1605
      %1671 = vst.msk [vmem:[%s175 + $0x24] sm:$0xf] %vm1661, %v1606
      %1672 = vst.msk [vmem:[%s175 + $0x28] sm:$0xf] %vm1661, %v1607
      %1673 = vst.msk [vmem:[%s175 + $0x2c] sm:$0xf] %vm1661, %v1608
      %1674 = vst.msk [vmem:[%s175 + $0x30] sm:$0xf] %vm1661, %v1609
      %1675 = vst.msk [vmem:[%s175 + $0x34] sm:$0xf] %vm1661, %v1610
      %1676 = vst.msk [vmem:[%s175 + $0x38] sm:$0xf] %vm1661, %v1611
      %1677 = vst.msk [vmem:[%s175 + $0x3c] sm:$0xf] %vm1661, %v1612
      %1678 = vst.msk [vmem:[%s175 + $0x40] sm:$0xf] %vm1661, %v1613
      %1679 = vst.msk [vmem:[%s175 + $0x44] sm:$0xf] %vm1661, %v1614
      %1680 = vst.msk [vmem:[%s175 + $0x48] sm:$0xf] %vm1661, %v1615
      %1681 = vst.msk [vmem:[%s175 + $0x4c] sm:$0xf] %vm1661, %v1616
      %1682 = vst.msk [vmem:[%s175 + $0x50] sm:$0xf] %vm1661, %v1617
      %1683 = vst.msk [vmem:[%s175 + $0x54] sm:$0xf] %vm1661, %v1618
      %1684 = vst.msk [vmem:[%s175 + $0x58] sm:$0xf] %vm1661, %v1619
      %1685 = vst.msk [vmem:[%s175 + $0x5c] sm:$0xf] %vm1661, %v1620
      %1686 = vst.msk [vmem:[%s175 + $0x60] sm:$0xf] %vm1661, %v1621
      %1687 = vst.msk [vmem:[%s175 + $0x64] sm:$0xf] %vm1661, %v1622
      %1688 = vst.msk [vmem:[%s175 + $0x68] sm:$0xf] %vm1661, %v1623
      %1689 = vst.msk [vmem:[%s175 + $0x6c] sm:$0xf] %vm1661, %v1624
      %1690 = vst.msk [vmem:[%s175 + $0x70] sm:$0xf] %vm1661, %v1625
      %1691 = vst.msk [vmem:[%s175 + $0x74] sm:$0xf] %vm1661, %v1626
      %1692 = vst.msk [vmem:[%s175 + $0x78] sm:$0xf] %vm1661, %v1627
      %1693 = vst.msk [vmem:[%s175 + $0x7c] sm:$0xf] %vm1661, %v1628
      %s1694 = smul.u32 32, %s14
      %p1695 = scmp.lt.s32.totalorder %s1694, 63
      %s1696 = scalar_select %p1695, %s1694, 63
      %s1697 = smul.addr %s1696, 4
      %s1698 = scalar_lea.vmem %s3, %s1697
      // Predicated region
      $region33: #{network_forward.7} parent=31 // pred_check
        %p1699 = pneg %p100
      $region34: #{network_forward.7} parent=31 // pred_check_branch
        %1701 = sbr.rel (%p1699) target = $region36
      $region35: #{network_forward.7} parent=31 // pred_region
        %s1702 = smul.u32 32, %s14
      $region36: #{network_forward.7} parent=31 // pred_fallthru
        _
    $region32: #{network_forward.7} parent=5 // pred_fallthru
      _
    %p1703 = scmp.le.s32.totalorder 2, %s9
    // Predicated region
    $region37: #{network_forward.7} parent=5 // pred_check
      %p1704 = pneg %p1703
    $region38: #{network_forward.7} parent=5 // pred_check_branch
      %1706 = sbr.rel (%p1704) target = $region40
    $region39: #{network_forward.7} parent=5 // pred_region
      %s1707 = ssub.s32 %s9, 2
      // Predicated region
      $region41: #{network_forward.7} parent=39 // pred_check
        %p1708 = pneg %p106
      $region42: #{network_forward.7} parent=39 // pred_check_branch
        %1710 = sbr.rel (%p1708) target = $region44
      $region43: #{network_forward.7} parent=39 // pred_region
        %s1711 = smul.u32 32, %s15
        %p1712 = scmp.lt.s32.totalorder %s1711, 63
        %s1713 = scalar_select %p1712, %s1711, 63
        %s1714 = smul.addr %s1713, 4
        %s1715 = scalar_lea.vmem %s3, %s1714
      $region44: #{network_forward.7} parent=39 // pred_fallthru
        _
    $region40: #{network_forward.7} parent=5 // pred_fallthru
      _
  $region6: #{network_forward.7} parent=0 // loop_footer
    %s13 = sadd.s32 1, %s9
  $region7: #{network_forward.7} parent=0 // loop_footer_branch
    %8 = sbr.rel target = $region3
  $region8: #{network_forward.7} parent=0 // loop_exit
    _

// kernel: network_forward.8
$region0: #{network_forward.8}
  #allocation0 [shape = 'u32[]', space=smem, size = 0x4, offset = 0x4, fixed_abs, tag = 'smem constant byte address 0x4 - core index']
  #allocation1 [shape = 'u32[144,128]{1,0:T(1,128)}', space=vmem, size = 0x12000, scoped, tag = 'internal scratch']
  %s0 = inlined_call_operand.vmem [shape: bf16[256,576], index: 0, kind: input, shape index: {}]
  %s1 = inlined_call_operand.vmem [shape: bf16[576,128], index: 1, kind: input, shape index: {}]
  %s2 = inlined_call_operand.vmem [shape: f32[1,128], index: 2, kind: input, shape index: {}]
  %s3 = inlined_call_operand.vmem [shape: bf16[256,128], index: 3, kind: output, shape index: {}]
  %s4 = sld [smem:[#allocation0]]
  $region22: #{network_forward.8} parent=0
    _
  %s6 = ssub.s32 1, %s4
  %s7 = scalar_select 0, %s6, %s4
  // Predicated region
  $region2: #{network_forward.8} parent=0 // pred_check
    _
  $region3: #{network_forward.8} parent=0 // pred_check_branch
    %9 = sbr.rel (0) target = $region5
  $region4: #{network_forward.8} parent=0 // pred_region
    _
  $region5: #{network_forward.8} parent=0 // pred_fallthru
    _
  // Predicated region
  $region6: #{network_forward.8} parent=0 // pred_check
    _
  $region7: #{network_forward.8} parent=0 // pred_check_branch
    %11 = sbr.rel (0) target = $region9
  $region8: #{network_forward.8} parent=0 // pred_region
    _
  $region9: #{network_forward.8} parent=0 // pred_fallthru
    _
  // Predicated region
  $region10: #{network_forward.8} parent=0 // pred_check
    _
  $region11: #{network_forward.8} parent=0 // pred_check_branch
    %13 = sbr.rel (0) target = $region13
  $region12: #{network_forward.8} parent=0 // pred_region
    _
  $region13: #{network_forward.8} parent=0 // pred_fallthru
    _
  %v15 = vld [vmem:[%s0] sm:$0xff]
  %v16 = vld [vmem:[%s0 + $0x8] sm:$0xff]
  %v17 = vld [vmem:[%s0 + $0x10] sm:$0xf]
  %v18 = vld [vmem:[%s0 + $0x14] sm:$0xff]
  %v19 = vld [vmem:[%s0 + $0x1c] sm:$0xff]
  %v20 = vld [vmem:[%s0 + $0x24] sm:$0xf]
  %v21 = vld [vmem:[%s0 + $0x28] sm:$0xff]
  %v22 = vld [vmem:[%s0 + $0x30] sm:$0xff]
  %v23 = vld [vmem:[%s0 + $0x38] sm:$0xf]
  %v24 = vld [vmem:[%s0 + $0x3c] sm:$0xff]
  %v25 = vld [vmem:[%s0 + $0x44] sm:$0xff]
  %v26 = vld [vmem:[%s0 + $0x4c] sm:$0xf]
  %v27 = vld [vmem:[%s0 + $0x50] sm:$0xff]
  %v28 = vld [vmem:[%s0 + $0x58] sm:$0xff]
  %v29 = vld [vmem:[%s0 + $0x60] sm:$0xf]
  %v30 = vld [vmem:[%s0 + $0x64] sm:$0xff]
  %v31 = vld [vmem:[%s0 + $0x6c] sm:$0xff]
  %v32 = vld [vmem:[%s0 + $0x74] sm:$0xf]
  %v33 = vld [vmem:[%s0 + $0x78] sm:$0xff]
  %v34 = vld [vmem:[%s0 + $0x80] sm:$0xff]
  %v35 = vld [vmem:[%s0 + $0x88] sm:$0xf]
  %v36 = vld [vmem:[%s0 + $0x8c] sm:$0xff]
  %v37 = vld [vmem:[%s0 + $0x94] sm:$0xff]
  %v38 = vld [vmem:[%s0 + $0x9c] sm:$0xf]
  %v39 = vld [vmem:[%s0 + $0xa0] sm:$0xff]
  %v40 = vld [vmem:[%s0 + $0xa8] sm:$0xff]
  %v41 = vld [vmem:[%s0 + $0xb0] sm:$0xf]
  %v42 = vld [vmem:[%s0 + $0xb4] sm:$0xff]
  %v43 = vld [vmem:[%s0 + $0xbc] sm:$0xff]
  %v44 = vld [vmem:[%s0 + $0xc4] sm:$0xf]
  %v45 = vld [vmem:[%s0 + $0xc8] sm:$0xff]
  %v46 = vld [vmem:[%s0 + $0xd0] sm:$0xff]
  %v47 = vld [vmem:[%s0 + $0xd8] sm:$0xf]
  %v48 = vld [vmem:[%s0 + $0xdc] sm:$0xff]
  %v49 = vld [vmem:[%s0 + $0xe4] sm:$0xff]
  %v50 = vld [vmem:[%s0 + $0xec] sm:$0xf]
  %v51 = vld [vmem:[%s0 + $0xf0] sm:$0xff]
  %v52 = vld [vmem:[%s0 + $0xf8] sm:$0xff]
  %v53 = vld [vmem:[%s0 + $0x100] sm:$0xf]
  %v54 = vld [vmem:[%s0 + $0x104] sm:$0xff]
  %v55 = vld [vmem:[%s0 + $0x10c] sm:$0xff]
  %v56 = vld [vmem:[%s0 + $0x114] sm:$0xf]
  %v57 = vld [vmem:[%s0 + $0x118] sm:$0xff]
  %v58 = vld [vmem:[%s0 + $0x120] sm:$0xff]
  %v59 = vld [vmem:[%s0 + $0x128] sm:$0xf]
  %v60 = vld [vmem:[%s0 + $0x12c] sm:$0xff]
  %v61 = vld [vmem:[%s0 + $0x134] sm:$0xff]
  %v62 = vld [vmem:[%s0 + $0x13c] sm:$0xf]
  %v63 = vld [vmem:[%s0 + $0x140] sm:$0xff]
  %v64 = vld [vmem:[%s0 + $0x148] sm:$0xff]
  %v65 = vld [vmem:[%s0 + $0x150] sm:$0xf]
  %v66 = vld [vmem:[%s0 + $0x154] sm:$0xff]
  %v67 = vld [vmem:[%s0 + $0x15c] sm:$0xff]
  %v68 = vld [vmem:[%s0 + $0x164] sm:$0xf]
  %v69 = vld [vmem:[%s0 + $0x168] sm:$0xff]
  %v70 = vld [vmem:[%s0 + $0x170] sm:$0xff]
  %v71 = vld [vmem:[%s0 + $0x178] sm:$0xf]
  %v72 = vld [vmem:[%s0 + $0x17c] sm:$0xff]
  %v73 = vld [vmem:[%s0 + $0x184] sm:$0xff]
  %v74 = vld [vmem:[%s0 + $0x18c] sm:$0xf]
  %v75 = vld [vmem:[%s0 + $0x190] sm:$0xff]
  %v76 = vld [vmem:[%s0 + $0x198] sm:$0xff]
  %v77 = vld [vmem:[%s0 + $0x1a0] sm:$0xf]
  %v78 = vld [vmem:[%s0 + $0x1a4] sm:$0xff]
  %v79 = vld [vmem:[%s0 + $0x1ac] sm:$0xff]
  %v80 = vld [vmem:[%s0 + $0x1b4] sm:$0xf]
  %v81 = vld [vmem:[%s0 + $0x1b8] sm:$0xff]
  %v82 = vld [vmem:[%s0 + $0x1c0] sm:$0xff]
  %v83 = vld [vmem:[%s0 + $0x1c8] sm:$0xf]
  %v84 = vld [vmem:[%s0 + $0x1cc] sm:$0xff]
  %v85 = vld [vmem:[%s0 + $0x1d4] sm:$0xff]
  %v86 = vld [vmem:[%s0 + $0x1dc] sm:$0xf]
  %v87 = vld [vmem:[%s0 + $0x1e0] sm:$0xff]
  %v88 = vld [vmem:[%s0 + $0x1e8] sm:$0xff]
  %v89 = vld [vmem:[%s0 + $0x1f0] sm:$0xf]
  %v90 = vld [vmem:[%s0 + $0x1f4] sm:$0xff]
  %v91 = vld [vmem:[%s0 + $0x1fc] sm:$0xff]
  %v92 = vld [vmem:[%s0 + $0x204] sm:$0xf]
  %v93 = vld [vmem:[%s0 + $0x208] sm:$0xff]
  %v94 = vld [vmem:[%s0 + $0x210] sm:$0xff]
  %v95 = vld [vmem:[%s0 + $0x218] sm:$0xf]
  %v96 = vld [vmem:[%s0 + $0x21c] sm:$0xff]
  %v97 = vld [vmem:[%s0 + $0x224] sm:$0xff]
  %v98 = vld [vmem:[%s0 + $0x22c] sm:$0xf]
  %v99 = vld [vmem:[%s0 + $0x230] sm:$0xff]
  %v100 = vld [vmem:[%s0 + $0x238] sm:$0xff]
  %v101 = vld [vmem:[%s0 + $0x240] sm:$0xf]
  %v102 = vld [vmem:[%s0 + $0x244] sm:$0xff]
  %v103 = vld [vmem:[%s0 + $0x24c] sm:$0xff]
  %v104 = vld [vmem:[%s0 + $0x254] sm:$0xf]
  %v105 = vld [vmem:[%s0 + $0x258] sm:$0xff]
  %v106 = vld [vmem:[%s0 + $0x260] sm:$0xff]
  %v107 = vld [vmem:[%s0 + $0x268] sm:$0xf]
  %v108 = vld [vmem:[%s0 + $0x26c] sm:$0xff]
  %v109 = vld [vmem:[%s0 + $0x274] sm:$0xff]
  %v110 = vld [vmem:[%s0 + $0x27c] sm:$0xf]
  %v111 = vld [vmem:[%s1] sm:$0xf]
  %v112 = vld [vmem:[%s1 + $0x4] sm:$0xf]
  %v113 = vld [vmem:[%s1 + $0x8] sm:$0xf]
  %v114 = vld [vmem:[%s1 + $0xc] sm:$0xf]
  %v115 = vld [vmem:[%s1 + $0x10] sm:$0xf]
  %v116 = vld [vmem:[%s1 + $0x14] sm:$0xf]
  %v117 = vld [vmem:[%s1 + $0x18] sm:$0xf]
  %v118 = vld [vmem:[%s1 + $0x1c] sm:$0xf]
  %v119 = vld [vmem:[%s1 + $0x20] sm:$0xf]
  %v120 = vld [vmem:[%s1 + $0x24] sm:$0xf]
  %v121 = vld [vmem:[%s1 + $0x28] sm:$0xf]
  %v122 = vld [vmem:[%s1 + $0x2c] sm:$0xf]
  %v123 = vld [vmem:[%s1 + $0x30] sm:$0xf]
  %v124 = vld [vmem:[%s1 + $0x34] sm:$0xf]
  %v125 = vld [vmem:[%s1 + $0x38] sm:$0xf]
  %v126 = vld [vmem:[%s1 + $0x3c] sm:$0xf]
  %v127 = vld [vmem:[%s1 + $0x40] sm:$0xf]
  %v128 = vld [vmem:[%s1 + $0x44] sm:$0xf]
  %v129 = vld [vmem:[%s1 + $0x48] sm:$0xf]
  %v130 = vld [vmem:[%s1 + $0x4c] sm:$0xf]
  %v131 = vld [vmem:[%s1 + $0x50] sm:$0xf]
  %v132 = vld [vmem:[%s1 + $0x54] sm:$0xf]
  %v133 = vld [vmem:[%s1 + $0x58] sm:$0xf]
  %v134 = vld [vmem:[%s1 + $0x5c] sm:$0xf]
  %v135 = vld [vmem:[%s1 + $0x60] sm:$0xf]
  %v136 = vld [vmem:[%s1 + $0x64] sm:$0xf]
  %v137 = vld [vmem:[%s1 + $0x68] sm:$0xf]
  %v138 = vld [vmem:[%s1 + $0x6c] sm:$0xf]
  %v139 = vld [vmem:[%s1 + $0x70] sm:$0xf]
  %v140 = vld [vmem:[%s1 + $0x74] sm:$0xf]
  %v141 = vld [vmem:[%s1 + $0x78] sm:$0xf]
  %v142 = vld [vmem:[%s1 + $0x7c] sm:$0xf]
  %v143 = vld [vmem:[%s1 + $0x80] sm:$0xf]
  %v144 = vld [vmem:[%s1 + $0x84] sm:$0xf]
  %v145 = vld [vmem:[%s1 + $0x88] sm:$0xf]
  %v146 = vld [vmem:[%s1 + $0x8c] sm:$0xf]
  %v147 = vld [vmem:[%s1 + $0x90] sm:$0xf]
  %v148 = vld [vmem:[%s1 + $0x94] sm:$0xf]
  %v149 = vld [vmem:[%s1 + $0x98] sm:$0xf]
  %v150 = vld [vmem:[%s1 + $0x9c] sm:$0xf]
  %v151 = vld [vmem:[%s1 + $0xa0] sm:$0xf]
  %v152 = vld [vmem:[%s1 + $0xa4] sm:$0xf]
  %v153 = vld [vmem:[%s1 + $0xa8] sm:$0xf]
  %v154 = vld [vmem:[%s1 + $0xac] sm:$0xf]
  %v155 = vld [vmem:[%s1 + $0xb0] sm:$0xf]
  %v156 = vld [vmem:[%s1 + $0xb4] sm:$0xf]
  %v157 = vld [vmem:[%s1 + $0xb8] sm:$0xf]
  %v158 = vld [vmem:[%s1 + $0xbc] sm:$0xf]
  %v159 = vld [vmem:[%s1 + $0xc0] sm:$0xf]
  %v160 = vld [vmem:[%s1 + $0xc4] sm:$0xf]
  %v161 = vld [vmem:[%s1 + $0xc8] sm:$0xf]
  %v162 = vld [vmem:[%s1 + $0xcc] sm:$0xf]
  %v163 = vld [vmem:[%s1 + $0xd0] sm:$0xf]
  %v164 = vld [vmem:[%s1 + $0xd4] sm:$0xf]
  %v165 = vld [vmem:[%s1 + $0xd8] sm:$0xf]
  %v166 = vld [vmem:[%s1 + $0xdc] sm:$0xf]
  %v167 = vld [vmem:[%s1 + $0xe0] sm:$0xf]
  %v168 = vld [vmem:[%s1 + $0xe4] sm:$0xf]
  %v169 = vld [vmem:[%s1 + $0xe8] sm:$0xf]
  %v170 = vld [vmem:[%s1 + $0xec] sm:$0xf]
  %v171 = vld [vmem:[%s1 + $0xf0] sm:$0xf]
  %v172 = vld [vmem:[%s1 + $0xf4] sm:$0xf]
  %v173 = vld [vmem:[%s1 + $0xf8] sm:$0xf]
  %v174 = vld [vmem:[%s1 + $0xfc] sm:$0xf]
  %v175 = vld [vmem:[%s1 + $0x100] sm:$0xf]
  %v176 = vld [vmem:[%s1 + $0x104] sm:$0xf]
  %v177 = vld [vmem:[%s1 + $0x108] sm:$0xf]
  %v178 = vld [vmem:[%s1 + $0x10c] sm:$0xf]
  %v179 = vld [vmem:[%s1 + $0x110] sm:$0xf]
  %v180 = vld [vmem:[%s1 + $0x114] sm:$0xf]
  %v181 = vld [vmem:[%s1 + $0x118] sm:$0xf]
  %v182 = vld [vmem:[%s1 + $0x11c] sm:$0xf]
  %v183 = vld [vmem:[%s2] sm:$0x1]
  %v185 = vlaneseq
  %v186 = vshrl.u32 %v185, 7
  %v187 = vsub.s32 0, %v186
  %v188 = vrot.slane %v183, %v187
  %v286 = vunpack.c.l.b16 %v15
  %v287 = vunpack.c.h.b16 %v15
  %v288 = vunpack.c.l.b16 %v16
  %v289 = vunpack.c.h.b16 %v16
  %v290 = vunpack.c.l.b16 %v17
  %v291 = vunpack.c.l.b16 %v18
  %v292 = vunpack.c.h.b16 %v18
  %v293 = vunpack.c.l.b16 %v19
  %v294 = vunpack.c.h.b16 %v19
  %v295 = vunpack.c.l.b16 %v20
  %v296 = vunpack.c.l.b16 %v21
  %v297 = vunpack.c.h.b16 %v21
  %v298 = vunpack.c.l.b16 %v22
  %v299 = vunpack.c.h.b16 %v22
  %v300 = vunpack.c.l.b16 %v23
  %v301 = vunpack.c.l.b16 %v24
  %v302 = vunpack.c.h.b16 %v24
  %v303 = vunpack.c.l.b16 %v25
  %v304 = vunpack.c.h.b16 %v25
  %v305 = vunpack.c.l.b16 %v26
  %v306 = vunpack.c.l.b16 %v27
  %v307 = vunpack.c.h.b16 %v27
  %v308 = vunpack.c.l.b16 %v28
  %v309 = vunpack.c.h.b16 %v28
  %v310 = vunpack.c.l.b16 %v29
  %v311 = vunpack.c.l.b16 %v30
  %v312 = vunpack.c.h.b16 %v30
  %v313 = vunpack.c.l.b16 %v31
  %v314 = vunpack.c.h.b16 %v31
  %v315 = vunpack.c.l.b16 %v32
  %v316 = vunpack.c.l.b16 %v33
  %v317 = vunpack.c.h.b16 %v33
  %v318 = vunpack.c.l.b16 %v34
  %v319 = vunpack.c.h.b16 %v34
  %v320 = vunpack.c.l.b16 %v35
  %v321 = vunpack.c.l.b16 %v36
  %v322 = vunpack.c.h.b16 %v36
  %v323 = vunpack.c.l.b16 %v37
  %v324 = vunpack.c.h.b16 %v37
  %v325 = vunpack.c.l.b16 %v38
  %v326 = vunpack.c.l.b16 %v39
  %v327 = vunpack.c.h.b16 %v39
  %v328 = vunpack.c.l.b16 %v40
  %v329 = vunpack.c.h.b16 %v40
  %v330 = vunpack.c.l.b16 %v41
  %v331 = vunpack.c.l.b16 %v42
  %v332 = vunpack.c.h.b16 %v42
  %v333 = vunpack.c.l.b16 %v43
  %v334 = vunpack.c.h.b16 %v43
  %v335 = vunpack.c.l.b16 %v44
  %v336 = vunpack.c.l.b16 %v45
  %v337 = vunpack.c.h.b16 %v45
  %v338 = vunpack.c.l.b16 %v46
  %v339 = vunpack.c.h.b16 %v46
  %v340 = vunpack.c.l.b16 %v47
  %v341 = vunpack.c.l.b16 %v48
  %v342 = vunpack.c.h.b16 %v48
  %v343 = vunpack.c.l.b16 %v49
  %v344 = vunpack.c.h.b16 %v49
  %v345 = vunpack.c.l.b16 %v50
  %v346 = vunpack.c.l.b16 %v51
  %v347 = vunpack.c.h.b16 %v51
  %v348 = vunpack.c.l.b16 %v52
  %v349 = vunpack.c.h.b16 %v52
  %v350 = vunpack.c.l.b16 %v53
  %v351 = vunpack.c.l.b16 %v54
  %v352 = vunpack.c.h.b16 %v54
  %v353 = vunpack.c.l.b16 %v55
  %v354 = vunpack.c.h.b16 %v55
  %v355 = vunpack.c.l.b16 %v56
  %v356 = vunpack.c.l.b16 %v57
  %v357 = vunpack.c.h.b16 %v57
  %v358 = vunpack.c.l.b16 %v58
  %v359 = vunpack.c.h.b16 %v58
  %v360 = vunpack.c.l.b16 %v59
  %v361 = vunpack.c.l.b16 %v60
  %v362 = vunpack.c.h.b16 %v60
  %v363 = vunpack.c.l.b16 %v61
  %v364 = vunpack.c.h.b16 %v61
  %v365 = vunpack.c.l.b16 %v62
  %v366 = vunpack.c.l.b16 %v63
  %v367 = vunpack.c.h.b16 %v63
  %v368 = vunpack.c.l.b16 %v64
  %v369 = vunpack.c.h.b16 %v64
  %v370 = vunpack.c.l.b16 %v65
  %v371 = vunpack.c.l.b16 %v66
  %v372 = vunpack.c.h.b16 %v66
  %v373 = vunpack.c.l.b16 %v67
  %v374 = vunpack.c.h.b16 %v67
  %v375 = vunpack.c.l.b16 %v68
  %v376 = vunpack.c.l.b16 %v69
  %v377 = vunpack.c.h.b16 %v69
  %v378 = vunpack.c.l.b16 %v70
  %v379 = vunpack.c.h.b16 %v70
  %v380 = vunpack.c.l.b16 %v71
  %v381 = vunpack.c.l.b16 %v72
  %v382 = vunpack.c.h.b16 %v72
  %v383 = vunpack.c.l.b16 %v73
  %v384 = vunpack.c.h.b16 %v73
  %v385 = vunpack.c.l.b16 %v74
  %v386 = vunpack.c.l.b16 %v75
  %v387 = vunpack.c.h.b16 %v75
  %v388 = vunpack.c.l.b16 %v76
  %v389 = vunpack.c.h.b16 %v76
  %v390 = vunpack.c.l.b16 %v77
  %v391 = vunpack.c.l.b16 %v78
  %v392 = vunpack.c.h.b16 %v78
  %v393 = vunpack.c.l.b16 %v79
  %v394 = vunpack.c.h.b16 %v79
  %v395 = vunpack.c.l.b16 %v80
  %v396 = vunpack.c.l.b16 %v81
  %v397 = vunpack.c.h.b16 %v81
  %v398 = vunpack.c.l.b16 %v82
  %v399 = vunpack.c.h.b16 %v82
  %v400 = vunpack.c.l.b16 %v83
  %v401 = vunpack.c.l.b16 %v84
  %v402 = vunpack.c.h.b16 %v84
  %v403 = vunpack.c.l.b16 %v85
  %v404 = vunpack.c.h.b16 %v85
  %v405 = vunpack.c.l.b16 %v86
  %v406 = vunpack.c.l.b16 %v87
  %v407 = vunpack.c.h.b16 %v87
  %v408 = vunpack.c.l.b16 %v88
  %v409 = vunpack.c.h.b16 %v88
  %v410 = vunpack.c.l.b16 %v89
  %v411 = vunpack.c.l.b16 %v90
  %v412 = vunpack.c.h.b16 %v90
  %v413 = vunpack.c.l.b16 %v91
  %v414 = vunpack.c.h.b16 %v91
  %v415 = vunpack.c.l.b16 %v92
  %v416 = vunpack.c.l.b16 %v93
  %v417 = vunpack.c.h.b16 %v93
  %v418 = vunpack.c.l.b16 %v94
  %v419 = vunpack.c.h.b16 %v94
  %v420 = vunpack.c.l.b16 %v95
  %v421 = vunpack.c.l.b16 %v96
  %v422 = vunpack.c.h.b16 %v96
  %v423 = vunpack.c.l.b16 %v97
  %v424 = vunpack.c.h.b16 %v97
  %v425 = vunpack.c.l.b16 %v98
  %v426 = vunpack.c.l.b16 %v99
  %v427 = vunpack.c.h.b16 %v99
  %v428 = vunpack.c.l.b16 %v100
  %v429 = vunpack.c.h.b16 %v100
  %v430 = vunpack.c.l.b16 %v101
  %v431 = vunpack.c.l.b16 %v102
  %v432 = vunpack.c.h.b16 %v102
  %v433 = vunpack.c.l.b16 %v103
  %v434 = vunpack.c.h.b16 %v103
  %v435 = vunpack.c.l.b16 %v104
  %v436 = vunpack.c.l.b16 %v105
  %v437 = vunpack.c.h.b16 %v105
  %v438 = vunpack.c.l.b16 %v106
  %v439 = vunpack.c.h.b16 %v106
  %v440 = vunpack.c.l.b16 %v107
  %v441 = vunpack.c.l.b16 %v108
  %v442 = vunpack.c.h.b16 %v108
  %v443 = vunpack.c.l.b16 %v109
  %v444 = vunpack.c.h.b16 %v109
  %v445 = vunpack.c.l.b16 %v110
  %v446 = vpack.c.b16 %v291, %v286
  %v447 = vpack.c.b16 %v292, %v287
  %v448 = vpack.c.b16 %v293, %v288
  %v449 = vpack.c.b16 %v294, %v289
  %v450 = vpack.c.b16 %v295, %v290
  %v451 = vpack.c.b16 %v301, %v296
  %v452 = vpack.c.b16 %v302, %v297
  %v453 = vpack.c.b16 %v303, %v298
  %v454 = vpack.c.b16 %v304, %v299
  %v455 = vpack.c.b16 %v305, %v300
  %v456 = vpack.c.b16 %v311, %v306
  %v457 = vpack.c.b16 %v312, %v307
  %v458 = vpack.c.b16 %v313, %v308
  %v459 = vpack.c.b16 %v314, %v309
  %v460 = vpack.c.b16 %v315, %v310
  %v461 = vpack.c.b16 %v321, %v316
  %v462 = vpack.c.b16 %v322, %v317
  %v463 = vpack.c.b16 %v323, %v318
  %v464 = vpack.c.b16 %v324, %v319
  %v465 = vpack.c.b16 %v325, %v320
  %v466 = vpack.c.b16 %v331, %v326
  %v467 = vpack.c.b16 %v332, %v327
  %v468 = vpack.c.b16 %v333, %v328
  %v469 = vpack.c.b16 %v334, %v329
  %v470 = vpack.c.b16 %v335, %v330
  %v471 = vpack.c.b16 %v341, %v336
  %v472 = vpack.c.b16 %v342, %v337
  %v473 = vpack.c.b16 %v343, %v338
  %v474 = vpack.c.b16 %v344, %v339
  %v475 = vpack.c.b16 %v345, %v340
  %v476 = vpack.c.b16 %v351, %v346
  %v477 = vpack.c.b16 %v352, %v347
  %v478 = vpack.c.b16 %v353, %v348
  %v479 = vpack.c.b16 %v354, %v349
  %v480 = vpack.c.b16 %v355, %v350
  %v481 = vpack.c.b16 %v361, %v356
  %v482 = vpack.c.b16 %v362, %v357
  %v483 = vpack.c.b16 %v363, %v358
  %v484 = vpack.c.b16 %v364, %v359
  %v485 = vpack.c.b16 %v365, %v360
  %v486 = vpack.c.b16 %v371, %v366
  %v487 = vpack.c.b16 %v372, %v367
  %v488 = vpack.c.b16 %v373, %v368
  %v489 = vpack.c.b16 %v374, %v369
  %v490 = vpack.c.b16 %v375, %v370
  %v491 = vpack.c.b16 %v381, %v376
  %v492 = vpack.c.b16 %v382, %v377
  %v493 = vpack.c.b16 %v383, %v378
  %v494 = vpack.c.b16 %v384, %v379
  %v495 = vpack.c.b16 %v385, %v380
  %v496 = vpack.c.b16 %v391, %v386
  %v497 = vpack.c.b16 %v392, %v387
  %v498 = vpack.c.b16 %v393, %v388
  %v499 = vpack.c.b16 %v394, %v389
  %v500 = vpack.c.b16 %v395, %v390
  %v501 = vpack.c.b16 %v401, %v396
  %v502 = vpack.c.b16 %v402, %v397
  %v503 = vpack.c.b16 %v403, %v398
  %v504 = vpack.c.b16 %v404, %v399
  %v505 = vpack.c.b16 %v405, %v400
  %v506 = vpack.c.b16 %v411, %v406
  %v507 = vpack.c.b16 %v412, %v407
  %v508 = vpack.c.b16 %v413, %v408
  %v509 = vpack.c.b16 %v414, %v409
  %v510 = vpack.c.b16 %v415, %v410
  %v511 = vpack.c.b16 %v421, %v416
  %v512 = vpack.c.b16 %v422, %v417
  %v513 = vpack.c.b16 %v423, %v418
  %v514 = vpack.c.b16 %v424, %v419
  %v515 = vpack.c.b16 %v425, %v420
  %v516 = vpack.c.b16 %v431, %v426
  %v517 = vpack.c.b16 %v432, %v427
  %v518 = vpack.c.b16 %v433, %v428
  %v519 = vpack.c.b16 %v434, %v429
  %v520 = vpack.c.b16 %v435, %v430
  %v521 = vpack.c.b16 %v441, %v436
  %v522 = vpack.c.b16 %v442, %v437
  %v523 = vpack.c.b16 %v443, %v438
  %v524 = vpack.c.b16 %v444, %v439
  %v525 = vpack.c.b16 %v445, %v440
  %v662 = vunpack.c.l.b16 %v111
  %v663 = vunpack.c.l.b16 %v112
  %v664 = vunpack.c.l.b16 %v113
  %v665 = vunpack.c.l.b16 %v114
  %v666 = vunpack.c.l.b16 %v115
  %v667 = vunpack.c.l.b16 %v116
  %v668 = vunpack.c.l.b16 %v117
  %v669 = vunpack.c.l.b16 %v118
  %v670 = vunpack.c.l.b16 %v119
  %v671 = vunpack.c.l.b16 %v120
  %v672 = vunpack.c.l.b16 %v121
  %v673 = vunpack.c.l.b16 %v122
  %v674 = vunpack.c.l.b16 %v123
  %v675 = vunpack.c.l.b16 %v124
  %v676 = vunpack.c.l.b16 %v125
  %v677 = vunpack.c.l.b16 %v126
  %v678 = vunpack.c.l.b16 %v127
  %v679 = vunpack.c.l.b16 %v128
  %v680 = vunpack.c.l.b16 %v129
  %v681 = vunpack.c.l.b16 %v130
  %v682 = vunpack.c.l.b16 %v131
  %v683 = vunpack.c.l.b16 %v132
  %v684 = vunpack.c.l.b16 %v133
  %v685 = vunpack.c.l.b16 %v134
  %v686 = vunpack.c.l.b16 %v135
  %v687 = vunpack.c.l.b16 %v136
  %v688 = vunpack.c.l.b16 %v137
  %v689 = vunpack.c.l.b16 %v138
  %v690 = vunpack.c.l.b16 %v139
  %v691 = vunpack.c.l.b16 %v140
  %v692 = vunpack.c.l.b16 %v141
  %v693 = vunpack.c.l.b16 %v142
  %v694 = vunpack.c.l.b16 %v143
  %v695 = vunpack.c.l.b16 %v144
  %v696 = vunpack.c.l.b16 %v145
  %v697 = vunpack.c.l.b16 %v146
  %v698 = vunpack.c.l.b16 %v147
  %v699 = vunpack.c.l.b16 %v148
  %v700 = vunpack.c.l.b16 %v149
  %v701 = vunpack.c.l.b16 %v150
  %v702 = vunpack.c.l.b16 %v151
  %v703 = vunpack.c.l.b16 %v152
  %v704 = vunpack.c.l.b16 %v153
  %v705 = vunpack.c.l.b16 %v154
  %v706 = vunpack.c.l.b16 %v155
  %v707 = vunpack.c.l.b16 %v156
  %v708 = vunpack.c.l.b16 %v157
  %v709 = vunpack.c.l.b16 %v158
  %v710 = vunpack.c.l.b16 %v159
  %v711 = vunpack.c.l.b16 %v160
  %v712 = vunpack.c.l.b16 %v161
  %v713 = vunpack.c.l.b16 %v162
  %v714 = vunpack.c.l.b16 %v163
  %v715 = vunpack.c.l.b16 %v164
  %v716 = vunpack.c.l.b16 %v165
  %v717 = vunpack.c.l.b16 %v166
  %v718 = vunpack.c.l.b16 %v167
  %v719 = vunpack.c.l.b16 %v168
  %v720 = vunpack.c.l.b16 %v169
  %v721 = vunpack.c.l.b16 %v170
  %v722 = vunpack.c.l.b16 %v171
  %v723 = vunpack.c.l.b16 %v172
  %v724 = vunpack.c.l.b16 %v173
  %v725 = vunpack.c.l.b16 %v174
  %v726 = vunpack.c.l.b16 %v175
  %v727 = vunpack.c.l.b16 %v176
  %v728 = vunpack.c.l.b16 %v177
  %v729 = vunpack.c.l.b16 %v178
  %v730 = vunpack.c.l.b16 %v179
  %v731 = vunpack.c.l.b16 %v180
  %v732 = vunpack.c.l.b16 %v181
  %v733 = vunpack.c.l.b16 %v182
  %v734 = vpack.c.b16 %v663, %v662
  %v735 = vpack.c.b16 %v665, %v664
  %v736 = vpack.c.b16 %v667, %v666
  %v737 = vpack.c.b16 %v669, %v668
  %v738 = vpack.c.b16 %v671, %v670
  %v739 = vpack.c.b16 %v673, %v672
  %v740 = vpack.c.b16 %v675, %v674
  %v741 = vpack.c.b16 %v677, %v676
  %v742 = vpack.c.b16 %v679, %v678
  %v743 = vpack.c.b16 %v681, %v680
  %v744 = vpack.c.b16 %v683, %v682
  %v745 = vpack.c.b16 %v685, %v684
  %v746 = vpack.c.b16 %v687, %v686
  %v747 = vpack.c.b16 %v689, %v688
  %v748 = vpack.c.b16 %v691, %v690
  %v749 = vpack.c.b16 %v693, %v692
  %v750 = vpack.c.b16 %v695, %v694
  %v751 = vpack.c.b16 %v697, %v696
  %v752 = vpack.c.b16 %v699, %v698
  %v753 = vpack.c.b16 %v701, %v700
  %v754 = vpack.c.b16 %v703, %v702
  %v755 = vpack.c.b16 %v705, %v704
  %v756 = vpack.c.b16 %v707, %v706
  %v757 = vpack.c.b16 %v709, %v708
  %v758 = vpack.c.b16 %v711, %v710
  %v759 = vpack.c.b16 %v713, %v712
  %v760 = vpack.c.b16 %v715, %v714
  %v761 = vpack.c.b16 %v717, %v716
  %v762 = vpack.c.b16 %v719, %v718
  %v763 = vpack.c.b16 %v721, %v720
  %v764 = vpack.c.b16 %v723, %v722
  %v765 = vpack.c.b16 %v725, %v724
  %v766 = vpack.c.b16 %v727, %v726
  %v767 = vpack.c.b16 %v729, %v728
  %v768 = vpack.c.b16 %v731, %v730
  %v769 = vpack.c.b16 %v733, %v732
  %vm806 = vcmask 523264
  %v808 = vsel %vm806, %v450, 0
  %v811 = vsel %vm806, %v455, 0
  %v814 = vsel %vm806, %v460, 0
  %v817 = vsel %vm806, %v465, 0
  %v820 = vsel %vm806, %v470, 0
  %v823 = vsel %vm806, %v475, 0
  %v826 = vsel %vm806, %v480, 0
  %v829 = vsel %vm806, %v485, 0
  %v832 = vsel %vm806, %v490, 0
  %v835 = vsel %vm806, %v495, 0
  %v838 = vsel %vm806, %v500, 0
  %v841 = vsel %vm806, %v505, 0
  %v844 = vsel %vm806, %v510, 0
  %v847 = vsel %vm806, %v515, 0
  %v850 = vsel %vm806, %v520, 0
  %v853 = vsel %vm806, %v525, 0
  %855 = vmatprep.subr.bf16.mxu0 0
  %856 = vmatpush1.bf16.msra.mxu0 %v741
  %857 = vmatprep.subr.bf16.mxu0 0
  %858 = vmatpush1.bf16.msra.mxu0 %v740
  %859 = vmatprep.subr.bf16.mxu0 0
  %860 = vmatpush1.bf16.msra.mxu0 %v739
  %861 = vmatprep.subr.bf16.mxu0 0
  %862 = vmatpush1.bf16.msra.mxu0 %v738
  %863 = vmatprep.subr.bf16.mxu0 0
  %864 = vmatpush1.bf16.msra.mxu0 %v737
  %865 = vmatprep.subr.bf16.mxu0 0
  %866 = vmatpush1.bf16.msra.mxu0 %v736
  %867 = vmatprep.subr.bf16.mxu0 0
  %868 = vmatpush1.bf16.msra.mxu0 %v735
  %869 = vmatprep.subr.bf16.mxu0 0
  %870 = vmatpush1.bf16.msra.mxu0 %v734
  %871 = vmatprep.subr.bf16.mxu0 0
  %872 = vmatpush2.bf16.msra.mxu0 %v749
  %873 = vmatprep.subr.bf16.mxu0 0
  %874 = vmatpush2.bf16.msra.mxu0 %v748
  %875 = vmatprep.subr.bf16.mxu0 0
  %876 = vmatpush2.bf16.msra.mxu0 %v747
  %877 = vmatprep.subr.bf16.mxu0 0
  %878 = vmatpush2.bf16.msra.mxu0 %v746
  %879 = vmatprep.subr.bf16.mxu0 0
  %880 = vmatpush2.bf16.msra.mxu0 %v745
  %881 = vmatprep.subr.bf16.mxu0 0
  %882 = vmatpush2.bf16.msra.mxu0 %v744
  %883 = vmatprep.subr.bf16.mxu0 0
  %884 = vmatpush2.bf16.msra.mxu0 %v743
  %885 = vmatprep.subr.bf16.mxu0 0
  %886 = vmatpush2.bf16.msra.mxu0 %v742
  %887 = vmatprep.mubr.bf16.mxu0 %v447
  %888 = vmatmul.mubr.bf16.gmra.mxu0 %v446
  %v889 = vpop.f32.mrf.mxu0
  %v890 = vadd.f32 %v188, %v889
  %v891 = vpop.f32.mrf.mxu0
  %v892 = vpop.f32.mrf.mxu0
  %v893 = vadd.f32 %v188, %v892
  %v894 = vpop.f32.mrf.mxu0
  %895 = vmatprep.mubr.bf16.mxu0 %v452
  %896 = vmatmul.mubr.bf16.gmra.mxu0 %v451
  %v897 = vpop.f32.mrf.mxu0
  %v898 = vadd.f32 %v188, %v897
  %v899 = vpop.f32.mrf.mxu0
  %v900 = vpop.f32.mrf.mxu0
  %v901 = vadd.f32 %v188, %v900
  %v902 = vpop.f32.mrf.mxu0
  %903 = vmatprep.mubr.bf16.mxu0 %v457
  %904 = vmatmul.mubr.bf16.gmra.mxu0 %v456
  %v905 = vpop.f32.mrf.mxu0
  %v906 = vadd.f32 %v188, %v905
  %v907 = vpop.f32.mrf.mxu0
  %v908 = vpop.f32.mrf.mxu0
  %v909 = vadd.f32 %v188, %v908
  %v910 = vpop.f32.mrf.mxu0
  %911 = vmatprep.mubr.bf16.mxu0 %v462
  %912 = vmatmul.mubr.bf16.gmra.mxu0 %v461
  %v913 = vpop.f32.mrf.mxu0
  %v914 = vadd.f32 %v188, %v913
  %v915 = vpop.f32.mrf.mxu0
  %v916 = vpop.f32.mrf.mxu0
  %v917 = vadd.f32 %v188, %v916
  %v918 = vpop.f32.mrf.mxu0
  %919 = vmatprep.mubr.bf16.mxu0 %v467
  %920 = vmatmul.mubr.bf16.gmra.mxu0 %v466
  %v921 = vpop.f32.mrf.mxu0
  %v922 = vadd.f32 %v188, %v921
  %v923 = vpop.f32.mrf.mxu0
  %v924 = vpop.f32.mrf.mxu0
  %v925 = vadd.f32 %v188, %v924
  %v926 = vpop.f32.mrf.mxu0
  %927 = vmatprep.mubr.bf16.mxu0 %v472
  %928 = vmatmul.mubr.bf16.gmra.mxu0 %v471
  %v929 = vpop.f32.mrf.mxu0
  %v930 = vadd.f32 %v188, %v929
  %v931 = vpop.f32.mrf.mxu0
  %v932 = vpop.f32.mrf.mxu0
  %v933 = vadd.f32 %v188, %v932
  %v934 = vpop.f32.mrf.mxu0
  %935 = vmatprep.mubr.bf16.mxu0 %v477
  %936 = vmatmul.mubr.bf16.gmra.mxu0 %v476
  %v937 = vpop.f32.mrf.mxu0
  %v938 = vadd.f32 %v188, %v937
  %v939 = vpop.f32.mrf.mxu0
  %v940 = vpop.f32.mrf.mxu0
  %v941 = vadd.f32 %v188, %v940
  %v942 = vpop.f32.mrf.mxu0
  %943 = vmatprep.mubr.bf16.mxu0 %v482
  %944 = vmatmul.mubr.bf16.gmra.mxu0 %v481
  %v945 = vpop.f32.mrf.mxu0
  %v946 = vadd.f32 %v188, %v945
  %v947 = vpop.f32.mrf.mxu0
  %v948 = vpop.f32.mrf.mxu0
  %v949 = vadd.f32 %v188, %v948
  %v950 = vpop.f32.mrf.mxu0
  %951 = vmatprep.mubr.bf16.mxu0 %v487
  %952 = vmatmul.mubr.bf16.gmra.mxu0 %v486
  %v953 = vpop.f32.mrf.mxu0
  %v954 = vadd.f32 %v188, %v953
  %v955 = vpop.f32.mrf.mxu0
  %v956 = vpop.f32.mrf.mxu0
  %v957 = vadd.f32 %v188, %v956
  %v958 = vpop.f32.mrf.mxu0
  %959 = vmatprep.mubr.bf16.mxu0 %v492
  %960 = vmatmul.mubr.bf16.gmra.mxu0 %v491
  %v961 = vpop.f32.mrf.mxu0
  %v962 = vadd.f32 %v188, %v961
  %v963 = vpop.f32.mrf.mxu0
  %v964 = vpop.f32.mrf.mxu0
  %v965 = vadd.f32 %v188, %v964
  %v966 = vpop.f32.mrf.mxu0
  %967 = vmatprep.mubr.bf16.mxu0 %v497
  %968 = vmatmul.mubr.bf16.gmra.mxu0 %v496
  %v969 = vpop.f32.mrf.mxu0
  %v970 = vadd.f32 %v188, %v969
  %v971 = vpop.f32.mrf.mxu0
  %v972 = vpop.f32.mrf.mxu0
  %v973 = vadd.f32 %v188, %v972
  %v974 = vpop.f32.mrf.mxu0
  %975 = vmatprep.mubr.bf16.mxu0 %v502
  %976 = vmatmul.mubr.bf16.gmra.mxu0 %v501
  %v977 = vpop.f32.mrf.mxu0
  %v978 = vadd.f32 %v188, %v977
  %v979 = vpop.f32.mrf.mxu0
  %v980 = vpop.f32.mrf.mxu0
  %v981 = vadd.f32 %v188, %v980
  %v982 = vpop.f32.mrf.mxu0
  %983 = vmatprep.mubr.bf16.mxu0 %v507
  %984 = vmatmul.mubr.bf16.gmra.mxu0 %v506
  %v985 = vpop.f32.mrf.mxu0
  %v986 = vadd.f32 %v188, %v985
  %v987 = vpop.f32.mrf.mxu0
  %v988 = vpop.f32.mrf.mxu0
  %v989 = vadd.f32 %v188, %v988
  %v990 = vpop.f32.mrf.mxu0
  %991 = vmatprep.mubr.bf16.mxu0 %v512
  %992 = vmatmul.mubr.bf16.gmra.mxu0 %v511
  %v993 = vpop.f32.mrf.mxu0
  %v994 = vadd.f32 %v188, %v993
  %v995 = vpop.f32.mrf.mxu0
  %v996 = vpop.f32.mrf.mxu0
  %v997 = vadd.f32 %v188, %v996
  %v998 = vpop.f32.mrf.mxu0
  %999 = vmatprep.mubr.bf16.mxu0 %v517
  %1000 = vmatmul.mubr.bf16.gmra.mxu0 %v516
  %v1001 = vpop.f32.mrf.mxu0
  %v1002 = vadd.f32 %v188, %v1001
  %v1003 = vpop.f32.mrf.mxu0
  %v1004 = vpop.f32.mrf.mxu0
  %v1005 = vadd.f32 %v188, %v1004
  %v1006 = vpop.f32.mrf.mxu0
  %1007 = vmatprep.mubr.bf16.mxu0 %v522
  %1008 = vmatmul.mubr.bf16.gmra.mxu0 %v521
  %v1009 = vpop.f32.mrf.mxu0
  %v1010 = vadd.f32 %v188, %v1009
  %v1011 = vpop.f32.mrf.mxu0
  %v1012 = vpop.f32.mrf.mxu0
  %v1013 = vadd.f32 %v188, %v1012
  %v1014 = vpop.f32.mrf.mxu0
  %1015 = vdwg.mxu0
  %1016 = vmatprep.subr.bf16.mxu0 0
  %1017 = vmatpush1.bf16.msra.mxu0 %v757
  %1018 = vmatprep.subr.bf16.mxu0 0
  %1019 = vmatpush1.bf16.msra.mxu0 %v756
  %1020 = vmatprep.subr.bf16.mxu0 0
  %1021 = vmatpush1.bf16.msra.mxu0 %v755
  %1022 = vmatprep.subr.bf16.mxu0 0
  %1023 = vmatpush1.bf16.msra.mxu0 %v754
  %1024 = vmatprep.subr.bf16.mxu0 0
  %1025 = vmatpush1.bf16.msra.mxu0 %v753
  %1026 = vmatprep.subr.bf16.mxu0 0
  %1027 = vmatpush1.bf16.msra.mxu0 %v752
  %1028 = vmatprep.subr.bf16.mxu0 0
  %1029 = vmatpush1.bf16.msra.mxu0 %v751
  %1030 = vmatprep.subr.bf16.mxu0 0
  %1031 = vmatpush1.bf16.msra.mxu0 %v750
  %1032 = vmatprep.subr.bf16.mxu0 0
  %1033 = vmatpush2.bf16.msra.mxu0 %v765
  %1034 = vmatprep.subr.bf16.mxu0 0
  %1035 = vmatpush2.bf16.msra.mxu0 %v764
  %1036 = vmatprep.subr.bf16.mxu0 0
  %1037 = vmatpush2.bf16.msra.mxu0 %v763
  %1038 = vmatprep.subr.bf16.mxu0 0
  %1039 = vmatpush2.bf16.msra.mxu0 %v762
  %1040 = vmatprep.subr.bf16.mxu0 0
  %1041 = vmatpush2.bf16.msra.mxu0 %v761
  %1042 = vmatprep.subr.bf16.mxu0 0
  %1043 = vmatpush2.bf16.msra.mxu0 %v760
  %1044 = vmatprep.subr.bf16.mxu0 0
  %1045 = vmatpush2.bf16.msra.mxu0 %v759
  %1046 = vmatprep.subr.bf16.mxu0 0
  %1047 = vmatpush2.bf16.msra.mxu0 %v758
  %1048 = vmatprep.mubr.bf16.mxu0 %v449
  %1049 = vmatmul.mubr.bf16.gmra.mxu0 %v448
  %v1050 = vpop.f32.mrf.mxu0
  %v1051 = vadd.f32 %v890, %v1050
  %v1052 = vpop.f32.mrf.mxu0
  %v1053 = vpop.f32.mrf.mxu0
  %v1054 = vadd.f32 %v893, %v1053
  %v1055 = vpop.f32.mrf.mxu0
  %1056 = vmatprep.mubr.bf16.mxu0 %v454
  %1057 = vmatmul.mubr.bf16.gmra.mxu0 %v453
  %v1058 = vpop.f32.mrf.mxu0
  %v1059 = vadd.f32 %v898, %v1058
  %v1060 = vpop.f32.mrf.mxu0
  %v1061 = vpop.f32.mrf.mxu0
  %v1062 = vadd.f32 %v901, %v1061
  %v1063 = vpop.f32.mrf.mxu0
  %1064 = vmatprep.mubr.bf16.mxu0 %v459
  %1065 = vmatmul.mubr.bf16.gmra.mxu0 %v458
  %v1066 = vpop.f32.mrf.mxu0
  %v1067 = vadd.f32 %v906, %v1066
  %v1068 = vpop.f32.mrf.mxu0
  %v1069 = vpop.f32.mrf.mxu0
  %v1070 = vadd.f32 %v909, %v1069
  %v1071 = vpop.f32.mrf.mxu0
  %1072 = vmatprep.mubr.bf16.mxu0 %v464
  %1073 = vmatmul.mubr.bf16.gmra.mxu0 %v463
  %v1074 = vpop.f32.mrf.mxu0
  %v1075 = vadd.f32 %v914, %v1074
  %v1076 = vpop.f32.mrf.mxu0
  %v1077 = vpop.f32.mrf.mxu0
  %v1078 = vadd.f32 %v917, %v1077
  %v1079 = vpop.f32.mrf.mxu0
  %1080 = vmatprep.mubr.bf16.mxu0 %v469
  %1081 = vmatmul.mubr.bf16.gmra.mxu0 %v468
  %v1082 = vpop.f32.mrf.mxu0
  %v1083 = vadd.f32 %v922, %v1082
  %v1084 = vpop.f32.mrf.mxu0
  %v1085 = vpop.f32.mrf.mxu0
  %v1086 = vadd.f32 %v925, %v1085
  %v1087 = vpop.f32.mrf.mxu0
  %1088 = vmatprep.mubr.bf16.mxu0 %v474
  %1089 = vmatmul.mubr.bf16.gmra.mxu0 %v473
  %v1090 = vpop.f32.mrf.mxu0
  %v1091 = vadd.f32 %v930, %v1090
  %v1092 = vpop.f32.mrf.mxu0
  %v1093 = vpop.f32.mrf.mxu0
  %v1094 = vadd.f32 %v933, %v1093
  %v1095 = vpop.f32.mrf.mxu0
  %1096 = vmatprep.mubr.bf16.mxu0 %v479
  %1097 = vmatmul.mubr.bf16.gmra.mxu0 %v478
  %v1098 = vpop.f32.mrf.mxu0
  %v1099 = vadd.f32 %v938, %v1098
  %v1100 = vpop.f32.mrf.mxu0
  %v1101 = vpop.f32.mrf.mxu0
  %v1102 = vadd.f32 %v941, %v1101
  %v1103 = vpop.f32.mrf.mxu0
  %1104 = vmatprep.mubr.bf16.mxu0 %v484
  %1105 = vmatmul.mubr.bf16.gmra.mxu0 %v483
  %v1106 = vpop.f32.mrf.mxu0
  %v1107 = vadd.f32 %v946, %v1106
  %v1108 = vpop.f32.mrf.mxu0
  %v1109 = vpop.f32.mrf.mxu0
  %v1110 = vadd.f32 %v949, %v1109
  %v1111 = vpop.f32.mrf.mxu0
  %1112 = vmatprep.mubr.bf16.mxu0 %v489
  %1113 = vmatmul.mubr.bf16.gmra.mxu0 %v488
  %v1114 = vpop.f32.mrf.mxu0
  %v1115 = vadd.f32 %v954, %v1114
  %v1116 = vpop.f32.mrf.mxu0
  %v1117 = vpop.f32.mrf.mxu0
  %v1118 = vadd.f32 %v957, %v1117
  %v1119 = vpop.f32.mrf.mxu0
  %1120 = vmatprep.mubr.bf16.mxu0 %v494
  %1121 = vmatmul.mubr.bf16.gmra.mxu0 %v493
  %v1122 = vpop.f32.mrf.mxu0
  %v1123 = vadd.f32 %v962, %v1122
  %v1124 = vpop.f32.mrf.mxu0
  %v1125 = vpop.f32.mrf.mxu0
  %v1126 = vadd.f32 %v965, %v1125
  %v1127 = vpop.f32.mrf.mxu0
  %1128 = vmatprep.mubr.bf16.mxu0 %v499
  %1129 = vmatmul.mubr.bf16.gmra.mxu0 %v498
  %v1130 = vpop.f32.mrf.mxu0
  %v1131 = vadd.f32 %v970, %v1130
  %v1132 = vpop.f32.mrf.mxu0
  %v1133 = vpop.f32.mrf.mxu0
  %v1134 = vadd.f32 %v973, %v1133
  %v1135 = vpop.f32.mrf.mxu0
  %1136 = vmatprep.mubr.bf16.mxu0 %v504
  %1137 = vmatmul.mubr.bf16.gmra.mxu0 %v503
  %v1138 = vpop.f32.mrf.mxu0
  %v1139 = vadd.f32 %v978, %v1138
  %v1140 = vpop.f32.mrf.mxu0
  %v1141 = vpop.f32.mrf.mxu0
  %v1142 = vadd.f32 %v981, %v1141
  %v1143 = vpop.f32.mrf.mxu0
  %1144 = vmatprep.mubr.bf16.mxu0 %v509
  %1145 = vmatmul.mubr.bf16.gmra.mxu0 %v508
  %v1146 = vpop.f32.mrf.mxu0
  %v1147 = vadd.f32 %v986, %v1146
  %v1148 = vpop.f32.mrf.mxu0
  %v1149 = vpop.f32.mrf.mxu0
  %v1150 = vadd.f32 %v989, %v1149
  %v1151 = vpop.f32.mrf.mxu0
  %1152 = vmatprep.mubr.bf16.mxu0 %v514
  %1153 = vmatmul.mubr.bf16.gmra.mxu0 %v513
  %v1154 = vpop.f32.mrf.mxu0
  %v1155 = vadd.f32 %v994, %v1154
  %v1156 = vpop.f32.mrf.mxu0
  %v1157 = vpop.f32.mrf.mxu0
  %v1158 = vadd.f32 %v997, %v1157
  %v1159 = vpop.f32.mrf.mxu0
  %1160 = vmatprep.mubr.bf16.mxu0 %v519
  %1161 = vmatmul.mubr.bf16.gmra.mxu0 %v518
  %v1162 = vpop.f32.mrf.mxu0
  %v1163 = vadd.f32 %v1002, %v1162
  %v1164 = vpop.f32.mrf.mxu0
  %v1165 = vpop.f32.mrf.mxu0
  %v1166 = vadd.f32 %v1005, %v1165
  %v1167 = vpop.f32.mrf.mxu0
  %1168 = vmatprep.mubr.bf16.mxu0 %v524
  %1169 = vmatmul.mubr.bf16.gmra.mxu0 %v523
  %v1170 = vpop.f32.mrf.mxu0
  %v1171 = vadd.f32 %v1010, %v1170
  %v1172 = vpop.f32.mrf.mxu0
  %v1173 = vpop.f32.mrf.mxu0
  %v1174 = vadd.f32 %v1013, %v1173
  %v1175 = vpop.f32.mrf.mxu0
  %1176 = vdwg.mxu0
  %1177 = vmatprep.subr.bf16.mxu0 0
  %1178 = vmatpush1.bf16.msra.mxu0 0
  %1179 = vmatprep.subr.bf16.mxu0 0
  %1180 = vmatpush1.bf16.msra.mxu0 0
  %1181 = vmatprep.subr.bf16.mxu0 0
  %1182 = vmatpush1.bf16.msra.mxu0 0
  %1183 = vmatprep.subr.bf16.mxu0 0
  %1184 = vmatpush1.bf16.msra.mxu0 0
  %1185 = vmatprep.subr.bf16.mxu0 0
  %1186 = vmatpush1.bf16.msra.mxu0 %v769
  %1187 = vmatprep.subr.bf16.mxu0 0
  %1188 = vmatpush1.bf16.msra.mxu0 %v768
  %1189 = vmatprep.subr.bf16.mxu0 0
  %1190 = vmatpush1.bf16.msra.mxu0 %v767
  %1191 = vmatprep.subr.bf16.mxu0 0
  %1192 = vmatpush1.bf16.msra.mxu0 %v766
  %1193 = vmatprep.subr.bf16.mxu0 0
  %1194 = vmatpush2.bf16.msra.mxu0 0
  %1195 = vmatprep.subr.bf16.mxu0 0
  %1196 = vmatpush2.bf16.msra.mxu0 0
  %1197 = vmatprep.subr.bf16.mxu0 0
  %1198 = vmatpush2.bf16.msra.mxu0 0
  %1199 = vmatprep.subr.bf16.mxu0 0
  %1200 = vmatpush2.bf16.msra.mxu0 0
  %1201 = vmatprep.subr.bf16.mxu0 0
  %1202 = vmatpush2.bf16.msra.mxu0 0
  %1203 = vmatprep.subr.bf16.mxu0 0
  %1204 = vmatpush2.bf16.msra.mxu0 0
  %1205 = vmatprep.subr.bf16.mxu0 0
  %1206 = vmatpush2.bf16.msra.mxu0 0
  %1207 = vmatprep.subr.bf16.mxu0 0
  %1208 = vmatpush2.bf16.msra.mxu0 0
  %1209 = vmatprep.mubr.bf16.mxu0 0
  %1210 = vmatmul.mubr.bf16.gmra.mxu0 %v808
  %v1211 = vpop.f32.mrf.mxu0
  %v1212 = vadd.f32 %v1051, %v1211
  %v1213 = vpop.f32.mrf.mxu0
  %v1214 = vpop.f32.mrf.mxu0
  %v1215 = vadd.f32 %v1054, %v1214
  %v1216 = vpop.f32.mrf.mxu0
  %1217 = vmatprep.mubr.bf16.mxu0 0
  %1218 = vmatmul.mubr.bf16.gmra.mxu0 %v811
  %v1219 = vpop.f32.mrf.mxu0
  %v1220 = vadd.f32 %v1059, %v1219
  %v1221 = vpop.f32.mrf.mxu0
  %v1222 = vpop.f32.mrf.mxu0
  %v1223 = vadd.f32 %v1062, %v1222
  %v1224 = vpop.f32.mrf.mxu0
  %1225 = vmatprep.mubr.bf16.mxu0 0
  %1226 = vmatmul.mubr.bf16.gmra.mxu0 %v814
  %v1227 = vpop.f32.mrf.mxu0
  %v1228 = vadd.f32 %v1067, %v1227
  %v1229 = vpop.f32.mrf.mxu0
  %v1230 = vpop.f32.mrf.mxu0
  %v1231 = vadd.f32 %v1070, %v1230
  %v1232 = vpop.f32.mrf.mxu0
  %1233 = vmatprep.mubr.bf16.mxu0 0
  %1234 = vmatmul.mubr.bf16.gmra.mxu0 %v817
  %v1235 = vpop.f32.mrf.mxu0
  %v1236 = vadd.f32 %v1075, %v1235
  %v1237 = vpop.f32.mrf.mxu0
  %v1238 = vpop.f32.mrf.mxu0
  %v1239 = vadd.f32 %v1078, %v1238
  %v1240 = vpop.f32.mrf.mxu0
  %1241 = vmatprep.mubr.bf16.mxu0 0
  %1242 = vmatmul.mubr.bf16.gmra.mxu0 %v820
  %v1243 = vpop.f32.mrf.mxu0
  %v1244 = vadd.f32 %v1083, %v1243
  %v1245 = vpop.f32.mrf.mxu0
  %v1246 = vpop.f32.mrf.mxu0
  %v1247 = vadd.f32 %v1086, %v1246
  %v1248 = vpop.f32.mrf.mxu0
  %1249 = vmatprep.mubr.bf16.mxu0 0
  %1250 = vmatmul.mubr.bf16.gmra.mxu0 %v823
  %v1251 = vpop.f32.mrf.mxu0
  %v1252 = vadd.f32 %v1091, %v1251
  %v1253 = vpop.f32.mrf.mxu0
  %v1254 = vpop.f32.mrf.mxu0
  %v1255 = vadd.f32 %v1094, %v1254
  %v1256 = vpop.f32.mrf.mxu0
  %1257 = vmatprep.mubr.bf16.mxu0 0
  %1258 = vmatmul.mubr.bf16.gmra.mxu0 %v826
  %v1259 = vpop.f32.mrf.mxu0
  %v1260 = vadd.f32 %v1099, %v1259
  %v1261 = vpop.f32.mrf.mxu0
  %v1262 = vpop.f32.mrf.mxu0
  %v1263 = vadd.f32 %v1102, %v1262
  %v1264 = vpop.f32.mrf.mxu0
  %1265 = vmatprep.mubr.bf16.mxu0 0
  %1266 = vmatmul.mubr.bf16.gmra.mxu0 %v829
  %v1267 = vpop.f32.mrf.mxu0
  %v1268 = vadd.f32 %v1107, %v1267
  %v1269 = vpop.f32.mrf.mxu0
  %v1270 = vpop.f32.mrf.mxu0
  %v1271 = vadd.f32 %v1110, %v1270
  %v1272 = vpop.f32.mrf.mxu0
  %1273 = vmatprep.mubr.bf16.mxu0 0
  %1274 = vmatmul.mubr.bf16.gmra.mxu0 %v832
  %v1275 = vpop.f32.mrf.mxu0
  %v1276 = vadd.f32 %v1115, %v1275
  %v1277 = vpop.f32.mrf.mxu0
  %v1278 = vpop.f32.mrf.mxu0
  %v1279 = vadd.f32 %v1118, %v1278
  %v1280 = vpop.f32.mrf.mxu0
  %1281 = vmatprep.mubr.bf16.mxu0 0
  %1282 = vmatmul.mubr.bf16.gmra.mxu0 %v835
  %v1283 = vpop.f32.mrf.mxu0
  %v1284 = vadd.f32 %v1123, %v1283
  %v1285 = vpop.f32.mrf.mxu0
  %v1286 = vpop.f32.mrf.mxu0
  %v1287 = vadd.f32 %v1126, %v1286
  %v1288 = vpop.f32.mrf.mxu0
  %1289 = vmatprep.mubr.bf16.mxu0 0
  %1290 = vmatmul.mubr.bf16.gmra.mxu0 %v838
  %v1291 = vpop.f32.mrf.mxu0
  %v1292 = vadd.f32 %v1131, %v1291
  %v1293 = vpop.f32.mrf.mxu0
  %v1294 = vpop.f32.mrf.mxu0
  %v1295 = vadd.f32 %v1134, %v1294
  %v1296 = vpop.f32.mrf.mxu0
  %1297 = vmatprep.mubr.bf16.mxu0 0
  %1298 = vmatmul.mubr.bf16.gmra.mxu0 %v841
  %v1299 = vpop.f32.mrf.mxu0
  %v1300 = vadd.f32 %v1139, %v1299
  %v1301 = vpop.f32.mrf.mxu0
  %v1302 = vpop.f32.mrf.mxu0
  %v1303 = vadd.f32 %v1142, %v1302
  %v1304 = vpop.f32.mrf.mxu0
  %1305 = vmatprep.mubr.bf16.mxu0 0
  %1306 = vmatmul.mubr.bf16.gmra.mxu0 %v844
  %v1307 = vpop.f32.mrf.mxu0
  %v1308 = vadd.f32 %v1147, %v1307
  %v1309 = vpop.f32.mrf.mxu0
  %v1310 = vpop.f32.mrf.mxu0
  %v1311 = vadd.f32 %v1150, %v1310
  %v1312 = vpop.f32.mrf.mxu0
  %1313 = vmatprep.mubr.bf16.mxu0 0
  %1314 = vmatmul.mubr.bf16.gmra.mxu0 %v847
  %v1315 = vpop.f32.mrf.mxu0
  %v1316 = vadd.f32 %v1155, %v1315
  %v1317 = vpop.f32.mrf.mxu0
  %v1318 = vpop.f32.mrf.mxu0
  %v1319 = vadd.f32 %v1158, %v1318
  %v1320 = vpop.f32.mrf.mxu0
  %1321 = vmatprep.mubr.bf16.mxu0 0
  %1322 = vmatmul.mubr.bf16.gmra.mxu0 %v850
  %v1323 = vpop.f32.mrf.mxu0
  %v1324 = vadd.f32 %v1163, %v1323
  %v1325 = vpop.f32.mrf.mxu0
  %v1326 = vpop.f32.mrf.mxu0
  %v1327 = vadd.f32 %v1166, %v1326
  %v1328 = vpop.f32.mrf.mxu0
  %1329 = vmatprep.mubr.bf16.mxu0 0
  %1330 = vmatmul.mubr.bf16.gmra.mxu0 %v853
  %v1331 = vpop.f32.mrf.mxu0
  %v1332 = vadd.f32 %v1171, %v1331
  %v1333 = vpop.f32.mrf.mxu0
  %v1334 = vpop.f32.mrf.mxu0
  %v1335 = vadd.f32 %v1174, %v1334
  %v1336 = vpop.f32.mrf.mxu0
  %1337 = vdwg.mxu0
  %v1338 = vmax.f32 %v1212, 0.0
  %v1339 = vmax.f32 %v1215, 0.0
  %v1340 = vmax.f32 %v1220, 0.0
  %v1341 = vmax.f32 %v1223, 0.0
  %v1342 = vmax.f32 %v1228, 0.0
  %v1343 = vmax.f32 %v1231, 0.0
  %v1344 = vmax.f32 %v1236, 0.0
  %v1345 = vmax.f32 %v1239, 0.0
  %v1346 = vmax.f32 %v1244, 0.0
  %v1347 = vmax.f32 %v1247, 0.0
  %v1348 = vmax.f32 %v1252, 0.0
  %v1349 = vmax.f32 %v1255, 0.0
  %v1350 = vmax.f32 %v1260, 0.0
  %v1351 = vmax.f32 %v1263, 0.0
  %v1352 = vmax.f32 %v1268, 0.0
  %v1353 = vmax.f32 %v1271, 0.0
  %v1354 = vmax.f32 %v1276, 0.0
  %v1355 = vmax.f32 %v1279, 0.0
  %v1356 = vmax.f32 %v1284, 0.0
  %v1357 = vmax.f32 %v1287, 0.0
  %v1358 = vmax.f32 %v1292, 0.0
  %v1359 = vmax.f32 %v1295, 0.0
  %v1360 = vmax.f32 %v1300, 0.0
  %v1361 = vmax.f32 %v1303, 0.0
  %v1362 = vmax.f32 %v1308, 0.0
  %v1363 = vmax.f32 %v1311, 0.0
  %v1364 = vmax.f32 %v1316, 0.0
  %v1365 = vmax.f32 %v1319, 0.0
  %v1366 = vmax.f32 %v1324, 0.0
  %v1367 = vmax.f32 %v1327, 0.0
  %v1368 = vmax.f32 %v1332, 0.0
  %v1369 = vmax.f32 %v1335, 0.0
  %v1370 = vpack.c.bf16 %v1339, %v1338
  %v1371 = vpack.c.bf16 %v1341, %v1340
  %v1372 = vpack.c.bf16 %v1343, %v1342
  %v1373 = vpack.c.bf16 %v1345, %v1344
  %v1374 = vpack.c.bf16 %v1347, %v1346
  %v1375 = vpack.c.bf16 %v1349, %v1348
  %v1376 = vpack.c.bf16 %v1351, %v1350
  %v1377 = vpack.c.bf16 %v1353, %v1352
  %v1378 = vpack.c.bf16 %v1355, %v1354
  %v1379 = vpack.c.bf16 %v1357, %v1356
  %v1380 = vpack.c.bf16 %v1359, %v1358
  %v1381 = vpack.c.bf16 %v1361, %v1360
  %v1382 = vpack.c.bf16 %v1363, %v1362
  %v1383 = vpack.c.bf16 %v1365, %v1364
  %v1384 = vpack.c.bf16 %v1367, %v1366
  %v1385 = vpack.c.bf16 %v1369, %v1368
  %v1402 = vunpack.c.l.b16 %v1370
  %v1403 = vunpack.c.h.b16 %v1370
  %v1404 = vunpack.c.l.b16 %v1371
  %v1405 = vunpack.c.h.b16 %v1371
  %v1406 = vunpack.c.l.b16 %v1372
  %v1407 = vunpack.c.h.b16 %v1372
  %v1408 = vunpack.c.l.b16 %v1373
  %v1409 = vunpack.c.h.b16 %v1373
  %v1410 = vunpack.c.l.b16 %v1374
  %v1411 = vunpack.c.h.b16 %v1374
  %v1412 = vunpack.c.l.b16 %v1375
  %v1413 = vunpack.c.h.b16 %v1375
  %v1414 = vunpack.c.l.b16 %v1376
  %v1415 = vunpack.c.h.b16 %v1376
  %v1416 = vunpack.c.l.b16 %v1377
  %v1417 = vunpack.c.h.b16 %v1377
  %v1418 = vunpack.c.l.b16 %v1378
  %v1419 = vunpack.c.h.b16 %v1378
  %v1420 = vunpack.c.l.b16 %v1379
  %v1421 = vunpack.c.h.b16 %v1379
  %v1422 = vunpack.c.l.b16 %v1380
  %v1423 = vunpack.c.h.b16 %v1380
  %v1424 = vunpack.c.l.b16 %v1381
  %v1425 = vunpack.c.h.b16 %v1381
  %v1426 = vunpack.c.l.b16 %v1382
  %v1427 = vunpack.c.h.b16 %v1382
  %v1428 = vunpack.c.l.b16 %v1383
  %v1429 = vunpack.c.h.b16 %v1383
  %v1430 = vunpack.c.l.b16 %v1384
  %v1431 = vunpack.c.h.b16 %v1384
  %v1432 = vunpack.c.l.b16 %v1385
  %v1433 = vunpack.c.h.b16 %v1385
  %v1434 = vpack.c.b16 %v1402, %v1402
  %v1435 = vpack.c.b16 %v1403, %v1403
  %v1436 = vpack.c.b16 %v1404, %v1404
  %v1437 = vpack.c.b16 %v1405, %v1405
  %v1438 = vpack.c.b16 %v1406, %v1406
  %v1439 = vpack.c.b16 %v1407, %v1407
  %v1440 = vpack.c.b16 %v1408, %v1408
  %v1441 = vpack.c.b16 %v1409, %v1409
  %v1442 = vpack.c.b16 %v1410, %v1410
  %v1443 = vpack.c.b16 %v1411, %v1411
  %v1444 = vpack.c.b16 %v1412, %v1412
  %v1445 = vpack.c.b16 %v1413, %v1413
  %v1446 = vpack.c.b16 %v1414, %v1414
  %v1447 = vpack.c.b16 %v1415, %v1415
  %v1448 = vpack.c.b16 %v1416, %v1416
  %v1449 = vpack.c.b16 %v1417, %v1417
  %v1450 = vpack.c.b16 %v1418, %v1418
  %v1451 = vpack.c.b16 %v1419, %v1419
  %v1452 = vpack.c.b16 %v1420, %v1420
  %v1453 = vpack.c.b16 %v1421, %v1421
  %v1454 = vpack.c.b16 %v1422, %v1422
  %v1455 = vpack.c.b16 %v1423, %v1423
  %v1456 = vpack.c.b16 %v1424, %v1424
  %v1457 = vpack.c.b16 %v1425, %v1425
  %v1458 = vpack.c.b16 %v1426, %v1426
  %v1459 = vpack.c.b16 %v1427, %v1427
  %v1460 = vpack.c.b16 %v1428, %v1428
  %v1461 = vpack.c.b16 %v1429, %v1429
  %v1462 = vpack.c.b16 %v1430, %v1430
  %v1463 = vpack.c.b16 %v1431, %v1431
  %v1464 = vpack.c.b16 %v1432, %v1432
  %v1465 = vpack.c.b16 %v1433, %v1433
  %1498 = vst [vmem:[%s3] sm:$0xf] %v1434
  %1499 = vst [vmem:[%s3 + $0x4] sm:$0xf] %v1435
  %1500 = vst [vmem:[%s3 + $0x8] sm:$0xf] %v1436
  %1501 = vst [vmem:[%s3 + $0xc] sm:$0xf] %v1437
  %1502 = vst [vmem:[%s3 + $0x10] sm:$0xf] %v1438
  %1503 = vst [vmem:[%s3 + $0x14] sm:$0xf] %v1439
  %1504 = vst [vmem:[%s3 + $0x18] sm:$0xf] %v1440
  %1505 = vst [vmem:[%s3 + $0x1c] sm:$0xf] %v1441
  %1506 = vst [vmem:[%s3 + $0x20] sm:$0xf] %v1442
  %1507 = vst [vmem:[%s3 + $0x24] sm:$0xf] %v1443
  %1508 = vst [vmem:[%s3 + $0x28] sm:$0xf] %v1444
  %1509 = vst [vmem:[%s3 + $0x2c] sm:$0xf] %v1445
  %1510 = vst [vmem:[%s3 + $0x30] sm:$0xf] %v1446
  %1511 = vst [vmem:[%s3 + $0x34] sm:$0xf] %v1447
  %1512 = vst [vmem:[%s3 + $0x38] sm:$0xf] %v1448
  %1513 = vst [vmem:[%s3 + $0x3c] sm:$0xf] %v1449
  %1514 = vst [vmem:[%s3 + $0x40] sm:$0xf] %v1450
  %1515 = vst [vmem:[%s3 + $0x44] sm:$0xf] %v1451
  %1516 = vst [vmem:[%s3 + $0x48] sm:$0xf] %v1452
  %1517 = vst [vmem:[%s3 + $0x4c] sm:$0xf] %v1453
  %1518 = vst [vmem:[%s3 + $0x50] sm:$0xf] %v1454
  %1519 = vst [vmem:[%s3 + $0x54] sm:$0xf] %v1455
  %1520 = vst [vmem:[%s3 + $0x58] sm:$0xf] %v1456
  %1521 = vst [vmem:[%s3 + $0x5c] sm:$0xf] %v1457
  %1522 = vst [vmem:[%s3 + $0x60] sm:$0xf] %v1458
  %1523 = vst [vmem:[%s3 + $0x64] sm:$0xf] %v1459
  %1524 = vst [vmem:[%s3 + $0x68] sm:$0xf] %v1460
  %1525 = vst [vmem:[%s3 + $0x6c] sm:$0xf] %v1461
  %1526 = vst [vmem:[%s3 + $0x70] sm:$0xf] %v1462
  %1527 = vst [vmem:[%s3 + $0x74] sm:$0xf] %v1463
  %1528 = vst [vmem:[%s3 + $0x78] sm:$0xf] %v1464
  %1529 = vst [vmem:[%s3 + $0x7c] sm:$0xf] %v1465
  // Predicated region
  $region14: #{network_forward.8} parent=0 // pred_check
    _
  $region15: #{network_forward.8} parent=0 // pred_check_branch
    %1531 = sbr.rel (0) target = $region17
  $region16: #{network_forward.8} parent=0 // pred_region
    _
  $region17: #{network_forward.8} parent=0 // pred_fallthru
    _
  // Predicated region
  $region18: #{network_forward.8} parent=0 // pred_check
    _
  $region19: #{network_forward.8} parent=0 // pred_check_branch
    %1533 = sbr.rel (0) target = $region21
  $region20: #{network_forward.8} parent=0 // pred_region
    _
  $region21: #{network_forward.8} parent=0 // pred_fallthru
    _

// kernel: network_forward.9
$region0: #{network_forward.9}
  #allocation0 [shape = 'u32[]', space=smem, size = 0x4, offset = 0x4, fixed_abs, tag = 'smem constant byte address 0x4 - core index']
  #allocation1 [shape = 'u32[144,128]{1,0:T(1,128)}', space=vmem, size = 0x12000, scoped, tag = 'internal scratch']
  #allocation2 [shape = 'f32[16,512]{1,0:T(8,128)}', space=vmem, size = 0x8000, scoped, tag = 'scratch operand']
  %s0 = inlined_call_operand.vmem [shape: bf16[16,12800], index: 0, kind: input, shape index: {}]
  %s1 = inlined_call_operand.vmem [shape: bf16[12800,512], index: 1, kind: input, shape index: {}]
  %s2 = inlined_call_operand.vmem [shape: f32[1,512], index: 2, kind: input, shape index: {}]
  %s3 = inlined_call_operand.vmem [shape: bf16[512,256], index: 3, kind: input, shape index: {}]
  %s4 = inlined_call_operand.vmem [shape: f32[1,256], index: 4, kind: input, shape index: {}]
  %s5 = inlined_call_operand.vmem [shape: bf16[256,128], index: 5, kind: input, shape index: {}]
  %s6 = inlined_call_operand.vmem [shape: f32[1,128], index: 6, kind: input, shape index: {}]
  %s7 = inlined_call_operand.vmem [shape: f32[16,128], index: 7, kind: output, shape index: {}]
  %s8 = sld [smem:[#allocation0]]
  $region95: #{network_forward.9} parent=0
    _
  %s10 = ssub.s32 1, %s8
  %s11 = scalar_select 0, %s10, %s8
  $region1: #{network_forward.9} parent=0
    #allocation3 [shape = 'u8[204800]{0}', space=vmem, size = 0x32000, scoped, tag = 'input window, operand 0']
    loop: start=0, step=1, limit=6
    $region2: #{network_forward.9} parent=1 // loop_pre_header
      _
    $region3: #{network_forward.9} parent=1 // loop_header
      %s13 = sphi 0, %s17
      %p14 = scmp.ge.s32.totalorder %s13, 6
      %s23 = sphi 0, %s25
      %s26 = sphi 0, %s23
      %s27 = sphi 0, %s26
      %s43 = sphi 0, %s27
      %s49 = sphi 0, %s51
      %s52 = sphi 0, %s49
      %s53 = sphi 0, %s52
      %s69 = sphi 0, %s53
      %s73 = sphi 0, %s73
      %s75 = sphi 0, %s73
      %s76 = sphi 0, %s75
      %s90 = sphi 0, %s76
      %s94 = sphi 0, %s94
      %s96 = sphi 0, %s94
      %s97 = sphi 0, %s96
      %s111 = sphi 0, %s97
      %s115 = sphi 0, %s115
      %s117 = sphi 0, %s115
      %s118 = sphi 0, %s117
      %s132 = sphi 0, %s118
      %s136 = sphi 0, %s136
      %s138 = sphi 0, %s136
      %s139 = sphi 0, %s138
      %s153 = sphi 0, %s139
      %s157 = sphi 0, %s157
      %s159 = sphi 0, %s157
      %s160 = sphi 0, %s159
      %s174 = sphi 0, %s160
      %s178 = sphi 0, %s178
      %s180 = sphi 0, %s178
      %s181 = sphi 0, %s180
      %s195 = sphi 0, %s181
    $region4: #{network_forward.9} parent=1 // loop_header_branch
      %16 = sbr.rel (%p14) target = $region8
    $region5: #{network_forward.9} parent=1 // loop_body
      %s18 = ssub.s32 %s13, 1
      %s19 = ssub.s32 %s13, 2
      %s20 = sadd.s32 %s13, 1
      %s21 = ssub.s32 %s13, %s20
      %p22 = scmp.eq.s32.totalorder %s21, 0
      %s24 = sadd.s32 %s23, 1
      %s25 = scalar_select %p22, %s23, %s24
      %p28 = pneg %p22
      %p29 = scmp.eq.s32.totalorder %s13, 3
      %p30 = por %p28, %p29
      %p31 = scmp.ne.s32.totalorder %s23, %s26
      %p32 = scmp.eq.s32.totalorder %s13, 0
      %p33 = por %p31, %p32
      %p34 = scmp.ne.s32.totalorder %s23, %s26
      %p35 = scmp.eq.s32.totalorder %s18, 3
      %p36 = por %p34, %p35
      %p37 = scmp.ne.s32.totalorder %s26, %s27
      %p38 = scmp.eq.s32.totalorder %s18, 0
      %p39 = por %p37, %p38
      %p40 = scmp.ne.s32.totalorder %s26, %s27
      %p41 = scmp.eq.s32.totalorder %s19, 3
      %p42 = por %p40, %p41
      %p44 = scmp.ne.s32.totalorder %s27, %s43
      %p45 = scmp.eq.s32.totalorder %s19, 0
      %p46 = por %p44, %p45
      %s47 = ssub.s32 %s13, %s20
      %p48 = scmp.eq.s32.totalorder %s47, 0
      %s50 = sadd.s32 %s49, 1
      %s51 = scalar_select %p48, %s49, %s50
      %p54 = pneg %p48
      %p55 = scmp.eq.s32.totalorder %s13, 3
      %p56 = por %p54, %p55
      %p57 = scmp.ne.s32.totalorder %s49, %s52
      %p58 = scmp.eq.s32.totalorder %s13, 0
      %p59 = por %p57, %p58
      %p60 = scmp.ne.s32.totalorder %s49, %s52
      %p61 = scmp.eq.s32.totalorder %s18, 3
      %p62 = por %p60, %p61
      %p63 = scmp.ne.s32.totalorder %s52, %s53
      %p64 = scmp.eq.s32.totalorder %s18, 0
      %p65 = por %p63, %p64
      %p66 = scmp.ne.s32.totalorder %s52, %s53
      %p67 = scmp.eq.s32.totalorder %s19, 3
      %p68 = por %p66, %p67
      %p70 = scmp.ne.s32.totalorder %s53, %s69
      %p71 = scmp.eq.s32.totalorder %s19, 0
      %p72 = por %p70, %p71
      %s74 = sadd.s32 %s73, 1
      %p77 = scmp.eq.s32.totalorder %s13, 3
      %p78 = scmp.ne.s32.totalorder %s73, %s75
      %p79 = scmp.eq.s32.totalorder %s13, 0
      %p80 = por %p78, %p79
      %p81 = scmp.ne.s32.totalorder %s73, %s75
      %p82 = scmp.eq.s32.totalorder %s18, 3
      %p83 = por %p81, %p82
      %p84 = scmp.ne.s32.totalorder %s75, %s76
      %p85 = scmp.eq.s32.totalorder %s18, 0
      %p86 = por %p84, %p85
      %p87 = scmp.ne.s32.totalorder %s75, %s76
      %p88 = scmp.eq.s32.totalorder %s19, 3
      %p89 = por %p87, %p88
      %p91 = scmp.ne.s32.totalorder %s76, %s90
      %p92 = scmp.eq.s32.totalorder %s19, 0
      %p93 = por %p91, %p92
      %s95 = sadd.s32 %s94, 1
      %p98 = scmp.eq.s32.totalorder %s13, 3
      %p99 = scmp.ne.s32.totalorder %s94, %s96
      %p100 = scmp.eq.s32.totalorder %s13, 0
      %p101 = por %p99, %p100
      %p102 = scmp.ne.s32.totalorder %s94, %s96
      %p103 = scmp.eq.s32.totalorder %s18, 3
      %p104 = por %p102, %p103
      %p105 = scmp.ne.s32.totalorder %s96, %s97
      %p106 = scmp.eq.s32.totalorder %s18, 0
      %p107 = por %p105, %p106
      %p108 = scmp.ne.s32.totalorder %s96, %s97
      %p109 = scmp.eq.s32.totalorder %s19, 3
      %p110 = por %p108, %p109
      %p112 = scmp.ne.s32.totalorder %s97, %s111
      %p113 = scmp.eq.s32.totalorder %s19, 0
      %p114 = por %p112, %p113
      %s116 = sadd.s32 %s115, 1
      %p119 = scmp.eq.s32.totalorder %s13, 3
      %p120 = scmp.ne.s32.totalorder %s115, %s117
      %p121 = scmp.eq.s32.totalorder %s13, 0
      %p122 = por %p120, %p121
      %p123 = scmp.ne.s32.totalorder %s115, %s117
      %p124 = scmp.eq.s32.totalorder %s18, 3
      %p125 = por %p123, %p124
      %p126 = scmp.ne.s32.totalorder %s117, %s118
      %p127 = scmp.eq.s32.totalorder %s18, 0
      %p128 = por %p126, %p127
      %p129 = scmp.ne.s32.totalorder %s117, %s118
      %p130 = scmp.eq.s32.totalorder %s19, 3
      %p131 = por %p129, %p130
      %p133 = scmp.ne.s32.totalorder %s118, %s132
      %p134 = scmp.eq.s32.totalorder %s19, 0
      %p135 = por %p133, %p134
      %s137 = sadd.s32 %s136, 1
      %p140 = scmp.eq.s32.totalorder %s13, 3
      %p141 = scmp.ne.s32.totalorder %s136, %s138
      %p142 = scmp.eq.s32.totalorder %s13, 0
      %p143 = por %p141, %p142
      %p144 = scmp.ne.s32.totalorder %s136, %s138
      %p145 = scmp.eq.s32.totalorder %s18, 3
      %p146 = por %p144, %p145
      %p147 = scmp.ne.s32.totalorder %s138, %s139
      %p148 = scmp.eq.s32.totalorder %s18, 0
      %p149 = por %p147, %p148
      %p150 = scmp.ne.s32.totalorder %s138, %s139
      %p151 = scmp.eq.s32.totalorder %s19, 3
      %p152 = por %p150, %p151
      %p154 = scmp.ne.s32.totalorder %s139, %s153
      %p155 = scmp.eq.s32.totalorder %s19, 0
      %p156 = por %p154, %p155
      %s158 = sadd.s32 %s157, 1
      %p161 = scmp.eq.s32.totalorder %s13, 3
      %p162 = scmp.ne.s32.totalorder %s157, %s159
      %p163 = scmp.eq.s32.totalorder %s13, 0
      %p164 = por %p162, %p163
      %p165 = scmp.ne.s32.totalorder %s157, %s159
      %p166 = scmp.eq.s32.totalorder %s18, 3
      %p167 = por %p165, %p166
      %p168 = scmp.ne.s32.totalorder %s159, %s160
      %p169 = scmp.eq.s32.totalorder %s18, 0
      %p170 = por %p168, %p169
      %p171 = scmp.ne.s32.totalorder %s159, %s160
      %p172 = scmp.eq.s32.totalorder %s19, 3
      %p173 = por %p171, %p172
      %p175 = scmp.ne.s32.totalorder %s160, %s174
      %p176 = scmp.eq.s32.totalorder %s19, 0
      %p177 = por %p175, %p176
      %s179 = sadd.s32 %s178, 1
      %p182 = scmp.eq.s32.totalorder %s13, 3
      %p183 = scmp.ne.s32.totalorder %s178, %s180
      %p184 = scmp.eq.s32.totalorder %s13, 0
      %p185 = por %p183, %p184
      %p186 = scmp.ne.s32.totalorder %s178, %s180
      %p187 = scmp.eq.s32.totalorder %s18, 3
      %p188 = por %p186, %p187
      %p189 = scmp.ne.s32.totalorder %s180, %s181
      %p190 = scmp.eq.s32.totalorder %s18, 0
      %p191 = por %p189, %p190
      %p192 = scmp.ne.s32.totalorder %s180, %s181
      %p193 = scmp.eq.s32.totalorder %s19, 3
      %p194 = por %p192, %p193
      %p196 = scmp.ne.s32.totalorder %s181, %s195
      %p197 = scmp.eq.s32.totalorder %s19, 0
      %p198 = por %p196, %p197
      %p199 = scmp.le.s32.totalorder 1, %s13
      %p200 = scmp.lt.s32.totalorder %s13, 5
      %p201 = pnand %p199, %p200
      %p202 = pneg %p201
      // Predicated region
      $region9: #{network_forward.9} parent=5 // pred_check
        _
      $region10: #{network_forward.9} parent=5 // pred_check_branch
        %204 = sbr.rel (%p201) target = $region12
      $region11: #{network_forward.9} parent=5 // pred_region
        %s205 = ssub.s32 %s13, 1
        // Predicated region
        $region13: #{network_forward.9} parent=11 // pred_check
          %p206 = pneg %p86
        $region14: #{network_forward.9} parent=11 // pred_check_branch
          %208 = sbr.rel (%p206) target = $region16
        $region15: #{network_forward.9} parent=11 // pred_region
          _
        $region16: #{network_forward.9} parent=11 // pred_fallthru
          _
        // Predicated region
        $region17: #{network_forward.9} parent=11 // pred_check
          %p209 = pneg %p107
        $region18: #{network_forward.9} parent=11 // pred_check_branch
          %211 = sbr.rel (%p209) target = $region20
        $region19: #{network_forward.9} parent=11 // pred_region
          _
        $region20: #{network_forward.9} parent=11 // pred_fallthru
          _
        // Predicated region
        $region21: #{network_forward.9} parent=11 // pred_check
          %p212 = pneg %p128
        $region22: #{network_forward.9} parent=11 // pred_check_branch
          %214 = sbr.rel (%p212) target = $region24
        $region23: #{network_forward.9} parent=11 // pred_region
          _
        $region24: #{network_forward.9} parent=11 // pred_fallthru
          _
        // Predicated region
        $region25: #{network_forward.9} parent=11 // pred_check
          %p215 = pneg %p149
        $region26: #{network_forward.9} parent=11 // pred_check_branch
          %217 = sbr.rel (%p215) target = $region28
        $region27: #{network_forward.9} parent=11 // pred_region
          _
        $region28: #{network_forward.9} parent=11 // pred_fallthru
          _
        // Predicated region
        $region29: #{network_forward.9} parent=11 // pred_check
          %p218 = pneg %p170
        $region30: #{network_forward.9} parent=11 // pred_check_branch
          %220 = sbr.rel (%p218) target = $region32
        $region31: #{network_forward.9} parent=11 // pred_region
          _
        $region32: #{network_forward.9} parent=11 // pred_fallthru
          _
      $region12: #{network_forward.9} parent=5 // pred_fallthru
        _
      %p221 = scmp.lt.s32.totalorder %s13, 4
      // Predicated region
      $region33: #{network_forward.9} parent=5 // pred_check
        %p222 = pneg %p221
      $region34: #{network_forward.9} parent=5 // pred_check_branch
        %224 = sbr.rel (%p222) target = $region36
      $region35: #{network_forward.9} parent=5 // pred_region
        // Predicated region
        $region37: #{network_forward.9} parent=35 // pred_check
          %p225 = pneg %p33
        $region38: #{network_forward.9} parent=35 // pred_check_branch
          %227 = sbr.rel (%p225) target = $region40
        $region39: #{network_forward.9} parent=35 // pred_region
          %s228 = sand.u32 %s23, 1
          %s229 = sand.u32 %s23, 1
          %s230 = smul.addr %s229, 200
          %s231 = scalar_lea.vmem [#allocation3], %s230
          %s232 = smul.u32 25, %s13
          %s233 = smul.addr %s232, 4
          %s234 = scalar_lea.vmem %s0, %s233
          // Predicated region
          $region41: #{network_forward.9} parent=39 // pred_check
            _
          $region42: #{network_forward.9} parent=39 // pred_check_branch
            %236 = sbr.rel (0) target = $region44
          $region43: #{network_forward.9} parent=39 // pred_region
            // Predicated region
            $region45: #{network_forward.9} parent=43 // pred_check
              _
            $region46: #{network_forward.9} parent=43 // pred_check_branch
              %238 = sbr.rel (0) target = $region48
            $region47: #{network_forward.9} parent=43 // pred_region
              %s239 = scalar_lea.vmem %s234, 96
              %s240 = scalar_lea.vmem %s231, 96 [#allocation3]
              loop: start=0, step=1, limit=1
              $region49: #{network_forward.9} parent=47 // loop_pre_header
                _
              $region50: #{network_forward.9} parent=47 // loop_header
                %s242 = sphi 0, %s246
                %p243 = scmp.ge.s32.totalorder %s242, 1
                %s247 = sphi %s234, %s234
                %s248 = sphi %s231, %s231
              $region51: #{network_forward.9} parent=47 // loop_header_branch
                %245 = sbr.rel (%p243) target = $region55
              $region52: #{network_forward.9} parent=47 // loop_body
                %v249 = vld [vmem:[%s247] sm:$0xff]
                %250 = vst [vmem:[%s248] sm:$0xff] %v249
                %v251 = vld [vmem:[%s247 + $0x8] sm:$0xff]
                %252 = vst [vmem:[%s248 + $0x8] sm:$0xff] %v251
                %v253 = vld [vmem:[%s247 + $0x10] sm:$0xff]
                %254 = vst [vmem:[%s248 + $0x10] sm:$0xff] %v253
                %v255 = vld [vmem:[%s247 + $0x18] sm:$0xff]
                %256 = vst [vmem:[%s248 + $0x18] sm:$0xff] %v255
                %v257 = vld [vmem:[%s247 + $0x20] sm:$0xff]
                %258 = vst [vmem:[%s248 + $0x20] sm:$0xff] %v257
                %v259 = vld [vmem:[%s247 + $0x28] sm:$0xff]
                %260 = vst [vmem:[%s248 + $0x28] sm:$0xff] %v259
                %v261 = vld [vmem:[%s247 + $0x30] sm:$0xff]
                %262 = vst [vmem:[%s248 + $0x30] sm:$0xff] %v261
                %v263 = vld [vmem:[%s247 + $0x38] sm:$0xff]
                %264 = vst [vmem:[%s248 + $0x38] sm:$0xff] %v263
                %v265 = vld [vmem:[%s247 + $0x40] sm:$0xff]
                %266 = vst [vmem:[%s248 + $0x40] sm:$0xff] %v265
                %v267 = vld [vmem:[%s247 + $0x48] sm:$0xff]
                %268 = vst [vmem:[%s248 + $0x48] sm:$0xff] %v267
                %v269 = vld [vmem:[%s247 + $0x50] sm:$0xff]
                %270 = vst [vmem:[%s248 + $0x50] sm:$0xff] %v269
                %v271 = vld [vmem:[%s247 + $0x58] sm:$0xff]
                %272 = vst [vmem:[%s248 + $0x58] sm:$0xff] %v271
                %v273 = vld [vmem:[%s247 + $0x190] sm:$0xff]
                %274 = vst [vmem:[%s248 + $0x64] sm:$0xff] %v273
                %v275 = vld [vmem:[%s247 + $0x198] sm:$0xff]
                %276 = vst [vmem:[%s248 + $0x6c] sm:$0xff] %v275
                %v277 = vld [vmem:[%s247 + $0x1a0] sm:$0xff]
                %278 = vst [vmem:[%s248 + $0x74] sm:$0xff] %v277
                %v279 = vld [vmem:[%s247 + $0x1a8] sm:$0xff]
                %280 = vst [vmem:[%s248 + $0x7c] sm:$0xff] %v279
                %v281 = vld [vmem:[%s247 + $0x1b0] sm:$0xff]
                %282 = vst [vmem:[%s248 + $0x84] sm:$0xff] %v281
                %v283 = vld [vmem:[%s247 + $0x1b8] sm:$0xff]
                %284 = vst [vmem:[%s248 + $0x8c] sm:$0xff] %v283
                %v285 = vld [vmem:[%s247 + $0x1c0] sm:$0xff]
                %286 = vst [vmem:[%s248 + $0x94] sm:$0xff] %v285
                %v287 = vld [vmem:[%s247 + $0x1c8] sm:$0xff]
                %288 = vst [vmem:[%s248 + $0x9c] sm:$0xff] %v287
                %v289 = vld [vmem:[%s247 + $0x1d0] sm:$0xff]
                %290 = vst [vmem:[%s248 + $0xa4] sm:$0xff] %v289
                %v291 = vld [vmem:[%s247 + $0x1d8] sm:$0xff]
                %292 = vst [vmem:[%s248 + $0xac] sm:$0xff] %v291
                %v293 = vld [vmem:[%s247 + $0x1e0] sm:$0xff]
                %294 = vst [vmem:[%s248 + $0xb4] sm:$0xff] %v293
                %v295 = vld [vmem:[%s247 + $0x1e8] sm:$0xff]
                %296 = vst [vmem:[%s248 + $0xbc] sm:$0xff] %v295
              $region53: #{network_forward.9} parent=47 // loop_footer
                %s246 = sadd.s32 1, %s242
              $region54: #{network_forward.9} parent=47 // loop_footer_branch
                %241 = sbr.rel target = $region50
              $region55: #{network_forward.9} parent=47 // loop_exit
                _
              %s298 = ssub.s32 16, 1
              loop: start=0, step=1, limit=1
              $region56: #{network_forward.9} parent=47 // loop_pre_header
                _
              $region57: #{network_forward.9} parent=47 // loop_header
                %s300 = sphi 0, %s304
                %p301 = scmp.ge.s32.totalorder %s300, 1
                %s305 = sphi %s239, %s239
                %s306 = sphi %s240, %s240
              $region58: #{network_forward.9} parent=47 // loop_header_branch
                %303 = sbr.rel (%p301) target = $region62
              $region59: #{network_forward.9} parent=47 // loop_body
                %v307 = vld [vmem:[%s305] sm:%s298]
                %308 = vst [vmem:[%s306] sm:%s298] %v307
                %v309 = vld [vmem:[%s305 + $0x190] sm:%s298]
                %310 = vst [vmem:[%s306 + $0x64] sm:%s298] %v309
              $region60: #{network_forward.9} parent=47 // loop_footer
                %s304 = sadd.s32 1, %s300
              $region61: #{network_forward.9} parent=47 // loop_footer_branch
                %299 = sbr.rel target = $region57
              $region62: #{network_forward.9} parent=47 // loop_exit
                _
            $region48: #{network_forward.9} parent=43 // pred_fallthru
              _
          $region44: #{network_forward.9} parent=39 // pred_fallthru
            _
          %311 = vnop
        $region40: #{network_forward.9} parent=35 // pred_fallthru
          _
        // Predicated region
        $region63: #{network_forward.9} parent=35 // pred_check
          %p312 = pneg %p59
        $region64: #{network_forward.9} parent=35 // pred_check_branch
          %314 = sbr.rel (%p312) target = $region66
        $region65: #{network_forward.9} parent=35 // pred_region
          %s315 = smul.u32 400, %s13
          %p316 = scmp.lt.s32.totalorder %s315, 1599
          %s317 = scalar_select %p316, %s315, 1599
          %s318 = smul.addr %s317, 4
          %s319 = smul.addr %s318, 4
          %s320 = scalar_lea.vmem %s1, %s319
          %s321 = smul.u32 400, %s13
        $region66: #{network_forward.9} parent=35 // pred_fallthru
          _
      $region36: #{network_forward.9} parent=5 // pred_fallthru
        _
      %p322 = scmp.le.s32.totalorder 1, %s13
      %p323 = scmp.lt.s32.totalorder %s13, 5
      %p324 = pnand %p322, %p323
      %p325 = pneg %p324
      // Predicated region
      $region67: #{network_forward.9} parent=5 // pred_check
        _
      $region68: #{network_forward.9} parent=5 // pred_check_branch
        %327 = sbr.rel (%p324) target = $region70
      $region69: #{network_forward.9} parent=5 // pred_region
        %s328 = ssub.s32 %s13, 1
        %s329 = sand.u32 %s26, 1
        %s330 = sand.u32 %s26, 1
        %s331 = smul.addr %s330, 200
        %s332 = scalar_lea.vmem [#allocation3], %s331
        // Predicated region
        $region71: #{network_forward.9} parent=69 // pred_check
          %p333 = pneg %p39
        $region72: #{network_forward.9} parent=69 // pred_check_branch
          %335 = sbr.rel (%p333) target = $region74
        $region73: #{network_forward.9} parent=69 // pred_region
          _
        $region74: #{network_forward.9} parent=69 // pred_fallthru
          _
        %s336 = sand.u32 %s26, 1
        %s337 = sand.u32 %s26, 1
        %s338 = smul.addr %s337, 200
        %s339 = scalar_lea.vmem [#allocation3], %s338
        %p340 = pneg %p39
        %p341 = pneg %p36
        %s342 = smul.u32 400, %s18
        %p343 = scmp.lt.s32.totalorder %s342, 1599
        %s344 = scalar_select %p343, %s342, 1599
        %s345 = smul.addr %s344, 4
        %s346 = smul.addr %s345, 4
        %s347 = scalar_lea.vmem %s1, %s346
        %p348 = pneg %p65
        %p349 = pneg %p62
        %p350 = pneg %p86
        %p351 = pneg %p83
        %p352 = pneg %p107
        %p353 = pneg %p104
        %p354 = pneg %p128
        %p355 = pneg %p125
        %p356 = pneg %p149
        %p357 = pneg %p146
        %p358 = pneg %p170
        %p359 = pneg %p167
        %p360 = pneg %p191
        %p361 = pneg %p188
        %s362 = smul.u32 25, %s18
        %s363 = smul.u32 400, %s18
        %p364 = scmp.lt.s32.totalorder %s363, 1599
        %s365 = scalar_select %p364, %s363, 1599
        %s366 = smul.addr %s365, 4
        %s367 = smul.addr %s366, 4
        %s368 = scalar_lea.vmem %s1, %s367
        %s369 = smul.u32 400, %s18
        %p371 = scmp.eq.s32.totalorder %s18, 0
        // Predicated region
        $region75: #{network_forward.9} parent=69 // pred_check
          %p372 = pneg %p371
        $region76: #{network_forward.9} parent=69 // pred_check_branch
          %374 = sbr.rel (%p372) target = $region78
        $region77: #{network_forward.9} parent=69 // pred_region
          %375 = vst [vmem:[#allocation2] sm:$0xff] 0.0
          %376 = vst [vmem:[#allocation2 + $0x8] sm:$0xff] 0.0
          %377 = vst [vmem:[#allocation2 + $0x10] sm:$0xff] 0.0
          %378 = vst [vmem:[#allocation2 + $0x18] sm:$0xff] 0.0
          %379 = vst [vmem:[#allocation2 + $0x20] sm:$0xff] 0.0
          %380 = vst [vmem:[#allocation2 + $0x28] sm:$0xff] 0.0
          %381 = vst [vmem:[#allocation2 + $0x30] sm:$0xff] 0.0
          %382 = vst [vmem:[#allocation2 + $0x38] sm:$0xff] 0.0
        $region78: #{network_forward.9} parent=69 // pred_fallthru
          _
        %v383 = vld [vmem:[#allocation2] sm:$0xff]
        %v384 = vld [vmem:[#allocation2 + $0x8] sm:$0xff]
        %v385 = vld [vmem:[#allocation2 + $0x10] sm:$0xff]
        %v386 = vld [vmem:[#allocation2 + $0x18] sm:$0xff]
        %v387 = vld [vmem:[#allocation2 + $0x20] sm:$0xff]
        %v388 = vld [vmem:[#allocation2 + $0x28] sm:$0xff]
        %v389 = vld [vmem:[#allocation2 + $0x30] sm:$0xff]
        %v390 = vld [vmem:[#allocation2 + $0x38] sm:$0xff]
        %v391 = vld [vmem:[%s332] sm:$0xff]
        %v392 = vld [vmem:[%s332 + $0x8] sm:$0xff]
        %v393 = vld [vmem:[%s332 + $0x10] sm:$0xff]
        %v394 = vld [vmem:[%s332 + $0x18] sm:$0xff]
        %v395 = vld [vmem:[%s332 + $0x20] sm:$0xff]
        %v396 = vld [vmem:[%s332 + $0x28] sm:$0xff]
        %v397 = vld [vmem:[%s332 + $0x30] sm:$0xff]
        %v398 = vld [vmem:[%s332 + $0x38] sm:$0xff]
        %v399 = vld [vmem:[%s332 + $0x40] sm:$0xff]
        %v400 = vld [vmem:[%s332 + $0x48] sm:$0xff]
        %v401 = vld [vmem:[%s332 + $0x50] sm:$0xff]
        %v402 = vld [vmem:[%s332 + $0x58] sm:$0xff]
        %v403 = vld [vmem:[%s332 + $0x60] sm:$0xf]
        %v404 = vld [vmem:[%s332 + $0x64] sm:$0xff]
        %v405 = vld [vmem:[%s332 + $0x6c] sm:$0xff]
        %v406 = vld [vmem:[%s332 + $0x74] sm:$0xff]
        %v407 = vld [vmem:[%s332 + $0x7c] sm:$0xff]
        %v408 = vld [vmem:[%s332 + $0x84] sm:$0xff]
        %v409 = vld [vmem:[%s332 + $0x8c] sm:$0xff]
        %v410 = vld [vmem:[%s332 + $0x94] sm:$0xff]
        %v411 = vld [vmem:[%s332 + $0x9c] sm:$0xff]
        %v412 = vld [vmem:[%s332 + $0xa4] sm:$0xff]
        %v413 = vld [vmem:[%s332 + $0xac] sm:$0xff]
        %v414 = vld [vmem:[%s332 + $0xb4] sm:$0xff]
        %v415 = vld [vmem:[%s332 + $0xbc] sm:$0xff]
        %v416 = vld [vmem:[%s332 + $0xc4] sm:$0xf]
        %v417 = vld [vmem:[%s368] sm:$0xff]
        %v418 = vld [vmem:[%s368 + $0x8] sm:$0xff]
        %v419 = vld [vmem:[%s368 + $0x10] sm:$0xff]
        %v420 = vld [vmem:[%s368 + $0x18] sm:$0xff]
        %v421 = vld [vmem:[%s368 + $0x20] sm:$0xff]
        %v422 = vld [vmem:[%s368 + $0x28] sm:$0xff]
        %v423 = vld [vmem:[%s368 + $0x30] sm:$0xff]
        %v424 = vld [vmem:[%s368 + $0x38] sm:$0xff]
        %v425 = vld [vmem:[%s368 + $0x40] sm:$0xff]
        %v426 = vld [vmem:[%s368 + $0x48] sm:$0xff]
        %v427 = vld [vmem:[%s368 + $0x50] sm:$0xff]
        %v428 = vld [vmem:[%s368 + $0x58] sm:$0xff]
        %v429 = vld [vmem:[%s368 + $0x60] sm:$0xff]
        %v430 = vld [vmem:[%s368 + $0x68] sm:$0xff]
        %v431 = vld [vmem:[%s368 + $0x70] sm:$0xff]
        %v432 = vld [vmem:[%s368 + $0x78] sm:$0xff]
        %v433 = vld [vmem:[%s368 + $0x80] sm:$0xff]
        %v434 = vld [vmem:[%s368 + $0x88] sm:$0xff]
        %v435 = vld [vmem:[%s368 + $0x90] sm:$0xff]
        %v436 = vld [vmem:[%s368 + $0x98] sm:$0xff]
        %v437 = vld [vmem:[%s368 + $0xa0] sm:$0xff]
        %v438 = vld [vmem:[%s368 + $0xa8] sm:$0xff]
        %v439 = vld [vmem:[%s368 + $0xb0] sm:$0xff]
        %v440 = vld [vmem:[%s368 + $0xb8] sm:$0xff]
        %v441 = vld [vmem:[%s368 + $0xc0] sm:$0xff]
        %v442 = vld [vmem:[%s368 + $0xc8] sm:$0xff]
        %v443 = vld [vmem:[%s368 + $0xd0] sm:$0xff]
        %v444 = vld [vmem:[%s368 + $0xd8] sm:$0xff]
        %v445 = vld [vmem:[%s368 + $0xe0] sm:$0xff]
        %v446 = vld [vmem:[%s368 + $0xe8] sm:$0xff]
        %v447 = vld [vmem:[%s368 + $0xf0] sm:$0xff]
        %v448 = vld [vmem:[%s368 + $0xf8] sm:$0xff]
        %v449 = vld [vmem:[%s368 + $0x100] sm:$0xff]
        %v450 = vld [vmem:[%s368 + $0x108] sm:$0xff]
        %v451 = vld [vmem:[%s368 + $0x110] sm:$0xff]
        %v452 = vld [vmem:[%s368 + $0x118] sm:$0xff]
        %v453 = vld [vmem:[%s368 + $0x120] sm:$0xff]
        %v454 = vld [vmem:[%s368 + $0x128] sm:$0xff]
        %v455 = vld [vmem:[%s368 + $0x130] sm:$0xff]
        %v456 = vld [vmem:[%s368 + $0x138] sm:$0xff]
        %v457 = vld [vmem:[%s368 + $0x140] sm:$0xff]
        %v458 = vld [vmem:[%s368 + $0x148] sm:$0xff]
        %v459 = vld [vmem:[%s368 + $0x150] sm:$0xff]
        %v460 = vld [vmem:[%s368 + $0x158] sm:$0xff]
        %v461 = vld [vmem:[%s368 + $0x160] sm:$0xff]
        %v462 = vld [vmem:[%s368 + $0x168] sm:$0xff]
        %v463 = vld [vmem:[%s368 + $0x170] sm:$0xff]
        %v464 = vld [vmem:[%s368 + $0x178] sm:$0xff]
        %v465 = vld [vmem:[%s368 + $0x180] sm:$0xff]
        %v466 = vld [vmem:[%s368 + $0x188] sm:$0xff]
        %v467 = vld [vmem:[%s368 + $0x190] sm:$0xff]
        %v468 = vld [vmem:[%s368 + $0x198] sm:$0xff]
        %v469 = vld [vmem:[%s368 + $0x1a0] sm:$0xff]
        %v470 = vld [vmem:[%s368 + $0x1a8] sm:$0xff]
        %v471 = vld [vmem:[%s368 + $0x1b0] sm:$0xff]
        %v472 = vld [vmem:[%s368 + $0x1b8] sm:$0xff]
        %v473 = vld [vmem:[%s368 + $0x1c0] sm:$0xff]
        %v474 = vld [vmem:[%s368 + $0x1c8] sm:$0xff]
        %v475 = vld [vmem:[%s368 + $0x1d0] sm:$0xff]
        %v476 = vld [vmem:[%s368 + $0x1d8] sm:$0xff]
        %v477 = vld [vmem:[%s368 + $0x1e0] sm:$0xff]
        %v478 = vld [vmem:[%s368 + $0x1e8] sm:$0xff]
        %v479 = vld [vmem:[%s368 + $0x1f0] sm:$0xff]
        %v480 = vld [vmem:[%s368 + $0x1f8] sm:$0xff]
        %v481 = vld [vmem:[%s368 + $0x200] sm:$0xff]
        %v482 = vld [vmem:[%s368 + $0x208] sm:$0xff]
        %v483 = vld [vmem:[%s368 + $0x210] sm:$0xff]
        %v484 = vld [vmem:[%s368 + $0x218] sm:$0xff]
        %v485 = vld [vmem:[%s368 + $0x220] sm:$0xff]
        %v486 = vld [vmem:[%s368 + $0x228] sm:$0xff]
        %v487 = vld [vmem:[%s368 + $0x230] sm:$0xff]
        %v488 = vld [vmem:[%s368 + $0x238] sm:$0xff]
        %v489 = vld [vmem:[%s368 + $0x240] sm:$0xff]
        %v490 = vld [vmem:[%s368 + $0x248] sm:$0xff]
        %v491 = vld [vmem:[%s368 + $0x250] sm:$0xff]
        %v492 = vld [vmem:[%s368 + $0x258] sm:$0xff]
        %v493 = vld [vmem:[%s368 + $0x260] sm:$0xff]
        %v494 = vld [vmem:[%s368 + $0x268] sm:$0xff]
        %v495 = vld [vmem:[%s368 + $0x270] sm:$0xff]
        %v496 = vld [vmem:[%s368 + $0x278] sm:$0xff]
        %v497 = vld [vmem:[%s368 + $0x280] sm:$0xff]
        %v498 = vld [vmem:[%s368 + $0x288] sm:$0xff]
        %v499 = vld [vmem:[%s368 + $0x290] sm:$0xff]
        %v500 = vld [vmem:[%s368 + $0x298] sm:$0xff]
        %v501 = vld [vmem:[%s368 + $0x2a0] sm:$0xff]
        %v502 = vld [vmem:[%s368 + $0x2a8] sm:$0xff]
        %v503 = vld [vmem:[%s368 + $0x2b0] sm:$0xff]
        %v504 = vld [vmem:[%s368 + $0x2b8] sm:$0xff]
        %v505 = vld [vmem:[%s368 + $0x2c0] sm:$0xff]
        %v506 = vld [vmem:[%s368 + $0x2c8] sm:$0xff]
        %v507 = vld [vmem:[%s368 + $0x2d0] sm:$0xff]
        %v508 = vld [vmem:[%s368 + $0x2d8] sm:$0xff]
        %v509 = vld [vmem:[%s368 + $0x2e0] sm:$0xff]
        %v510 = vld [vmem:[%s368 + $0x2e8] sm:$0xff]
        %v511 = vld [vmem:[%s368 + $0x2f0] sm:$0xff]
        %v512 = vld [vmem:[%s368 + $0x2f8] sm:$0xff]
        %v513 = vld [vmem:[%s368 + $0x300] sm:$0xff]
        %v514 = vld [vmem:[%s368 + $0x308] sm:$0xff]
        %v515 = vld [vmem:[%s368 + $0x310] sm:$0xff]
        %v516 = vld [vmem:[%s368 + $0x318] sm:$0xff]
        %v517 = vld [vmem:[%s368 + $0x320] sm:$0xff]
        %v518 = vld [vmem:[%s368 + $0x328] sm:$0xff]
        %v519 = vld [vmem:[%s368 + $0x330] sm:$0xff]
        %v520 = vld [vmem:[%s368 + $0x338] sm:$0xff]
        %v521 = vld [vmem:[%s368 + $0x340] sm:$0xff]
        %v522 = vld [vmem:[%s368 + $0x348] sm:$0xff]
        %v523 = vld [vmem:[%s368 + $0x350] sm:$0xff]
        %v524 = vld [vmem:[%s368 + $0x358] sm:$0xff]
        %v525 = vld [vmem:[%s368 + $0x360] sm:$0xff]
        %v526 = vld [vmem:[%s368 + $0x368] sm:$0xff]
        %v527 = vld [vmem:[%s368 + $0x370] sm:$0xff]
        %v528 = vld [vmem:[%s368 + $0x378] sm:$0xff]
        %v529 = vld [vmem:[%s368 + $0x380] sm:$0xff]
        %v530 = vld [vmem:[%s368 + $0x388] sm:$0xff]
        %v531 = vld [vmem:[%s368 + $0x390] sm:$0xff]
        %v532 = vld [vmem:[%s368 + $0x398] sm:$0xff]
        %v533 = vld [vmem:[%s368 + $0x3a0] sm:$0xff]
        %v534 = vld [vmem:[%s368 + $0x3a8] sm:$0xff]
        %v535 = vld [vmem:[%s368 + $0x3b0] sm:$0xff]
        %v536 = vld [vmem:[%s368 + $0x3b8] sm:$0xff]
        %v537 = vld [vmem:[%s368 + $0x3c0] sm:$0xff]
        %v538 = vld [vmem:[%s368 + $0x3c8] sm:$0xff]
        %v539 = vld [vmem:[%s368 + $0x3d0] sm:$0xff]
        %v540 = vld [vmem:[%s368 + $0x3d8] sm:$0xff]
        %v541 = vld [vmem:[%s368 + $0x3e0] sm:$0xff]
        %v542 = vld [vmem:[%s368 + $0x3e8] sm:$0xff]
        %v543 = vld [vmem:[%s368 + $0x3f0] sm:$0xff]
        %v544 = vld [vmem:[%s368 + $0x3f8] sm:$0xff]
        %v545 = vld [vmem:[%s368 + $0x400] sm:$0xff]
        %v546 = vld [vmem:[%s368 + $0x408] sm:$0xff]
        %v547 = vld [vmem:[%s368 + $0x410] sm:$0xff]
        %v548 = vld [vmem:[%s368 + $0x418] sm:$0xff]
        %v549 = vld [vmem:[%s368 + $0x420] sm:$0xff]
        %v550 = vld [vmem:[%s368 + $0x428] sm:$0xff]
        %v551 = vld [vmem:[%s368 + $0x430] sm:$0xff]
        %v552 = vld [vmem:[%s368 + $0x438] sm:$0xff]
        %v553 = vld [vmem:[%s368 + $0x440] sm:$0xff]
        %v554 = vld [vmem:[%s368 + $0x448] sm:$0xff]
        %v555 = vld [vmem:[%s368 + $0x450] sm:$0xff]
        %v556 = vld [vmem:[%s368 + $0x458] sm:$0xff]
        %v557 = vld [vmem:[%s368 + $0x460] sm:$0xff]
        %v558 = vld [vmem:[%s368 + $0x468] sm:$0xff]
        %v559 = vld [vmem:[%s368 + $0x470] sm:$0xff]
        %v560 = vld [vmem:[%s368 + $0x478] sm:$0xff]
        %v561 = vld [vmem:[%s368 + $0x480] sm:$0xff]
        %v562 = vld [vmem:[%s368 + $0x488] sm:$0xff]
        %v563 = vld [vmem:[%s368 + $0x490] sm:$0xff]
        %v564 = vld [vmem:[%s368 + $0x498] sm:$0xff]
        %v565 = vld [vmem:[%s368 + $0x4a0] sm:$0xff]
        %v566 = vld [vmem:[%s368 + $0x4a8] sm:$0xff]
        %v567 = vld [vmem:[%s368 + $0x4b0] sm:$0xff]
        %v568 = vld [vmem:[%s368 + $0x4b8] sm:$0xff]
        %v569 = vld [vmem:[%s368 + $0x4c0] sm:$0xff]
        %v570 = vld [vmem:[%s368 + $0x4c8] sm:$0xff]
        %v571 = vld [vmem:[%s368 + $0x4d0] sm:$0xff]
        %v572 = vld [vmem:[%s368 + $0x4d8] sm:$0xff]
        %v573 = vld [vmem:[%s368 + $0x4e0] sm:$0xff]
        %v574 = vld [vmem:[%s368 + $0x4e8] sm:$0xff]
        %v575 = vld [vmem:[%s368 + $0x4f0] sm:$0xff]
        %v576 = vld [vmem:[%s368 + $0x4f8] sm:$0xff]
        %v577 = vld [vmem:[%s368 + $0x500] sm:$0xff]
        %v578 = vld [vmem:[%s368 + $0x508] sm:$0xff]
        %v579 = vld [vmem:[%s368 + $0x510] sm:$0xff]
        %v580 = vld [vmem:[%s368 + $0x518] sm:$0xff]
        %v581 = vld [vmem:[%s368 + $0x520] sm:$0xff]
        %v582 = vld [vmem:[%s368 + $0x528] sm:$0xff]
        %v583 = vld [vmem:[%s368 + $0x530] sm:$0xff]
        %v584 = vld [vmem:[%s368 + $0x538] sm:$0xff]
        %v585 = vld [vmem:[%s368 + $0x540] sm:$0xff]
        %v586 = vld [vmem:[%s368 + $0x548] sm:$0xff]
        %v587 = vld [vmem:[%s368 + $0x550] sm:$0xff]
        %v588 = vld [vmem:[%s368 + $0x558] sm:$0xff]
        %v589 = vld [vmem:[%s368 + $0x560] sm:$0xff]
        %v590 = vld [vmem:[%s368 + $0x568] sm:$0xff]
        %v591 = vld [vmem:[%s368 + $0x570] sm:$0xff]
        %v592 = vld [vmem:[%s368 + $0x578] sm:$0xff]
        %v593 = vld [vmem:[%s368 + $0x580] sm:$0xff]
        %v594 = vld [vmem:[%s368 + $0x588] sm:$0xff]
        %v595 = vld [vmem:[%s368 + $0x590] sm:$0xff]
        %v596 = vld [vmem:[%s368 + $0x598] sm:$0xff]
        %v597 = vld [vmem:[%s368 + $0x5a0] sm:$0xff]
        %v598 = vld [vmem:[%s368 + $0x5a8] sm:$0xff]
        %v599 = vld [vmem:[%s368 + $0x5b0] sm:$0xff]
        %v600 = vld [vmem:[%s368 + $0x5b8] sm:$0xff]
        %v601 = vld [vmem:[%s368 + $0x5c0] sm:$0xff]
        %v602 = vld [vmem:[%s368 + $0x5c8] sm:$0xff]
        %v603 = vld [vmem:[%s368 + $0x5d0] sm:$0xff]
        %v604 = vld [vmem:[%s368 + $0x5d8] sm:$0xff]
        %v605 = vld [vmem:[%s368 + $0x5e0] sm:$0xff]
        %v606 = vld [vmem:[%s368 + $0x5e8] sm:$0xff]
        %v607 = vld [vmem:[%s368 + $0x5f0] sm:$0xff]
        %v608 = vld [vmem:[%s368 + $0x5f8] sm:$0xff]
        %v609 = vld [vmem:[%s368 + $0x600] sm:$0xff]
        %v610 = vld [vmem:[%s368 + $0x608] sm:$0xff]
        %v611 = vld [vmem:[%s368 + $0x610] sm:$0xff]
        %v612 = vld [vmem:[%s368 + $0x618] sm:$0xff]
        %v613 = vld [vmem:[%s368 + $0x620] sm:$0xff]
        %v614 = vld [vmem:[%s368 + $0x628] sm:$0xff]
        %v615 = vld [vmem:[%s368 + $0x630] sm:$0xff]
        %v616 = vld [vmem:[%s368 + $0x638] sm:$0xff]
        %v617 = vld [vmem:[%s368 + $0x640] sm:$0xff]
        %v618 = vld [vmem:[%s368 + $0x648] sm:$0xff]
        %v619 = vld [vmem:[%s368 + $0x650] sm:$0xff]
        %v620 = vld [vmem:[%s368 + $0x658] sm:$0xff]
        %v621 = vld [vmem:[%s368 + $0x660] sm:$0xff]
        %v622 = vld [vmem:[%s368 + $0x668] sm:$0xff]
        %v623 = vld [vmem:[%s368 + $0x670] sm:$0xff]
        %v624 = vld [vmem:[%s368 + $0x678] sm:$0xff]
        %v625 = vld [vmem:[%s368 + $0x680] sm:$0xff]
        %v626 = vld [vmem:[%s368 + $0x688] sm:$0xff]
        %v627 = vld [vmem:[%s368 + $0x690] sm:$0xff]
        %v628 = vld [vmem:[%s368 + $0x698] sm:$0xff]
        %v629 = vld [vmem:[%s368 + $0x6a0] sm:$0xff]
        %v630 = vld [vmem:[%s368 + $0x6a8] sm:$0xff]
        %v631 = vld [vmem:[%s368 + $0x6b0] sm:$0xff]
        %v632 = vld [vmem:[%s368 + $0x6b8] sm:$0xff]
        %v633 = vld [vmem:[%s368 + $0x6c0] sm:$0xff]
        %v634 = vld [vmem:[%s368 + $0x6c8] sm:$0xff]
        %v635 = vld [vmem:[%s368 + $0x6d0] sm:$0xff]
        %v636 = vld [vmem:[%s368 + $0x6d8] sm:$0xff]
        %v637 = vld [vmem:[%s368 + $0x6e0] sm:$0xff]
        %v638 = vld [vmem:[%s368 + $0x6e8] sm:$0xff]
        %v639 = vld [vmem:[%s368 + $0x6f0] sm:$0xff]
        %v640 = vld [vmem:[%s368 + $0x6f8] sm:$0xff]
        %v641 = vld [vmem:[%s368 + $0x700] sm:$0xff]
        %v642 = vld [vmem:[%s368 + $0x708] sm:$0xff]
        %v643 = vld [vmem:[%s368 + $0x710] sm:$0xff]
        %v644 = vld [vmem:[%s368 + $0x718] sm:$0xff]
        %v645 = vld [vmem:[%s368 + $0x720] sm:$0xff]
        %v646 = vld [vmem:[%s368 + $0x728] sm:$0xff]
        %v647 = vld [vmem:[%s368 + $0x730] sm:$0xff]
        %v648 = vld [vmem:[%s368 + $0x738] sm:$0xff]
        %v649 = vld [vmem:[%s368 + $0x740] sm:$0xff]
        %v650 = vld [vmem:[%s368 + $0x748] sm:$0xff]
        %v651 = vld [vmem:[%s368 + $0x750] sm:$0xff]
        %v652 = vld [vmem:[%s368 + $0x758] sm:$0xff]
        %v653 = vld [vmem:[%s368 + $0x760] sm:$0xff]
        %v654 = vld [vmem:[%s368 + $0x768] sm:$0xff]
        %v655 = vld [vmem:[%s368 + $0x770] sm:$0xff]
        %v656 = vld [vmem:[%s368 + $0x778] sm:$0xff]
        %v657 = vld [vmem:[%s368 + $0x780] sm:$0xff]
        %v658 = vld [vmem:[%s368 + $0x788] sm:$0xff]
        %v659 = vld [vmem:[%s368 + $0x790] sm:$0xff]
        %v660 = vld [vmem:[%s368 + $0x798] sm:$0xff]
        %v661 = vld [vmem:[%s368 + $0x7a0] sm:$0xff]
        %v662 = vld [vmem:[%s368 + $0x7a8] sm:$0xff]
        %v663 = vld [vmem:[%s368 + $0x7b0] sm:$0xff]
        %v664 = vld [vmem:[%s368 + $0x7b8] sm:$0xff]
        %v665 = vld [vmem:[%s368 + $0x7c0] sm:$0xff]
        %v666 = vld [vmem:[%s368 + $0x7c8] sm:$0xff]
        %v667 = vld [vmem:[%s368 + $0x7d0] sm:$0xff]
        %v668 = vld [vmem:[%s368 + $0x7d8] sm:$0xff]
        %v669 = vld [vmem:[%s368 + $0x7e0] sm:$0xff]
        %v670 = vld [vmem:[%s368 + $0x7e8] sm:$0xff]
        %v671 = vld [vmem:[%s368 + $0x7f0] sm:$0xff]
        %v672 = vld [vmem:[%s368 + $0x7f8] sm:$0xff]
        %v673 = vld [vmem:[%s368 + $0x800] sm:$0xff]
        %v674 = vld [vmem:[%s368 + $0x808] sm:$0xff]
        %v675 = vld [vmem:[%s368 + $0x810] sm:$0xff]
        %v676 = vld [vmem:[%s368 + $0x818] sm:$0xff]
        %v677 = vld [vmem:[%s368 + $0x820] sm:$0xff]
        %v678 = vld [vmem:[%s368 + $0x828] sm:$0xff]
        %v679 = vld [vmem:[%s368 + $0x830] sm:$0xff]
        %v680 = vld [vmem:[%s368 + $0x838] sm:$0xff]
        %v681 = vld [vmem:[%s368 + $0x840] sm:$0xff]
        %v682 = vld [vmem:[%s368 + $0x848] sm:$0xff]
        %v683 = vld [vmem:[%s368 + $0x850] sm:$0xff]
        %v684 = vld [vmem:[%s368 + $0x858] sm:$0xff]
        %v685 = vld [vmem:[%s368 + $0x860] sm:$0xff]
        %v686 = vld [vmem:[%s368 + $0x868] sm:$0xff]
        %v687 = vld [vmem:[%s368 + $0x870] sm:$0xff]
        %v688 = vld [vmem:[%s368 + $0x878] sm:$0xff]
        %v689 = vld [vmem:[%s368 + $0x880] sm:$0xff]
        %v690 = vld [vmem:[%s368 + $0x888] sm:$0xff]
        %v691 = vld [vmem:[%s368 + $0x890] sm:$0xff]
        %v692 = vld [vmem:[%s368 + $0x898] sm:$0xff]
        %v693 = vld [vmem:[%s368 + $0x8a0] sm:$0xff]
        %v694 = vld [vmem:[%s368 + $0x8a8] sm:$0xff]
        %v695 = vld [vmem:[%s368 + $0x8b0] sm:$0xff]
        %v696 = vld [vmem:[%s368 + $0x8b8] sm:$0xff]
        %v697 = vld [vmem:[%s368 + $0x8c0] sm:$0xff]
        %v698 = vld [vmem:[%s368 + $0x8c8] sm:$0xff]
        %v699 = vld [vmem:[%s368 + $0x8d0] sm:$0xff]
        %v700 = vld [vmem:[%s368 + $0x8d8] sm:$0xff]
        %v701 = vld [vmem:[%s368 + $0x8e0] sm:$0xff]
        %v702 = vld [vmem:[%s368 + $0x8e8] sm:$0xff]
        %v703 = vld [vmem:[%s368 + $0x8f0] sm:$0xff]
        %v704 = vld [vmem:[%s368 + $0x8f8] sm:$0xff]
        %v705 = vld [vmem:[%s368 + $0x900] sm:$0xff]
        %v706 = vld [vmem:[%s368 + $0x908] sm:$0xff]
        %v707 = vld [vmem:[%s368 + $0x910] sm:$0xff]
        %v708 = vld [vmem:[%s368 + $0x918] sm:$0xff]
        %v709 = vld [vmem:[%s368 + $0x920] sm:$0xff]
        %v710 = vld [vmem:[%s368 + $0x928] sm:$0xff]
        %v711 = vld [vmem:[%s368 + $0x930] sm:$0xff]
        %v712 = vld [vmem:[%s368 + $0x938] sm:$0xff]
        %v713 = vld [vmem:[%s368 + $0x940] sm:$0xff]
        %v714 = vld [vmem:[%s368 + $0x948] sm:$0xff]
        %v715 = vld [vmem:[%s368 + $0x950] sm:$0xff]
        %v716 = vld [vmem:[%s368 + $0x958] sm:$0xff]
        %v717 = vld [vmem:[%s368 + $0x960] sm:$0xff]
        %v718 = vld [vmem:[%s368 + $0x968] sm:$0xff]
        %v719 = vld [vmem:[%s368 + $0x970] sm:$0xff]
        %v720 = vld [vmem:[%s368 + $0x978] sm:$0xff]
        %v721 = vld [vmem:[%s368 + $0x980] sm:$0xff]
        %v722 = vld [vmem:[%s368 + $0x988] sm:$0xff]
        %v723 = vld [vmem:[%s368 + $0x990] sm:$0xff]
        %v724 = vld [vmem:[%s368 + $0x998] sm:$0xff]
        %v725 = vld [vmem:[%s368 + $0x9a0] sm:$0xff]
        %v726 = vld [vmem:[%s368 + $0x9a8] sm:$0xff]
        %v727 = vld [vmem:[%s368 + $0x9b0] sm:$0xff]
        %v728 = vld [vmem:[%s368 + $0x9b8] sm:$0xff]
        %v729 = vld [vmem:[%s368 + $0x9c0] sm:$0xff]
        %v730 = vld [vmem:[%s368 + $0x9c8] sm:$0xff]
        %v731 = vld [vmem:[%s368 + $0x9d0] sm:$0xff]
        %v732 = vld [vmem:[%s368 + $0x9d8] sm:$0xff]
        %v733 = vld [vmem:[%s368 + $0x9e0] sm:$0xff]
        %v734 = vld [vmem:[%s368 + $0x9e8] sm:$0xff]
        %v735 = vld [vmem:[%s368 + $0x9f0] sm:$0xff]
        %v736 = vld [vmem:[%s368 + $0x9f8] sm:$0xff]
        %v737 = vld [vmem:[%s368 + $0xa00] sm:$0xff]
        %v738 = vld [vmem:[%s368 + $0xa08] sm:$0xff]
        %v739 = vld [vmem:[%s368 + $0xa10] sm:$0xff]
        %v740 = vld [vmem:[%s368 + $0xa18] sm:$0xff]
        %v741 = vld [vmem:[%s368 + $0xa20] sm:$0xff]
        %v742 = vld [vmem:[%s368 + $0xa28] sm:$0xff]
        %v743 = vld [vmem:[%s368 + $0xa30] sm:$0xff]
        %v744 = vld [vmem:[%s368 + $0xa38] sm:$0xff]
        %v745 = vld [vmem:[%s368 + $0xa40] sm:$0xff]
        %v746 = vld [vmem:[%s368 + $0xa48] sm:$0xff]
        %v747 = vld [vmem:[%s368 + $0xa50] sm:$0xff]
        %v748 = vld [vmem:[%s368 + $0xa58] sm:$0xff]
        %v749 = vld [vmem:[%s368 + $0xa60] sm:$0xff]
        %v750 = vld [vmem:[%s368 + $0xa68] sm:$0xff]
        %v751 = vld [vmem:[%s368 + $0xa70] sm:$0xff]
        %v752 = vld [vmem:[%s368 + $0xa78] sm:$0xff]
        %v753 = vld [vmem:[%s368 + $0xa80] sm:$0xff]
        %v754 = vld [vmem:[%s368 + $0xa88] sm:$0xff]
        %v755 = vld [vmem:[%s368 + $0xa90] sm:$0xff]
        %v756 = vld [vmem:[%s368 + $0xa98] sm:$0xff]
        %v757 = vld [vmem:[%s368 + $0xaa0] sm:$0xff]
        %v758 = vld [vmem:[%s368 + $0xaa8] sm:$0xff]
        %v759 = vld [vmem:[%s368 + $0xab0] sm:$0xff]
        %v760 = vld [vmem:[%s368 + $0xab8] sm:$0xff]
        %v761 = vld [vmem:[%s368 + $0xac0] sm:$0xff]
        %v762 = vld [vmem:[%s368 + $0xac8] sm:$0xff]
        %v763 = vld [vmem:[%s368 + $0xad0] sm:$0xff]
        %v764 = vld [vmem:[%s368 + $0xad8] sm:$0xff]
        %v765 = vld [vmem:[%s368 + $0xae0] sm:$0xff]
        %v766 = vld [vmem:[%s368 + $0xae8] sm:$0xff]
        %v767 = vld [vmem:[%s368 + $0xaf0] sm:$0xff]
        %v768 = vld [vmem:[%s368 + $0xaf8] sm:$0xff]
        %v769 = vld [vmem:[%s368 + $0xb00] sm:$0xff]
        %v770 = vld [vmem:[%s368 + $0xb08] sm:$0xff]
        %v771 = vld [vmem:[%s368 + $0xb10] sm:$0xff]
        %v772 = vld [vmem:[%s368 + $0xb18] sm:$0xff]
        %v773 = vld [vmem:[%s368 + $0xb20] sm:$0xff]
        %v774 = vld [vmem:[%s368 + $0xb28] sm:$0xff]
        %v775 = vld [vmem:[%s368 + $0xb30] sm:$0xff]
        %v776 = vld [vmem:[%s368 + $0xb38] sm:$0xff]
        %v777 = vld [vmem:[%s368 + $0xb40] sm:$0xff]
        %v778 = vld [vmem:[%s368 + $0xb48] sm:$0xff]
        %v779 = vld [vmem:[%s368 + $0xb50] sm:$0xff]
        %v780 = vld [vmem:[%s368 + $0xb58] sm:$0xff]
        %v781 = vld [vmem:[%s368 + $0xb60] sm:$0xff]
        %v782 = vld [vmem:[%s368 + $0xb68] sm:$0xff]
        %v783 = vld [vmem:[%s368 + $0xb70] sm:$0xff]
        %v784 = vld [vmem:[%s368 + $0xb78] sm:$0xff]
        %v785 = vld [vmem:[%s368 + $0xb80] sm:$0xff]
        %v786 = vld [vmem:[%s368 + $0xb88] sm:$0xff]
        %v787 = vld [vmem:[%s368 + $0xb90] sm:$0xff]
        %v788 = vld [vmem:[%s368 + $0xb98] sm:$0xff]
        %v789 = vld [vmem:[%s368 + $0xba0] sm:$0xff]
        %v790 = vld [vmem:[%s368 + $0xba8] sm:$0xff]
        %v791 = vld [vmem:[%s368 + $0xbb0] sm:$0xff]
        %v792 = vld [vmem:[%s368 + $0xbb8] sm:$0xff]
        %v793 = vld [vmem:[%s368 + $0xbc0] sm:$0xff]
        %v794 = vld [vmem:[%s368 + $0xbc8] sm:$0xff]
        %v795 = vld [vmem:[%s368 + $0xbd0] sm:$0xff]
        %v796 = vld [vmem:[%s368 + $0xbd8] sm:$0xff]
        %v797 = vld [vmem:[%s368 + $0xbe0] sm:$0xff]
        %v798 = vld [vmem:[%s368 + $0xbe8] sm:$0xff]
        %v799 = vld [vmem:[%s368 + $0xbf0] sm:$0xff]
        %v800 = vld [vmem:[%s368 + $0xbf8] sm:$0xff]
        %v801 = vld [vmem:[%s368 + $0xc00] sm:$0xff]
        %v802 = vld [vmem:[%s368 + $0xc08] sm:$0xff]
        %v803 = vld [vmem:[%s368 + $0xc10] sm:$0xff]
        %v804 = vld [vmem:[%s368 + $0xc18] sm:$0xff]
        %v805 = vld [vmem:[%s368 + $0xc20] sm:$0xff]
        %v806 = vld [vmem:[%s368 + $0xc28] sm:$0xff]
        %v807 = vld [vmem:[%s368 + $0xc30] sm:$0xff]
        %v808 = vld [vmem:[%s368 + $0xc38] sm:$0xff]
        %v809 = vld [vmem:[%s368 + $0xc40] sm:$0xff]
        %v810 = vld [vmem:[%s368 + $0xc48] sm:$0xff]
        %v811 = vld [vmem:[%s368 + $0xc50] sm:$0xff]
        %v812 = vld [vmem:[%s368 + $0xc58] sm:$0xff]
        %v813 = vld [vmem:[%s368 + $0xc60] sm:$0xff]
        %v814 = vld [vmem:[%s368 + $0xc68] sm:$0xff]
        %v815 = vld [vmem:[%s368 + $0xc70] sm:$0xff]
        %v816 = vld [vmem:[%s368 + $0xc78] sm:$0xff]
        %v817 = vld [vmem:[%s368 + $0xc80] sm:$0xff]
        %v818 = vld [vmem:[%s368 + $0xc88] sm:$0xff]
        %v819 = vld [vmem:[%s368 + $0xc90] sm:$0xff]
        %v820 = vld [vmem:[%s368 + $0xc98] sm:$0xff]
        %v821 = vld [vmem:[%s368 + $0xca0] sm:$0xff]
        %v822 = vld [vmem:[%s368 + $0xca8] sm:$0xff]
        %v823 = vld [vmem:[%s368 + $0xcb0] sm:$0xff]
        %v824 = vld [vmem:[%s368 + $0xcb8] sm:$0xff]
        %v825 = vld [vmem:[%s368 + $0xcc0] sm:$0xff]
        %v826 = vld [vmem:[%s368 + $0xcc8] sm:$0xff]
        %v827 = vld [vmem:[%s368 + $0xcd0] sm:$0xff]
        %v828 = vld [vmem:[%s368 + $0xcd8] sm:$0xff]
        %v829 = vld [vmem:[%s368 + $0xce0] sm:$0xff]
        %v830 = vld [vmem:[%s368 + $0xce8] sm:$0xff]
        %v831 = vld [vmem:[%s368 + $0xcf0] sm:$0xff]
        %v832 = vld [vmem:[%s368 + $0xcf8] sm:$0xff]
        %v833 = vld [vmem:[%s368 + $0xd00] sm:$0xff]
        %v834 = vld [vmem:[%s368 + $0xd08] sm:$0xff]
        %v835 = vld [vmem:[%s368 + $0xd10] sm:$0xff]
        %v836 = vld [vmem:[%s368 + $0xd18] sm:$0xff]
        %v837 = vld [vmem:[%s368 + $0xd20] sm:$0xff]
        %v838 = vld [vmem:[%s368 + $0xd28] sm:$0xff]
        %v839 = vld [vmem:[%s368 + $0xd30] sm:$0xff]
        %v840 = vld [vmem:[%s368 + $0xd38] sm:$0xff]
        %v841 = vld [vmem:[%s368 + $0xd40] sm:$0xff]
        %v842 = vld [vmem:[%s368 + $0xd48] sm:$0xff]
        %v843 = vld [vmem:[%s368 + $0xd50] sm:$0xff]
        %v844 = vld [vmem:[%s368 + $0xd58] sm:$0xff]
        %v845 = vld [vmem:[%s368 + $0xd60] sm:$0xff]
        %v846 = vld [vmem:[%s368 + $0xd68] sm:$0xff]
        %v847 = vld [vmem:[%s368 + $0xd70] sm:$0xff]
        %v848 = vld [vmem:[%s368 + $0xd78] sm:$0xff]
        %v849 = vld [vmem:[%s368 + $0xd80] sm:$0xff]
        %v850 = vld [vmem:[%s368 + $0xd88] sm:$0xff]
        %v851 = vld [vmem:[%s368 + $0xd90] sm:$0xff]
        %v852 = vld [vmem:[%s368 + $0xd98] sm:$0xff]
        %v853 = vld [vmem:[%s368 + $0xda0] sm:$0xff]
        %v854 = vld [vmem:[%s368 + $0xda8] sm:$0xff]
        %v855 = vld [vmem:[%s368 + $0xdb0] sm:$0xff]
        %v856 = vld [vmem:[%s368 + $0xdb8] sm:$0xff]
        %v857 = vld [vmem:[%s368 + $0xdc0] sm:$0xff]
        %v858 = vld [vmem:[%s368 + $0xdc8] sm:$0xff]
        %v859 = vld [vmem:[%s368 + $0xdd0] sm:$0xff]
        %v860 = vld [vmem:[%s368 + $0xdd8] sm:$0xff]
        %v861 = vld [vmem:[%s368 + $0xde0] sm:$0xff]
        %v862 = vld [vmem:[%s368 + $0xde8] sm:$0xff]
        %v863 = vld [vmem:[%s368 + $0xdf0] sm:$0xff]
        %v864 = vld [vmem:[%s368 + $0xdf8] sm:$0xff]
        %v865 = vld [vmem:[%s368 + $0xe00] sm:$0xff]
        %v866 = vld [vmem:[%s368 + $0xe08] sm:$0xff]
        %v867 = vld [vmem:[%s368 + $0xe10] sm:$0xff]
        %v868 = vld [vmem:[%s368 + $0xe18] sm:$0xff]
        %v869 = vld [vmem:[%s368 + $0xe20] sm:$0xff]
        %v870 = vld [vmem:[%s368 + $0xe28] sm:$0xff]
        %v871 = vld [vmem:[%s368 + $0xe30] sm:$0xff]
        %v872 = vld [vmem:[%s368 + $0xe38] sm:$0xff]
        %v873 = vld [vmem:[%s368 + $0xe40] sm:$0xff]
        %v874 = vld [vmem:[%s368 + $0xe48] sm:$0xff]
        %v875 = vld [vmem:[%s368 + $0xe50] sm:$0xff]
        %v876 = vld [vmem:[%s368 + $0xe58] sm:$0xff]
        %v877 = vld [vmem:[%s368 + $0xe60] sm:$0xff]
        %v878 = vld [vmem:[%s368 + $0xe68] sm:$0xff]
        %v879 = vld [vmem:[%s368 + $0xe70] sm:$0xff]
        %v880 = vld [vmem:[%s368 + $0xe78] sm:$0xff]
        %v881 = vld [vmem:[%s368 + $0xe80] sm:$0xff]
        %v882 = vld [vmem:[%s368 + $0xe88] sm:$0xff]
        %v883 = vld [vmem:[%s368 + $0xe90] sm:$0xff]
        %v884 = vld [vmem:[%s368 + $0xe98] sm:$0xff]
        %v885 = vld [vmem:[%s368 + $0xea0] sm:$0xff]
        %v886 = vld [vmem:[%s368 + $0xea8] sm:$0xff]
        %v887 = vld [vmem:[%s368 + $0xeb0] sm:$0xff]
        %v888 = vld [vmem:[%s368 + $0xeb8] sm:$0xff]
        %v889 = vld [vmem:[%s368 + $0xec0] sm:$0xff]
        %v890 = vld [vmem:[%s368 + $0xec8] sm:$0xff]
        %v891 = vld [vmem:[%s368 + $0xed0] sm:$0xff]
        %v892 = vld [vmem:[%s368 + $0xed8] sm:$0xff]
        %v893 = vld [vmem:[%s368 + $0xee0] sm:$0xff]
        %v894 = vld [vmem:[%s368 + $0xee8] sm:$0xff]
        %v895 = vld [vmem:[%s368 + $0xef0] sm:$0xff]
        %v896 = vld [vmem:[%s368 + $0xef8] sm:$0xff]
        %v897 = vld [vmem:[%s368 + $0xf00] sm:$0xff]
        %v898 = vld [vmem:[%s368 + $0xf08] sm:$0xff]
        %v899 = vld [vmem:[%s368 + $0xf10] sm:$0xff]
        %v900 = vld [vmem:[%s368 + $0xf18] sm:$0xff]
        %v901 = vld [vmem:[%s368 + $0xf20] sm:$0xff]
        %v902 = vld [vmem:[%s368 + $0xf28] sm:$0xff]
        %v903 = vld [vmem:[%s368 + $0xf30] sm:$0xff]
        %v904 = vld [vmem:[%s368 + $0xf38] sm:$0xff]
        %v905 = vld [vmem:[%s368 + $0xf40] sm:$0xff]
        %v906 = vld [vmem:[%s368 + $0xf48] sm:$0xff]
        %v907 = vld [vmem:[%s368 + $0xf50] sm:$0xff]
        %v908 = vld [vmem:[%s368 + $0xf58] sm:$0xff]
        %v909 = vld [vmem:[%s368 + $0xf60] sm:$0xff]
        %v910 = vld [vmem:[%s368 + $0xf68] sm:$0xff]
        %v911 = vld [vmem:[%s368 + $0xf70] sm:$0xff]
        %v912 = vld [vmem:[%s368 + $0xf78] sm:$0xff]
        %v913 = vld [vmem:[%s368 + $0xf80] sm:$0xff]
        %v914 = vld [vmem:[%s368 + $0xf88] sm:$0xff]
        %v915 = vld [vmem:[%s368 + $0xf90] sm:$0xff]
        %v916 = vld [vmem:[%s368 + $0xf98] sm:$0xff]
        %v917 = vld [vmem:[%s368 + $0xfa0] sm:$0xff]
        %v918 = vld [vmem:[%s368 + $0xfa8] sm:$0xff]
        %v919 = vld [vmem:[%s368 + $0xfb0] sm:$0xff]
        %v920 = vld [vmem:[%s368 + $0xfb8] sm:$0xff]
        %v921 = vld [vmem:[%s368 + $0xfc0] sm:$0xff]
        %v922 = vld [vmem:[%s368 + $0xfc8] sm:$0xff]
        %v923 = vld [vmem:[%s368 + $0xfd0] sm:$0xff]
        %v924 = vld [vmem:[%s368 + $0xfd8] sm:$0xff]
        %v925 = vld [vmem:[%s368 + $0xfe0] sm:$0xff]
        %v926 = vld [vmem:[%s368 + $0xfe8] sm:$0xff]
        %v927 = vld [vmem:[%s368 + $0xff0] sm:$0xff]
        %v928 = vld [vmem:[%s368 + $0xff8] sm:$0xff]
        %v929 = vld [vmem:[%s368 + $0x1000] sm:$0xff]
        %v930 = vld [vmem:[%s368 + $0x1008] sm:$0xff]
        %v931 = vld [vmem:[%s368 + $0x1010] sm:$0xff]
        %v932 = vld [vmem:[%s368 + $0x1018] sm:$0xff]
        %v933 = vld [vmem:[%s368 + $0x1020] sm:$0xff]
        %v934 = vld [vmem:[%s368 + $0x1028] sm:$0xff]
        %v935 = vld [vmem:[%s368 + $0x1030] sm:$0xff]
        %v936 = vld [vmem:[%s368 + $0x1038] sm:$0xff]
        %v937 = vld [vmem:[%s368 + $0x1040] sm:$0xff]
        %v938 = vld [vmem:[%s368 + $0x1048] sm:$0xff]
        %v939 = vld [vmem:[%s368 + $0x1050] sm:$0xff]
        %v940 = vld [vmem:[%s368 + $0x1058] sm:$0xff]
        %v941 = vld [vmem:[%s368 + $0x1060] sm:$0xff]
        %v942 = vld [vmem:[%s368 + $0x1068] sm:$0xff]
        %v943 = vld [vmem:[%s368 + $0x1070] sm:$0xff]
        %v944 = vld [vmem:[%s368 + $0x1078] sm:$0xff]
        %v945 = vld [vmem:[%s368 + $0x1080] sm:$0xff]
        %v946 = vld [vmem:[%s368 + $0x1088] sm:$0xff]
        %v947 = vld [vmem:[%s368 + $0x1090] sm:$0xff]
        %v948 = vld [vmem:[%s368 + $0x1098] sm:$0xff]
        %v949 = vld [vmem:[%s368 + $0x10a0] sm:$0xff]
        %v950 = vld [vmem:[%s368 + $0x10a8] sm:$0xff]
        %v951 = vld [vmem:[%s368 + $0x10b0] sm:$0xff]
        %v952 = vld [vmem:[%s368 + $0x10b8] sm:$0xff]
        %v953 = vld [vmem:[%s368 + $0x10c0] sm:$0xff]
        %v954 = vld [vmem:[%s368 + $0x10c8] sm:$0xff]
        %v955 = vld [vmem:[%s368 + $0x10d0] sm:$0xff]
        %v956 = vld [vmem:[%s368 + $0x10d8] sm:$0xff]
        %v957 = vld [vmem:[%s368 + $0x10e0] sm:$0xff]
        %v958 = vld [vmem:[%s368 + $0x10e8] sm:$0xff]
        %v959 = vld [vmem:[%s368 + $0x10f0] sm:$0xff]
        %v960 = vld [vmem:[%s368 + $0x10f8] sm:$0xff]
        %v961 = vld [vmem:[%s368 + $0x1100] sm:$0xff]
        %v962 = vld [vmem:[%s368 + $0x1108] sm:$0xff]
        %v963 = vld [vmem:[%s368 + $0x1110] sm:$0xff]
        %v964 = vld [vmem:[%s368 + $0x1118] sm:$0xff]
        %v965 = vld [vmem:[%s368 + $0x1120] sm:$0xff]
        %v966 = vld [vmem:[%s368 + $0x1128] sm:$0xff]
        %v967 = vld [vmem:[%s368 + $0x1130] sm:$0xff]
        %v968 = vld [vmem:[%s368 + $0x1138] sm:$0xff]
        %v969 = vld [vmem:[%s368 + $0x1140] sm:$0xff]
        %v970 = vld [vmem:[%s368 + $0x1148] sm:$0xff]
        %v971 = vld [vmem:[%s368 + $0x1150] sm:$0xff]
        %v972 = vld [vmem:[%s368 + $0x1158] sm:$0xff]
        %v973 = vld [vmem:[%s368 + $0x1160] sm:$0xff]
        %v974 = vld [vmem:[%s368 + $0x1168] sm:$0xff]
        %v975 = vld [vmem:[%s368 + $0x1170] sm:$0xff]
        %v976 = vld [vmem:[%s368 + $0x1178] sm:$0xff]
        %v977 = vld [vmem:[%s368 + $0x1180] sm:$0xff]
        %v978 = vld [vmem:[%s368 + $0x1188] sm:$0xff]
        %v979 = vld [vmem:[%s368 + $0x1190] sm:$0xff]
        %v980 = vld [vmem:[%s368 + $0x1198] sm:$0xff]
        %v981 = vld [vmem:[%s368 + $0x11a0] sm:$0xff]
        %v982 = vld [vmem:[%s368 + $0x11a8] sm:$0xff]
        %v983 = vld [vmem:[%s368 + $0x11b0] sm:$0xff]
        %v984 = vld [vmem:[%s368 + $0x11b8] sm:$0xff]
        %v985 = vld [vmem:[%s368 + $0x11c0] sm:$0xff]
        %v986 = vld [vmem:[%s368 + $0x11c8] sm:$0xff]
        %v987 = vld [vmem:[%s368 + $0x11d0] sm:$0xff]
        %v988 = vld [vmem:[%s368 + $0x11d8] sm:$0xff]
        %v989 = vld [vmem:[%s368 + $0x11e0] sm:$0xff]
        %v990 = vld [vmem:[%s368 + $0x11e8] sm:$0xff]
        %v991 = vld [vmem:[%s368 + $0x11f0] sm:$0xff]
        %v992 = vld [vmem:[%s368 + $0x11f8] sm:$0xff]
        %v993 = vld [vmem:[%s368 + $0x1200] sm:$0xff]
        %v994 = vld [vmem:[%s368 + $0x1208] sm:$0xff]
        %v995 = vld [vmem:[%s368 + $0x1210] sm:$0xff]
        %v996 = vld [vmem:[%s368 + $0x1218] sm:$0xff]
        %v997 = vld [vmem:[%s368 + $0x1220] sm:$0xff]
        %v998 = vld [vmem:[%s368 + $0x1228] sm:$0xff]
        %v999 = vld [vmem:[%s368 + $0x1230] sm:$0xff]
        %v1000 = vld [vmem:[%s368 + $0x1238] sm:$0xff]
        %v1001 = vld [vmem:[%s368 + $0x1240] sm:$0xff]
        %v1002 = vld [vmem:[%s368 + $0x1248] sm:$0xff]
        %v1003 = vld [vmem:[%s368 + $0x1250] sm:$0xff]
        %v1004 = vld [vmem:[%s368 + $0x1258] sm:$0xff]
        %v1005 = vld [vmem:[%s368 + $0x1260] sm:$0xff]
        %v1006 = vld [vmem:[%s368 + $0x1268] sm:$0xff]
        %v1007 = vld [vmem:[%s368 + $0x1270] sm:$0xff]
        %v1008 = vld [vmem:[%s368 + $0x1278] sm:$0xff]
        %v1009 = vld [vmem:[%s368 + $0x1280] sm:$0xff]
        %v1010 = vld [vmem:[%s368 + $0x1288] sm:$0xff]
        %v1011 = vld [vmem:[%s368 + $0x1290] sm:$0xff]
        %v1012 = vld [vmem:[%s368 + $0x1298] sm:$0xff]
        %v1013 = vld [vmem:[%s368 + $0x12a0] sm:$0xff]
        %v1014 = vld [vmem:[%s368 + $0x12a8] sm:$0xff]
        %v1015 = vld [vmem:[%s368 + $0x12b0] sm:$0xff]
        %v1016 = vld [vmem:[%s368 + $0x12b8] sm:$0xff]
        %v1017 = vld [vmem:[%s368 + $0x12c0] sm:$0xff]
        %v1018 = vld [vmem:[%s368 + $0x12c8] sm:$0xff]
        %v1019 = vld [vmem:[%s368 + $0x12d0] sm:$0xff]
        %v1020 = vld [vmem:[%s368 + $0x12d8] sm:$0xff]
        %v1021 = vld [vmem:[%s368 + $0x12e0] sm:$0xff]
        %v1022 = vld [vmem:[%s368 + $0x12e8] sm:$0xff]
        %v1023 = vld [vmem:[%s368 + $0x12f0] sm:$0xff]
        %v1024 = vld [vmem:[%s368 + $0x12f8] sm:$0xff]
        %v1025 = vld [vmem:[%s368 + $0x1300] sm:$0xff]
        %v1026 = vld [vmem:[%s368 + $0x1308] sm:$0xff]
        %v1027 = vld [vmem:[%s368 + $0x1310] sm:$0xff]
        %v1028 = vld [vmem:[%s368 + $0x1318] sm:$0xff]
        %v1029 = vld [vmem:[%s368 + $0x1320] sm:$0xff]
        %v1030 = vld [vmem:[%s368 + $0x1328] sm:$0xff]
        %v1031 = vld [vmem:[%s368 + $0x1330] sm:$0xff]
        %v1032 = vld [vmem:[%s368 + $0x1338] sm:$0xff]
        %v1033 = vld [vmem:[%s368 + $0x1340] sm:$0xff]
        %v1034 = vld [vmem:[%s368 + $0x1348] sm:$0xff]
        %v1035 = vld [vmem:[%s368 + $0x1350] sm:$0xff]
        %v1036 = vld [vmem:[%s368 + $0x1358] sm:$0xff]
        %v1037 = vld [vmem:[%s368 + $0x1360] sm:$0xff]
        %v1038 = vld [vmem:[%s368 + $0x1368] sm:$0xff]
        %v1039 = vld [vmem:[%s368 + $0x1370] sm:$0xff]
        %v1040 = vld [vmem:[%s368 + $0x1378] sm:$0xff]
        %v1041 = vld [vmem:[%s368 + $0x1380] sm:$0xff]
        %v1042 = vld [vmem:[%s368 + $0x1388] sm:$0xff]
        %v1043 = vld [vmem:[%s368 + $0x1390] sm:$0xff]
        %v1044 = vld [vmem:[%s368 + $0x1398] sm:$0xff]
        %v1045 = vld [vmem:[%s368 + $0x13a0] sm:$0xff]
        %v1046 = vld [vmem:[%s368 + $0x13a8] sm:$0xff]
        %v1047 = vld [vmem:[%s368 + $0x13b0] sm:$0xff]
        %v1048 = vld [vmem:[%s368 + $0x13b8] sm:$0xff]
        %v1049 = vld [vmem:[%s368 + $0x13c0] sm:$0xff]
        %v1050 = vld [vmem:[%s368 + $0x13c8] sm:$0xff]
        %v1051 = vld [vmem:[%s368 + $0x13d0] sm:$0xff]
        %v1052 = vld [vmem:[%s368 + $0x13d8] sm:$0xff]
        %v1053 = vld [vmem:[%s368 + $0x13e0] sm:$0xff]
        %v1054 = vld [vmem:[%s368 + $0x13e8] sm:$0xff]
        %v1055 = vld [vmem:[%s368 + $0x13f0] sm:$0xff]
        %v1056 = vld [vmem:[%s368 + $0x13f8] sm:$0xff]
        %v1057 = vld [vmem:[%s368 + $0x1400] sm:$0xff]
        %v1058 = vld [vmem:[%s368 + $0x1408] sm:$0xff]
        %v1059 = vld [vmem:[%s368 + $0x1410] sm:$0xff]
        %v1060 = vld [vmem:[%s368 + $0x1418] sm:$0xff]
        %v1061 = vld [vmem:[%s368 + $0x1420] sm:$0xff]
        %v1062 = vld [vmem:[%s368 + $0x1428] sm:$0xff]
        %v1063 = vld [vmem:[%s368 + $0x1430] sm:$0xff]
        %v1064 = vld [vmem:[%s368 + $0x1438] sm:$0xff]
        %v1065 = vld [vmem:[%s368 + $0x1440] sm:$0xff]
        %v1066 = vld [vmem:[%s368 + $0x1448] sm:$0xff]
        %v1067 = vld [vmem:[%s368 + $0x1450] sm:$0xff]
        %v1068 = vld [vmem:[%s368 + $0x1458] sm:$0xff]
        %v1069 = vld [vmem:[%s368 + $0x1460] sm:$0xff]
        %v1070 = vld [vmem:[%s368 + $0x1468] sm:$0xff]
        %v1071 = vld [vmem:[%s368 + $0x1470] sm:$0xff]
        %v1072 = vld [vmem:[%s368 + $0x1478] sm:$0xff]
        %v1073 = vld [vmem:[%s368 + $0x1480] sm:$0xff]
        %v1074 = vld [vmem:[%s368 + $0x1488] sm:$0xff]
        %v1075 = vld [vmem:[%s368 + $0x1490] sm:$0xff]
        %v1076 = vld [vmem:[%s368 + $0x1498] sm:$0xff]
        %v1077 = vld [vmem:[%s368 + $0x14a0] sm:$0xff]
        %v1078 = vld [vmem:[%s368 + $0x14a8] sm:$0xff]
        %v1079 = vld [vmem:[%s368 + $0x14b0] sm:$0xff]
        %v1080 = vld [vmem:[%s368 + $0x14b8] sm:$0xff]
        %v1081 = vld [vmem:[%s368 + $0x14c0] sm:$0xff]
        %v1082 = vld [vmem:[%s368 + $0x14c8] sm:$0xff]
        %v1083 = vld [vmem:[%s368 + $0x14d0] sm:$0xff]
        %v1084 = vld [vmem:[%s368 + $0x14d8] sm:$0xff]
        %v1085 = vld [vmem:[%s368 + $0x14e0] sm:$0xff]
        %v1086 = vld [vmem:[%s368 + $0x14e8] sm:$0xff]
        %v1087 = vld [vmem:[%s368 + $0x14f0] sm:$0xff]
        %v1088 = vld [vmem:[%s368 + $0x14f8] sm:$0xff]
        %v1089 = vld [vmem:[%s368 + $0x1500] sm:$0xff]
        %v1090 = vld [vmem:[%s368 + $0x1508] sm:$0xff]
        %v1091 = vld [vmem:[%s368 + $0x1510] sm:$0xff]
        %v1092 = vld [vmem:[%s368 + $0x1518] sm:$0xff]
        %v1093 = vld [vmem:[%s368 + $0x1520] sm:$0xff]
        %v1094 = vld [vmem:[%s368 + $0x1528] sm:$0xff]
        %v1095 = vld [vmem:[%s368 + $0x1530] sm:$0xff]
        %v1096 = vld [vmem:[%s368 + $0x1538] sm:$0xff]
        %v1097 = vld [vmem:[%s368 + $0x1540] sm:$0xff]
        %v1098 = vld [vmem:[%s368 + $0x1548] sm:$0xff]
        %v1099 = vld [vmem:[%s368 + $0x1550] sm:$0xff]
        %v1100 = vld [vmem:[%s368 + $0x1558] sm:$0xff]
        %v1101 = vld [vmem:[%s368 + $0x1560] sm:$0xff]
        %v1102 = vld [vmem:[%s368 + $0x1568] sm:$0xff]
        %v1103 = vld [vmem:[%s368 + $0x1570] sm:$0xff]
        %v1104 = vld [vmem:[%s368 + $0x1578] sm:$0xff]
        %v1105 = vld [vmem:[%s368 + $0x1580] sm:$0xff]
        %v1106 = vld [vmem:[%s368 + $0x1588] sm:$0xff]
        %v1107 = vld [vmem:[%s368 + $0x1590] sm:$0xff]
        %v1108 = vld [vmem:[%s368 + $0x1598] sm:$0xff]
        %v1109 = vld [vmem:[%s368 + $0x15a0] sm:$0xff]
        %v1110 = vld [vmem:[%s368 + $0x15a8] sm:$0xff]
        %v1111 = vld [vmem:[%s368 + $0x15b0] sm:$0xff]
        %v1112 = vld [vmem:[%s368 + $0x15b8] sm:$0xff]
        %v1113 = vld [vmem:[%s368 + $0x15c0] sm:$0xff]
        %v1114 = vld [vmem:[%s368 + $0x15c8] sm:$0xff]
        %v1115 = vld [vmem:[%s368 + $0x15d0] sm:$0xff]
        %v1116 = vld [vmem:[%s368 + $0x15d8] sm:$0xff]
        %v1117 = vld [vmem:[%s368 + $0x15e0] sm:$0xff]
        %v1118 = vld [vmem:[%s368 + $0x15e8] sm:$0xff]
        %v1119 = vld [vmem:[%s368 + $0x15f0] sm:$0xff]
        %v1120 = vld [vmem:[%s368 + $0x15f8] sm:$0xff]
        %v1121 = vld [vmem:[%s368 + $0x1600] sm:$0xff]
        %v1122 = vld [vmem:[%s368 + $0x1608] sm:$0xff]
        %v1123 = vld [vmem:[%s368 + $0x1610] sm:$0xff]
        %v1124 = vld [vmem:[%s368 + $0x1618] sm:$0xff]
        %v1125 = vld [vmem:[%s368 + $0x1620] sm:$0xff]
        %v1126 = vld [vmem:[%s368 + $0x1628] sm:$0xff]
        %v1127 = vld [vmem:[%s368 + $0x1630] sm:$0xff]
        %v1128 = vld [vmem:[%s368 + $0x1638] sm:$0xff]
        %v1129 = vld [vmem:[%s368 + $0x1640] sm:$0xff]
        %v1130 = vld [vmem:[%s368 + $0x1648] sm:$0xff]
        %v1131 = vld [vmem:[%s368 + $0x1650] sm:$0xff]
        %v1132 = vld [vmem:[%s368 + $0x1658] sm:$0xff]
        %v1133 = vld [vmem:[%s368 + $0x1660] sm:$0xff]
        %v1134 = vld [vmem:[%s368 + $0x1668] sm:$0xff]
        %v1135 = vld [vmem:[%s368 + $0x1670] sm:$0xff]
        %v1136 = vld [vmem:[%s368 + $0x1678] sm:$0xff]
        %v1137 = vld [vmem:[%s368 + $0x1680] sm:$0xff]
        %v1138 = vld [vmem:[%s368 + $0x1688] sm:$0xff]
        %v1139 = vld [vmem:[%s368 + $0x1690] sm:$0xff]
        %v1140 = vld [vmem:[%s368 + $0x1698] sm:$0xff]
        %v1141 = vld [vmem:[%s368 + $0x16a0] sm:$0xff]
        %v1142 = vld [vmem:[%s368 + $0x16a8] sm:$0xff]
        %v1143 = vld [vmem:[%s368 + $0x16b0] sm:$0xff]
        %v1144 = vld [vmem:[%s368 + $0x16b8] sm:$0xff]
        %v1145 = vld [vmem:[%s368 + $0x16c0] sm:$0xff]
        %v1146 = vld [vmem:[%s368 + $0x16c8] sm:$0xff]
        %v1147 = vld [vmem:[%s368 + $0x16d0] sm:$0xff]
        %v1148 = vld [vmem:[%s368 + $0x16d8] sm:$0xff]
        %v1149 = vld [vmem:[%s368 + $0x16e0] sm:$0xff]
        %v1150 = vld [vmem:[%s368 + $0x16e8] sm:$0xff]
        %v1151 = vld [vmem:[%s368 + $0x16f0] sm:$0xff]
        %v1152 = vld [vmem:[%s368 + $0x16f8] sm:$0xff]
        %v1153 = vld [vmem:[%s368 + $0x1700] sm:$0xff]
        %v1154 = vld [vmem:[%s368 + $0x1708] sm:$0xff]
        %v1155 = vld [vmem:[%s368 + $0x1710] sm:$0xff]
        %v1156 = vld [vmem:[%s368 + $0x1718] sm:$0xff]
        %v1157 = vld [vmem:[%s368 + $0x1720] sm:$0xff]
        %v1158 = vld [vmem:[%s368 + $0x1728] sm:$0xff]
        %v1159 = vld [vmem:[%s368 + $0x1730] sm:$0xff]
        %v1160 = vld [vmem:[%s368 + $0x1738] sm:$0xff]
        %v1161 = vld [vmem:[%s368 + $0x1740] sm:$0xff]
        %v1162 = vld [vmem:[%s368 + $0x1748] sm:$0xff]
        %v1163 = vld [vmem:[%s368 + $0x1750] sm:$0xff]
        %v1164 = vld [vmem:[%s368 + $0x1758] sm:$0xff]
        %v1165 = vld [vmem:[%s368 + $0x1760] sm:$0xff]
        %v1166 = vld [vmem:[%s368 + $0x1768] sm:$0xff]
        %v1167 = vld [vmem:[%s368 + $0x1770] sm:$0xff]
        %v1168 = vld [vmem:[%s368 + $0x1778] sm:$0xff]
        %v1169 = vld [vmem:[%s368 + $0x1780] sm:$0xff]
        %v1170 = vld [vmem:[%s368 + $0x1788] sm:$0xff]
        %v1171 = vld [vmem:[%s368 + $0x1790] sm:$0xff]
        %v1172 = vld [vmem:[%s368 + $0x1798] sm:$0xff]
        %v1173 = vld [vmem:[%s368 + $0x17a0] sm:$0xff]
        %v1174 = vld [vmem:[%s368 + $0x17a8] sm:$0xff]
        %v1175 = vld [vmem:[%s368 + $0x17b0] sm:$0xff]
        %v1176 = vld [vmem:[%s368 + $0x17b8] sm:$0xff]
        %v1177 = vld [vmem:[%s368 + $0x17c0] sm:$0xff]
        %v1178 = vld [vmem:[%s368 + $0x17c8] sm:$0xff]
        %v1179 = vld [vmem:[%s368 + $0x17d0] sm:$0xff]
        %v1180 = vld [vmem:[%s368 + $0x17d8] sm:$0xff]
        %v1181 = vld [vmem:[%s368 + $0x17e0] sm:$0xff]
        %v1182 = vld [vmem:[%s368 + $0x17e8] sm:$0xff]
        %v1183 = vld [vmem:[%s368 + $0x17f0] sm:$0xff]
        %v1184 = vld [vmem:[%s368 + $0x17f8] sm:$0xff]
        %v1185 = vld [vmem:[%s368 + $0x1800] sm:$0xff]
        %v1186 = vld [vmem:[%s368 + $0x1808] sm:$0xff]
        %v1187 = vld [vmem:[%s368 + $0x1810] sm:$0xff]
        %v1188 = vld [vmem:[%s368 + $0x1818] sm:$0xff]
        %v1189 = vld [vmem:[%s368 + $0x1820] sm:$0xff]
        %v1190 = vld [vmem:[%s368 + $0x1828] sm:$0xff]
        %v1191 = vld [vmem:[%s368 + $0x1830] sm:$0xff]
        %v1192 = vld [vmem:[%s368 + $0x1838] sm:$0xff]
        %v1193 = vld [vmem:[%s368 + $0x1840] sm:$0xff]
        %v1194 = vld [vmem:[%s368 + $0x1848] sm:$0xff]
        %v1195 = vld [vmem:[%s368 + $0x1850] sm:$0xff]
        %v1196 = vld [vmem:[%s368 + $0x1858] sm:$0xff]
        %v1197 = vld [vmem:[%s368 + $0x1860] sm:$0xff]
        %v1198 = vld [vmem:[%s368 + $0x1868] sm:$0xff]
        %v1199 = vld [vmem:[%s368 + $0x1870] sm:$0xff]
        %v1200 = vld [vmem:[%s368 + $0x1878] sm:$0xff]
        %v1201 = vld [vmem:[%s368 + $0x1880] sm:$0xff]
        %v1202 = vld [vmem:[%s368 + $0x1888] sm:$0xff]
        %v1203 = vld [vmem:[%s368 + $0x1890] sm:$0xff]
        %v1204 = vld [vmem:[%s368 + $0x1898] sm:$0xff]
        %v1205 = vld [vmem:[%s368 + $0x18a0] sm:$0xff]
        %v1206 = vld [vmem:[%s368 + $0x18a8] sm:$0xff]
        %v1207 = vld [vmem:[%s368 + $0x18b0] sm:$0xff]
        %v1208 = vld [vmem:[%s368 + $0x18b8] sm:$0xff]
        %v1209 = vld [vmem:[%s368 + $0x18c0] sm:$0xff]
        %v1210 = vld [vmem:[%s368 + $0x18c8] sm:$0xff]
        %v1211 = vld [vmem:[%s368 + $0x18d0] sm:$0xff]
        %v1212 = vld [vmem:[%s368 + $0x18d8] sm:$0xff]
        %v1213 = vld [vmem:[%s368 + $0x18e0] sm:$0xff]
        %v1214 = vld [vmem:[%s368 + $0x18e8] sm:$0xff]
        %v1215 = vld [vmem:[%s368 + $0x18f0] sm:$0xff]
        %v1216 = vld [vmem:[%s368 + $0x18f8] sm:$0xff]
        %v1243 = vunpack.c.l.b16 %v391
        %v1244 = vunpack.c.h.b16 %v391
        %v1245 = vunpack.c.l.b16 %v392
        %v1246 = vunpack.c.h.b16 %v392
        %v1247 = vunpack.c.l.b16 %v393
        %v1248 = vunpack.c.h.b16 %v393
        %v1249 = vunpack.c.l.b16 %v394
        %v1250 = vunpack.c.h.b16 %v394
        %v1251 = vunpack.c.l.b16 %v395
        %v1252 = vunpack.c.h.b16 %v395
        %v1253 = vunpack.c.l.b16 %v396
        %v1254 = vunpack.c.h.b16 %v396
        %v1255 = vunpack.c.l.b16 %v397
        %v1256 = vunpack.c.h.b16 %v397
        %v1257 = vunpack.c.l.b16 %v398
        %v1258 = vunpack.c.h.b16 %v398
        %v1259 = vunpack.c.l.b16 %v399
        %v1260 = vunpack.c.h.b16 %v399
        %v1261 = vunpack.c.l.b16 %v400
        %v1262 = vunpack.c.h.b16 %v400
        %v1263 = vunpack.c.l.b16 %v401
        %v1264 = vunpack.c.h.b16 %v401
        %v1265 = vunpack.c.l.b16 %v402
        %v1266 = vunpack.c.h.b16 %v402
        %v1267 = vunpack.c.l.b16 %v403
        %v1268 = vunpack.c.l.b16 %v404
        %v1269 = vunpack.c.h.b16 %v404
        %v1270 = vunpack.c.l.b16 %v405
        %v1271 = vunpack.c.h.b16 %v405
        %v1272 = vunpack.c.l.b16 %v406
        %v1273 = vunpack.c.h.b16 %v406
        %v1274 = vunpack.c.l.b16 %v407
        %v1275 = vunpack.c.h.b16 %v407
        %v1276 = vunpack.c.l.b16 %v408
        %v1277 = vunpack.c.h.b16 %v408
        %v1278 = vunpack.c.l.b16 %v409
        %v1279 = vunpack.c.h.b16 %v409
        %v1280 = vunpack.c.l.b16 %v410
        %v1281 = vunpack.c.h.b16 %v410
        %v1282 = vunpack.c.l.b16 %v411
        %v1283 = vunpack.c.h.b16 %v411
        %v1284 = vunpack.c.l.b16 %v412
        %v1285 = vunpack.c.h.b16 %v412
        %v1286 = vunpack.c.l.b16 %v413
        %v1287 = vunpack.c.h.b16 %v413
        %v1288 = vunpack.c.l.b16 %v414
        %v1289 = vunpack.c.h.b16 %v414
        %v1290 = vunpack.c.l.b16 %v415
        %v1291 = vunpack.c.h.b16 %v415
        %v1292 = vunpack.c.l.b16 %v416
        %v1293 = vpack.c.b16 %v1268, %v1243
        %v1294 = vpack.c.b16 %v1269, %v1244
        %v1295 = vpack.c.b16 %v1270, %v1245
        %v1296 = vpack.c.b16 %v1271, %v1246
        %v1297 = vpack.c.b16 %v1272, %v1247
        %v1298 = vpack.c.b16 %v1273, %v1248
        %v1299 = vpack.c.b16 %v1274, %v1249
        %v1300 = vpack.c.b16 %v1275, %v1250
        %v1301 = vpack.c.b16 %v1276, %v1251
        %v1302 = vpack.c.b16 %v1277, %v1252
        %v1303 = vpack.c.b16 %v1278, %v1253
        %v1304 = vpack.c.b16 %v1279, %v1254
        %v1305 = vpack.c.b16 %v1280, %v1255
        %v1306 = vpack.c.b16 %v1281, %v1256
        %v1307 = vpack.c.b16 %v1282, %v1257
        %v1308 = vpack.c.b16 %v1283, %v1258
        %v1309 = vpack.c.b16 %v1284, %v1259
        %v1310 = vpack.c.b16 %v1285, %v1260
        %v1311 = vpack.c.b16 %v1286, %v1261
        %v1312 = vpack.c.b16 %v1287, %v1262
        %v1313 = vpack.c.b16 %v1288, %v1263
        %v1314 = vpack.c.b16 %v1289, %v1264
        %v1315 = vpack.c.b16 %v1290, %v1265
        %v1316 = vpack.c.b16 %v1291, %v1266
        %v1317 = vpack.c.b16 %v1292, %v1267
        %v2143 = vunpack.c.l.b16 %v417
        %v2144 = vunpack.c.h.b16 %v417
        %v2145 = vunpack.c.l.b16 %v418
        %v2146 = vunpack.c.h.b16 %v418
        %v2147 = vunpack.c.l.b16 %v419
        %v2148 = vunpack.c.h.b16 %v419
        %v2149 = vunpack.c.l.b16 %v420
        %v2150 = vunpack.c.h.b16 %v420
        %v2151 = vunpack.c.l.b16 %v421
        %v2152 = vunpack.c.h.b16 %v421
        %v2153 = vunpack.c.l.b16 %v422
        %v2154 = vunpack.c.h.b16 %v422
        %v2155 = vunpack.c.l.b16 %v423
        %v2156 = vunpack.c.h.b16 %v423
        %v2157 = vunpack.c.l.b16 %v424
        %v2158 = vunpack.c.h.b16 %v424
        %v2159 = vunpack.c.l.b16 %v425
        %v2160 = vunpack.c.h.b16 %v425
        %v2161 = vunpack.c.l.b16 %v426
        %v2162 = vunpack.c.h.b16 %v426
        %v2163 = vunpack.c.l.b16 %v427
        %v2164 = vunpack.c.h.b16 %v427
        %v2165 = vunpack.c.l.b16 %v428
        %v2166 = vunpack.c.h.b16 %v428
        %v2167 = vunpack.c.l.b16 %v429
        %v2168 = vunpack.c.h.b16 %v429
        %v2169 = vunpack.c.l.b16 %v430
        %v2170 = vunpack.c.h.b16 %v430
        %v2171 = vunpack.c.l.b16 %v431
        %v2172 = vunpack.c.h.b16 %v431
        %v2173 = vunpack.c.l.b16 %v432
        %v2174 = vunpack.c.h.b16 %v432
        %v2175 = vunpack.c.l.b16 %v433
        %v2176 = vunpack.c.h.b16 %v433
        %v2177 = vunpack.c.l.b16 %v434
        %v2178 = vunpack.c.h.b16 %v434
        %v2179 = vunpack.c.l.b16 %v435
        %v2180 = vunpack.c.h.b16 %v435
        %v2181 = vunpack.c.l.b16 %v436
        %v2182 = vunpack.c.h.b16 %v436
        %v2183 = vunpack.c.l.b16 %v437
        %v2184 = vunpack.c.h.b16 %v437
        %v2185 = vunpack.c.l.b16 %v438
        %v2186 = vunpack.c.h.b16 %v438
        %v2187 = vunpack.c.l.b16 %v439
        %v2188 = vunpack.c.h.b16 %v439
        %v2189 = vunpack.c.l.b16 %v440
        %v2190 = vunpack.c.h.b16 %v440
        %v2191 = vunpack.c.l.b16 %v441
        %v2192 = vunpack.c.h.b16 %v441
        %v2193 = vunpack.c.l.b16 %v442
        %v2194 = vunpack.c.h.b16 %v442
        %v2195 = vunpack.c.l.b16 %v443
        %v2196 = vunpack.c.h.b16 %v443
        %v2197 = vunpack.c.l.b16 %v444
        %v2198 = vunpack.c.h.b16 %v444
        %v2199 = vunpack.c.l.b16 %v445
        %v2200 = vunpack.c.h.b16 %v445
        %v2201 = vunpack.c.l.b16 %v446
        %v2202 = vunpack.c.h.b16 %v446
        %v2203 = vunpack.c.l.b16 %v447
        %v2204 = vunpack.c.h.b16 %v447
        %v2205 = vunpack.c.l.b16 %v448
        %v2206 = vunpack.c.h.b16 %v448
        %v2207 = vunpack.c.l.b16 %v449
        %v2208 = vunpack.c.h.b16 %v449
        %v2209 = vunpack.c.l.b16 %v450
        %v2210 = vunpack.c.h.b16 %v450
        %v2211 = vunpack.c.l.b16 %v451
        %v2212 = vunpack.c.h.b16 %v451
        %v2213 = vunpack.c.l.b16 %v452
        %v2214 = vunpack.c.h.b16 %v452
        %v2215 = vunpack.c.l.b16 %v453
        %v2216 = vunpack.c.h.b16 %v453
        %v2217 = vunpack.c.l.b16 %v454
        %v2218 = vunpack.c.h.b16 %v454
        %v2219 = vunpack.c.l.b16 %v455
        %v2220 = vunpack.c.h.b16 %v455
        %v2221 = vunpack.c.l.b16 %v456
        %v2222 = vunpack.c.h.b16 %v456
        %v2223 = vunpack.c.l.b16 %v457
        %v2224 = vunpack.c.h.b16 %v457
        %v2225 = vunpack.c.l.b16 %v458
        %v2226 = vunpack.c.h.b16 %v458
        %v2227 = vunpack.c.l.b16 %v459
        %v2228 = vunpack.c.h.b16 %v459
        %v2229 = vunpack.c.l.b16 %v460
        %v2230 = vunpack.c.h.b16 %v460
        %v2231 = vunpack.c.l.b16 %v461
        %v2232 = vunpack.c.h.b16 %v461
        %v2233 = vunpack.c.l.b16 %v462
        %v2234 = vunpack.c.h.b16 %v462
        %v2235 = vunpack.c.l.b16 %v463
        %v2236 = vunpack.c.h.b16 %v463
        %v2237 = vunpack.c.l.b16 %v464
        %v2238 = vunpack.c.h.b16 %v464
        %v2239 = vunpack.c.l.b16 %v465
        %v2240 = vunpack.c.h.b16 %v465
        %v2241 = vunpack.c.l.b16 %v466
        %v2242 = vunpack.c.h.b16 %v466
        %v2243 = vunpack.c.l.b16 %v467
        %v2244 = vunpack.c.h.b16 %v467
        %v2245 = vunpack.c.l.b16 %v468
        %v2246 = vunpack.c.h.b16 %v468
        %v2247 = vunpack.c.l.b16 %v469
        %v2248 = vunpack.c.h.b16 %v469
        %v2249 = vunpack.c.l.b16 %v470
        %v2250 = vunpack.c.h.b16 %v470
        %v2251 = vunpack.c.l.b16 %v471
        %v2252 = vunpack.c.h.b16 %v471
        %v2253 = vunpack.c.l.b16 %v472
        %v2254 = vunpack.c.h.b16 %v472
        %v2255 = vunpack.c.l.b16 %v473
        %v2256 = vunpack.c.h.b16 %v473
        %v2257 = vunpack.c.l.b16 %v474
        %v2258 = vunpack.c.h.b16 %v474
        %v2259 = vunpack.c.l.b16 %v475
        %v2260 = vunpack.c.h.b16 %v475
        %v2261 = vunpack.c.l.b16 %v476
        %v2262 = vunpack.c.h.b16 %v476
        %v2263 = vunpack.c.l.b16 %v477
        %v2264 = vunpack.c.h.b16 %v477
        %v2265 = vunpack.c.l.b16 %v478
        %v2266 = vunpack.c.h.b16 %v478
        %v2267 = vunpack.c.l.b16 %v479
        %v2268 = vunpack.c.h.b16 %v479
        %v2269 = vunpack.c.l.b16 %v480
        %v2270 = vunpack.c.h.b16 %v480
        %v2271 = vunpack.c.l.b16 %v481
        %v2272 = vunpack.c.h.b16 %v481
        %v2273 = vunpack.c.l.b16 %v482
        %v2274 = vunpack.c.h.b16 %v482
        %v2275 = vunpack.c.l.b16 %v483
        %v2276 = vunpack.c.h.b16 %v483
        %v2277 = vunpack.c.l.b16 %v484
        %v2278 = vunpack.c.h.b16 %v484
        %v2279 = vunpack.c.l.b16 %v485
        %v2280 = vunpack.c.h.b16 %v485
        %v2281 = vunpack.c.l.b16 %v486
        %v2282 = vunpack.c.h.b16 %v486
        %v2283 = vunpack.c.l.b16 %v487
        %v2284 = vunpack.c.h.b16 %v487
        %v2285 = vunpack.c.l.b16 %v488
        %v2286 = vunpack.c.h.b16 %v488
        %v2287 = vunpack.c.l.b16 %v489
        %v2288 = vunpack.c.h.b16 %v489
        %v2289 = vunpack.c.l.b16 %v490
        %v2290 = vunpack.c.h.b16 %v490
        %v2291 = vunpack.c.l.b16 %v491
        %v2292 = vunpack.c.h.b16 %v491
        %v2293 = vunpack.c.l.b16 %v492
        %v2294 = vunpack.c.h.b16 %v492
        %v2295 = vunpack.c.l.b16 %v493
        %v2296 = vunpack.c.h.b16 %v493
        %v2297 = vunpack.c.l.b16 %v494
        %v2298 = vunpack.c.h.b16 %v494
        %v2299 = vunpack.c.l.b16 %v495
        %v2300 = vunpack.c.h.b16 %v495
        %v2301 = vunpack.c.l.b16 %v496
        %v2302 = vunpack.c.h.b16 %v496
        %v2303 = vunpack.c.l.b16 %v497
        %v2304 = vunpack.c.h.b16 %v497
        %v2305 = vunpack.c.l.b16 %v498
        %v2306 = vunpack.c.h.b16 %v498
        %v2307 = vunpack.c.l.b16 %v499
        %v2308 = vunpack.c.h.b16 %v499
        %v2309 = vunpack.c.l.b16 %v500
        %v2310 = vunpack.c.h.b16 %v500
        %v2311 = vunpack.c.l.b16 %v501
        %v2312 = vunpack.c.h.b16 %v501
        %v2313 = vunpack.c.l.b16 %v502
        %v2314 = vunpack.c.h.b16 %v502
        %v2315 = vunpack.c.l.b16 %v503
        %v2316 = vunpack.c.h.b16 %v503
        %v2317 = vunpack.c.l.b16 %v504
        %v2318 = vunpack.c.h.b16 %v504
        %v2319 = vunpack.c.l.b16 %v505
        %v2320 = vunpack.c.h.b16 %v505
        %v2321 = vunpack.c.l.b16 %v506
        %v2322 = vunpack.c.h.b16 %v506
        %v2323 = vunpack.c.l.b16 %v507
        %v2324 = vunpack.c.h.b16 %v507
        %v2325 = vunpack.c.l.b16 %v508
        %v2326 = vunpack.c.h.b16 %v508
        %v2327 = vunpack.c.l.b16 %v509
        %v2328 = vunpack.c.h.b16 %v509
        %v2329 = vunpack.c.l.b16 %v510
        %v2330 = vunpack.c.h.b16 %v510
        %v2331 = vunpack.c.l.b16 %v511
        %v2332 = vunpack.c.h.b16 %v511
        %v2333 = vunpack.c.l.b16 %v512
        %v2334 = vunpack.c.h.b16 %v512
        %v2335 = vunpack.c.l.b16 %v513
        %v2336 = vunpack.c.h.b16 %v513
        %v2337 = vunpack.c.l.b16 %v514
        %v2338 = vunpack.c.h.b16 %v514
        %v2339 = vunpack.c.l.b16 %v515
        %v2340 = vunpack.c.h.b16 %v515
        %v2341 = vunpack.c.l.b16 %v516
        %v2342 = vunpack.c.h.b16 %v516
        %v2343 = vunpack.c.l.b16 %v517
        %v2344 = vunpack.c.h.b16 %v517
        %v2345 = vunpack.c.l.b16 %v518
        %v2346 = vunpack.c.h.b16 %v518
        %v2347 = vunpack.c.l.b16 %v519
        %v2348 = vunpack.c.h.b16 %v519
        %v2349 = vunpack.c.l.b16 %v520
        %v2350 = vunpack.c.h.b16 %v520
        %v2351 = vunpack.c.l.b16 %v521
        %v2352 = vunpack.c.h.b16 %v521
        %v2353 = vunpack.c.l.b16 %v522
        %v2354 = vunpack.c.h.b16 %v522
        %v2355 = vunpack.c.l.b16 %v523
        %v2356 = vunpack.c.h.b16 %v523
        %v2357 = vunpack.c.l.b16 %v524
        %v2358 = vunpack.c.h.b16 %v524
        %v2359 = vunpack.c.l.b16 %v525
        %v2360 = vunpack.c.h.b16 %v525
        %v2361 = vunpack.c.l.b16 %v526
        %v2362 = vunpack.c.h.b16 %v526
        %v2363 = vunpack.c.l.b16 %v527
        %v2364 = vunpack.c.h.b16 %v527
        %v2365 = vunpack.c.l.b16 %v528
        %v2366 = vunpack.c.h.b16 %v528
        %v2367 = vunpack.c.l.b16 %v529
        %v2368 = vunpack.c.h.b16 %v529
        %v2369 = vunpack.c.l.b16 %v530
        %v2370 = vunpack.c.h.b16 %v530
        %v2371 = vunpack.c.l.b16 %v531
        %v2372 = vunpack.c.h.b16 %v531
        %v2373 = vunpack.c.l.b16 %v532
        %v2374 = vunpack.c.h.b16 %v532
        %v2375 = vunpack.c.l.b16 %v533
        %v2376 = vunpack.c.h.b16 %v533
        %v2377 = vunpack.c.l.b16 %v534
        %v2378 = vunpack.c.h.b16 %v534
        %v2379 = vunpack.c.l.b16 %v535
        %v2380 = vunpack.c.h.b16 %v535
        %v2381 = vunpack.c.l.b16 %v536
        %v2382 = vunpack.c.h.b16 %v536
        %v2383 = vunpack.c.l.b16 %v537
        %v2384 = vunpack.c.h.b16 %v537
        %v2385 = vunpack.c.l.b16 %v538
        %v2386 = vunpack.c.h.b16 %v538
        %v2387 = vunpack.c.l.b16 %v539
        %v2388 = vunpack.c.h.b16 %v539
        %v2389 = vunpack.c.l.b16 %v540
        %v2390 = vunpack.c.h.b16 %v540
        %v2391 = vunpack.c.l.b16 %v541
        %v2392 = vunpack.c.h.b16 %v541
        %v2393 = vunpack.c.l.b16 %v542
        %v2394 = vunpack.c.h.b16 %v542
        %v2395 = vunpack.c.l.b16 %v543
        %v2396 = vunpack.c.h.b16 %v543
        %v2397 = vunpack.c.l.b16 %v544
        %v2398 = vunpack.c.h.b16 %v544
        %v2399 = vunpack.c.l.b16 %v545
        %v2400 = vunpack.c.h.b16 %v545
        %v2401 = vunpack.c.l.b16 %v546
        %v2402 = vunpack.c.h.b16 %v546
        %v2403 = vunpack.c.l.b16 %v547
        %v2404 = vunpack.c.h.b16 %v547
        %v2405 = vunpack.c.l.b16 %v548
        %v2406 = vunpack.c.h.b16 %v548
        %v2407 = vunpack.c.l.b16 %v549
        %v2408 = vunpack.c.h.b16 %v549
        %v2409 = vunpack.c.l.b16 %v550
        %v2410 = vunpack.c.h.b16 %v550
        %v2411 = vunpack.c.l.b16 %v551
        %v2412 = vunpack.c.h.b16 %v551
        %v2413 = vunpack.c.l.b16 %v552
        %v2414 = vunpack.c.h.b16 %v552
        %v2415 = vunpack.c.l.b16 %v553
        %v2416 = vunpack.c.h.b16 %v553
        %v2417 = vunpack.c.l.b16 %v554
        %v2418 = vunpack.c.h.b16 %v554
        %v2419 = vunpack.c.l.b16 %v555
        %v2420 = vunpack.c.h.b16 %v555
        %v2421 = vunpack.c.l.b16 %v556
        %v2422 = vunpack.c.h.b16 %v556
        %v2423 = vunpack.c.l.b16 %v557
        %v2424 = vunpack.c.h.b16 %v557
        %v2425 = vunpack.c.l.b16 %v558
        %v2426 = vunpack.c.h.b16 %v558
        %v2427 = vunpack.c.l.b16 %v559
        %v2428 = vunpack.c.h.b16 %v559
        %v2429 = vunpack.c.l.b16 %v560
        %v2430 = vunpack.c.h.b16 %v560
        %v2431 = vunpack.c.l.b16 %v561
        %v2432 = vunpack.c.h.b16 %v561
        %v2433 = vunpack.c.l.b16 %v562
        %v2434 = vunpack.c.h.b16 %v562
        %v2435 = vunpack.c.l.b16 %v563
        %v2436 = vunpack.c.h.b16 %v563
        %v2437 = vunpack.c.l.b16 %v564
        %v2438 = vunpack.c.h.b16 %v564
        %v2439 = vunpack.c.l.b16 %v565
        %v2440 = vunpack.c.h.b16 %v565
        %v2441 = vunpack.c.l.b16 %v566
        %v2442 = vunpack.c.h.b16 %v566
        %v2443 = vunpack.c.l.b16 %v567
        %v2444 = vunpack.c.h.b16 %v567
        %v2445 = vunpack.c.l.b16 %v568
        %v2446 = vunpack.c.h.b16 %v568
        %v2447 = vunpack.c.l.b16 %v569
        %v2448 = vunpack.c.h.b16 %v569
        %v2449 = vunpack.c.l.b16 %v570
        %v2450 = vunpack.c.h.b16 %v570
        %v2451 = vunpack.c.l.b16 %v571
        %v2452 = vunpack.c.h.b16 %v571
        %v2453 = vunpack.c.l.b16 %v572
        %v2454 = vunpack.c.h.b16 %v572
        %v2455 = vunpack.c.l.b16 %v573
        %v2456 = vunpack.c.h.b16 %v573
        %v2457 = vunpack.c.l.b16 %v574
        %v2458 = vunpack.c.h.b16 %v574
        %v2459 = vunpack.c.l.b16 %v575
        %v2460 = vunpack.c.h.b16 %v575
        %v2461 = vunpack.c.l.b16 %v576
        %v2462 = vunpack.c.h.b16 %v576
        %v2463 = vunpack.c.l.b16 %v577
        %v2464 = vunpack.c.h.b16 %v577
        %v2465 = vunpack.c.l.b16 %v578
        %v2466 = vunpack.c.h.b16 %v578
        %v2467 = vunpack.c.l.b16 %v579
        %v2468 = vunpack.c.h.b16 %v579
        %v2469 = vunpack.c.l.b16 %v580
        %v2470 = vunpack.c.h.b16 %v580
        %v2471 = vunpack.c.l.b16 %v581
        %v2472 = vunpack.c.h.b16 %v581
        %v2473 = vunpack.c.l.b16 %v582
        %v2474 = vunpack.c.h.b16 %v582
        %v2475 = vunpack.c.l.b16 %v583
        %v2476 = vunpack.c.h.b16 %v583
        %v2477 = vunpack.c.l.b16 %v584
        %v2478 = vunpack.c.h.b16 %v584
        %v2479 = vunpack.c.l.b16 %v585
        %v2480 = vunpack.c.h.b16 %v585
        %v2481 = vunpack.c.l.b16 %v586
        %v2482 = vunpack.c.h.b16 %v586
        %v2483 = vunpack.c.l.b16 %v587
        %v2484 = vunpack.c.h.b16 %v587
        %v2485 = vunpack.c.l.b16 %v588
        %v2486 = vunpack.c.h.b16 %v588
        %v2487 = vunpack.c.l.b16 %v589
        %v2488 = vunpack.c.h.b16 %v589
        %v2489 = vunpack.c.l.b16 %v590
        %v2490 = vunpack.c.h.b16 %v590
        %v2491 = vunpack.c.l.b16 %v591
        %v2492 = vunpack.c.h.b16 %v591
        %v2493 = vunpack.c.l.b16 %v592
        %v2494 = vunpack.c.h.b16 %v592
        %v2495 = vunpack.c.l.b16 %v593
        %v2496 = vunpack.c.h.b16 %v593
        %v2497 = vunpack.c.l.b16 %v594
        %v2498 = vunpack.c.h.b16 %v594
        %v2499 = vunpack.c.l.b16 %v595
        %v2500 = vunpack.c.h.b16 %v595
        %v2501 = vunpack.c.l.b16 %v596
        %v2502 = vunpack.c.h.b16 %v596
        %v2503 = vunpack.c.l.b16 %v597
        %v2504 = vunpack.c.h.b16 %v597
        %v2505 = vunpack.c.l.b16 %v598
        %v2506 = vunpack.c.h.b16 %v598
        %v2507 = vunpack.c.l.b16 %v599
        %v2508 = vunpack.c.h.b16 %v599
        %v2509 = vunpack.c.l.b16 %v600
        %v2510 = vunpack.c.h.b16 %v600
        %v2511 = vunpack.c.l.b16 %v601
        %v2512 = vunpack.c.h.b16 %v601
        %v2513 = vunpack.c.l.b16 %v602
        %v2514 = vunpack.c.h.b16 %v602
        %v2515 = vunpack.c.l.b16 %v603
        %v2516 = vunpack.c.h.b16 %v603
        %v2517 = vunpack.c.l.b16 %v604
        %v2518 = vunpack.c.h.b16 %v604
        %v2519 = vunpack.c.l.b16 %v605
        %v2520 = vunpack.c.h.b16 %v605
        %v2521 = vunpack.c.l.b16 %v606
        %v2522 = vunpack.c.h.b16 %v606
        %v2523 = vunpack.c.l.b16 %v607
        %v2524 = vunpack.c.h.b16 %v607
        %v2525 = vunpack.c.l.b16 %v608
        %v2526 = vunpack.c.h.b16 %v608
        %v2527 = vunpack.c.l.b16 %v609
        %v2528 = vunpack.c.h.b16 %v609
        %v2529 = vunpack.c.l.b16 %v610
        %v2530 = vunpack.c.h.b16 %v610
        %v2531 = vunpack.c.l.b16 %v611
        %v2532 = vunpack.c.h.b16 %v611
        %v2533 = vunpack.c.l.b16 %v612
        %v2534 = vunpack.c.h.b16 %v612
        %v2535 = vunpack.c.l.b16 %v613
        %v2536 = vunpack.c.h.b16 %v613
        %v2537 = vunpack.c.l.b16 %v614
        %v2538 = vunpack.c.h.b16 %v614
        %v2539 = vunpack.c.l.b16 %v615
        %v2540 = vunpack.c.h.b16 %v615
        %v2541 = vunpack.c.l.b16 %v616
        %v2542 = vunpack.c.h.b16 %v616
        %v2543 = vunpack.c.l.b16 %v617
        %v2544 = vunpack.c.h.b16 %v617
        %v2545 = vunpack.c.l.b16 %v618
        %v2546 = vunpack.c.h.b16 %v618
        %v2547 = vunpack.c.l.b16 %v619
        %v2548 = vunpack.c.h.b16 %v619
        %v2549 = vunpack.c.l.b16 %v620
        %v2550 = vunpack.c.h.b16 %v620
        %v2551 = vunpack.c.l.b16 %v621
        %v2552 = vunpack.c.h.b16 %v621
        %v2553 = vunpack.c.l.b16 %v622
        %v2554 = vunpack.c.h.b16 %v622
        %v2555 = vunpack.c.l.b16 %v623
        %v2556 = vunpack.c.h.b16 %v623
        %v2557 = vunpack.c.l.b16 %v624
        %v2558 = vunpack.c.h.b16 %v624
        %v2559 = vunpack.c.l.b16 %v625
        %v2560 = vunpack.c.h.b16 %v625
        %v2561 = vunpack.c.l.b16 %v626
        %v2562 = vunpack.c.h.b16 %v626
        %v2563 = vunpack.c.l.b16 %v627
        %v2564 = vunpack.c.h.b16 %v627
        %v2565 = vunpack.c.l.b16 %v628
        %v2566 = vunpack.c.h.b16 %v628
        %v2567 = vunpack.c.l.b16 %v629
        %v2568 = vunpack.c.h.b16 %v629
        %v2569 = vunpack.c.l.b16 %v630
        %v2570 = vunpack.c.h.b16 %v630
        %v2571 = vunpack.c.l.b16 %v631
        %v2572 = vunpack.c.h.b16 %v631
        %v2573 = vunpack.c.l.b16 %v632
        %v2574 = vunpack.c.h.b16 %v632
        %v2575 = vunpack.c.l.b16 %v633
        %v2576 = vunpack.c.h.b16 %v633
        %v2577 = vunpack.c.l.b16 %v634
        %v2578 = vunpack.c.h.b16 %v634
        %v2579 = vunpack.c.l.b16 %v635
        %v2580 = vunpack.c.h.b16 %v635
        %v2581 = vunpack.c.l.b16 %v636
        %v2582 = vunpack.c.h.b16 %v636
        %v2583 = vunpack.c.l.b16 %v637
        %v2584 = vunpack.c.h.b16 %v637
        %v2585 = vunpack.c.l.b16 %v638
        %v2586 = vunpack.c.h.b16 %v638
        %v2587 = vunpack.c.l.b16 %v639
        %v2588 = vunpack.c.h.b16 %v639
        %v2589 = vunpack.c.l.b16 %v640
        %v2590 = vunpack.c.h.b16 %v640
        %v2591 = vunpack.c.l.b16 %v641
        %v2592 = vunpack.c.h.b16 %v641
        %v2593 = vunpack.c.l.b16 %v642
        %v2594 = vunpack.c.h.b16 %v642
        %v2595 = vunpack.c.l.b16 %v643
        %v2596 = vunpack.c.h.b16 %v643
        %v2597 = vunpack.c.l.b16 %v644
        %v2598 = vunpack.c.h.b16 %v644
        %v2599 = vunpack.c.l.b16 %v645
        %v2600 = vunpack.c.h.b16 %v645
        %v2601 = vunpack.c.l.b16 %v646
        %v2602 = vunpack.c.h.b16 %v646
        %v2603 = vunpack.c.l.b16 %v647
        %v2604 = vunpack.c.h.b16 %v647
        %v2605 = vunpack.c.l.b16 %v648
        %v2606 = vunpack.c.h.b16 %v648
        %v2607 = vunpack.c.l.b16 %v649
        %v2608 = vunpack.c.h.b16 %v649
        %v2609 = vunpack.c.l.b16 %v650
        %v2610 = vunpack.c.h.b16 %v650
        %v2611 = vunpack.c.l.b16 %v651
        %v2612 = vunpack.c.h.b16 %v651
        %v2613 = vunpack.c.l.b16 %v652
        %v2614 = vunpack.c.h.b16 %v652
        %v2615 = vunpack.c.l.b16 %v653
        %v2616 = vunpack.c.h.b16 %v653
        %v2617 = vunpack.c.l.b16 %v654
        %v2618 = vunpack.c.h.b16 %v654
        %v2619 = vunpack.c.l.b16 %v655
        %v2620 = vunpack.c.h.b16 %v655
        %v2621 = vunpack.c.l.b16 %v656
        %v2622 = vunpack.c.h.b16 %v656
        %v2623 = vunpack.c.l.b16 %v657
        %v2624 = vunpack.c.h.b16 %v657
        %v2625 = vunpack.c.l.b16 %v658
        %v2626 = vunpack.c.h.b16 %v658
        %v2627 = vunpack.c.l.b16 %v659
        %v2628 = vunpack.c.h.b16 %v659
        %v2629 = vunpack.c.l.b16 %v660
        %v2630 = vunpack.c.h.b16 %v660
        %v2631 = vunpack.c.l.b16 %v661
        %v2632 = vunpack.c.h.b16 %v661
        %v2633 = vunpack.c.l.b16 %v662
        %v2634 = vunpack.c.h.b16 %v662
        %v2635 = vunpack.c.l.b16 %v663
        %v2636 = vunpack.c.h.b16 %v663
        %v2637 = vunpack.c.l.b16 %v664
        %v2638 = vunpack.c.h.b16 %v664
        %v2639 = vunpack.c.l.b16 %v665
        %v2640 = vunpack.c.h.b16 %v665
        %v2641 = vunpack.c.l.b16 %v666
        %v2642 = vunpack.c.h.b16 %v666
        %v2643 = vunpack.c.l.b16 %v667
        %v2644 = vunpack.c.h.b16 %v667
        %v2645 = vunpack.c.l.b16 %v668
        %v2646 = vunpack.c.h.b16 %v668
        %v2647 = vunpack.c.l.b16 %v669
        %v2648 = vunpack.c.h.b16 %v669
        %v2649 = vunpack.c.l.b16 %v670
        %v2650 = vunpack.c.h.b16 %v670
        %v2651 = vunpack.c.l.b16 %v671
        %v2652 = vunpack.c.h.b16 %v671
        %v2653 = vunpack.c.l.b16 %v672
        %v2654 = vunpack.c.h.b16 %v672
        %v2655 = vunpack.c.l.b16 %v673
        %v2656 = vunpack.c.h.b16 %v673
        %v2657 = vunpack.c.l.b16 %v674
        %v2658 = vunpack.c.h.b16 %v674
        %v2659 = vunpack.c.l.b16 %v675
        %v2660 = vunpack.c.h.b16 %v675
        %v2661 = vunpack.c.l.b16 %v676
        %v2662 = vunpack.c.h.b16 %v676
        %v2663 = vunpack.c.l.b16 %v677
        %v2664 = vunpack.c.h.b16 %v677
        %v2665 = vunpack.c.l.b16 %v678
        %v2666 = vunpack.c.h.b16 %v678
        %v2667 = vunpack.c.l.b16 %v679
        %v2668 = vunpack.c.h.b16 %v679
        %v2669 = vunpack.c.l.b16 %v680
        %v2670 = vunpack.c.h.b16 %v680
        %v2671 = vunpack.c.l.b16 %v681
        %v2672 = vunpack.c.h.b16 %v681
        %v2673 = vunpack.c.l.b16 %v682
        %v2674 = vunpack.c.h.b16 %v682
        %v2675 = vunpack.c.l.b16 %v683
        %v2676 = vunpack.c.h.b16 %v683
        %v2677 = vunpack.c.l.b16 %v684
        %v2678 = vunpack.c.h.b16 %v684
        %v2679 = vunpack.c.l.b16 %v685
        %v2680 = vunpack.c.h.b16 %v685
        %v2681 = vunpack.c.l.b16 %v686
        %v2682 = vunpack.c.h.b16 %v686
        %v2683 = vunpack.c.l.b16 %v687
        %v2684 = vunpack.c.h.b16 %v687
        %v2685 = vunpack.c.l.b16 %v688
        %v2686 = vunpack.c.h.b16 %v688
        %v2687 = vunpack.c.l.b16 %v689
        %v2688 = vunpack.c.h.b16 %v689
        %v2689 = vunpack.c.l.b16 %v690
        %v2690 = vunpack.c.h.b16 %v690
        %v2691 = vunpack.c.l.b16 %v691
        %v2692 = vunpack.c.h.b16 %v691
        %v2693 = vunpack.c.l.b16 %v692
        %v2694 = vunpack.c.h.b16 %v692
        %v2695 = vunpack.c.l.b16 %v693
        %v2696 = vunpack.c.h.b16 %v693
        %v2697 = vunpack.c.l.b16 %v694
        %v2698 = vunpack.c.h.b16 %v694
        %v2699 = vunpack.c.l.b16 %v695
        %v2700 = vunpack.c.h.b16 %v695
        %v2701 = vunpack.c.l.b16 %v696
        %v2702 = vunpack.c.h.b16 %v696
        %v2703 = vunpack.c.l.b16 %v697
        %v2704 = vunpack.c.h.b16 %v697
        %v2705 = vunpack.c.l.b16 %v698
        %v2706 = vunpack.c.h.b16 %v698
        %v2707 = vunpack.c.l.b16 %v699
        %v2708 = vunpack.c.h.b16 %v699
        %v2709 = vunpack.c.l.b16 %v700
        %v2710 = vunpack.c.h.b16 %v700
        %v2711 = vunpack.c.l.b16 %v701
        %v2712 = vunpack.c.h.b16 %v701
        %v2713 = vunpack.c.l.b16 %v702
        %v2714 = vunpack.c.h.b16 %v702
        %v2715 = vunpack.c.l.b16 %v703
        %v2716 = vunpack.c.h.b16 %v703
        %v2717 = vunpack.c.l.b16 %v704
        %v2718 = vunpack.c.h.b16 %v704
        %v2719 = vunpack.c.l.b16 %v705
        %v2720 = vunpack.c.h.b16 %v705
        %v2721 = vunpack.c.l.b16 %v706
        %v2722 = vunpack.c.h.b16 %v706
        %v2723 = vunpack.c.l.b16 %v707
        %v2724 = vunpack.c.h.b16 %v707
        %v2725 = vunpack.c.l.b16 %v708
        %v2726 = vunpack.c.h.b16 %v708
        %v2727 = vunpack.c.l.b16 %v709
        %v2728 = vunpack.c.h.b16 %v709
        %v2729 = vunpack.c.l.b16 %v710
        %v2730 = vunpack.c.h.b16 %v710
        %v2731 = vunpack.c.l.b16 %v711
        %v2732 = vunpack.c.h.b16 %v711
        %v2733 = vunpack.c.l.b16 %v712
        %v2734 = vunpack.c.h.b16 %v712
        %v2735 = vunpack.c.l.b16 %v713
        %v2736 = vunpack.c.h.b16 %v713
        %v2737 = vunpack.c.l.b16 %v714
        %v2738 = vunpack.c.h.b16 %v714
        %v2739 = vunpack.c.l.b16 %v715
        %v2740 = vunpack.c.h.b16 %v715
        %v2741 = vunpack.c.l.b16 %v716
        %v2742 = vunpack.c.h.b16 %v716
        %v2743 = vunpack.c.l.b16 %v717
        %v2744 = vunpack.c.h.b16 %v717
        %v2745 = vunpack.c.l.b16 %v718
        %v2746 = vunpack.c.h.b16 %v718
        %v2747 = vunpack.c.l.b16 %v719
        %v2748 = vunpack.c.h.b16 %v719
        %v2749 = vunpack.c.l.b16 %v720
        %v2750 = vunpack.c.h.b16 %v720
        %v2751 = vunpack.c.l.b16 %v721
        %v2752 = vunpack.c.h.b16 %v721
        %v2753 = vunpack.c.l.b16 %v722
        %v2754 = vunpack.c.h.b16 %v722
        %v2755 = vunpack.c.l.b16 %v723
        %v2756 = vunpack.c.h.b16 %v723
        %v2757 = vunpack.c.l.b16 %v724
        %v2758 = vunpack.c.h.b16 %v724
        %v2759 = vunpack.c.l.b16 %v725
        %v2760 = vunpack.c.h.b16 %v725
        %v2761 = vunpack.c.l.b16 %v726
        %v2762 = vunpack.c.h.b16 %v726
        %v2763 = vunpack.c.l.b16 %v727
        %v2764 = vunpack.c.h.b16 %v727
        %v2765 = vunpack.c.l.b16 %v728
        %v2766 = vunpack.c.h.b16 %v728
        %v2767 = vunpack.c.l.b16 %v729
        %v2768 = vunpack.c.h.b16 %v729
        %v2769 = vunpack.c.l.b16 %v730
        %v2770 = vunpack.c.h.b16 %v730
        %v2771 = vunpack.c.l.b16 %v731
        %v2772 = vunpack.c.h.b16 %v731
        %v2773 = vunpack.c.l.b16 %v732
        %v2774 = vunpack.c.h.b16 %v732
        %v2775 = vunpack.c.l.b16 %v733
        %v2776 = vunpack.c.h.b16 %v733
        %v2777 = vunpack.c.l.b16 %v734
        %v2778 = vunpack.c.h.b16 %v734
        %v2779 = vunpack.c.l.b16 %v735
        %v2780 = vunpack.c.h.b16 %v735
        %v2781 = vunpack.c.l.b16 %v736
        %v2782 = vunpack.c.h.b16 %v736
        %v2783 = vunpack.c.l.b16 %v737
        %v2784 = vunpack.c.h.b16 %v737
        %v2785 = vunpack.c.l.b16 %v738
        %v2786 = vunpack.c.h.b16 %v738
        %v2787 = vunpack.c.l.b16 %v739
        %v2788 = vunpack.c.h.b16 %v739
        %v2789 = vunpack.c.l.b16 %v740
        %v2790 = vunpack.c.h.b16 %v740
        %v2791 = vunpack.c.l.b16 %v741
        %v2792 = vunpack.c.h.b16 %v741
        %v2793 = vunpack.c.l.b16 %v742
        %v2794 = vunpack.c.h.b16 %v742
        %v2795 = vunpack.c.l.b16 %v743
        %v2796 = vunpack.c.h.b16 %v743
        %v2797 = vunpack.c.l.b16 %v744
        %v2798 = vunpack.c.h.b16 %v744
        %v2799 = vunpack.c.l.b16 %v745
        %v2800 = vunpack.c.h.b16 %v745
        %v2801 = vunpack.c.l.b16 %v746
        %v2802 = vunpack.c.h.b16 %v746
        %v2803 = vunpack.c.l.b16 %v747
        %v2804 = vunpack.c.h.b16 %v747
        %v2805 = vunpack.c.l.b16 %v748
        %v2806 = vunpack.c.h.b16 %v748
        %v2807 = vunpack.c.l.b16 %v749
        %v2808 = vunpack.c.h.b16 %v749
        %v2809 = vunpack.c.l.b16 %v750
        %v2810 = vunpack.c.h.b16 %v750
        %v2811 = vunpack.c.l.b16 %v751
        %v2812 = vunpack.c.h.b16 %v751
        %v2813 = vunpack.c.l.b16 %v752
        %v2814 = vunpack.c.h.b16 %v752
        %v2815 = vunpack.c.l.b16 %v753
        %v2816 = vunpack.c.h.b16 %v753
        %v2817 = vunpack.c.l.b16 %v754
        %v2818 = vunpack.c.h.b16 %v754
        %v2819 = vunpack.c.l.b16 %v755
        %v2820 = vunpack.c.h.b16 %v755
        %v2821 = vunpack.c.l.b16 %v756
        %v2822 = vunpack.c.h.b16 %v756
        %v2823 = vunpack.c.l.b16 %v757
        %v2824 = vunpack.c.h.b16 %v757
        %v2825 = vunpack.c.l.b16 %v758
        %v2826 = vunpack.c.h.b16 %v758
        %v2827 = vunpack.c.l.b16 %v759
        %v2828 = vunpack.c.h.b16 %v759
        %v2829 = vunpack.c.l.b16 %v760
        %v2830 = vunpack.c.h.b16 %v760
        %v2831 = vunpack.c.l.b16 %v761
        %v2832 = vunpack.c.h.b16 %v761
        %v2833 = vunpack.c.l.b16 %v762
        %v2834 = vunpack.c.h.b16 %v762
        %v2835 = vunpack.c.l.b16 %v763
        %v2836 = vunpack.c.h.b16 %v763
        %v2837 = vunpack.c.l.b16 %v764
        %v2838 = vunpack.c.h.b16 %v764
        %v2839 = vunpack.c.l.b16 %v765
        %v2840 = vunpack.c.h.b16 %v765
        %v2841 = vunpack.c.l.b16 %v766
        %v2842 = vunpack.c.h.b16 %v766
        %v2843 = vunpack.c.l.b16 %v767
        %v2844 = vunpack.c.h.b16 %v767
        %v2845 = vunpack.c.l.b16 %v768
        %v2846 = vunpack.c.h.b16 %v768
        %v2847 = vunpack.c.l.b16 %v769
        %v2848 = vunpack.c.h.b16 %v769
        %v2849 = vunpack.c.l.b16 %v770
        %v2850 = vunpack.c.h.b16 %v770
        %v2851 = vunpack.c.l.b16 %v771
        %v2852 = vunpack.c.h.b16 %v771
        %v2853 = vunpack.c.l.b16 %v772
        %v2854 = vunpack.c.h.b16 %v772
        %v2855 = vunpack.c.l.b16 %v773
        %v2856 = vunpack.c.h.b16 %v773
        %v2857 = vunpack.c.l.b16 %v774
        %v2858 = vunpack.c.h.b16 %v774
        %v2859 = vunpack.c.l.b16 %v775
        %v2860 = vunpack.c.h.b16 %v775
        %v2861 = vunpack.c.l.b16 %v776
        %v2862 = vunpack.c.h.b16 %v776
        %v2863 = vunpack.c.l.b16 %v777
        %v2864 = vunpack.c.h.b16 %v777
        %v2865 = vunpack.c.l.b16 %v778
        %v2866 = vunpack.c.h.b16 %v778
        %v2867 = vunpack.c.l.b16 %v779
        %v2868 = vunpack.c.h.b16 %v779
        %v2869 = vunpack.c.l.b16 %v780
        %v2870 = vunpack.c.h.b16 %v780
        %v2871 = vunpack.c.l.b16 %v781
        %v2872 = vunpack.c.h.b16 %v781
        %v2873 = vunpack.c.l.b16 %v782
        %v2874 = vunpack.c.h.b16 %v782
        %v2875 = vunpack.c.l.b16 %v783
        %v2876 = vunpack.c.h.b16 %v783
        %v2877 = vunpack.c.l.b16 %v784
        %v2878 = vunpack.c.h.b16 %v784
        %v2879 = vunpack.c.l.b16 %v785
        %v2880 = vunpack.c.h.b16 %v785
        %v2881 = vunpack.c.l.b16 %v786
        %v2882 = vunpack.c.h.b16 %v786
        %v2883 = vunpack.c.l.b16 %v787
        %v2884 = vunpack.c.h.b16 %v787
        %v2885 = vunpack.c.l.b16 %v788
        %v2886 = vunpack.c.h.b16 %v788
        %v2887 = vunpack.c.l.b16 %v789
        %v2888 = vunpack.c.h.b16 %v789
        %v2889 = vunpack.c.l.b16 %v790
        %v2890 = vunpack.c.h.b16 %v790
        %v2891 = vunpack.c.l.b16 %v791
        %v2892 = vunpack.c.h.b16 %v791
        %v2893 = vunpack.c.l.b16 %v792
        %v2894 = vunpack.c.h.b16 %v792
        %v2895 = vunpack.c.l.b16 %v793
        %v2896 = vunpack.c.h.b16 %v793
        %v2897 = vunpack.c.l.b16 %v794
        %v2898 = vunpack.c.h.b16 %v794
        %v2899 = vunpack.c.l.b16 %v795
        %v2900 = vunpack.c.h.b16 %v795
        %v2901 = vunpack.c.l.b16 %v796
        %v2902 = vunpack.c.h.b16 %v796
        %v2903 = vunpack.c.l.b16 %v797
        %v2904 = vunpack.c.h.b16 %v797
        %v2905 = vunpack.c.l.b16 %v798
        %v2906 = vunpack.c.h.b16 %v798
        %v2907 = vunpack.c.l.b16 %v799
        %v2908 = vunpack.c.h.b16 %v799
        %v2909 = vunpack.c.l.b16 %v800
        %v2910 = vunpack.c.h.b16 %v800
        %v2911 = vunpack.c.l.b16 %v801
        %v2912 = vunpack.c.h.b16 %v801
        %v2913 = vunpack.c.l.b16 %v802
        %v2914 = vunpack.c.h.b16 %v802
        %v2915 = vunpack.c.l.b16 %v803
        %v2916 = vunpack.c.h.b16 %v803
        %v2917 = vunpack.c.l.b16 %v804
        %v2918 = vunpack.c.h.b16 %v804
        %v2919 = vunpack.c.l.b16 %v805
        %v2920 = vunpack.c.h.b16 %v805
        %v2921 = vunpack.c.l.b16 %v806
        %v2922 = vunpack.c.h.b16 %v806
        %v2923 = vunpack.c.l.b16 %v807
        %v2924 = vunpack.c.h.b16 %v807
        %v2925 = vunpack.c.l.b16 %v808
        %v2926 = vunpack.c.h.b16 %v808
        %v2927 = vunpack.c.l.b16 %v809
        %v2928 = vunpack.c.h.b16 %v809
        %v2929 = vunpack.c.l.b16 %v810
        %v2930 = vunpack.c.h.b16 %v810
        %v2931 = vunpack.c.l.b16 %v811
        %v2932 = vunpack.c.h.b16 %v811
        %v2933 = vunpack.c.l.b16 %v812
        %v2934 = vunpack.c.h.b16 %v812
        %v2935 = vunpack.c.l.b16 %v813
        %v2936 = vunpack.c.h.b16 %v813
        %v2937 = vunpack.c.l.b16 %v814
        %v2938 = vunpack.c.h.b16 %v814
        %v2939 = vunpack.c.l.b16 %v815
        %v2940 = vunpack.c.h.b16 %v815
        %v2941 = vunpack.c.l.b16 %v816
        %v2942 = vunpack.c.h.b16 %v816
        %v2943 = vunpack.c.l.b16 %v817
        %v2944 = vunpack.c.h.b16 %v817
        %v2945 = vunpack.c.l.b16 %v818
        %v2946 = vunpack.c.h.b16 %v818
        %v2947 = vunpack.c.l.b16 %v819
        %v2948 = vunpack.c.h.b16 %v819
        %v2949 = vunpack.c.l.b16 %v820
        %v2950 = vunpack.c.h.b16 %v820
        %v2951 = vunpack.c.l.b16 %v821
        %v2952 = vunpack.c.h.b16 %v821
        %v2953 = vunpack.c.l.b16 %v822
        %v2954 = vunpack.c.h.b16 %v822
        %v2955 = vunpack.c.l.b16 %v823
        %v2956 = vunpack.c.h.b16 %v823
        %v2957 = vunpack.c.l.b16 %v824
        %v2958 = vunpack.c.h.b16 %v824
        %v2959 = vunpack.c.l.b16 %v825
        %v2960 = vunpack.c.h.b16 %v825
        %v2961 = vunpack.c.l.b16 %v826
        %v2962 = vunpack.c.h.b16 %v826
        %v2963 = vunpack.c.l.b16 %v827
        %v2964 = vunpack.c.h.b16 %v827
        %v2965 = vunpack.c.l.b16 %v828
        %v2966 = vunpack.c.h.b16 %v828
        %v2967 = vunpack.c.l.b16 %v829
        %v2968 = vunpack.c.h.b16 %v829
        %v2969 = vunpack.c.l.b16 %v830
        %v2970 = vunpack.c.h.b16 %v830
        %v2971 = vunpack.c.l.b16 %v831
        %v2972 = vunpack.c.h.b16 %v831
        %v2973 = vunpack.c.l.b16 %v832
        %v2974 = vunpack.c.h.b16 %v832
        %v2975 = vunpack.c.l.b16 %v833
        %v2976 = vunpack.c.h.b16 %v833
        %v2977 = vunpack.c.l.b16 %v834
        %v2978 = vunpack.c.h.b16 %v834
        %v2979 = vunpack.c.l.b16 %v835
        %v2980 = vunpack.c.h.b16 %v835
        %v2981 = vunpack.c.l.b16 %v836
        %v2982 = vunpack.c.h.b16 %v836
        %v2983 = vunpack.c.l.b16 %v837
        %v2984 = vunpack.c.h.b16 %v837
        %v2985 = vunpack.c.l.b16 %v838
        %v2986 = vunpack.c.h.b16 %v838
        %v2987 = vunpack.c.l.b16 %v839
        %v2988 = vunpack.c.h.b16 %v839
        %v2989 = vunpack.c.l.b16 %v840
        %v2990 = vunpack.c.h.b16 %v840
        %v2991 = vunpack.c.l.b16 %v841
        %v2992 = vunpack.c.h.b16 %v841
        %v2993 = vunpack.c.l.b16 %v842
        %v2994 = vunpack.c.h.b16 %v842
        %v2995 = vunpack.c.l.b16 %v843
        %v2996 = vunpack.c.h.b16 %v843
        %v2997 = vunpack.c.l.b16 %v844
        %v2998 = vunpack.c.h.b16 %v844
        %v2999 = vunpack.c.l.b16 %v845
        %v3000 = vunpack.c.h.b16 %v845
        %v3001 = vunpack.c.l.b16 %v846
        %v3002 = vunpack.c.h.b16 %v846
        %v3003 = vunpack.c.l.b16 %v847
        %v3004 = vunpack.c.h.b16 %v847
        %v3005 = vunpack.c.l.b16 %v848
        %v3006 = vunpack.c.h.b16 %v848
        %v3007 = vunpack.c.l.b16 %v849
        %v3008 = vunpack.c.h.b16 %v849
        %v3009 = vunpack.c.l.b16 %v850
        %v3010 = vunpack.c.h.b16 %v850
        %v3011 = vunpack.c.l.b16 %v851
        %v3012 = vunpack.c.h.b16 %v851
        %v3013 = vunpack.c.l.b16 %v852
        %v3014 = vunpack.c.h.b16 %v852
        %v3015 = vunpack.c.l.b16 %v853
        %v3016 = vunpack.c.h.b16 %v853
        %v3017 = vunpack.c.l.b16 %v854
        %v3018 = vunpack.c.h.b16 %v854
        %v3019 = vunpack.c.l.b16 %v855
        %v3020 = vunpack.c.h.b16 %v855
        %v3021 = vunpack.c.l.b16 %v856
        %v3022 = vunpack.c.h.b16 %v856
        %v3023 = vunpack.c.l.b16 %v857
        %v3024 = vunpack.c.h.b16 %v857
        %v3025 = vunpack.c.l.b16 %v858
        %v3026 = vunpack.c.h.b16 %v858
        %v3027 = vunpack.c.l.b16 %v859
        %v3028 = vunpack.c.h.b16 %v859
        %v3029 = vunpack.c.l.b16 %v860
        %v3030 = vunpack.c.h.b16 %v860
        %v3031 = vunpack.c.l.b16 %v861
        %v3032 = vunpack.c.h.b16 %v861
        %v3033 = vunpack.c.l.b16 %v862
        %v3034 = vunpack.c.h.b16 %v862
        %v3035 = vunpack.c.l.b16 %v863
        %v3036 = vunpack.c.h.b16 %v863
        %v3037 = vunpack.c.l.b16 %v864
        %v3038 = vunpack.c.h.b16 %v864
        %v3039 = vunpack.c.l.b16 %v865
        %v3040 = vunpack.c.h.b16 %v865
        %v3041 = vunpack.c.l.b16 %v866
        %v3042 = vunpack.c.h.b16 %v866
        %v3043 = vunpack.c.l.b16 %v867
        %v3044 = vunpack.c.h.b16 %v867
        %v3045 = vunpack.c.l.b16 %v868
        %v3046 = vunpack.c.h.b16 %v868
        %v3047 = vunpack.c.l.b16 %v869
        %v3048 = vunpack.c.h.b16 %v869
        %v3049 = vunpack.c.l.b16 %v870
        %v3050 = vunpack.c.h.b16 %v870
        %v3051 = vunpack.c.l.b16 %v871
        %v3052 = vunpack.c.h.b16 %v871
        %v3053 = vunpack.c.l.b16 %v872
        %v3054 = vunpack.c.h.b16 %v872
        %v3055 = vunpack.c.l.b16 %v873
        %v3056 = vunpack.c.h.b16 %v873
        %v3057 = vunpack.c.l.b16 %v874
        %v3058 = vunpack.c.h.b16 %v874
        %v3059 = vunpack.c.l.b16 %v875
        %v3060 = vunpack.c.h.b16 %v875
        %v3061 = vunpack.c.l.b16 %v876
        %v3062 = vunpack.c.h.b16 %v876
        %v3063 = vunpack.c.l.b16 %v877
        %v3064 = vunpack.c.h.b16 %v877
        %v3065 = vunpack.c.l.b16 %v878
        %v3066 = vunpack.c.h.b16 %v878
        %v3067 = vunpack.c.l.b16 %v879
        %v3068 = vunpack.c.h.b16 %v879
        %v3069 = vunpack.c.l.b16 %v880
        %v3070 = vunpack.c.h.b16 %v880
        %v3071 = vunpack.c.l.b16 %v881
        %v3072 = vunpack.c.h.b16 %v881
        %v3073 = vunpack.c.l.b16 %v882
        %v3074 = vunpack.c.h.b16 %v882
        %v3075 = vunpack.c.l.b16 %v883
        %v3076 = vunpack.c.h.b16 %v883
        %v3077 = vunpack.c.l.b16 %v884
        %v3078 = vunpack.c.h.b16 %v884
        %v3079 = vunpack.c.l.b16 %v885
        %v3080 = vunpack.c.h.b16 %v885
        %v3081 = vunpack.c.l.b16 %v886
        %v3082 = vunpack.c.h.b16 %v886
        %v3083 = vunpack.c.l.b16 %v887
        %v3084 = vunpack.c.h.b16 %v887
        %v3085 = vunpack.c.l.b16 %v888
        %v3086 = vunpack.c.h.b16 %v888
        %v3087 = vunpack.c.l.b16 %v889
        %v3088 = vunpack.c.h.b16 %v889
        %v3089 = vunpack.c.l.b16 %v890
        %v3090 = vunpack.c.h.b16 %v890
        %v3091 = vunpack.c.l.b16 %v891
        %v3092 = vunpack.c.h.b16 %v891
        %v3093 = vunpack.c.l.b16 %v892
        %v3094 = vunpack.c.h.b16 %v892
        %v3095 = vunpack.c.l.b16 %v893
        %v3096 = vunpack.c.h.b16 %v893
        %v3097 = vunpack.c.l.b16 %v894
        %v3098 = vunpack.c.h.b16 %v894
        %v3099 = vunpack.c.l.b16 %v895
        %v3100 = vunpack.c.h.b16 %v895
        %v3101 = vunpack.c.l.b16 %v896
        %v3102 = vunpack.c.h.b16 %v896
        %v3103 = vunpack.c.l.b16 %v897
        %v3104 = vunpack.c.h.b16 %v897
        %v3105 = vunpack.c.l.b16 %v898
        %v3106 = vunpack.c.h.b16 %v898
        %v3107 = vunpack.c.l.b16 %v899
        %v3108 = vunpack.c.h.b16 %v899
        %v3109 = vunpack.c.l.b16 %v900
        %v3110 = vunpack.c.h.b16 %v900
        %v3111 = vunpack.c.l.b16 %v901
        %v3112 = vunpack.c.h.b16 %v901
        %v3113 = vunpack.c.l.b16 %v902
        %v3114 = vunpack.c.h.b16 %v902
        %v3115 = vunpack.c.l.b16 %v903
        %v3116 = vunpack.c.h.b16 %v903
        %v3117 = vunpack.c.l.b16 %v904
        %v3118 = vunpack.c.h.b16 %v904
        %v3119 = vunpack.c.l.b16 %v905
        %v3120 = vunpack.c.h.b16 %v905
        %v3121 = vunpack.c.l.b16 %v906
        %v3122 = vunpack.c.h.b16 %v906
        %v3123 = vunpack.c.l.b16 %v907
        %v3124 = vunpack.c.h.b16 %v907
        %v3125 = vunpack.c.l.b16 %v908
        %v3126 = vunpack.c.h.b16 %v908
        %v3127 = vunpack.c.l.b16 %v909
        %v3128 = vunpack.c.h.b16 %v909
        %v3129 = vunpack.c.l.b16 %v910
        %v3130 = vunpack.c.h.b16 %v910
        %v3131 = vunpack.c.l.b16 %v911
        %v3132 = vunpack.c.h.b16 %v911
        %v3133 = vunpack.c.l.b16 %v912
        %v3134 = vunpack.c.h.b16 %v912
        %v3135 = vunpack.c.l.b16 %v913
        %v3136 = vunpack.c.h.b16 %v913
        %v3137 = vunpack.c.l.b16 %v914
        %v3138 = vunpack.c.h.b16 %v914
        %v3139 = vunpack.c.l.b16 %v915
        %v3140 = vunpack.c.h.b16 %v915
        %v3141 = vunpack.c.l.b16 %v916
        %v3142 = vunpack.c.h.b16 %v916
        %v3143 = vunpack.c.l.b16 %v917
        %v3144 = vunpack.c.h.b16 %v917
        %v3145 = vunpack.c.l.b16 %v918
        %v3146 = vunpack.c.h.b16 %v918
        %v3147 = vunpack.c.l.b16 %v919
        %v3148 = vunpack.c.h.b16 %v919
        %v3149 = vunpack.c.l.b16 %v920
        %v3150 = vunpack.c.h.b16 %v920
        %v3151 = vunpack.c.l.b16 %v921
        %v3152 = vunpack.c.h.b16 %v921
        %v3153 = vunpack.c.l.b16 %v922
        %v3154 = vunpack.c.h.b16 %v922
        %v3155 = vunpack.c.l.b16 %v923
        %v3156 = vunpack.c.h.b16 %v923
        %v3157 = vunpack.c.l.b16 %v924
        %v3158 = vunpack.c.h.b16 %v924
        %v3159 = vunpack.c.l.b16 %v925
        %v3160 = vunpack.c.h.b16 %v925
        %v3161 = vunpack.c.l.b16 %v926
        %v3162 = vunpack.c.h.b16 %v926
        %v3163 = vunpack.c.l.b16 %v927
        %v3164 = vunpack.c.h.b16 %v927
        %v3165 = vunpack.c.l.b16 %v928
        %v3166 = vunpack.c.h.b16 %v928
        %v3167 = vunpack.c.l.b16 %v929
        %v3168 = vunpack.c.h.b16 %v929
        %v3169 = vunpack.c.l.b16 %v930
        %v3170 = vunpack.c.h.b16 %v930
        %v3171 = vunpack.c.l.b16 %v931
        %v3172 = vunpack.c.h.b16 %v931
        %v3173 = vunpack.c.l.b16 %v932
        %v3174 = vunpack.c.h.b16 %v932
        %v3175 = vunpack.c.l.b16 %v933
        %v3176 = vunpack.c.h.b16 %v933
        %v3177 = vunpack.c.l.b16 %v934
        %v3178 = vunpack.c.h.b16 %v934
        %v3179 = vunpack.c.l.b16 %v935
        %v3180 = vunpack.c.h.b16 %v935
        %v3181 = vunpack.c.l.b16 %v936
        %v3182 = vunpack.c.h.b16 %v936
        %v3183 = vunpack.c.l.b16 %v937
        %v3184 = vunpack.c.h.b16 %v937
        %v3185 = vunpack.c.l.b16 %v938
        %v3186 = vunpack.c.h.b16 %v938
        %v3187 = vunpack.c.l.b16 %v939
        %v3188 = vunpack.c.h.b16 %v939
        %v3189 = vunpack.c.l.b16 %v940
        %v3190 = vunpack.c.h.b16 %v940
        %v3191 = vunpack.c.l.b16 %v941
        %v3192 = vunpack.c.h.b16 %v941
        %v3193 = vunpack.c.l.b16 %v942
        %v3194 = vunpack.c.h.b16 %v942
        %v3195 = vunpack.c.l.b16 %v943
        %v3196 = vunpack.c.h.b16 %v943
        %v3197 = vunpack.c.l.b16 %v944
        %v3198 = vunpack.c.h.b16 %v944
        %v3199 = vunpack.c.l.b16 %v945
        %v3200 = vunpack.c.h.b16 %v945
        %v3201 = vunpack.c.l.b16 %v946
        %v3202 = vunpack.c.h.b16 %v946
        %v3203 = vunpack.c.l.b16 %v947
        %v3204 = vunpack.c.h.b16 %v947
        %v3205 = vunpack.c.l.b16 %v948
        %v3206 = vunpack.c.h.b16 %v948
        %v3207 = vunpack.c.l.b16 %v949
        %v3208 = vunpack.c.h.b16 %v949
        %v3209 = vunpack.c.l.b16 %v950
        %v3210 = vunpack.c.h.b16 %v950
        %v3211 = vunpack.c.l.b16 %v951
        %v3212 = vunpack.c.h.b16 %v951
        %v3213 = vunpack.c.l.b16 %v952
        %v3214 = vunpack.c.h.b16 %v952
        %v3215 = vunpack.c.l.b16 %v953
        %v3216 = vunpack.c.h.b16 %v953
        %v3217 = vunpack.c.l.b16 %v954
        %v3218 = vunpack.c.h.b16 %v954
        %v3219 = vunpack.c.l.b16 %v955
        %v3220 = vunpack.c.h.b16 %v955
        %v3221 = vunpack.c.l.b16 %v956
        %v3222 = vunpack.c.h.b16 %v956
        %v3223 = vunpack.c.l.b16 %v957
        %v3224 = vunpack.c.h.b16 %v957
        %v3225 = vunpack.c.l.b16 %v958
        %v3226 = vunpack.c.h.b16 %v958
        %v3227 = vunpack.c.l.b16 %v959
        %v3228 = vunpack.c.h.b16 %v959
        %v3229 = vunpack.c.l.b16 %v960
        %v3230 = vunpack.c.h.b16 %v960
        %v3231 = vunpack.c.l.b16 %v961
        %v3232 = vunpack.c.h.b16 %v961
        %v3233 = vunpack.c.l.b16 %v962
        %v3234 = vunpack.c.h.b16 %v962
        %v3235 = vunpack.c.l.b16 %v963
        %v3236 = vunpack.c.h.b16 %v963
        %v3237 = vunpack.c.l.b16 %v964
        %v3238 = vunpack.c.h.b16 %v964
        %v3239 = vunpack.c.l.b16 %v965
        %v3240 = vunpack.c.h.b16 %v965
        %v3241 = vunpack.c.l.b16 %v966
        %v3242 = vunpack.c.h.b16 %v966
        %v3243 = vunpack.c.l.b16 %v967
        %v3244 = vunpack.c.h.b16 %v967
        %v3245 = vunpack.c.l.b16 %v968
        %v3246 = vunpack.c.h.b16 %v968
        %v3247 = vunpack.c.l.b16 %v969
        %v3248 = vunpack.c.h.b16 %v969
        %v3249 = vunpack.c.l.b16 %v970
        %v3250 = vunpack.c.h.b16 %v970
        %v3251 = vunpack.c.l.b16 %v971
        %v3252 = vunpack.c.h.b16 %v971
        %v3253 = vunpack.c.l.b16 %v972
        %v3254 = vunpack.c.h.b16 %v972
        %v3255 = vunpack.c.l.b16 %v973
        %v3256 = vunpack.c.h.b16 %v973
        %v3257 = vunpack.c.l.b16 %v974
        %v3258 = vunpack.c.h.b16 %v974
        %v3259 = vunpack.c.l.b16 %v975
        %v3260 = vunpack.c.h.b16 %v975
        %v3261 = vunpack.c.l.b16 %v976
        %v3262 = vunpack.c.h.b16 %v976
        %v3263 = vunpack.c.l.b16 %v977
        %v3264 = vunpack.c.h.b16 %v977
        %v3265 = vunpack.c.l.b16 %v978
        %v3266 = vunpack.c.h.b16 %v978
        %v3267 = vunpack.c.l.b16 %v979
        %v3268 = vunpack.c.h.b16 %v979
        %v3269 = vunpack.c.l.b16 %v980
        %v3270 = vunpack.c.h.b16 %v980
        %v3271 = vunpack.c.l.b16 %v981
        %v3272 = vunpack.c.h.b16 %v981
        %v3273 = vunpack.c.l.b16 %v982
        %v3274 = vunpack.c.h.b16 %v982
        %v3275 = vunpack.c.l.b16 %v983
        %v3276 = vunpack.c.h.b16 %v983
        %v3277 = vunpack.c.l.b16 %v984
        %v3278 = vunpack.c.h.b16 %v984
        %v3279 = vunpack.c.l.b16 %v985
        %v3280 = vunpack.c.h.b16 %v985
        %v3281 = vunpack.c.l.b16 %v986
        %v3282 = vunpack.c.h.b16 %v986
        %v3283 = vunpack.c.l.b16 %v987
        %v3284 = vunpack.c.h.b16 %v987
        %v3285 = vunpack.c.l.b16 %v988
        %v3286 = vunpack.c.h.b16 %v988
        %v3287 = vunpack.c.l.b16 %v989
        %v3288 = vunpack.c.h.b16 %v989
        %v3289 = vunpack.c.l.b16 %v990
        %v3290 = vunpack.c.h.b16 %v990
        %v3291 = vunpack.c.l.b16 %v991
        %v3292 = vunpack.c.h.b16 %v991
        %v3293 = vunpack.c.l.b16 %v992
        %v3294 = vunpack.c.h.b16 %v992
        %v3295 = vunpack.c.l.b16 %v993
        %v3296 = vunpack.c.h.b16 %v993
        %v3297 = vunpack.c.l.b16 %v994
        %v3298 = vunpack.c.h.b16 %v994
        %v3299 = vunpack.c.l.b16 %v995
        %v3300 = vunpack.c.h.b16 %v995
        %v3301 = vunpack.c.l.b16 %v996
        %v3302 = vunpack.c.h.b16 %v996
        %v3303 = vunpack.c.l.b16 %v997
        %v3304 = vunpack.c.h.b16 %v997
        %v3305 = vunpack.c.l.b16 %v998
        %v3306 = vunpack.c.h.b16 %v998
        %v3307 = vunpack.c.l.b16 %v999
        %v3308 = vunpack.c.h.b16 %v999
        %v3309 = vunpack.c.l.b16 %v1000
        %v3310 = vunpack.c.h.b16 %v1000
        %v3311 = vunpack.c.l.b16 %v1001
        %v3312 = vunpack.c.h.b16 %v1001
        %v3313 = vunpack.c.l.b16 %v1002
        %v3314 = vunpack.c.h.b16 %v1002
        %v3315 = vunpack.c.l.b16 %v1003
        %v3316 = vunpack.c.h.b16 %v1003
        %v3317 = vunpack.c.l.b16 %v1004
        %v3318 = vunpack.c.h.b16 %v1004
        %v3319 = vunpack.c.l.b16 %v1005
        %v3320 = vunpack.c.h.b16 %v1005
        %v3321 = vunpack.c.l.b16 %v1006
        %v3322 = vunpack.c.h.b16 %v1006
        %v3323 = vunpack.c.l.b16 %v1007
        %v3324 = vunpack.c.h.b16 %v1007
        %v3325 = vunpack.c.l.b16 %v1008
        %v3326 = vunpack.c.h.b16 %v1008
        %v3327 = vunpack.c.l.b16 %v1009
        %v3328 = vunpack.c.h.b16 %v1009
        %v3329 = vunpack.c.l.b16 %v1010
        %v3330 = vunpack.c.h.b16 %v1010
        %v3331 = vunpack.c.l.b16 %v1011
        %v3332 = vunpack.c.h.b16 %v1011
        %v3333 = vunpack.c.l.b16 %v1012
        %v3334 = vunpack.c.h.b16 %v1012
        %v3335 = vunpack.c.l.b16 %v1013
        %v3336 = vunpack.c.h.b16 %v1013
        %v3337 = vunpack.c.l.b16 %v1014
        %v3338 = vunpack.c.h.b16 %v1014
        %v3339 = vunpack.c.l.b16 %v1015
        %v3340 = vunpack.c.h.b16 %v1015
        %v3341 = vunpack.c.l.b16 %v1016
        %v3342 = vunpack.c.h.b16 %v1016
        %v3343 = vunpack.c.l.b16 %v1017
        %v3344 = vunpack.c.h.b16 %v1017
        %v3345 = vunpack.c.l.b16 %v1018
        %v3346 = vunpack.c.h.b16 %v1018
        %v3347 = vunpack.c.l.b16 %v1019
        %v3348 = vunpack.c.h.b16 %v1019
        %v3349 = vunpack.c.l.b16 %v1020
        %v3350 = vunpack.c.h.b16 %v1020
        %v3351 = vunpack.c.l.b16 %v1021
        %v3352 = vunpack.c.h.b16 %v1021
        %v3353 = vunpack.c.l.b16 %v1022
        %v3354 = vunpack.c.h.b16 %v1022
        %v3355 = vunpack.c.l.b16 %v1023
        %v3356 = vunpack.c.h.b16 %v1023
        %v3357 = vunpack.c.l.b16 %v1024
        %v3358 = vunpack.c.h.b16 %v1024
        %v3359 = vunpack.c.l.b16 %v1025
        %v3360 = vunpack.c.h.b16 %v1025
        %v3361 = vunpack.c.l.b16 %v1026
        %v3362 = vunpack.c.h.b16 %v1026
        %v3363 = vunpack.c.l.b16 %v1027
        %v3364 = vunpack.c.h.b16 %v1027
        %v3365 = vunpack.c.l.b16 %v1028
        %v3366 = vunpack.c.h.b16 %v1028
        %v3367 = vunpack.c.l.b16 %v1029
        %v3368 = vunpack.c.h.b16 %v1029
        %v3369 = vunpack.c.l.b16 %v1030
        %v3370 = vunpack.c.h.b16 %v1030
        %v3371 = vunpack.c.l.b16 %v1031
        %v3372 = vunpack.c.h.b16 %v1031
        %v3373 = vunpack.c.l.b16 %v1032
        %v3374 = vunpack.c.h.b16 %v1032
        %v3375 = vunpack.c.l.b16 %v1033
        %v3376 = vunpack.c.h.b16 %v1033
        %v3377 = vunpack.c.l.b16 %v1034
        %v3378 = vunpack.c.h.b16 %v1034
        %v3379 = vunpack.c.l.b16 %v1035
        %v3380 = vunpack.c.h.b16 %v1035
        %v3381 = vunpack.c.l.b16 %v1036
        %v3382 = vunpack.c.h.b16 %v1036
        %v3383 = vunpack.c.l.b16 %v1037
        %v3384 = vunpack.c.h.b16 %v1037
        %v3385 = vunpack.c.l.b16 %v1038
        %v3386 = vunpack.c.h.b16 %v1038
        %v3387 = vunpack.c.l.b16 %v1039
        %v3388 = vunpack.c.h.b16 %v1039
        %v3389 = vunpack.c.l.b16 %v1040
        %v3390 = vunpack.c.h.b16 %v1040
        %v3391 = vunpack.c.l.b16 %v1041
        %v3392 = vunpack.c.h.b16 %v1041
        %v3393 = vunpack.c.l.b16 %v1042
        %v3394 = vunpack.c.h.b16 %v1042
        %v3395 = vunpack.c.l.b16 %v1043
        %v3396 = vunpack.c.h.b16 %v1043
        %v3397 = vunpack.c.l.b16 %v1044
        %v3398 = vunpack.c.h.b16 %v1044
        %v3399 = vunpack.c.l.b16 %v1045
        %v3400 = vunpack.c.h.b16 %v1045
        %v3401 = vunpack.c.l.b16 %v1046
        %v3402 = vunpack.c.h.b16 %v1046
        %v3403 = vunpack.c.l.b16 %v1047
        %v3404 = vunpack.c.h.b16 %v1047
        %v3405 = vunpack.c.l.b16 %v1048
        %v3406 = vunpack.c.h.b16 %v1048
        %v3407 = vunpack.c.l.b16 %v1049
        %v3408 = vunpack.c.h.b16 %v1049
        %v3409 = vunpack.c.l.b16 %v1050
        %v3410 = vunpack.c.h.b16 %v1050
        %v3411 = vunpack.c.l.b16 %v1051
        %v3412 = vunpack.c.h.b16 %v1051
        %v3413 = vunpack.c.l.b16 %v1052
        %v3414 = vunpack.c.h.b16 %v1052
        %v3415 = vunpack.c.l.b16 %v1053
        %v3416 = vunpack.c.h.b16 %v1053
        %v3417 = vunpack.c.l.b16 %v1054
        %v3418 = vunpack.c.h.b16 %v1054
        %v3419 = vunpack.c.l.b16 %v1055
        %v3420 = vunpack.c.h.b16 %v1055
        %v3421 = vunpack.c.l.b16 %v1056
        %v3422 = vunpack.c.h.b16 %v1056
        %v3423 = vunpack.c.l.b16 %v1057
        %v3424 = vunpack.c.h.b16 %v1057
        %v3425 = vunpack.c.l.b16 %v1058
        %v3426 = vunpack.c.h.b16 %v1058
        %v3427 = vunpack.c.l.b16 %v1059
        %v3428 = vunpack.c.h.b16 %v1059
        %v3429 = vunpack.c.l.b16 %v1060
        %v3430 = vunpack.c.h.b16 %v1060
        %v3431 = vunpack.c.l.b16 %v1061
        %v3432 = vunpack.c.h.b16 %v1061
        %v3433 = vunpack.c.l.b16 %v1062
        %v3434 = vunpack.c.h.b16 %v1062
        %v3435 = vunpack.c.l.b16 %v1063
        %v3436 = vunpack.c.h.b16 %v1063
        %v3437 = vunpack.c.l.b16 %v1064
        %v3438 = vunpack.c.h.b16 %v1064
        %v3439 = vunpack.c.l.b16 %v1065
        %v3440 = vunpack.c.h.b16 %v1065
        %v3441 = vunpack.c.l.b16 %v1066
        %v3442 = vunpack.c.h.b16 %v1066
        %v3443 = vunpack.c.l.b16 %v1067
        %v3444 = vunpack.c.h.b16 %v1067
        %v3445 = vunpack.c.l.b16 %v1068
        %v3446 = vunpack.c.h.b16 %v1068
        %v3447 = vunpack.c.l.b16 %v1069
        %v3448 = vunpack.c.h.b16 %v1069
        %v3449 = vunpack.c.l.b16 %v1070
        %v3450 = vunpack.c.h.b16 %v1070
        %v3451 = vunpack.c.l.b16 %v1071
        %v3452 = vunpack.c.h.b16 %v1071
        %v3453 = vunpack.c.l.b16 %v1072
        %v3454 = vunpack.c.h.b16 %v1072
        %v3455 = vunpack.c.l.b16 %v1073
        %v3456 = vunpack.c.h.b16 %v1073
        %v3457 = vunpack.c.l.b16 %v1074
        %v3458 = vunpack.c.h.b16 %v1074
        %v3459 = vunpack.c.l.b16 %v1075
        %v3460 = vunpack.c.h.b16 %v1075
        %v3461 = vunpack.c.l.b16 %v1076
        %v3462 = vunpack.c.h.b16 %v1076
        %v3463 = vunpack.c.l.b16 %v1077
        %v3464 = vunpack.c.h.b16 %v1077
        %v3465 = vunpack.c.l.b16 %v1078
        %v3466 = vunpack.c.h.b16 %v1078
        %v3467 = vunpack.c.l.b16 %v1079
        %v3468 = vunpack.c.h.b16 %v1079
        %v3469 = vunpack.c.l.b16 %v1080
        %v3470 = vunpack.c.h.b16 %v1080
        %v3471 = vunpack.c.l.b16 %v1081
        %v3472 = vunpack.c.h.b16 %v1081
        %v3473 = vunpack.c.l.b16 %v1082
        %v3474 = vunpack.c.h.b16 %v1082
        %v3475 = vunpack.c.l.b16 %v1083
        %v3476 = vunpack.c.h.b16 %v1083
        %v3477 = vunpack.c.l.b16 %v1084
        %v3478 = vunpack.c.h.b16 %v1084
        %v3479 = vunpack.c.l.b16 %v1085
        %v3480 = vunpack.c.h.b16 %v1085
        %v3481 = vunpack.c.l.b16 %v1086
        %v3482 = vunpack.c.h.b16 %v1086
        %v3483 = vunpack.c.l.b16 %v1087
        %v3484 = vunpack.c.h.b16 %v1087
        %v3485 = vunpack.c.l.b16 %v1088
        %v3486 = vunpack.c.h.b16 %v1088
        %v3487 = vunpack.c.l.b16 %v1089
        %v3488 = vunpack.c.h.b16 %v1089
        %v3489 = vunpack.c.l.b16 %v1090
        %v3490 = vunpack.c.h.b16 %v1090
        %v3491 = vunpack.c.l.b16 %v1091
        %v3492 = vunpack.c.h.b16 %v1091
        %v3493 = vunpack.c.l.b16 %v1092
        %v3494 = vunpack.c.h.b16 %v1092
        %v3495 = vunpack.c.l.b16 %v1093
        %v3496 = vunpack.c.h.b16 %v1093
        %v3497 = vunpack.c.l.b16 %v1094
        %v3498 = vunpack.c.h.b16 %v1094
        %v3499 = vunpack.c.l.b16 %v1095
        %v3500 = vunpack.c.h.b16 %v1095
        %v3501 = vunpack.c.l.b16 %v1096
        %v3502 = vunpack.c.h.b16 %v1096
        %v3503 = vunpack.c.l.b16 %v1097
        %v3504 = vunpack.c.h.b16 %v1097
        %v3505 = vunpack.c.l.b16 %v1098
        %v3506 = vunpack.c.h.b16 %v1098
        %v3507 = vunpack.c.l.b16 %v1099
        %v3508 = vunpack.c.h.b16 %v1099
        %v3509 = vunpack.c.l.b16 %v1100
        %v3510 = vunpack.c.h.b16 %v1100
        %v3511 = vunpack.c.l.b16 %v1101
        %v3512 = vunpack.c.h.b16 %v1101
        %v3513 = vunpack.c.l.b16 %v1102
        %v3514 = vunpack.c.h.b16 %v1102
        %v3515 = vunpack.c.l.b16 %v1103
        %v3516 = vunpack.c.h.b16 %v1103
        %v3517 = vunpack.c.l.b16 %v1104
        %v3518 = vunpack.c.h.b16 %v1104
        %v3519 = vunpack.c.l.b16 %v1105
        %v3520 = vunpack.c.h.b16 %v1105
        %v3521 = vunpack.c.l.b16 %v1106
        %v3522 = vunpack.c.h.b16 %v1106
        %v3523 = vunpack.c.l.b16 %v1107
        %v3524 = vunpack.c.h.b16 %v1107
        %v3525 = vunpack.c.l.b16 %v1108
        %v3526 = vunpack.c.h.b16 %v1108
        %v3527 = vunpack.c.l.b16 %v1109
        %v3528 = vunpack.c.h.b16 %v1109
        %v3529 = vunpack.c.l.b16 %v1110
        %v3530 = vunpack.c.h.b16 %v1110
        %v3531 = vunpack.c.l.b16 %v1111
        %v3532 = vunpack.c.h.b16 %v1111
        %v3533 = vunpack.c.l.b16 %v1112
        %v3534 = vunpack.c.h.b16 %v1112
        %v3535 = vunpack.c.l.b16 %v1113
        %v3536 = vunpack.c.h.b16 %v1113
        %v3537 = vunpack.c.l.b16 %v1114
        %v3538 = vunpack.c.h.b16 %v1114
        %v3539 = vunpack.c.l.b16 %v1115
        %v3540 = vunpack.c.h.b16 %v1115
        %v3541 = vunpack.c.l.b16 %v1116
        %v3542 = vunpack.c.h.b16 %v1116
        %v3543 = vunpack.c.l.b16 %v1117
        %v3544 = vunpack.c.h.b16 %v1117
        %v3545 = vunpack.c.l.b16 %v1118
        %v3546 = vunpack.c.h.b16 %v1118
        %v3547 = vunpack.c.l.b16 %v1119
        %v3548 = vunpack.c.h.b16 %v1119
        %v3549 = vunpack.c.l.b16 %v1120
        %v3550 = vunpack.c.h.b16 %v1120
        %v3551 = vunpack.c.l.b16 %v1121
        %v3552 = vunpack.c.h.b16 %v1121
        %v3553 = vunpack.c.l.b16 %v1122
        %v3554 = vunpack.c.h.b16 %v1122
        %v3555 = vunpack.c.l.b16 %v1123
        %v3556 = vunpack.c.h.b16 %v1123
        %v3557 = vunpack.c.l.b16 %v1124
        %v3558 = vunpack.c.h.b16 %v1124
        %v3559 = vunpack.c.l.b16 %v1125
        %v3560 = vunpack.c.h.b16 %v1125
        %v3561 = vunpack.c.l.b16 %v1126
        %v3562 = vunpack.c.h.b16 %v1126
        %v3563 = vunpack.c.l.b16 %v1127
        %v3564 = vunpack.c.h.b16 %v1127
        %v3565 = vunpack.c.l.b16 %v1128
        %v3566 = vunpack.c.h.b16 %v1128
        %v3567 = vunpack.c.l.b16 %v1129
        %v3568 = vunpack.c.h.b16 %v1129
        %v3569 = vunpack.c.l.b16 %v1130
        %v3570 = vunpack.c.h.b16 %v1130
        %v3571 = vunpack.c.l.b16 %v1131
        %v3572 = vunpack.c.h.b16 %v1131
        %v3573 = vunpack.c.l.b16 %v1132
        %v3574 = vunpack.c.h.b16 %v1132
        %v3575 = vunpack.c.l.b16 %v1133
        %v3576 = vunpack.c.h.b16 %v1133
        %v3577 = vunpack.c.l.b16 %v1134
        %v3578 = vunpack.c.h.b16 %v1134
        %v3579 = vunpack.c.l.b16 %v1135
        %v3580 = vunpack.c.h.b16 %v1135
        %v3581 = vunpack.c.l.b16 %v1136
        %v3582 = vunpack.c.h.b16 %v1136
        %v3583 = vunpack.c.l.b16 %v1137
        %v3584 = vunpack.c.h.b16 %v1137
        %v3585 = vunpack.c.l.b16 %v1138
        %v3586 = vunpack.c.h.b16 %v1138
        %v3587 = vunpack.c.l.b16 %v1139
        %v3588 = vunpack.c.h.b16 %v1139
        %v3589 = vunpack.c.l.b16 %v1140
        %v3590 = vunpack.c.h.b16 %v1140
        %v3591 = vunpack.c.l.b16 %v1141
        %v3592 = vunpack.c.h.b16 %v1141
        %v3593 = vunpack.c.l.b16 %v1142
        %v3594 = vunpack.c.h.b16 %v1142
        %v3595 = vunpack.c.l.b16 %v1143
        %v3596 = vunpack.c.h.b16 %v1143
        %v3597 = vunpack.c.l.b16 %v1144
        %v3598 = vunpack.c.h.b16 %v1144
        %v3599 = vunpack.c.l.b16 %v1145
        %v3600 = vunpack.c.h.b16 %v1145
        %v3601 = vunpack.c.l.b16 %v1146
        %v3602 = vunpack.c.h.b16 %v1146
        %v3603 = vunpack.c.l.b16 %v1147
        %v3604 = vunpack.c.h.b16 %v1147
        %v3605 = vunpack.c.l.b16 %v1148
        %v3606 = vunpack.c.h.b16 %v1148
        %v3607 = vunpack.c.l.b16 %v1149
        %v3608 = vunpack.c.h.b16 %v1149
        %v3609 = vunpack.c.l.b16 %v1150
        %v3610 = vunpack.c.h.b16 %v1150
        %v3611 = vunpack.c.l.b16 %v1151
        %v3612 = vunpack.c.h.b16 %v1151
        %v3613 = vunpack.c.l.b16 %v1152
        %v3614 = vunpack.c.h.b16 %v1152
        %v3615 = vunpack.c.l.b16 %v1153
        %v3616 = vunpack.c.h.b16 %v1153
        %v3617 = vunpack.c.l.b16 %v1154
        %v3618 = vunpack.c.h.b16 %v1154
        %v3619 = vunpack.c.l.b16 %v1155
        %v3620 = vunpack.c.h.b16 %v1155
        %v3621 = vunpack.c.l.b16 %v1156
        %v3622 = vunpack.c.h.b16 %v1156
        %v3623 = vunpack.c.l.b16 %v1157
        %v3624 = vunpack.c.h.b16 %v1157
        %v3625 = vunpack.c.l.b16 %v1158
        %v3626 = vunpack.c.h.b16 %v1158
        %v3627 = vunpack.c.l.b16 %v1159
        %v3628 = vunpack.c.h.b16 %v1159
        %v3629 = vunpack.c.l.b16 %v1160
        %v3630 = vunpack.c.h.b16 %v1160
        %v3631 = vunpack.c.l.b16 %v1161
        %v3632 = vunpack.c.h.b16 %v1161
        %v3633 = vunpack.c.l.b16 %v1162
        %v3634 = vunpack.c.h.b16 %v1162
        %v3635 = vunpack.c.l.b16 %v1163
        %v3636 = vunpack.c.h.b16 %v1163
        %v3637 = vunpack.c.l.b16 %v1164
        %v3638 = vunpack.c.h.b16 %v1164
        %v3639 = vunpack.c.l.b16 %v1165
        %v3640 = vunpack.c.h.b16 %v1165
        %v3641 = vunpack.c.l.b16 %v1166
        %v3642 = vunpack.c.h.b16 %v1166
        %v3643 = vunpack.c.l.b16 %v1167
        %v3644 = vunpack.c.h.b16 %v1167
        %v3645 = vunpack.c.l.b16 %v1168
        %v3646 = vunpack.c.h.b16 %v1168
        %v3647 = vunpack.c.l.b16 %v1169
        %v3648 = vunpack.c.h.b16 %v1169
        %v3649 = vunpack.c.l.b16 %v1170
        %v3650 = vunpack.c.h.b16 %v1170
        %v3651 = vunpack.c.l.b16 %v1171
        %v3652 = vunpack.c.h.b16 %v1171
        %v3653 = vunpack.c.l.b16 %v1172
        %v3654 = vunpack.c.h.b16 %v1172
        %v3655 = vunpack.c.l.b16 %v1173
        %v3656 = vunpack.c.h.b16 %v1173
        %v3657 = vunpack.c.l.b16 %v1174
        %v3658 = vunpack.c.h.b16 %v1174
        %v3659 = vunpack.c.l.b16 %v1175
        %v3660 = vunpack.c.h.b16 %v1175
        %v3661 = vunpack.c.l.b16 %v1176
        %v3662 = vunpack.c.h.b16 %v1176
        %v3663 = vunpack.c.l.b16 %v1177
        %v3664 = vunpack.c.h.b16 %v1177
        %v3665 = vunpack.c.l.b16 %v1178
        %v3666 = vunpack.c.h.b16 %v1178
        %v3667 = vunpack.c.l.b16 %v1179
        %v3668 = vunpack.c.h.b16 %v1179
        %v3669 = vunpack.c.l.b16 %v1180
        %v3670 = vunpack.c.h.b16 %v1180
        %v3671 = vunpack.c.l.b16 %v1181
        %v3672 = vunpack.c.h.b16 %v1181
        %v3673 = vunpack.c.l.b16 %v1182
        %v3674 = vunpack.c.h.b16 %v1182
        %v3675 = vunpack.c.l.b16 %v1183
        %v3676 = vunpack.c.h.b16 %v1183
        %v3677 = vunpack.c.l.b16 %v1184
        %v3678 = vunpack.c.h.b16 %v1184
        %v3679 = vunpack.c.l.b16 %v1185
        %v3680 = vunpack.c.h.b16 %v1185
        %v3681 = vunpack.c.l.b16 %v1186
        %v3682 = vunpack.c.h.b16 %v1186
        %v3683 = vunpack.c.l.b16 %v1187
        %v3684 = vunpack.c.h.b16 %v1187
        %v3685 = vunpack.c.l.b16 %v1188
        %v3686 = vunpack.c.h.b16 %v1188
        %v3687 = vunpack.c.l.b16 %v1189
        %v3688 = vunpack.c.h.b16 %v1189
        %v3689 = vunpack.c.l.b16 %v1190
        %v3690 = vunpack.c.h.b16 %v1190
        %v3691 = vunpack.c.l.b16 %v1191
        %v3692 = vunpack.c.h.b16 %v1191
        %v3693 = vunpack.c.l.b16 %v1192
        %v3694 = vunpack.c.h.b16 %v1192
        %v3695 = vunpack.c.l.b16 %v1193
        %v3696 = vunpack.c.h.b16 %v1193
        %v3697 = vunpack.c.l.b16 %v1194
        %v3698 = vunpack.c.h.b16 %v1194
        %v3699 = vunpack.c.l.b16 %v1195
        %v3700 = vunpack.c.h.b16 %v1195
        %v3701 = vunpack.c.l.b16 %v1196
        %v3702 = vunpack.c.h.b16 %v1196
        %v3703 = vunpack.c.l.b16 %v1197
        %v3704 = vunpack.c.h.b16 %v1197
        %v3705 = vunpack.c.l.b16 %v1198
        %v3706 = vunpack.c.h.b16 %v1198
        %v3707 = vunpack.c.l.b16 %v1199
        %v3708 = vunpack.c.h.b16 %v1199
        %v3709 = vunpack.c.l.b16 %v1200
        %v3710 = vunpack.c.h.b16 %v1200
        %v3711 = vunpack.c.l.b16 %v1201
        %v3712 = vunpack.c.h.b16 %v1201
        %v3713 = vunpack.c.l.b16 %v1202
        %v3714 = vunpack.c.h.b16 %v1202
        %v3715 = vunpack.c.l.b16 %v1203
        %v3716 = vunpack.c.h.b16 %v1203
        %v3717 = vunpack.c.l.b16 %v1204
        %v3718 = vunpack.c.h.b16 %v1204
        %v3719 = vunpack.c.l.b16 %v1205
        %v3720 = vunpack.c.h.b16 %v1205
        %v3721 = vunpack.c.l.b16 %v1206
        %v3722 = vunpack.c.h.b16 %v1206
        %v3723 = vunpack.c.l.b16 %v1207
        %v3724 = vunpack.c.h.b16 %v1207
        %v3725 = vunpack.c.l.b16 %v1208
        %v3726 = vunpack.c.h.b16 %v1208
        %v3727 = vunpack.c.l.b16 %v1209
        %v3728 = vunpack.c.h.b16 %v1209
        %v3729 = vunpack.c.l.b16 %v1210
        %v3730 = vunpack.c.h.b16 %v1210
        %v3731 = vunpack.c.l.b16 %v1211
        %v3732 = vunpack.c.h.b16 %v1211
        %v3733 = vunpack.c.l.b16 %v1212
        %v3734 = vunpack.c.h.b16 %v1212
        %v3735 = vunpack.c.l.b16 %v1213
        %v3736 = vunpack.c.h.b16 %v1213
        %v3737 = vunpack.c.l.b16 %v1214
        %v3738 = vunpack.c.h.b16 %v1214
        %v3739 = vunpack.c.l.b16 %v1215
        %v3740 = vunpack.c.h.b16 %v1215
        %v3741 = vunpack.c.l.b16 %v1216
        %v3742 = vunpack.c.h.b16 %v1216
        %v3743 = vpack.c.b16 %v2147, %v2143
        %v3744 = vpack.c.b16 %v2148, %v2144
        %v3745 = vpack.c.b16 %v2149, %v2145
        %v3746 = vpack.c.b16 %v2150, %v2146
        %v3747 = vpack.c.b16 %v2155, %v2151
        %v3748 = vpack.c.b16 %v2156, %v2152
        %v3749 = vpack.c.b16 %v2157, %v2153
        %v3750 = vpack.c.b16 %v2158, %v2154
        %v3751 = vpack.c.b16 %v2163, %v2159
        %v3752 = vpack.c.b16 %v2164, %v2160
        %v3753 = vpack.c.b16 %v2165, %v2161
        %v3754 = vpack.c.b16 %v2166, %v2162
        %v3755 = vpack.c.b16 %v2171, %v2167
        %v3756 = vpack.c.b16 %v2172, %v2168
        %v3757 = vpack.c.b16 %v2173, %v2169
        %v3758 = vpack.c.b16 %v2174, %v2170
        %v3759 = vpack.c.b16 %v2179, %v2175
        %v3760 = vpack.c.b16 %v2180, %v2176
        %v3761 = vpack.c.b16 %v2181, %v2177
        %v3762 = vpack.c.b16 %v2182, %v2178
        %v3763 = vpack.c.b16 %v2187, %v2183
        %v3764 = vpack.c.b16 %v2188, %v2184
        %v3765 = vpack.c.b16 %v2189, %v2185
        %v3766 = vpack.c.b16 %v2190, %v2186
        %v3767 = vpack.c.b16 %v2195, %v2191
        %v3768 = vpack.c.b16 %v2196, %v2192
        %v3769 = vpack.c.b16 %v2197, %v2193
        %v3770 = vpack.c.b16 %v2198, %v2194
        %v3771 = vpack.c.b16 %v2203, %v2199
        %v3772 = vpack.c.b16 %v2204, %v2200
        %v3773 = vpack.c.b16 %v2205, %v2201
        %v3774 = vpack.c.b16 %v2206, %v2202
        %v3775 = vpack.c.b16 %v2211, %v2207
        %v3776 = vpack.c.b16 %v2212, %v2208
        %v3777 = vpack.c.b16 %v2213, %v2209
        %v3778 = vpack.c.b16 %v2214, %v2210
        %v3779 = vpack.c.b16 %v2219, %v2215
        %v3780 = vpack.c.b16 %v2220, %v2216
        %v3781 = vpack.c.b16 %v2221, %v2217
        %v3782 = vpack.c.b16 %v2222, %v2218
        %v3783 = vpack.c.b16 %v2227, %v2223
        %v3784 = vpack.c.b16 %v2228, %v2224
        %v3785 = vpack.c.b16 %v2229, %v2225
        %v3786 = vpack.c.b16 %v2230, %v2226
        %v3787 = vpack.c.b16 %v2235, %v2231
        %v3788 = vpack.c.b16 %v2236, %v2232
        %v3789 = vpack.c.b16 %v2237, %v2233
        %v3790 = vpack.c.b16 %v2238, %v2234
        %v3791 = vpack.c.b16 %v2243, %v2239
        %v3792 = vpack.c.b16 %v2244, %v2240
        %v3793 = vpack.c.b16 %v2245, %v2241
        %v3794 = vpack.c.b16 %v2246, %v2242
        %v3795 = vpack.c.b16 %v2251, %v2247
        %v3796 = vpack.c.b16 %v2252, %v2248
        %v3797 = vpack.c.b16 %v2253, %v2249
        %v3798 = vpack.c.b16 %v2254, %v2250
        %v3799 = vpack.c.b16 %v2259, %v2255
        %v3800 = vpack.c.b16 %v2260, %v2256
        %v3801 = vpack.c.b16 %v2261, %v2257
        %v3802 = vpack.c.b16 %v2262, %v2258
        %v3803 = vpack.c.b16 %v2267, %v2263
        %v3804 = vpack.c.b16 %v2268, %v2264
        %v3805 = vpack.c.b16 %v2269, %v2265
        %v3806 = vpack.c.b16 %v2270, %v2266
        %v3807 = vpack.c.b16 %v2275, %v2271
        %v3808 = vpack.c.b16 %v2276, %v2272
        %v3809 = vpack.c.b16 %v2277, %v2273
        %v3810 = vpack.c.b16 %v2278, %v2274
        %v3811 = vpack.c.b16 %v2283, %v2279
        %v3812 = vpack.c.b16 %v2284, %v2280
        %v3813 = vpack.c.b16 %v2285, %v2281
        %v3814 = vpack.c.b16 %v2286, %v2282
        %v3815 = vpack.c.b16 %v2291, %v2287
        %v3816 = vpack.c.b16 %v2292, %v2288
        %v3817 = vpack.c.b16 %v2293, %v2289
        %v3818 = vpack.c.b16 %v2294, %v2290
        %v3819 = vpack.c.b16 %v2299, %v2295
        %v3820 = vpack.c.b16 %v2300, %v2296
        %v3821 = vpack.c.b16 %v2301, %v2297
        %v3822 = vpack.c.b16 %v2302, %v2298
        %v3823 = vpack.c.b16 %v2307, %v2303
        %v3824 = vpack.c.b16 %v2308, %v2304
        %v3825 = vpack.c.b16 %v2309, %v2305
        %v3826 = vpack.c.b16 %v2310, %v2306
        %v3827 = vpack.c.b16 %v2315, %v2311
        %v3828 = vpack.c.b16 %v2316, %v2312
        %v3829 = vpack.c.b16 %v2317, %v2313
        %v3830 = vpack.c.b16 %v2318, %v2314
        %v3831 = vpack.c.b16 %v2323, %v2319
        %v3832 = vpack.c.b16 %v2324, %v2320
        %v3833 = vpack.c.b16 %v2325, %v2321
        %v3834 = vpack.c.b16 %v2326, %v2322
        %v3835 = vpack.c.b16 %v2331, %v2327
        %v3836 = vpack.c.b16 %v2332, %v2328
        %v3837 = vpack.c.b16 %v2333, %v2329
        %v3838 = vpack.c.b16 %v2334, %v2330
        %v3839 = vpack.c.b16 %v2339, %v2335
        %v3840 = vpack.c.b16 %v2340, %v2336
        %v3841 = vpack.c.b16 %v2341, %v2337
        %v3842 = vpack.c.b16 %v2342, %v2338
        %v3843 = vpack.c.b16 %v2347, %v2343
        %v3844 = vpack.c.b16 %v2348, %v2344
        %v3845 = vpack.c.b16 %v2349, %v2345
        %v3846 = vpack.c.b16 %v2350, %v2346
        %v3847 = vpack.c.b16 %v2355, %v2351
        %v3848 = vpack.c.b16 %v2356, %v2352
        %v3849 = vpack.c.b16 %v2357, %v2353
        %v3850 = vpack.c.b16 %v2358, %v2354
        %v3851 = vpack.c.b16 %v2363, %v2359
        %v3852 = vpack.c.b16 %v2364, %v2360
        %v3853 = vpack.c.b16 %v2365, %v2361
        %v3854 = vpack.c.b16 %v2366, %v2362
        %v3855 = vpack.c.b16 %v2371, %v2367
        %v3856 = vpack.c.b16 %v2372, %v2368
        %v3857 = vpack.c.b16 %v2373, %v2369
        %v3858 = vpack.c.b16 %v2374, %v2370
        %v3859 = vpack.c.b16 %v2379, %v2375
        %v3860 = vpack.c.b16 %v2380, %v2376
        %v3861 = vpack.c.b16 %v2381, %v2377
        %v3862 = vpack.c.b16 %v2382, %v2378
        %v3863 = vpack.c.b16 %v2387, %v2383
        %v3864 = vpack.c.b16 %v2388, %v2384
        %v3865 = vpack.c.b16 %v2389, %v2385
        %v3866 = vpack.c.b16 %v2390, %v2386
        %v3867 = vpack.c.b16 %v2395, %v2391
        %v3868 = vpack.c.b16 %v2396, %v2392
        %v3869 = vpack.c.b16 %v2397, %v2393
        %v3870 = vpack.c.b16 %v2398, %v2394
        %v3871 = vpack.c.b16 %v2403, %v2399
        %v3872 = vpack.c.b16 %v2404, %v2400
        %v3873 = vpack.c.b16 %v2405, %v2401
        %v3874 = vpack.c.b16 %v2406, %v2402
        %v3875 = vpack.c.b16 %v2411, %v2407
        %v3876 = vpack.c.b16 %v2412, %v2408
        %v3877 = vpack.c.b16 %v2413, %v2409
        %v3878 = vpack.c.b16 %v2414, %v2410
        %v3879 = vpack.c.b16 %v2419, %v2415
        %v3880 = vpack.c.b16 %v2420, %v2416
        %v3881 = vpack.c.b16 %v2421, %v2417
        %v3882 = vpack.c.b16 %v2422, %v2418
        %v3883 = vpack.c.b16 %v2427, %v2423
        %v3884 = vpack.c.b16 %v2428, %v2424
        %v3885 = vpack.c.b16 %v2429, %v2425
        %v3886 = vpack.c.b16 %v2430, %v2426
        %v3887 = vpack.c.b16 %v2435, %v2431
        %v3888 = vpack.c.b16 %v2436, %v2432
        %v3889 = vpack.c.b16 %v2437, %v2433
        %v3890 = vpack.c.b16 %v2438, %v2434
        %v3891 = vpack.c.b16 %v2443, %v2439
        %v3892 = vpack.c.b16 %v2444, %v2440
        %v3893 = vpack.c.b16 %v2445, %v2441
        %v3894 = vpack.c.b16 %v2446, %v2442
        %v3895 = vpack.c.b16 %v2451, %v2447
        %v3896 = vpack.c.b16 %v2452, %v2448
        %v3897 = vpack.c.b16 %v2453, %v2449
        %v3898 = vpack.c.b16 %v2454, %v2450
        %v3899 = vpack.c.b16 %v2459, %v2455
        %v3900 = vpack.c.b16 %v2460, %v2456
        %v3901 = vpack.c.b16 %v2461, %v2457
        %v3902 = vpack.c.b16 %v2462, %v2458
        %v3903 = vpack.c.b16 %v2467, %v2463
        %v3904 = vpack.c.b16 %v2468, %v2464
        %v3905 = vpack.c.b16 %v2469, %v2465
        %v3906 = vpack.c.b16 %v2470, %v2466
        %v3907 = vpack.c.b16 %v2475, %v2471
        %v3908 = vpack.c.b16 %v2476, %v2472
        %v3909 = vpack.c.b16 %v2477, %v2473
        %v3910 = vpack.c.b16 %v2478, %v2474
        %v3911 = vpack.c.b16 %v2483, %v2479
        %v3912 = vpack.c.b16 %v2484, %v2480
        %v3913 = vpack.c.b16 %v2485, %v2481
        %v3914 = vpack.c.b16 %v2486, %v2482
        %v3915 = vpack.c.b16 %v2491, %v2487
        %v3916 = vpack.c.b16 %v2492, %v2488
        %v3917 = vpack.c.b16 %v2493, %v2489
        %v3918 = vpack.c.b16 %v2494, %v2490
        %v3919 = vpack.c.b16 %v2499, %v2495
        %v3920 = vpack.c.b16 %v2500, %v2496
        %v3921 = vpack.c.b16 %v2501, %v2497
        %v3922 = vpack.c.b16 %v2502, %v2498
        %v3923 = vpack.c.b16 %v2507, %v2503
        %v3924 = vpack.c.b16 %v2508, %v2504
        %v3925 = vpack.c.b16 %v2509, %v2505
        %v3926 = vpack.c.b16 %v2510, %v2506
        %v3927 = vpack.c.b16 %v2515, %v2511
        %v3928 = vpack.c.b16 %v2516, %v2512
        %v3929 = vpack.c.b16 %v2517, %v2513
        %v3930 = vpack.c.b16 %v2518, %v2514
        %v3931 = vpack.c.b16 %v2523, %v2519
        %v3932 = vpack.c.b16 %v2524, %v2520
        %v3933 = vpack.c.b16 %v2525, %v2521
        %v3934 = vpack.c.b16 %v2526, %v2522
        %v3935 = vpack.c.b16 %v2531, %v2527
        %v3936 = vpack.c.b16 %v2532, %v2528
        %v3937 = vpack.c.b16 %v2533, %v2529
        %v3938 = vpack.c.b16 %v2534, %v2530
        %v3939 = vpack.c.b16 %v2539, %v2535
        %v3940 = vpack.c.b16 %v2540, %v2536
        %v3941 = vpack.c.b16 %v2541, %v2537
        %v3942 = vpack.c.b16 %v2542, %v2538
        %v3943 = vpack.c.b16 %v2547, %v2543
        %v3944 = vpack.c.b16 %v2548, %v2544
        %v3945 = vpack.c.b16 %v2549, %v2545
        %v3946 = vpack.c.b16 %v2550, %v2546
        %v3947 = vpack.c.b16 %v2555, %v2551
        %v3948 = vpack.c.b16 %v2556, %v2552
        %v3949 = vpack.c.b16 %v2557, %v2553
        %v3950 = vpack.c.b16 %v2558, %v2554
        %v3951 = vpack.c.b16 %v2563, %v2559
        %v3952 = vpack.c.b16 %v2564, %v2560
        %v3953 = vpack.c.b16 %v2565, %v2561
        %v3954 = vpack.c.b16 %v2566, %v2562
        %v3955 = vpack.c.b16 %v2571, %v2567
        %v3956 = vpack.c.b16 %v2572, %v2568
        %v3957 = vpack.c.b16 %v2573, %v2569
        %v3958 = vpack.c.b16 %v2574, %v2570
        %v3959 = vpack.c.b16 %v2579, %v2575
        %v3960 = vpack.c.b16 %v2580, %v2576
        %v3961 = vpack.c.b16 %v2581, %v2577
        %v3962 = vpack.c.b16 %v2582, %v2578
        %v3963 = vpack.c.b16 %v2587, %v2583
        %v3964 = vpack.c.b16 %v2588, %v2584
        %v3965 = vpack.c.b16 %v2589, %v2585
        %v3966 = vpack.c.b16 %v2590, %v2586
        %v3967 = vpack.c.b16 %v2595, %v2591
        %v3968 = vpack.c.b16 %v2596, %v2592
        %v3969 = vpack.c.b16 %v2597, %v2593
        %v3970 = vpack.c.b16 %v2598, %v2594
        %v3971 = vpack.c.b16 %v2603, %v2599
        %v3972 = vpack.c.b16 %v2604, %v2600
        %v3973 = vpack.c.b16 %v2605, %v2601
        %v3974 = vpack.c.b16 %v2606, %v2602
        %v3975 = vpack.c.b16 %v2611, %v2607
        %v3976 = vpack.c.b16 %v2612, %v2608
        %v3977 = vpack.c.b16 %v2613, %v2609
        %v3978 = vpack.c.b16 %v2614, %v2610
        %v3979 = vpack.c.b16 %v2619, %v2615
        %v3980 = vpack.c.b16 %v2620, %v2616
        %v3981 = vpack.c.b16 %v2621, %v2617
        %v3982 = vpack.c.b16 %v2622, %v2618
        %v3983 = vpack.c.b16 %v2627, %v2623
        %v3984 = vpack.c.b16 %v2628, %v2624
        %v3985 = vpack.c.b16 %v2629, %v2625
        %v3986 = vpack.c.b16 %v2630, %v2626
        %v3987 = vpack.c.b16 %v2635, %v2631
        %v3988 = vpack.c.b16 %v2636, %v2632
        %v3989 = vpack.c.b16 %v2637, %v2633
        %v3990 = vpack.c.b16 %v2638, %v2634
        %v3991 = vpack.c.b16 %v2643, %v2639
        %v3992 = vpack.c.b16 %v2644, %v2640
        %v3993 = vpack.c.b16 %v2645, %v2641
        %v3994 = vpack.c.b16 %v2646, %v2642
        %v3995 = vpack.c.b16 %v2651, %v2647
        %v3996 = vpack.c.b16 %v2652, %v2648
        %v3997 = vpack.c.b16 %v2653, %v2649
        %v3998 = vpack.c.b16 %v2654, %v2650
        %v3999 = vpack.c.b16 %v2659, %v2655
        %v4000 = vpack.c.b16 %v2660, %v2656
        %v4001 = vpack.c.b16 %v2661, %v2657
        %v4002 = vpack.c.b16 %v2662, %v2658
        %v4003 = vpack.c.b16 %v2667, %v2663
        %v4004 = vpack.c.b16 %v2668, %v2664
        %v4005 = vpack.c.b16 %v2669, %v2665
        %v4006 = vpack.c.b16 %v2670, %v2666
        %v4007 = vpack.c.b16 %v2675, %v2671
        %v4008 = vpack.c.b16 %v2676, %v2672
        %v4009 = vpack.c.b16 %v2677, %v2673
        %v4010 = vpack.c.b16 %v2678, %v2674
        %v4011 = vpack.c.b16 %v2683, %v2679
        %v4012 = vpack.c.b16 %v2684, %v2680
        %v4013 = vpack.c.b16 %v2685, %v2681
        %v4014 = vpack.c.b16 %v2686, %v2682
        %v4015 = vpack.c.b16 %v2691, %v2687
        %v4016 = vpack.c.b16 %v2692, %v2688
        %v4017 = vpack.c.b16 %v2693, %v2689
        %v4018 = vpack.c.b16 %v2694, %v2690
        %v4019 = vpack.c.b16 %v2699, %v2695
        %v4020 = vpack.c.b16 %v2700, %v2696
        %v4021 = vpack.c.b16 %v2701, %v2697
        %v4022 = vpack.c.b16 %v2702, %v2698
        %v4023 = vpack.c.b16 %v2707, %v2703
        %v4024 = vpack.c.b16 %v2708, %v2704
        %v4025 = vpack.c.b16 %v2709, %v2705
        %v4026 = vpack.c.b16 %v2710, %v2706
        %v4027 = vpack.c.b16 %v2715, %v2711
        %v4028 = vpack.c.b16 %v2716, %v2712
        %v4029 = vpack.c.b16 %v2717, %v2713
        %v4030 = vpack.c.b16 %v2718, %v2714
        %v4031 = vpack.c.b16 %v2723, %v2719
        %v4032 = vpack.c.b16 %v2724, %v2720
        %v4033 = vpack.c.b16 %v2725, %v2721
        %v4034 = vpack.c.b16 %v2726, %v2722
        %v4035 = vpack.c.b16 %v2731, %v2727
        %v4036 = vpack.c.b16 %v2732, %v2728
        %v4037 = vpack.c.b16 %v2733, %v2729
        %v4038 = vpack.c.b16 %v2734, %v2730
        %v4039 = vpack.c.b16 %v2739, %v2735
        %v4040 = vpack.c.b16 %v2740, %v2736
        %v4041 = vpack.c.b16 %v2741, %v2737
        %v4042 = vpack.c.b16 %v2742, %v2738
        %v4043 = vpack.c.b16 %v2747, %v2743
        %v4044 = vpack.c.b16 %v2748, %v2744
        %v4045 = vpack.c.b16 %v2749, %v2745
        %v4046 = vpack.c.b16 %v2750, %v2746
        %v4047 = vpack.c.b16 %v2755, %v2751
        %v4048 = vpack.c.b16 %v2756, %v2752
        %v4049 = vpack.c.b16 %v2757, %v2753
        %v4050 = vpack.c.b16 %v2758, %v2754
        %v4051 = vpack.c.b16 %v2763, %v2759
        %v4052 = vpack.c.b16 %v2764, %v2760
        %v4053 = vpack.c.b16 %v2765, %v2761
        %v4054 = vpack.c.b16 %v2766, %v2762
        %v4055 = vpack.c.b16 %v2771, %v2767
        %v4056 = vpack.c.b16 %v2772, %v2768
        %v4057 = vpack.c.b16 %v2773, %v2769
        %v4058 = vpack.c.b16 %v2774, %v2770
        %v4059 = vpack.c.b16 %v2779, %v2775
        %v4060 = vpack.c.b16 %v2780, %v2776
        %v4061 = vpack.c.b16 %v2781, %v2777
        %v4062 = vpack.c.b16 %v2782, %v2778
        %v4063 = vpack.c.b16 %v2787, %v2783
        %v4064 = vpack.c.b16 %v2788, %v2784
        %v4065 = vpack.c.b16 %v2789, %v2785
        %v4066 = vpack.c.b16 %v2790, %v2786
        %v4067 = vpack.c.b16 %v2795, %v2791
        %v4068 = vpack.c.b16 %v2796, %v2792
        %v4069 = vpack.c.b16 %v2797, %v2793
        %v4070 = vpack.c.b16 %v2798, %v2794
        %v4071 = vpack.c.b16 %v2803, %v2799
        %v4072 = vpack.c.b16 %v2804, %v2800
        %v4073 = vpack.c.b16 %v2805, %v2801
        %v4074 = vpack.c.b16 %v2806, %v2802
        %v4075 = vpack.c.b16 %v2811, %v2807
        %v4076 = vpack.c.b16 %v2812, %v2808
        %v4077 = vpack.c.b16 %v2813, %v2809
        %v4078 = vpack.c.b16 %v2814, %v2810
        %v4079 = vpack.c.b16 %v2819, %v2815
        %v4080 = vpack.c.b16 %v2820, %v2816
        %v4081 = vpack.c.b16 %v2821, %v2817
        %v4082 = vpack.c.b16 %v2822, %v2818
        %v4083 = vpack.c.b16 %v2827, %v2823
        %v4084 = vpack.c.b16 %v2828, %v2824
        %v4085 = vpack.c.b16 %v2829, %v2825
        %v4086 = vpack.c.b16 %v2830, %v2826
        %v4087 = vpack.c.b16 %v2835, %v2831
        %v4088 = vpack.c.b16 %v2836, %v2832
        %v4089 = vpack.c.b16 %v2837, %v2833
        %v4090 = vpack.c.b16 %v2838, %v2834
        %v4091 = vpack.c.b16 %v2843, %v2839
        %v4092 = vpack.c.b16 %v2844, %v2840
        %v4093 = vpack.c.b16 %v2845, %v2841
        %v4094 = vpack.c.b16 %v2846, %v2842
        %v4095 = vpack.c.b16 %v2851, %v2847
        %v4096 = vpack.c.b16 %v2852, %v2848
        %v4097 = vpack.c.b16 %v2853, %v2849
        %v4098 = vpack.c.b16 %v2854, %v2850
        %v4099 = vpack.c.b16 %v2859, %v2855
        %v4100 = vpack.c.b16 %v2860, %v2856
        %v4101 = vpack.c.b16 %v2861, %v2857
        %v4102 = vpack.c.b16 %v2862, %v2858
        %v4103 = vpack.c.b16 %v2867, %v2863
        %v4104 = vpack.c.b16 %v2868, %v2864
        %v4105 = vpack.c.b16 %v2869, %v2865
        %v4106 = vpack.c.b16 %v2870, %v2866
        %v4107 = vpack.c.b16 %v2875, %v2871
        %v4108 = vpack.c.b16 %v2876, %v2872
        %v4109 = vpack.c.b16 %v2877, %v2873
        %v4110 = vpack.c.b16 %v2878, %v2874
        %v4111 = vpack.c.b16 %v2883, %v2879
        %v4112 = vpack.c.b16 %v2884, %v2880
        %v4113 = vpack.c.b16 %v2885, %v2881
        %v4114 = vpack.c.b16 %v2886, %v2882
        %v4115 = vpack.c.b16 %v2891, %v2887
        %v4116 = vpack.c.b16 %v2892, %v2888
        %v4117 = vpack.c.b16 %v2893, %v2889
        %v4118 = vpack.c.b16 %v2894, %v2890
        %v4119 = vpack.c.b16 %v2899, %v2895
        %v4120 = vpack.c.b16 %v2900, %v2896
        %v4121 = vpack.c.b16 %v2901, %v2897
        %v4122 = vpack.c.b16 %v2902, %v2898
        %v4123 = vpack.c.b16 %v2907, %v2903
        %v4124 = vpack.c.b16 %v2908, %v2904
        %v4125 = vpack.c.b16 %v2909, %v2905
        %v4126 = vpack.c.b16 %v2910, %v2906
        %v4127 = vpack.c.b16 %v2915, %v2911
        %v4128 = vpack.c.b16 %v2916, %v2912
        %v4129 = vpack.c.b16 %v2917, %v2913
        %v4130 = vpack.c.b16 %v2918, %v2914
        %v4131 = vpack.c.b16 %v2923, %v2919
        %v4132 = vpack.c.b16 %v2924, %v2920
        %v4133 = vpack.c.b16 %v2925, %v2921
        %v4134 = vpack.c.b16 %v2926, %v2922
        %v4135 = vpack.c.b16 %v2931, %v2927
        %v4136 = vpack.c.b16 %v2932, %v2928
        %v4137 = vpack.c.b16 %v2933, %v2929
        %v4138 = vpack.c.b16 %v2934, %v2930
        %v4139 = vpack.c.b16 %v2939, %v2935
        %v4140 = vpack.c.b16 %v2940, %v2936
        %v4141 = vpack.c.b16 %v2941, %v2937
        %v4142 = vpack.c.b16 %v2942, %v2938
        %v4143 = vpack.c.b16 %v2947, %v2943
        %v4144 = vpack.c.b16 %v2948, %v2944
        %v4145 = vpack.c.b16 %v2949, %v2945
        %v4146 = vpack.c.b16 %v2950, %v2946
        %v4147 = vpack.c.b16 %v2955, %v2951
        %v4148 = vpack.c.b16 %v2956, %v2952
        %v4149 = vpack.c.b16 %v2957, %v2953
        %v4150 = vpack.c.b16 %v2958, %v2954
        %v4151 = vpack.c.b16 %v2963, %v2959
        %v4152 = vpack.c.b16 %v2964, %v2960
        %v4153 = vpack.c.b16 %v2965, %v2961
        %v4154 = vpack.c.b16 %v2966, %v2962
        %v4155 = vpack.c.b16 %v2971, %v2967
        %v4156 = vpack.c.b16 %v2972, %v2968
        %v4157 = vpack.c.b16 %v2973, %v2969
        %v4158 = vpack.c.b16 %v2974, %v2970
        %v4159 = vpack.c.b16 %v2979, %v2975
        %v4160 = vpack.c.b16 %v2980, %v2976
        %v4161 = vpack.c.b16 %v2981, %v2977
        %v4162 = vpack.c.b16 %v2982, %v2978
        %v4163 = vpack.c.b16 %v2987, %v2983
        %v4164 = vpack.c.b16 %v2988, %v2984
        %v4165 = vpack.c.b16 %v2989, %v2985
        %v4166 = vpack.c.b16 %v2990, %v2986
        %v4167 = vpack.c.b16 %v2995, %v2991
        %v4168 = vpack.c.b16 %v2996, %v2992
        %v4169 = vpack.c.b16 %v2997, %v2993
        %v4170 = vpack.c.b16 %v2998, %v2994
        %v4171 = vpack.c.b16 %v3003, %v2999
        %v4172 = vpack.c.b16 %v3004, %v3000
        %v4173 = vpack.c.b16 %v3005, %v3001
        %v4174 = vpack.c.b16 %v3006, %v3002
        %v4175 = vpack.c.b16 %v3011, %v3007
        %v4176 = vpack.c.b16 %v3012, %v3008
        %v4177 = vpack.c.b16 %v3013, %v3009
        %v4178 = vpack.c.b16 %v3014, %v3010
        %v4179 = vpack.c.b16 %v3019, %v3015
        %v4180 = vpack.c.b16 %v3020, %v3016
        %v4181 = vpack.c.b16 %v3021, %v3017
        %v4182 = vpack.c.b16 %v3022, %v3018
        %v4183 = vpack.c.b16 %v3027, %v3023
        %v4184 = vpack.c.b16 %v3028, %v3024
        %v4185 = vpack.c.b16 %v3029, %v3025
        %v4186 = vpack.c.b16 %v3030, %v3026
        %v4187 = vpack.c.b16 %v3035, %v3031
        %v4188 = vpack.c.b16 %v3036, %v3032
        %v4189 = vpack.c.b16 %v3037, %v3033
        %v4190 = vpack.c.b16 %v3038, %v3034
        %v4191 = vpack.c.b16 %v3043, %v3039
        %v4192 = vpack.c.b16 %v3044, %v3040
        %v4193 = vpack.c.b16 %v3045, %v3041
        %v4194 = vpack.c.b16 %v3046, %v3042
        %v4195 = vpack.c.b16 %v3051, %v3047
        %v4196 = vpack.c.b16 %v3052, %v3048
        %v4197 = vpack.c.b16 %v3053, %v3049
        %v4198 = vpack.c.b16 %v3054, %v3050
        %v4199 = vpack.c.b16 %v3059, %v3055
        %v4200 = vpack.c.b16 %v3060, %v3056
        %v4201 = vpack.c.b16 %v3061, %v3057
        %v4202 = vpack.c.b16 %v3062, %v3058
        %v4203 = vpack.c.b16 %v3067, %v3063
        %v4204 = vpack.c.b16 %v3068, %v3064
        %v4205 = vpack.c.b16 %v3069, %v3065
        %v4206 = vpack.c.b16 %v3070, %v3066
        %v4207 = vpack.c.b16 %v3075, %v3071
        %v4208 = vpack.c.b16 %v3076, %v3072
        %v4209 = vpack.c.b16 %v3077, %v3073
        %v4210 = vpack.c.b16 %v3078, %v3074
        %v4211 = vpack.c.b16 %v3083, %v3079
        %v4212 = vpack.c.b16 %v3084, %v3080
        %v4213 = vpack.c.b16 %v3085, %v3081
        %v4214 = vpack.c.b16 %v3086, %v3082
        %v4215 = vpack.c.b16 %v3091, %v3087
        %v4216 = vpack.c.b16 %v3092, %v3088
        %v4217 = vpack.c.b16 %v3093, %v3089
        %v4218 = vpack.c.b16 %v3094, %v3090
        %v4219 = vpack.c.b16 %v3099, %v3095
        %v4220 = vpack.c.b16 %v3100, %v3096
        %v4221 = vpack.c.b16 %v3101, %v3097
        %v4222 = vpack.c.b16 %v3102, %v3098
        %v4223 = vpack.c.b16 %v3107, %v3103
        %v4224 = vpack.c.b16 %v3108, %v3104
        %v4225 = vpack.c.b16 %v3109, %v3105
        %v4226 = vpack.c.b16 %v3110, %v3106
        %v4227 = vpack.c.b16 %v3115, %v3111
        %v4228 = vpack.c.b16 %v3116, %v3112
        %v4229 = vpack.c.b16 %v3117, %v3113
        %v4230 = vpack.c.b16 %v3118, %v3114
        %v4231 = vpack.c.b16 %v3123, %v3119
        %v4232 = vpack.c.b16 %v3124, %v3120
        %v4233 = vpack.c.b16 %v3125, %v3121
        %v4234 = vpack.c.b16 %v3126, %v3122
        %v4235 = vpack.c.b16 %v3131, %v3127
        %v4236 = vpack.c.b16 %v3132, %v3128
        %v4237 = vpack.c.b16 %v3133, %v3129
        %v4238 = vpack.c.b16 %v3134, %v3130
        %v4239 = vpack.c.b16 %v3139, %v3135
        %v4240 = vpack.c.b16 %v3140, %v3136
        %v4241 = vpack.c.b16 %v3141, %v3137
        %v4242 = vpack.c.b16 %v3142, %v3138
        %v4243 = vpack.c.b16 %v3147, %v3143
        %v4244 = vpack.c.b16 %v3148, %v3144
        %v4245 = vpack.c.b16 %v3149, %v3145
        %v4246 = vpack.c.b16 %v3150, %v3146
        %v4247 = vpack.c.b16 %v3155, %v3151
        %v4248 = vpack.c.b16 %v3156, %v3152
        %v4249 = vpack.c.b16 %v3157, %v3153
        %v4250 = vpack.c.b16 %v3158, %v3154
        %v4251 = vpack.c.b16 %v3163, %v3159
        %v4252 = vpack.c.b16 %v3164, %v3160
        %v4253 = vpack.c.b16 %v3165, %v3161
        %v4254 = vpack.c.b16 %v3166, %v3162
        %v4255 = vpack.c.b16 %v3171, %v3167
        %v4256 = vpack.c.b16 %v3172, %v3168
        %v4257 = vpack.c.b16 %v3173, %v3169
        %v4258 = vpack.c.b16 %v3174, %v3170
        %v4259 = vpack.c.b16 %v3179, %v3175
        %v4260 = vpack.c.b16 %v3180, %v3176
        %v4261 = vpack.c.b16 %v3181, %v3177
        %v4262 = vpack.c.b16 %v3182, %v3178
        %v4263 = vpack.c.b16 %v3187, %v3183
        %v4264 = vpack.c.b16 %v3188, %v3184
        %v4265 = vpack.c.b16 %v3189, %v3185
        %v4266 = vpack.c.b16 %v3190, %v3186
        %v4267 = vpack.c.b16 %v3195, %v3191
        %v4268 = vpack.c.b16 %v3196, %v3192
        %v4269 = vpack.c.b16 %v3197, %v3193
        %v4270 = vpack.c.b16 %v3198, %v3194
        %v4271 = vpack.c.b16 %v3203, %v3199
        %v4272 = vpack.c.b16 %v3204, %v3200
        %v4273 = vpack.c.b16 %v3205, %v3201
        %v4274 = vpack.c.b16 %v3206, %v3202
        %v4275 = vpack.c.b16 %v3211, %v3207
        %v4276 = vpack.c.b16 %v3212, %v3208
        %v4277 = vpack.c.b16 %v3213, %v3209
        %v4278 = vpack.c.b16 %v3214, %v3210
        %v4279 = vpack.c.b16 %v3219, %v3215
        %v4280 = vpack.c.b16 %v3220, %v3216
        %v4281 = vpack.c.b16 %v3221, %v3217
        %v4282 = vpack.c.b16 %v3222, %v3218
        %v4283 = vpack.c.b16 %v3227, %v3223
        %v4284 = vpack.c.b16 %v3228, %v3224
        %v4285 = vpack.c.b16 %v3229, %v3225
        %v4286 = vpack.c.b16 %v3230, %v3226
        %v4287 = vpack.c.b16 %v3235, %v3231
        %v4288 = vpack.c.b16 %v3236, %v3232
        %v4289 = vpack.c.b16 %v3237, %v3233
        %v4290 = vpack.c.b16 %v3238, %v3234
        %v4291 = vpack.c.b16 %v3243, %v3239
        %v4292 = vpack.c.b16 %v3244, %v3240
        %v4293 = vpack.c.b16 %v3245, %v3241
        %v4294 = vpack.c.b16 %v3246, %v3242
        %v4295 = vpack.c.b16 %v3251, %v3247
        %v4296 = vpack.c.b16 %v3252, %v3248
        %v4297 = vpack.c.b16 %v3253, %v3249
        %v4298 = vpack.c.b16 %v3254, %v3250
        %v4299 = vpack.c.b16 %v3259, %v3255
        %v4300 = vpack.c.b16 %v3260, %v3256
        %v4301 = vpack.c.b16 %v3261, %v3257
        %v4302 = vpack.c.b16 %v3262, %v3258
        %v4303 = vpack.c.b16 %v3267, %v3263
        %v4304 = vpack.c.b16 %v3268, %v3264
        %v4305 = vpack.c.b16 %v3269, %v3265
        %v4306 = vpack.c.b16 %v3270, %v3266
        %v4307 = vpack.c.b16 %v3275, %v3271
        %v4308 = vpack.c.b16 %v3276, %v3272
        %v4309 = vpack.c.b16 %v3277, %v3273
        %v4310 = vpack.c.b16 %v3278, %v3274
        %v4311 = vpack.c.b16 %v3283, %v3279
        %v4312 = vpack.c.b16 %v3284, %v3280
        %v4313 = vpack.c.b16 %v3285, %v3281
        %v4314 = vpack.c.b16 %v3286, %v3282
        %v4315 = vpack.c.b16 %v3291, %v3287
        %v4316 = vpack.c.b16 %v3292, %v3288
        %v4317 = vpack.c.b16 %v3293, %v3289
        %v4318 = vpack.c.b16 %v3294, %v3290
        %v4319 = vpack.c.b16 %v3299, %v3295
        %v4320 = vpack.c.b16 %v3300, %v3296
        %v4321 = vpack.c.b16 %v3301, %v3297
        %v4322 = vpack.c.b16 %v3302, %v3298
        %v4323 = vpack.c.b16 %v3307, %v3303
        %v4324 = vpack.c.b16 %v3308, %v3304
        %v4325 = vpack.c.b16 %v3309, %v3305
        %v4326 = vpack.c.b16 %v3310, %v3306
        %v4327 = vpack.c.b16 %v3315, %v3311
        %v4328 = vpack.c.b16 %v3316, %v3312
        %v4329 = vpack.c.b16 %v3317, %v3313
        %v4330 = vpack.c.b16 %v3318, %v3314
        %v4331 = vpack.c.b16 %v3323, %v3319
        %v4332 = vpack.c.b16 %v3324, %v3320
        %v4333 = vpack.c.b16 %v3325, %v3321
        %v4334 = vpack.c.b16 %v3326, %v3322
        %v4335 = vpack.c.b16 %v3331, %v3327
        %v4336 = vpack.c.b16 %v3332, %v3328
        %v4337 = vpack.c.b16 %v3333, %v3329
        %v4338 = vpack.c.b16 %v3334, %v3330
        %v4339 = vpack.c.b16 %v3339, %v3335
        %v4340 = vpack.c.b16 %v3340, %v3336
        %v4341 = vpack.c.b16 %v3341, %v3337
        %v4342 = vpack.c.b16 %v3342, %v3338
        %v4343 = vpack.c.b16 %v3347, %v3343
        %v4344 = vpack.c.b16 %v3348, %v3344
        %v4345 = vpack.c.b16 %v3349, %v3345
        %v4346 = vpack.c.b16 %v3350, %v3346
        %v4347 = vpack.c.b16 %v3355, %v3351
        %v4348 = vpack.c.b16 %v3356, %v3352
        %v4349 = vpack.c.b16 %v3357, %v3353
        %v4350 = vpack.c.b16 %v3358, %v3354
        %v4351 = vpack.c.b16 %v3363, %v3359
        %v4352 = vpack.c.b16 %v3364, %v3360
        %v4353 = vpack.c.b16 %v3365, %v3361
        %v4354 = vpack.c.b16 %v3366, %v3362
        %v4355 = vpack.c.b16 %v3371, %v3367
        %v4356 = vpack.c.b16 %v3372, %v3368
        %v4357 = vpack.c.b16 %v3373, %v3369
        %v4358 = vpack.c.b16 %v3374, %v3370
        %v4359 = vpack.c.b16 %v3379, %v3375
        %v4360 = vpack.c.b16 %v3380, %v3376
        %v4361 = vpack.c.b16 %v3381, %v3377
        %v4362 = vpack.c.b16 %v3382, %v3378
        %v4363 = vpack.c.b16 %v3387, %v3383
        %v4364 = vpack.c.b16 %v3388, %v3384
        %v4365 = vpack.c.b16 %v3389, %v3385
        %v4366 = vpack.c.b16 %v3390, %v3386
        %v4367 = vpack.c.b16 %v3395, %v3391
        %v4368 = vpack.c.b16 %v3396, %v3392
        %v4369 = vpack.c.b16 %v3397, %v3393
        %v4370 = vpack.c.b16 %v3398, %v3394
        %v4371 = vpack.c.b16 %v3403, %v3399
        %v4372 = vpack.c.b16 %v3404, %v3400
        %v4373 = vpack.c.b16 %v3405, %v3401
        %v4374 = vpack.c.b16 %v3406, %v3402
        %v4375 = vpack.c.b16 %v3411, %v3407
        %v4376 = vpack.c.b16 %v3412, %v3408
        %v4377 = vpack.c.b16 %v3413, %v3409
        %v4378 = vpack.c.b16 %v3414, %v3410
        %v4379 = vpack.c.b16 %v3419, %v3415
        %v4380 = vpack.c.b16 %v3420, %v3416
        %v4381 = vpack.c.b16 %v3421, %v3417
        %v4382 = vpack.c.b16 %v3422, %v3418
        %v4383 = vpack.c.b16 %v3427, %v3423
        %v4384 = vpack.c.b16 %v3428, %v3424
        %v4385 = vpack.c.b16 %v3429, %v3425
        %v4386 = vpack.c.b16 %v3430, %v3426
        %v4387 = vpack.c.b16 %v3435, %v3431
        %v4388 = vpack.c.b16 %v3436, %v3432
        %v4389 = vpack.c.b16 %v3437, %v3433
        %v4390 = vpack.c.b16 %v3438, %v3434
        %v4391 = vpack.c.b16 %v3443, %v3439
        %v4392 = vpack.c.b16 %v3444, %v3440
        %v4393 = vpack.c.b16 %v3445, %v3441
        %v4394 = vpack.c.b16 %v3446, %v3442
        %v4395 = vpack.c.b16 %v3451, %v3447
        %v4396 = vpack.c.b16 %v3452, %v3448
        %v4397 = vpack.c.b16 %v3453, %v3449
        %v4398 = vpack.c.b16 %v3454, %v3450
        %v4399 = vpack.c.b16 %v3459, %v3455
        %v4400 = vpack.c.b16 %v3460, %v3456
        %v4401 = vpack.c.b16 %v3461, %v3457
        %v4402 = vpack.c.b16 %v3462, %v3458
        %v4403 = vpack.c.b16 %v3467, %v3463
        %v4404 = vpack.c.b16 %v3468, %v3464
        %v4405 = vpack.c.b16 %v3469, %v3465
        %v4406 = vpack.c.b16 %v3470, %v3466
        %v4407 = vpack.c.b16 %v3475, %v3471
        %v4408 = vpack.c.b16 %v3476, %v3472
        %v4409 = vpack.c.b16 %v3477, %v3473
        %v4410 = vpack.c.b16 %v3478, %v3474
        %v4411 = vpack.c.b16 %v3483, %v3479
        %v4412 = vpack.c.b16 %v3484, %v3480
        %v4413 = vpack.c.b16 %v3485, %v3481
        %v4414 = vpack.c.b16 %v3486, %v3482
        %v4415 = vpack.c.b16 %v3491, %v3487
        %v4416 = vpack.c.b16 %v3492, %v3488
        %v4417 = vpack.c.b16 %v3493, %v3489
        %v4418 = vpack.c.b16 %v3494, %v3490
        %v4419 = vpack.c.b16 %v3499, %v3495
        %v4420 = vpack.c.b16 %v3500, %v3496
        %v4421 = vpack.c.b16 %v3501, %v3497
        %v4422 = vpack.c.b16 %v3502, %v3498
        %v4423 = vpack.c.b16 %v3507, %v3503
        %v4424 = vpack.c.b16 %v3508, %v3504
        %v4425 = vpack.c.b16 %v3509, %v3505
        %v4426 = vpack.c.b16 %v3510, %v3506
        %v4427 = vpack.c.b16 %v3515, %v3511
        %v4428 = vpack.c.b16 %v3516, %v3512
        %v4429 = vpack.c.b16 %v3517, %v3513
        %v4430 = vpack.c.b16 %v3518, %v3514
        %v4431 = vpack.c.b16 %v3523, %v3519
        %v4432 = vpack.c.b16 %v3524, %v3520
        %v4433 = vpack.c.b16 %v3525, %v3521
        %v4434 = vpack.c.b16 %v3526, %v3522
        %v4435 = vpack.c.b16 %v3531, %v3527
        %v4436 = vpack.c.b16 %v3532, %v3528
        %v4437 = vpack.c.b16 %v3533, %v3529
        %v4438 = vpack.c.b16 %v3534, %v3530
        %v4439 = vpack.c.b16 %v3539, %v3535
        %v4440 = vpack.c.b16 %v3540, %v3536
        %v4441 = vpack.c.b16 %v3541, %v3537
        %v4442 = vpack.c.b16 %v3542, %v3538
        %v4443 = vpack.c.b16 %v3547, %v3543
        %v4444 = vpack.c.b16 %v3548, %v3544
        %v4445 = vpack.c.b16 %v3549, %v3545
        %v4446 = vpack.c.b16 %v3550, %v3546
        %v4447 = vpack.c.b16 %v3555, %v3551
        %v4448 = vpack.c.b16 %v3556, %v3552
        %v4449 = vpack.c.b16 %v3557, %v3553
        %v4450 = vpack.c.b16 %v3558, %v3554
        %v4451 = vpack.c.b16 %v3563, %v3559
        %v4452 = vpack.c.b16 %v3564, %v3560
        %v4453 = vpack.c.b16 %v3565, %v3561
        %v4454 = vpack.c.b16 %v3566, %v3562
        %v4455 = vpack.c.b16 %v3571, %v3567
        %v4456 = vpack.c.b16 %v3572, %v3568
        %v4457 = vpack.c.b16 %v3573, %v3569
        %v4458 = vpack.c.b16 %v3574, %v3570
        %v4459 = vpack.c.b16 %v3579, %v3575
        %v4460 = vpack.c.b16 %v3580, %v3576
        %v4461 = vpack.c.b16 %v3581, %v3577
        %v4462 = vpack.c.b16 %v3582, %v3578
        %v4463 = vpack.c.b16 %v3587, %v3583
        %v4464 = vpack.c.b16 %v3588, %v3584
        %v4465 = vpack.c.b16 %v3589, %v3585
        %v4466 = vpack.c.b16 %v3590, %v3586
        %v4467 = vpack.c.b16 %v3595, %v3591
        %v4468 = vpack.c.b16 %v3596, %v3592
        %v4469 = vpack.c.b16 %v3597, %v3593
        %v4470 = vpack.c.b16 %v3598, %v3594
        %v4471 = vpack.c.b16 %v3603, %v3599
        %v4472 = vpack.c.b16 %v3604, %v3600
        %v4473 = vpack.c.b16 %v3605, %v3601
        %v4474 = vpack.c.b16 %v3606, %v3602
        %v4475 = vpack.c.b16 %v3611, %v3607
        %v4476 = vpack.c.b16 %v3612, %v3608
        %v4477 = vpack.c.b16 %v3613, %v3609
        %v4478 = vpack.c.b16 %v3614, %v3610
        %v4479 = vpack.c.b16 %v3619, %v3615
        %v4480 = vpack.c.b16 %v3620, %v3616
        %v4481 = vpack.c.b16 %v3621, %v3617
        %v4482 = vpack.c.b16 %v3622, %v3618
        %v4483 = vpack.c.b16 %v3627, %v3623
        %v4484 = vpack.c.b16 %v3628, %v3624
        %v4485 = vpack.c.b16 %v3629, %v3625
        %v4486 = vpack.c.b16 %v3630, %v3626
        %v4487 = vpack.c.b16 %v3635, %v3631
        %v4488 = vpack.c.b16 %v3636, %v3632
        %v4489 = vpack.c.b16 %v3637, %v3633
        %v4490 = vpack.c.b16 %v3638, %v3634
        %v4491 = vpack.c.b16 %v3643, %v3639
        %v4492 = vpack.c.b16 %v3644, %v3640
        %v4493 = vpack.c.b16 %v3645, %v3641
        %v4494 = vpack.c.b16 %v3646, %v3642
        %v4495 = vpack.c.b16 %v3651, %v3647
        %v4496 = vpack.c.b16 %v3652, %v3648
        %v4497 = vpack.c.b16 %v3653, %v3649
        %v4498 = vpack.c.b16 %v3654, %v3650
        %v4499 = vpack.c.b16 %v3659, %v3655
        %v4500 = vpack.c.b16 %v3660, %v3656
        %v4501 = vpack.c.b16 %v3661, %v3657
        %v4502 = vpack.c.b16 %v3662, %v3658
        %v4503 = vpack.c.b16 %v3667, %v3663
        %v4504 = vpack.c.b16 %v3668, %v3664
        %v4505 = vpack.c.b16 %v3669, %v3665
        %v4506 = vpack.c.b16 %v3670, %v3666
        %v4507 = vpack.c.b16 %v3675, %v3671
        %v4508 = vpack.c.b16 %v3676, %v3672
        %v4509 = vpack.c.b16 %v3677, %v3673
        %v4510 = vpack.c.b16 %v3678, %v3674
        %v4511 = vpack.c.b16 %v3683, %v3679
        %v4512 = vpack.c.b16 %v3684, %v3680
        %v4513 = vpack.c.b16 %v3685, %v3681
        %v4514 = vpack.c.b16 %v3686, %v3682
        %v4515 = vpack.c.b16 %v3691, %v3687
        %v4516 = vpack.c.b16 %v3692, %v3688
        %v4517 = vpack.c.b16 %v3693, %v3689
        %v4518 = vpack.c.b16 %v3694, %v3690
        %v4519 = vpack.c.b16 %v3699, %v3695
        %v4520 = vpack.c.b16 %v3700, %v3696
        %v4521 = vpack.c.b16 %v3701, %v3697
        %v4522 = vpack.c.b16 %v3702, %v3698
        %v4523 = vpack.c.b16 %v3707, %v3703
        %v4524 = vpack.c.b16 %v3708, %v3704
        %v4525 = vpack.c.b16 %v3709, %v3705
        %v4526 = vpack.c.b16 %v3710, %v3706
        %v4527 = vpack.c.b16 %v3715, %v3711
        %v4528 = vpack.c.b16 %v3716, %v3712
        %v4529 = vpack.c.b16 %v3717, %v3713
        %v4530 = vpack.c.b16 %v3718, %v3714
        %v4531 = vpack.c.b16 %v3723, %v3719
        %v4532 = vpack.c.b16 %v3724, %v3720
        %v4533 = vpack.c.b16 %v3725, %v3721
        %v4534 = vpack.c.b16 %v3726, %v3722
        %v4535 = vpack.c.b16 %v3731, %v3727
        %v4536 = vpack.c.b16 %v3732, %v3728
        %v4537 = vpack.c.b16 %v3733, %v3729
        %v4538 = vpack.c.b16 %v3734, %v3730
        %v4539 = vpack.c.b16 %v3739, %v3735
        %v4540 = vpack.c.b16 %v3740, %v3736
        %v4541 = vpack.c.b16 %v3741, %v3737
        %v4542 = vpack.c.b16 %v3742, %v3738
        %5343 = vmatprep.subr.bf16.mxu0 %v3772
        %5344 = vmatpush1.bf16.msra.mxu0 %v3771
        %5345 = vmatprep.subr.bf16.mxu0 %v3768
        %5346 = vmatpush1.bf16.msra.mxu0 %v3767
        %5347 = vmatprep.subr.bf16.mxu0 %v3764
        %5348 = vmatpush1.bf16.msra.mxu0 %v3763
        %5349 = vmatprep.subr.bf16.mxu0 %v3760
        %5350 = vmatpush1.bf16.msra.mxu0 %v3759
        %5351 = vmatprep.subr.bf16.mxu0 %v3756
        %5352 = vmatpush1.bf16.msra.mxu0 %v3755
        %5353 = vmatprep.subr.bf16.mxu0 %v3752
        %5354 = vmatpush1.bf16.msra.mxu0 %v3751
        %5355 = vmatprep.subr.bf16.mxu0 %v3748
        %5356 = vmatpush1.bf16.msra.mxu0 %v3747
        %5357 = vmatprep.subr.bf16.mxu0 %v3744
        %5358 = vmatpush1.bf16.msra.mxu0 %v3743
        %5359 = vmatprep.subr.bf16.mxu0 %v3804
        %5360 = vmatpush2.bf16.msra.mxu0 %v3803
        %5361 = vmatprep.subr.bf16.mxu0 %v3800
        %5362 = vmatpush2.bf16.msra.mxu0 %v3799
        %5363 = vmatprep.subr.bf16.mxu0 %v3796
        %5364 = vmatpush2.bf16.msra.mxu0 %v3795
        %5365 = vmatprep.subr.bf16.mxu0 %v3792
        %5366 = vmatpush2.bf16.msra.mxu0 %v3791
        %5367 = vmatprep.subr.bf16.mxu0 %v3788
        %5368 = vmatpush2.bf16.msra.mxu0 %v3787
        %5369 = vmatprep.subr.bf16.mxu0 %v3784
        %5370 = vmatpush2.bf16.msra.mxu0 %v3783
        %5371 = vmatprep.subr.bf16.mxu0 %v3780
        %5372 = vmatpush2.bf16.msra.mxu0 %v3779
        %5373 = vmatprep.subr.bf16.mxu0 %v3776
        %5374 = vmatpush2.bf16.msra.mxu0 %v3775
        %5375 = vmatprep.mubr.bf16.mxu0 %v1294
        %5376 = vmatmul.mubr.bf16.gmra.mxu0 %v1293
        %v5377 = vpop.f32.mrf.mxu0
        %v5378 = vadd.f32 0.0, %v5377
        %v5379 = vpop.f32.mrf.mxu0
        %v5380 = vadd.f32 0.0, %v5379
        %v5381 = vpop.f32.mrf.mxu0
        %v5382 = vadd.f32 0.0, %v5381
        %v5383 = vpop.f32.mrf.mxu0
        %v5384 = vadd.f32 0.0, %v5383
        %5385 = vdwg.mxu0
        %5386 = vmatprep.subr.bf16.mxu0 %v3836
        %5387 = vmatpush1.bf16.msra.mxu0 %v3835
        %5388 = vmatprep.subr.bf16.mxu0 %v3832
        %5389 = vmatpush1.bf16.msra.mxu0 %v3831
        %5390 = vmatprep.subr.bf16.mxu0 %v3828
        %5391 = vmatpush1.bf16.msra.mxu0 %v3827
        %5392 = vmatprep.subr.bf16.mxu0 %v3824
        %5393 = vmatpush1.bf16.msra.mxu0 %v3823
        %5394 = vmatprep.subr.bf16.mxu0 %v3820
        %5395 = vmatpush1.bf16.msra.mxu0 %v3819
        %5396 = vmatprep.subr.bf16.mxu0 %v3816
        %5397 = vmatpush1.bf16.msra.mxu0 %v3815
        %5398 = vmatprep.subr.bf16.mxu0 %v3812
        %5399 = vmatpush1.bf16.msra.mxu0 %v3811
        %5400 = vmatprep.subr.bf16.mxu0 %v3808
        %5401 = vmatpush1.bf16.msra.mxu0 %v3807
        %5402 = vmatprep.subr.bf16.mxu0 %v3868
        %5403 = vmatpush2.bf16.msra.mxu0 %v3867
        %5404 = vmatprep.subr.bf16.mxu0 %v3864
        %5405 = vmatpush2.bf16.msra.mxu0 %v3863
        %5406 = vmatprep.subr.bf16.mxu0 %v3860
        %5407 = vmatpush2.bf16.msra.mxu0 %v3859
        %5408 = vmatprep.subr.bf16.mxu0 %v3856
        %5409 = vmatpush2.bf16.msra.mxu0 %v3855
        %5410 = vmatprep.subr.bf16.mxu0 %v3852
        %5411 = vmatpush2.bf16.msra.mxu0 %v3851
        %5412 = vmatprep.subr.bf16.mxu0 %v3848
        %5413 = vmatpush2.bf16.msra.mxu0 %v3847
        %5414 = vmatprep.subr.bf16.mxu0 %v3844
        %5415 = vmatpush2.bf16.msra.mxu0 %v3843
        %5416 = vmatprep.subr.bf16.mxu0 %v3840
        %5417 = vmatpush2.bf16.msra.mxu0 %v3839
        %5418 = vmatprep.mubr.bf16.mxu0 %v1296
        %5419 = vmatmul.mubr.bf16.gmra.mxu0 %v1295
        %v5420 = vpop.f32.mrf.mxu0
        %v5421 = vadd.f32 %v5378, %v5420
        %v5422 = vpop.f32.mrf.mxu0
        %v5423 = vadd.f32 %v5380, %v5422
        %v5424 = vpop.f32.mrf.mxu0
        %v5425 = vadd.f32 %v5382, %v5424
        %v5426 = vpop.f32.mrf.mxu0
        %v5427 = vadd.f32 %v5384, %v5426
        %5428 = vdwg.mxu0
        %5429 = vmatprep.subr.bf16.mxu0 %v3900
        %5430 = vmatpush1.bf16.msra.mxu0 %v3899
        %5431 = vmatprep.subr.bf16.mxu0 %v3896
        %5432 = vmatpush1.bf16.msra.mxu0 %v3895
        %5433 = vmatprep.subr.bf16.mxu0 %v3892
        %5434 = vmatpush1.bf16.msra.mxu0 %v3891
        %5435 = vmatprep.subr.bf16.mxu0 %v3888
        %5436 = vmatpush1.bf16.msra.mxu0 %v3887
        %5437 = vmatprep.subr.bf16.mxu0 %v3884
        %5438 = vmatpush1.bf16.msra.mxu0 %v3883
        %5439 = vmatprep.subr.bf16.mxu0 %v3880
        %5440 = vmatpush1.bf16.msra.mxu0 %v3879
        %5441 = vmatprep.subr.bf16.mxu0 %v3876
        %5442 = vmatpush1.bf16.msra.mxu0 %v3875
        %5443 = vmatprep.subr.bf16.mxu0 %v3872
        %5444 = vmatpush1.bf16.msra.mxu0 %v3871
        %5445 = vmatprep.subr.bf16.mxu0 %v3932
        %5446 = vmatpush2.bf16.msra.mxu0 %v3931
        %5447 = vmatprep.subr.bf16.mxu0 %v3928
        %5448 = vmatpush2.bf16.msra.mxu0 %v3927
        %5449 = vmatprep.subr.bf16.mxu0 %v3924
        %5450 = vmatpush2.bf16.msra.mxu0 %v3923
        %5451 = vmatprep.subr.bf16.mxu0 %v3920
        %5452 = vmatpush2.bf16.msra.mxu0 %v3919
        %5453 = vmatprep.subr.bf16.mxu0 %v3916
        %5454 = vmatpush2.bf16.msra.mxu0 %v3915
        %5455 = vmatprep.subr.bf16.mxu0 %v3912
        %5456 = vmatpush2.bf16.msra.mxu0 %v3911
        %5457 = vmatprep.subr.bf16.mxu0 %v3908
        %5458 = vmatpush2.bf16.msra.mxu0 %v3907
        %5459 = vmatprep.subr.bf16.mxu0 %v3904
        %5460 = vmatpush2.bf16.msra.mxu0 %v3903
        %5461 = vmatprep.mubr.bf16.mxu0 %v1298
        %5462 = vmatmul.mubr.bf16.gmra.mxu0 %v1297
        %v5463 = vpop.f32.mrf.mxu0
        %v5464 = vadd.f32 %v5421, %v5463
        %v5465 = vpop.f32.mrf.mxu0
        %v5466 = vadd.f32 %v5423, %v5465
        %v5467 = vpop.f32.mrf.mxu0
        %v5468 = vadd.f32 %v5425, %v5467
        %v5469 = vpop.f32.mrf.mxu0
        %v5470 = vadd.f32 %v5427, %v5469
        %5471 = vdwg.mxu0
        %5472 = vmatprep.subr.bf16.mxu0 %v3964
        %5473 = vmatpush1.bf16.msra.mxu0 %v3963
        %5474 = vmatprep.subr.bf16.mxu0 %v3960
        %5475 = vmatpush1.bf16.msra.mxu0 %v3959
        %5476 = vmatprep.subr.bf16.mxu0 %v3956
        %5477 = vmatpush1.bf16.msra.mxu0 %v3955
        %5478 = vmatprep.subr.bf16.mxu0 %v3952
        %5479 = vmatpush1.bf16.msra.mxu0 %v3951
        %5480 = vmatprep.subr.bf16.mxu0 %v3948
        %5481 = vmatpush1.bf16.msra.mxu0 %v3947
        %5482 = vmatprep.subr.bf16.mxu0 %v3944
        %5483 = vmatpush1.bf16.msra.mxu0 %v3943
        %5484 = vmatprep.subr.bf16.mxu0 %v3940
        %5485 = vmatpush1.bf16.msra.mxu0 %v3939
        %5486 = vmatprep.subr.bf16.mxu0 %v3936
        %5487 = vmatpush1.bf16.msra.mxu0 %v3935
        %5488 = vmatprep.subr.bf16.mxu0 %v3996
        %5489 = vmatpush2.bf16.msra.mxu0 %v3995
        %5490 = vmatprep.subr.bf16.mxu0 %v3992
        %5491 = vmatpush2.bf16.msra.mxu0 %v3991
        %5492 = vmatprep.subr.bf16.mxu0 %v3988
        %5493 = vmatpush2.bf16.msra.mxu0 %v3987
        %5494 = vmatprep.subr.bf16.mxu0 %v3984
        %5495 = vmatpush2.bf16.msra.mxu0 %v3983
        %5496 = vmatprep.subr.bf16.mxu0 %v3980
        %5497 = vmatpush2.bf16.msra.mxu0 %v3979
        %5498 = vmatprep.subr.bf16.mxu0 %v3976
        %5499 = vmatpush2.bf16.msra.mxu0 %v3975
        %5500 = vmatprep.subr.bf16.mxu0 %v3972
        %5501 = vmatpush2.bf16.msra.mxu0 %v3971
        %5502 = vmatprep.subr.bf16.mxu0 %v3968
        %5503 = vmatpush2.bf16.msra.mxu0 %v3967
        %5504 = vmatprep.mubr.bf16.mxu0 %v1300
        %5505 = vmatmul.mubr.bf16.gmra.mxu0 %v1299
        %v5506 = vpop.f32.mrf.mxu0
        %v5507 = vadd.f32 %v5464, %v5506
        %v5508 = vpop.f32.mrf.mxu0
        %v5509 = vadd.f32 %v5466, %v5508
        %v5510 = vpop.f32.mrf.mxu0
        %v5511 = vadd.f32 %v5468, %v5510
        %v5512 = vpop.f32.mrf.mxu0
        %v5513 = vadd.f32 %v5470, %v5512
        %5514 = vdwg.mxu0
        %5515 = vmatprep.subr.bf16.mxu0 %v4028
        %5516 = vmatpush1.bf16.msra.mxu0 %v4027
        %5517 = vmatprep.subr.bf16.mxu0 %v4024
        %5518 = vmatpush1.bf16.msra.mxu0 %v4023
        %5519 = vmatprep.subr.bf16.mxu0 %v4020
        %5520 = vmatpush1.bf16.msra.mxu0 %v4019
        %5521 = vmatprep.subr.bf16.mxu0 %v4016
        %5522 = vmatpush1.bf16.msra.mxu0 %v4015
        %5523 = vmatprep.subr.bf16.mxu0 %v4012
        %5524 = vmatpush1.bf16.msra.mxu0 %v4011
        %5525 = vmatprep.subr.bf16.mxu0 %v4008
        %5526 = vmatpush1.bf16.msra.mxu0 %v4007
        %5527 = vmatprep.subr.bf16.mxu0 %v4004
        %5528 = vmatpush1.bf16.msra.mxu0 %v4003
        %5529 = vmatprep.subr.bf16.mxu0 %v4000
        %5530 = vmatpush1.bf16.msra.mxu0 %v3999
        %5531 = vmatprep.subr.bf16.mxu0 %v4060
        %5532 = vmatpush2.bf16.msra.mxu0 %v4059
        %5533 = vmatprep.subr.bf16.mxu0 %v4056
        %5534 = vmatpush2.bf16.msra.mxu0 %v4055
        %5535 = vmatprep.subr.bf16.mxu0 %v4052
        %5536 = vmatpush2.bf16.msra.mxu0 %v4051
        %5537 = vmatprep.subr.bf16.mxu0 %v4048
        %5538 = vmatpush2.bf16.msra.mxu0 %v4047
        %5539 = vmatprep.subr.bf16.mxu0 %v4044
        %5540 = vmatpush2.bf16.msra.mxu0 %v4043
        %5541 = vmatprep.subr.bf16.mxu0 %v4040
        %5542 = vmatpush2.bf16.msra.mxu0 %v4039
        %5543 = vmatprep.subr.bf16.mxu0 %v4036
        %5544 = vmatpush2.bf16.msra.mxu0 %v4035
        %5545 = vmatprep.subr.bf16.mxu0 %v4032
        %5546 = vmatpush2.bf16.msra.mxu0 %v4031
        %5547 = vmatprep.mubr.bf16.mxu0 %v1302
        %5548 = vmatmul.mubr.bf16.gmra.mxu0 %v1301
        %v5549 = vpop.f32.mrf.mxu0
        %v5550 = vadd.f32 %v5507, %v5549
        %v5551 = vpop.f32.mrf.mxu0
        %v5552 = vadd.f32 %v5509, %v5551
        %v5553 = vpop.f32.mrf.mxu0
        %v5554 = vadd.f32 %v5511, %v5553
        %v5555 = vpop.f32.mrf.mxu0
        %v5556 = vadd.f32 %v5513, %v5555
        %5557 = vdwg.mxu0
        %5558 = vmatprep.subr.bf16.mxu0 %v4092
        %5559 = vmatpush1.bf16.msra.mxu0 %v4091
        %5560 = vmatprep.subr.bf16.mxu0 %v4088
        %5561 = vmatpush1.bf16.msra.mxu0 %v4087
        %5562 = vmatprep.subr.bf16.mxu0 %v4084
        %5563 = vmatpush1.bf16.msra.mxu0 %v4083
        %5564 = vmatprep.subr.bf16.mxu0 %v4080
        %5565 = vmatpush1.bf16.msra.mxu0 %v4079
        %5566 = vmatprep.subr.bf16.mxu0 %v4076
        %5567 = vmatpush1.bf16.msra.mxu0 %v4075
        %5568 = vmatprep.subr.bf16.mxu0 %v4072
        %5569 = vmatpush1.bf16.msra.mxu0 %v4071
        %5570 = vmatprep.subr.bf16.mxu0 %v4068
        %5571 = vmatpush1.bf16.msra.mxu0 %v4067
        %5572 = vmatprep.subr.bf16.mxu0 %v4064
        %5573 = vmatpush1.bf16.msra.mxu0 %v4063
        %5574 = vmatprep.subr.bf16.mxu0 %v4124
        %5575 = vmatpush2.bf16.msra.mxu0 %v4123
        %5576 = vmatprep.subr.bf16.mxu0 %v4120
        %5577 = vmatpush2.bf16.msra.mxu0 %v4119
        %5578 = vmatprep.subr.bf16.mxu0 %v4116
        %5579 = vmatpush2.bf16.msra.mxu0 %v4115
        %5580 = vmatprep.subr.bf16.mxu0 %v4112
        %5581 = vmatpush2.bf16.msra.mxu0 %v4111
        %5582 = vmatprep.subr.bf16.mxu0 %v4108
        %5583 = vmatpush2.bf16.msra.mxu0 %v4107
        %5584 = vmatprep.subr.bf16.mxu0 %v4104
        %5585 = vmatpush2.bf16.msra.mxu0 %v4103
        %5586 = vmatprep.subr.bf16.mxu0 %v4100
        %5587 = vmatpush2.bf16.msra.mxu0 %v4099
        %5588 = vmatprep.subr.bf16.mxu0 %v4096
        %5589 = vmatpush2.bf16.msra.mxu0 %v4095
        %5590 = vmatprep.mubr.bf16.mxu0 %v1304
        %5591 = vmatmul.mubr.bf16.gmra.mxu0 %v1303
        %v5592 = vpop.f32.mrf.mxu0
        %v5593 = vadd.f32 %v5550, %v5592
        %v5594 = vpop.f32.mrf.mxu0
        %v5595 = vadd.f32 %v5552, %v5594
        %v5596 = vpop.f32.mrf.mxu0
        %v5597 = vadd.f32 %v5554, %v5596
        %v5598 = vpop.f32.mrf.mxu0
        %v5599 = vadd.f32 %v5556, %v5598
        %5600 = vdwg.mxu0
        %5601 = vmatprep.subr.bf16.mxu0 %v4156
        %5602 = vmatpush1.bf16.msra.mxu0 %v4155
        %5603 = vmatprep.subr.bf16.mxu0 %v4152
        %5604 = vmatpush1.bf16.msra.mxu0 %v4151
        %5605 = vmatprep.subr.bf16.mxu0 %v4148
        %5606 = vmatpush1.bf16.msra.mxu0 %v4147
        %5607 = vmatprep.subr.bf16.mxu0 %v4144
        %5608 = vmatpush1.bf16.msra.mxu0 %v4143
        %5609 = vmatprep.subr.bf16.mxu0 %v4140
        %5610 = vmatpush1.bf16.msra.mxu0 %v4139
        %5611 = vmatprep.subr.bf16.mxu0 %v4136
        %5612 = vmatpush1.bf16.msra.mxu0 %v4135
        %5613 = vmatprep.subr.bf16.mxu0 %v4132
        %5614 = vmatpush1.bf16.msra.mxu0 %v4131
        %5615 = vmatprep.subr.bf16.mxu0 %v4128
        %5616 = vmatpush1.bf16.msra.mxu0 %v4127
        %5617 = vmatprep.subr.bf16.mxu0 %v4188
        %5618 = vmatpush2.bf16.msra.mxu0 %v4187
        %5619 = vmatprep.subr.bf16.mxu0 %v4184
        %5620 = vmatpush2.bf16.msra.mxu0 %v4183
        %5621 = vmatprep.subr.bf16.mxu0 %v4180
        %5622 = vmatpush2.bf16.msra.mxu0 %v4179
        %5623 = vmatprep.subr.bf16.mxu0 %v4176
        %5624 = vmatpush2.bf16.msra.mxu0 %v4175
        %5625 = vmatprep.subr.bf16.mxu0 %v4172
        %5626 = vmatpush2.bf16.msra.mxu0 %v4171
        %5627 = vmatprep.subr.bf16.mxu0 %v4168
        %5628 = vmatpush2.bf16.msra.mxu0 %v4167
        %5629 = vmatprep.subr.bf16.mxu0 %v4164
        %5630 = vmatpush2.bf16.msra.mxu0 %v4163
        %5631 = vmatprep.subr.bf16.mxu0 %v4160
        %5632 = vmatpush2.bf16.msra.mxu0 %v4159
        %5633 = vmatprep.mubr.bf16.mxu0 %v1306
        %5634 = vmatmul.mubr.bf16.gmra.mxu0 %v1305
        %v5635 = vpop.f32.mrf.mxu0
        %v5636 = vadd.f32 %v5593, %v5635
        %v5637 = vpop.f32.mrf.mxu0
        %v5638 = vadd.f32 %v5595, %v5637
        %v5639 = vpop.f32.mrf.mxu0
        %v5640 = vadd.f32 %v5597, %v5639
        %v5641 = vpop.f32.mrf.mxu0
        %v5642 = vadd.f32 %v5599, %v5641
        %5643 = vdwg.mxu0
        %5644 = vmatprep.subr.bf16.mxu0 %v4220
        %5645 = vmatpush1.bf16.msra.mxu0 %v4219
        %5646 = vmatprep.subr.bf16.mxu0 %v4216
        %5647 = vmatpush1.bf16.msra.mxu0 %v4215
        %5648 = vmatprep.subr.bf16.mxu0 %v4212
        %5649 = vmatpush1.bf16.msra.mxu0 %v4211
        %5650 = vmatprep.subr.bf16.mxu0 %v4208
        %5651 = vmatpush1.bf16.msra.mxu0 %v4207
        %5652 = vmatprep.subr.bf16.mxu0 %v4204
        %5653 = vmatpush1.bf16.msra.mxu0 %v4203
        %5654 = vmatprep.subr.bf16.mxu0 %v4200
        %5655 = vmatpush1.bf16.msra.mxu0 %v4199
        %5656 = vmatprep.subr.bf16.mxu0 %v4196
        %5657 = vmatpush1.bf16.msra.mxu0 %v4195
        %5658 = vmatprep.subr.bf16.mxu0 %v4192
        %5659 = vmatpush1.bf16.msra.mxu0 %v4191
        %5660 = vmatprep.subr.bf16.mxu0 %v4252
        %5661 = vmatpush2.bf16.msra.mxu0 %v4251
        %5662 = vmatprep.subr.bf16.mxu0 %v4248
        %5663 = vmatpush2.bf16.msra.mxu0 %v4247
        %5664 = vmatprep.subr.bf16.mxu0 %v4244
        %5665 = vmatpush2.bf16.msra.mxu0 %v4243
        %5666 = vmatprep.subr.bf16.mxu0 %v4240
        %5667 = vmatpush2.bf16.msra.mxu0 %v4239
        %5668 = vmatprep.subr.bf16.mxu0 %v4236
        %5669 = vmatpush2.bf16.msra.mxu0 %v4235
        %5670 = vmatprep.subr.bf16.mxu0 %v4232
        %5671 = vmatpush2.bf16.msra.mxu0 %v4231
        %5672 = vmatprep.subr.bf16.mxu0 %v4228
        %5673 = vmatpush2.bf16.msra.mxu0 %v4227
        %5674 = vmatprep.subr.bf16.mxu0 %v4224
        %5675 = vmatpush2.bf16.msra.mxu0 %v4223
        %5676 = vmatprep.mubr.bf16.mxu0 %v1308
        %5677 = vmatmul.mubr.bf16.gmra.mxu0 %v1307
        %v5678 = vpop.f32.mrf.mxu0
        %v5679 = vadd.f32 %v5636, %v5678
        %v5680 = vpop.f32.mrf.mxu0
        %v5681 = vadd.f32 %v5638, %v5680
        %v5682 = vpop.f32.mrf.mxu0
        %v5683 = vadd.f32 %v5640, %v5682
        %v5684 = vpop.f32.mrf.mxu0
        %v5685 = vadd.f32 %v5642, %v5684
        %5686 = vdwg.mxu0
        %5687 = vmatprep.subr.bf16.mxu0 %v4284
        %5688 = vmatpush1.bf16.msra.mxu0 %v4283
        %5689 = vmatprep.subr.bf16.mxu0 %v4280
        %5690 = vmatpush1.bf16.msra.mxu0 %v4279
        %5691 = vmatprep.subr.bf16.mxu0 %v4276
        %5692 = vmatpush1.bf16.msra.mxu0 %v4275
        %5693 = vmatprep.subr.bf16.mxu0 %v4272
        %5694 = vmatpush1.bf16.msra.mxu0 %v4271
        %5695 = vmatprep.subr.bf16.mxu0 %v4268
        %5696 = vmatpush1.bf16.msra.mxu0 %v4267
        %5697 = vmatprep.subr.bf16.mxu0 %v4264
        %5698 = vmatpush1.bf16.msra.mxu0 %v4263
        %5699 = vmatprep.subr.bf16.mxu0 %v4260
        %5700 = vmatpush1.bf16.msra.mxu0 %v4259
        %5701 = vmatprep.subr.bf16.mxu0 %v4256
        %5702 = vmatpush1.bf16.msra.mxu0 %v4255
        %5703 = vmatprep.subr.bf16.mxu0 %v4316
        %5704 = vmatpush2.bf16.msra.mxu0 %v4315
        %5705 = vmatprep.subr.bf16.mxu0 %v4312
        %5706 = vmatpush2.bf16.msra.mxu0 %v4311
        %5707 = vmatprep.subr.bf16.mxu0 %v4308
        %5708 = vmatpush2.bf16.msra.mxu0 %v4307
        %5709 = vmatprep.subr.bf16.mxu0 %v4304
        %5710 = vmatpush2.bf16.msra.mxu0 %v4303
        %5711 = vmatprep.subr.bf16.mxu0 %v4300
        %5712 = vmatpush2.bf16.msra.mxu0 %v4299
        %5713 = vmatprep.subr.bf16.mxu0 %v4296
        %5714 = vmatpush2.bf16.msra.mxu0 %v4295
        %5715 = vmatprep.subr.bf16.mxu0 %v4292
        %5716 = vmatpush2.bf16.msra.mxu0 %v4291
        %5717 = vmatprep.subr.bf16.mxu0 %v4288
        %5718 = vmatpush2.bf16.msra.mxu0 %v4287
        %5719 = vmatprep.mubr.bf16.mxu0 %v1310
        %5720 = vmatmul.mubr.bf16.gmra.mxu0 %v1309
        %v5721 = vpop.f32.mrf.mxu0
        %v5722 = vadd.f32 %v5679, %v5721
        %v5723 = vpop.f32.mrf.mxu0
        %v5724 = vadd.f32 %v5681, %v5723
        %v5725 = vpop.f32.mrf.mxu0
        %v5726 = vadd.f32 %v5683, %v5725
        %v5727 = vpop.f32.mrf.mxu0
        %v5728 = vadd.f32 %v5685, %v5727
        %5729 = vdwg.mxu0
        %5730 = vmatprep.subr.bf16.mxu0 %v4348
        %5731 = vmatpush1.bf16.msra.mxu0 %v4347
        %5732 = vmatprep.subr.bf16.mxu0 %v4344
        %5733 = vmatpush1.bf16.msra.mxu0 %v4343
        %5734 = vmatprep.subr.bf16.mxu0 %v4340
        %5735 = vmatpush1.bf16.msra.mxu0 %v4339
        %5736 = vmatprep.subr.bf16.mxu0 %v4336
        %5737 = vmatpush1.bf16.msra.mxu0 %v4335
        %5738 = vmatprep.subr.bf16.mxu0 %v4332
        %5739 = vmatpush1.bf16.msra.mxu0 %v4331
        %5740 = vmatprep.subr.bf16.mxu0 %v4328
        %5741 = vmatpush1.bf16.msra.mxu0 %v4327
        %5742 = vmatprep.subr.bf16.mxu0 %v4324
        %5743 = vmatpush1.bf16.msra.mxu0 %v4323
        %5744 = vmatprep.subr.bf16.mxu0 %v4320
        %5745 = vmatpush1.bf16.msra.mxu0 %v4319
        %5746 = vmatprep.subr.bf16.mxu0 %v4380
        %5747 = vmatpush2.bf16.msra.mxu0 %v4379
        %5748 = vmatprep.subr.bf16.mxu0 %v4376
        %5749 = vmatpush2.bf16.msra.mxu0 %v4375
        %5750 = vmatprep.subr.bf16.mxu0 %v4372
        %5751 = vmatpush2.bf16.msra.mxu0 %v4371
        %5752 = vmatprep.subr.bf16.mxu0 %v4368
        %5753 = vmatpush2.bf16.msra.mxu0 %v4367
        %5754 = vmatprep.subr.bf16.mxu0 %v4364
        %5755 = vmatpush2.bf16.msra.mxu0 %v4363
        %5756 = vmatprep.subr.bf16.mxu0 %v4360
        %5757 = vmatpush2.bf16.msra.mxu0 %v4359
        %5758 = vmatprep.subr.bf16.mxu0 %v4356
        %5759 = vmatpush2.bf16.msra.mxu0 %v4355
        %5760 = vmatprep.subr.bf16.mxu0 %v4352
        %5761 = vmatpush2.bf16.msra.mxu0 %v4351
        %5762 = vmatprep.mubr.bf16.mxu0 %v1312
        %5763 = vmatmul.mubr.bf16.gmra.mxu0 %v1311
        %v5764 = vpop.f32.mrf.mxu0
        %v5765 = vadd.f32 %v5722, %v5764
        %v5766 = vpop.f32.mrf.mxu0
        %v5767 = vadd.f32 %v5724, %v5766
        %v5768 = vpop.f32.mrf.mxu0
        %v5769 = vadd.f32 %v5726, %v5768
        %v5770 = vpop.f32.mrf.mxu0
        %v5771 = vadd.f32 %v5728, %v5770
        %5772 = vdwg.mxu0
        %5773 = vmatprep.subr.bf16.mxu0 %v4412
        %5774 = vmatpush1.bf16.msra.mxu0 %v4411
        %5775 = vmatprep.subr.bf16.mxu0 %v4408
        %5776 = vmatpush1.bf16.msra.mxu0 %v4407
        %5777 = vmatprep.subr.bf16.mxu0 %v4404
        %5778 = vmatpush1.bf16.msra.mxu0 %v4403
        %5779 = vmatprep.subr.bf16.mxu0 %v4400
        %5780 = vmatpush1.bf16.msra.mxu0 %v4399
        %5781 = vmatprep.subr.bf16.mxu0 %v4396
        %5782 = vmatpush1.bf16.msra.mxu0 %v4395
        %5783 = vmatprep.subr.bf16.mxu0 %v4392
        %5784 = vmatpush1.bf16.msra.mxu0 %v4391
        %5785 = vmatprep.subr.bf16.mxu0 %v4388
        %5786 = vmatpush1.bf16.msra.mxu0 %v4387
        %5787 = vmatprep.subr.bf16.mxu0 %v4384
        %5788 = vmatpush1.bf16.msra.mxu0 %v4383
        %5789 = vmatprep.subr.bf16.mxu0 %v4444
        %5790 = vmatpush2.bf16.msra.mxu0 %v4443
        %5791 = vmatprep.subr.bf16.mxu0 %v4440
        %5792 = vmatpush2.bf16.msra.mxu0 %v4439
        %5793 = vmatprep.subr.bf16.mxu0 %v4436
        %5794 = vmatpush2.bf16.msra.mxu0 %v4435
        %5795 = vmatprep.subr.bf16.mxu0 %v4432
        %5796 = vmatpush2.bf16.msra.mxu0 %v4431
        %5797 = vmatprep.subr.bf16.mxu0 %v4428
        %5798 = vmatpush2.bf16.msra.mxu0 %v4427
        %5799 = vmatprep.subr.bf16.mxu0 %v4424
        %5800 = vmatpush2.bf16.msra.mxu0 %v4423
        %5801 = vmatprep.subr.bf16.mxu0 %v4420
        %5802 = vmatpush2.bf16.msra.mxu0 %v4419
        %5803 = vmatprep.subr.bf16.mxu0 %v4416
        %5804 = vmatpush2.bf16.msra.mxu0 %v4415
        %5805 = vmatprep.mubr.bf16.mxu0 %v1314
        %5806 = vmatmul.mubr.bf16.gmra.mxu0 %v1313
        %v5807 = vpop.f32.mrf.mxu0
        %v5808 = vadd.f32 %v5765, %v5807
        %v5809 = vpop.f32.mrf.mxu0
        %v5810 = vadd.f32 %v5767, %v5809
        %v5811 = vpop.f32.mrf.mxu0
        %v5812 = vadd.f32 %v5769, %v5811
        %v5813 = vpop.f32.mrf.mxu0
        %v5814 = vadd.f32 %v5771, %v5813
        %5815 = vdwg.mxu0
        %5816 = vmatprep.subr.bf16.mxu0 %v4476
        %5817 = vmatpush1.bf16.msra.mxu0 %v4475
        %5818 = vmatprep.subr.bf16.mxu0 %v4472
        %5819 = vmatpush1.bf16.msra.mxu0 %v4471
        %5820 = vmatprep.subr.bf16.mxu0 %v4468
        %5821 = vmatpush1.bf16.msra.mxu0 %v4467
        %5822 = vmatprep.subr.bf16.mxu0 %v4464
        %5823 = vmatpush1.bf16.msra.mxu0 %v4463
        %5824 = vmatprep.subr.bf16.mxu0 %v4460
        %5825 = vmatpush1.bf16.msra.mxu0 %v4459
        %5826 = vmatprep.subr.bf16.mxu0 %v4456
        %5827 = vmatpush1.bf16.msra.mxu0 %v4455
        %5828 = vmatprep.subr.bf16.mxu0 %v4452
        %5829 = vmatpush1.bf16.msra.mxu0 %v4451
        %5830 = vmatprep.subr.bf16.mxu0 %v4448
        %5831 = vmatpush1.bf16.msra.mxu0 %v4447
        %5832 = vmatprep.subr.bf16.mxu0 %v4508
        %5833 = vmatpush2.bf16.msra.mxu0 %v4507
        %5834 = vmatprep.subr.bf16.mxu0 %v4504
        %5835 = vmatpush2.bf16.msra.mxu0 %v4503
        %5836 = vmatprep.subr.bf16.mxu0 %v4500
        %5837 = vmatpush2.bf16.msra.mxu0 %v4499
        %5838 = vmatprep.subr.bf16.mxu0 %v4496
        %5839 = vmatpush2.bf16.msra.mxu0 %v4495
        %5840 = vmatprep.subr.bf16.mxu0 %v4492
        %5841 = vmatpush2.bf16.msra.mxu0 %v4491
        %5842 = vmatprep.subr.bf16.mxu0 %v4488
        %5843 = vmatpush2.bf16.msra.mxu0 %v4487
        %5844 = vmatprep.subr.bf16.mxu0 %v4484
        %5845 = vmatpush2.bf16.msra.mxu0 %v4483
        %5846 = vmatprep.subr.bf16.mxu0 %v4480
        %5847 = vmatpush2.bf16.msra.mxu0 %v4479
        %5848 = vmatprep.mubr.bf16.mxu0 %v1316
        %5849 = vmatmul.mubr.bf16.gmra.mxu0 %v1315
        %v5850 = vpop.f32.mrf.mxu0
        %v5851 = vadd.f32 %v5808, %v5850
        %v5852 = vpop.f32.mrf.mxu0
        %v5853 = vadd.f32 %v5810, %v5852
        %v5854 = vpop.f32.mrf.mxu0
        %v5855 = vadd.f32 %v5812, %v5854
        %v5856 = vpop.f32.mrf.mxu0
        %v5857 = vadd.f32 %v5814, %v5856
        %5858 = vdwg.mxu0
        %5859 = vmatprep.subr.bf16.mxu0 %v4540
        %5860 = vmatpush1.bf16.msra.mxu0 %v4539
        %5861 = vmatprep.subr.bf16.mxu0 %v4536
        %5862 = vmatpush1.bf16.msra.mxu0 %v4535
        %5863 = vmatprep.subr.bf16.mxu0 %v4532
        %5864 = vmatpush1.bf16.msra.mxu0 %v4531
        %5865 = vmatprep.subr.bf16.mxu0 %v4528
        %5866 = vmatpush1.bf16.msra.mxu0 %v4527
        %5867 = vmatprep.subr.bf16.mxu0 %v4524
        %5868 = vmatpush1.bf16.msra.mxu0 %v4523
        %5869 = vmatprep.subr.bf16.mxu0 %v4520
        %5870 = vmatpush1.bf16.msra.mxu0 %v4519
        %5871 = vmatprep.subr.bf16.mxu0 %v4516
        %5872 = vmatpush1.bf16.msra.mxu0 %v4515
        %5873 = vmatprep.subr.bf16.mxu0 %v4512
        %5874 = vmatpush1.bf16.msra.mxu0 %v4511
        %5875 = vmatprep.subr.bf16.mxu0 0
        %5876 = vmatpush2.bf16.msra.mxu0 0
        %5877 = vmatprep.subr.bf16.mxu0 0
        %5878 = vmatpush2.bf16.msra.mxu0 0
        %5879 = vmatprep.subr.bf16.mxu0 0
        %5880 = vmatpush2.bf16.msra.mxu0 0
        %5881 = vmatprep.subr.bf16.mxu0 0
        %5882 = vmatpush2.bf16.msra.mxu0 0
        %5883 = vmatprep.subr.bf16.mxu0 0
        %5884 = vmatpush2.bf16.msra.mxu0 0
        %5885 = vmatprep.subr.bf16.mxu0 0
        %5886 = vmatpush2.bf16.msra.mxu0 0
        %5887 = vmatprep.subr.bf16.mxu0 0
        %5888 = vmatpush2.bf16.msra.mxu0 0
        %5889 = vmatprep.subr.bf16.mxu0 0
        %5890 = vmatpush2.bf16.msra.mxu0 0
        %5891 = vmatprep.mubr.bf16.mxu0 0
        %5892 = vmatmul.mubr.bf16.gmra.mxu0 %v1317
        %v5893 = vpop.f32.mrf.mxu0
        %v5894 = vadd.f32 %v5851, %v5893
        %v5895 = vpop.f32.mrf.mxu0
        %v5896 = vadd.f32 %v5853, %v5895
        %v5897 = vpop.f32.mrf.mxu0
        %v5898 = vadd.f32 %v5855, %v5897
        %v5899 = vpop.f32.mrf.mxu0
        %v5900 = vadd.f32 %v5857, %v5899
        %5901 = vdwg.mxu0
        %5902 = vmatprep.subr.bf16.mxu0 %v3774
        %5903 = vmatpush1.bf16.msra.mxu0 %v3773
        %5904 = vmatprep.subr.bf16.mxu0 %v3770
        %5905 = vmatpush1.bf16.msra.mxu0 %v3769
        %5906 = vmatprep.subr.bf16.mxu0 %v3766
        %5907 = vmatpush1.bf16.msra.mxu0 %v3765
        %5908 = vmatprep.subr.bf16.mxu0 %v3762
        %5909 = vmatpush1.bf16.msra.mxu0 %v3761
        %5910 = vmatprep.subr.bf16.mxu0 %v3758
        %5911 = vmatpush1.bf16.msra.mxu0 %v3757
        %5912 = vmatprep.subr.bf16.mxu0 %v3754
        %5913 = vmatpush1.bf16.msra.mxu0 %v3753
        %5914 = vmatprep.subr.bf16.mxu0 %v3750
        %5915 = vmatpush1.bf16.msra.mxu0 %v3749
        %5916 = vmatprep.subr.bf16.mxu0 %v3746
        %5917 = vmatpush1.bf16.msra.mxu0 %v3745
        %5918 = vmatprep.subr.bf16.mxu0 %v3806
        %5919 = vmatpush2.bf16.msra.mxu0 %v3805
        %5920 = vmatprep.subr.bf16.mxu0 %v3802
        %5921 = vmatpush2.bf16.msra.mxu0 %v3801
        %5922 = vmatprep.subr.bf16.mxu0 %v3798
        %5923 = vmatpush2.bf16.msra.mxu0 %v3797
        %5924 = vmatprep.subr.bf16.mxu0 %v3794
        %5925 = vmatpush2.bf16.msra.mxu0 %v3793
        %5926 = vmatprep.subr.bf16.mxu0 %v3790
        %5927 = vmatpush2.bf16.msra.mxu0 %v3789
        %5928 = vmatprep.subr.bf16.mxu0 %v3786
        %5929 = vmatpush2.bf16.msra.mxu0 %v3785
        %5930 = vmatprep.subr.bf16.mxu0 %v3782
        %5931 = vmatpush2.bf16.msra.mxu0 %v3781
        %5932 = vmatprep.subr.bf16.mxu0 %v3778
        %5933 = vmatpush2.bf16.msra.mxu0 %v3777
        %5934 = vmatprep.mubr.bf16.mxu0 %v1294
        %5935 = vmatmul.mubr.bf16.gmra.mxu0 %v1293
        %v5936 = vpop.f32.mrf.mxu0
        %v5937 = vadd.f32 0.0, %v5936
        %v5938 = vpop.f32.mrf.mxu0
        %v5939 = vadd.f32 0.0, %v5938
        %v5940 = vpop.f32.mrf.mxu0
        %v5941 = vadd.f32 0.0, %v5940
        %v5942 = vpop.f32.mrf.mxu0
        %v5943 = vadd.f32 0.0, %v5942
        %5944 = vdwg.mxu0
        %5945 = vmatprep.subr.bf16.mxu0 %v3838
        %5946 = vmatpush1.bf16.msra.mxu0 %v3837
        %5947 = vmatprep.subr.bf16.mxu0 %v3834
        %5948 = vmatpush1.bf16.msra.mxu0 %v3833
        %5949 = vmatprep.subr.bf16.mxu0 %v3830
        %5950 = vmatpush1.bf16.msra.mxu0 %v3829
        %5951 = vmatprep.subr.bf16.mxu0 %v3826
        %5952 = vmatpush1.bf16.msra.mxu0 %v3825
        %5953 = vmatprep.subr.bf16.mxu0 %v3822
        %5954 = vmatpush1.bf16.msra.mxu0 %v3821
        %5955 = vmatprep.subr.bf16.mxu0 %v3818
        %5956 = vmatpush1.bf16.msra.mxu0 %v3817
        %5957 = vmatprep.subr.bf16.mxu0 %v3814
        %5958 = vmatpush1.bf16.msra.mxu0 %v3813
        %5959 = vmatprep.subr.bf16.mxu0 %v3810
        %5960 = vmatpush1.bf16.msra.mxu0 %v3809
        %5961 = vmatprep.subr.bf16.mxu0 %v3870
        %5962 = vmatpush2.bf16.msra.mxu0 %v3869
        %5963 = vmatprep.subr.bf16.mxu0 %v3866
        %5964 = vmatpush2.bf16.msra.mxu0 %v3865
        %5965 = vmatprep.subr.bf16.mxu0 %v3862
        %5966 = vmatpush2.bf16.msra.mxu0 %v3861
        %5967 = vmatprep.subr.bf16.mxu0 %v3858
        %5968 = vmatpush2.bf16.msra.mxu0 %v3857
        %5969 = vmatprep.subr.bf16.mxu0 %v3854
        %5970 = vmatpush2.bf16.msra.mxu0 %v3853
        %5971 = vmatprep.subr.bf16.mxu0 %v3850
        %5972 = vmatpush2.bf16.msra.mxu0 %v3849
        %5973 = vmatprep.subr.bf16.mxu0 %v3846
        %5974 = vmatpush2.bf16.msra.mxu0 %v3845
        %5975 = vmatprep.subr.bf16.mxu0 %v3842
        %5976 = vmatpush2.bf16.msra.mxu0 %v3841
        %5977 = vmatprep.mubr.bf16.mxu0 %v1296
        %5978 = vmatmul.mubr.bf16.gmra.mxu0 %v1295
        %v5979 = vpop.f32.mrf.mxu0
        %v5980 = vadd.f32 %v5937, %v5979
        %v5981 = vpop.f32.mrf.mxu0
        %v5982 = vadd.f32 %v5939, %v5981
        %v5983 = vpop.f32.mrf.mxu0
        %v5984 = vadd.f32 %v5941, %v5983
        %v5985 = vpop.f32.mrf.mxu0
        %v5986 = vadd.f32 %v5943, %v5985
        %5987 = vdwg.mxu0
        %5988 = vmatprep.subr.bf16.mxu0 %v3902
        %5989 = vmatpush1.bf16.msra.mxu0 %v3901
        %5990 = vmatprep.subr.bf16.mxu0 %v3898
        %5991 = vmatpush1.bf16.msra.mxu0 %v3897
        %5992 = vmatprep.subr.bf16.mxu0 %v3894
        %5993 = vmatpush1.bf16.msra.mxu0 %v3893
        %5994 = vmatprep.subr.bf16.mxu0 %v3890
        %5995 = vmatpush1.bf16.msra.mxu0 %v3889
        %5996 = vmatprep.subr.bf16.mxu0 %v3886
        %5997 = vmatpush1.bf16.msra.mxu0 %v3885
        %5998 = vmatprep.subr.bf16.mxu0 %v3882
        %5999 = vmatpush1.bf16.msra.mxu0 %v3881
        %6000 = vmatprep.subr.bf16.mxu0 %v3878
        %6001 = vmatpush1.bf16.msra.mxu0 %v3877
        %6002 = vmatprep.subr.bf16.mxu0 %v3874
        %6003 = vmatpush1.bf16.msra.mxu0 %v3873
        %6004 = vmatprep.subr.bf16.mxu0 %v3934
        %6005 = vmatpush2.bf16.msra.mxu0 %v3933
        %6006 = vmatprep.subr.bf16.mxu0 %v3930
        %6007 = vmatpush2.bf16.msra.mxu0 %v3929
        %6008 = vmatprep.subr.bf16.mxu0 %v3926
        %6009 = vmatpush2.bf16.msra.mxu0 %v3925
        %6010 = vmatprep.subr.bf16.mxu0 %v3922
        %6011 = vmatpush2.bf16.msra.mxu0 %v3921
        %6012 = vmatprep.subr.bf16.mxu0 %v3918
        %6013 = vmatpush2.bf16.msra.mxu0 %v3917
        %6014 = vmatprep.subr.bf16.mxu0 %v3914
        %6015 = vmatpush2.bf16.msra.mxu0 %v3913
        %6016 = vmatprep.subr.bf16.mxu0 %v3910
        %6017 = vmatpush2.bf16.msra.mxu0 %v3909
        %6018 = vmatprep.subr.bf16.mxu0 %v3906
        %6019 = vmatpush2.bf16.msra.mxu0 %v3905
        %6020 = vmatprep.mubr.bf16.mxu0 %v1298
        %6021 = vmatmul.mubr.bf16.gmra.mxu0 %v1297
        %v6022 = vpop.f32.mrf.mxu0
        %v6023 = vadd.f32 %v5980, %v6022
        %v6024 = vpop.f32.mrf.mxu0
        %v6025 = vadd.f32 %v5982, %v6024
        %v6026 = vpop.f32.mrf.mxu0
        %v6027 = vadd.f32 %v5984, %v6026
        %v6028 = vpop.f32.mrf.mxu0
        %v6029 = vadd.f32 %v5986, %v6028
        %6030 = vdwg.mxu0
        %6031 = vmatprep.subr.bf16.mxu0 %v3966
        %6032 = vmatpush1.bf16.msra.mxu0 %v3965
        %6033 = vmatprep.subr.bf16.mxu0 %v3962
        %6034 = vmatpush1.bf16.msra.mxu0 %v3961
        %6035 = vmatprep.subr.bf16.mxu0 %v3958
        %6036 = vmatpush1.bf16.msra.mxu0 %v3957
        %6037 = vmatprep.subr.bf16.mxu0 %v3954
        %6038 = vmatpush1.bf16.msra.mxu0 %v3953
        %6039 = vmatprep.subr.bf16.mxu0 %v3950
        %6040 = vmatpush1.bf16.msra.mxu0 %v3949
        %6041 = vmatprep.subr.bf16.mxu0 %v3946
        %6042 = vmatpush1.bf16.msra.mxu0 %v3945
        %6043 = vmatprep.subr.bf16.mxu0 %v3942
        %6044 = vmatpush1.bf16.msra.mxu0 %v3941
        %6045 = vmatprep.subr.bf16.mxu0 %v3938
        %6046 = vmatpush1.bf16.msra.mxu0 %v3937
        %6047 = vmatprep.subr.bf16.mxu0 %v3998
        %6048 = vmatpush2.bf16.msra.mxu0 %v3997
        %6049 = vmatprep.subr.bf16.mxu0 %v3994
        %6050 = vmatpush2.bf16.msra.mxu0 %v3993
        %6051 = vmatprep.subr.bf16.mxu0 %v3990
        %6052 = vmatpush2.bf16.msra.mxu0 %v3989
        %6053 = vmatprep.subr.bf16.mxu0 %v3986
        %6054 = vmatpush2.bf16.msra.mxu0 %v3985
        %6055 = vmatprep.subr.bf16.mxu0 %v3982
        %6056 = vmatpush2.bf16.msra.mxu0 %v3981
        %6057 = vmatprep.subr.bf16.mxu0 %v3978
        %6058 = vmatpush2.bf16.msra.mxu0 %v3977
        %6059 = vmatprep.subr.bf16.mxu0 %v3974
        %6060 = vmatpush2.bf16.msra.mxu0 %v3973
        %6061 = vmatprep.subr.bf16.mxu0 %v3970
        %6062 = vmatpush2.bf16.msra.mxu0 %v3969
        %6063 = vmatprep.mubr.bf16.mxu0 %v1300
        %6064 = vmatmul.mubr.bf16.gmra.mxu0 %v1299
        %v6065 = vpop.f32.mrf.mxu0
        %v6066 = vadd.f32 %v6023, %v6065
        %v6067 = vpop.f32.mrf.mxu0
        %v6068 = vadd.f32 %v6025, %v6067
        %v6069 = vpop.f32.mrf.mxu0
        %v6070 = vadd.f32 %v6027, %v6069
        %v6071 = vpop.f32.mrf.mxu0
        %v6072 = vadd.f32 %v6029, %v6071
        %6073 = vdwg.mxu0
        %6074 = vmatprep.subr.bf16.mxu0 %v4030
        %6075 = vmatpush1.bf16.msra.mxu0 %v4029
        %6076 = vmatprep.subr.bf16.mxu0 %v4026
        %6077 = vmatpush1.bf16.msra.mxu0 %v4025
        %6078 = vmatprep.subr.bf16.mxu0 %v4022
        %6079 = vmatpush1.bf16.msra.mxu0 %v4021
        %6080 = vmatprep.subr.bf16.mxu0 %v4018
        %6081 = vmatpush1.bf16.msra.mxu0 %v4017
        %6082 = vmatprep.subr.bf16.mxu0 %v4014
        %6083 = vmatpush1.bf16.msra.mxu0 %v4013
        %6084 = vmatprep.subr.bf16.mxu0 %v4010
        %6085 = vmatpush1.bf16.msra.mxu0 %v4009
        %6086 = vmatprep.subr.bf16.mxu0 %v4006
        %6087 = vmatpush1.bf16.msra.mxu0 %v4005
        %6088 = vmatprep.subr.bf16.mxu0 %v4002
        %6089 = vmatpush1.bf16.msra.mxu0 %v4001
        %6090 = vmatprep.subr.bf16.mxu0 %v4062
        %6091 = vmatpush2.bf16.msra.mxu0 %v4061
        %6092 = vmatprep.subr.bf16.mxu0 %v4058
        %6093 = vmatpush2.bf16.msra.mxu0 %v4057
        %6094 = vmatprep.subr.bf16.mxu0 %v4054
        %6095 = vmatpush2.bf16.msra.mxu0 %v4053
        %6096 = vmatprep.subr.bf16.mxu0 %v4050
        %6097 = vmatpush2.bf16.msra.mxu0 %v4049
        %6098 = vmatprep.subr.bf16.mxu0 %v4046
        %6099 = vmatpush2.bf16.msra.mxu0 %v4045
        %6100 = vmatprep.subr.bf16.mxu0 %v4042
        %6101 = vmatpush2.bf16.msra.mxu0 %v4041
        %6102 = vmatprep.subr.bf16.mxu0 %v4038
        %6103 = vmatpush2.bf16.msra.mxu0 %v4037
        %6104 = vmatprep.subr.bf16.mxu0 %v4034
        %6105 = vmatpush2.bf16.msra.mxu0 %v4033
        %6106 = vmatprep.mubr.bf16.mxu0 %v1302
        %6107 = vmatmul.mubr.bf16.gmra.mxu0 %v1301
        %v6108 = vpop.f32.mrf.mxu0
        %v6109 = vadd.f32 %v6066, %v6108
        %v6110 = vpop.f32.mrf.mxu0
        %v6111 = vadd.f32 %v6068, %v6110
        %v6112 = vpop.f32.mrf.mxu0
        %v6113 = vadd.f32 %v6070, %v6112
        %v6114 = vpop.f32.mrf.mxu0
        %v6115 = vadd.f32 %v6072, %v6114
        %6116 = vdwg.mxu0
        %6117 = vmatprep.subr.bf16.mxu0 %v4094
        %6118 = vmatpush1.bf16.msra.mxu0 %v4093
        %6119 = vmatprep.subr.bf16.mxu0 %v4090
        %6120 = vmatpush1.bf16.msra.mxu0 %v4089
        %6121 = vmatprep.subr.bf16.mxu0 %v4086
        %6122 = vmatpush1.bf16.msra.mxu0 %v4085
        %6123 = vmatprep.subr.bf16.mxu0 %v4082
        %6124 = vmatpush1.bf16.msra.mxu0 %v4081
        %6125 = vmatprep.subr.bf16.mxu0 %v4078
        %6126 = vmatpush1.bf16.msra.mxu0 %v4077
        %6127 = vmatprep.subr.bf16.mxu0 %v4074
        %6128 = vmatpush1.bf16.msra.mxu0 %v4073
        %6129 = vmatprep.subr.bf16.mxu0 %v4070
        %6130 = vmatpush1.bf16.msra.mxu0 %v4069
        %6131 = vmatprep.subr.bf16.mxu0 %v4066
        %6132 = vmatpush1.bf16.msra.mxu0 %v4065
        %6133 = vmatprep.subr.bf16.mxu0 %v4126
        %6134 = vmatpush2.bf16.msra.mxu0 %v4125
        %6135 = vmatprep.subr.bf16.mxu0 %v4122
        %6136 = vmatpush2.bf16.msra.mxu0 %v4121
        %6137 = vmatprep.subr.bf16.mxu0 %v4118
        %6138 = vmatpush2.bf16.msra.mxu0 %v4117
        %6139 = vmatprep.subr.bf16.mxu0 %v4114
        %6140 = vmatpush2.bf16.msra.mxu0 %v4113
        %6141 = vmatprep.subr.bf16.mxu0 %v4110
        %6142 = vmatpush2.bf16.msra.mxu0 %v4109
        %6143 = vmatprep.subr.bf16.mxu0 %v4106
        %6144 = vmatpush2.bf16.msra.mxu0 %v4105
        %6145 = vmatprep.subr.bf16.mxu0 %v4102
        %6146 = vmatpush2.bf16.msra.mxu0 %v4101
        %6147 = vmatprep.subr.bf16.mxu0 %v4098
        %6148 = vmatpush2.bf16.msra.mxu0 %v4097
        %6149 = vmatprep.mubr.bf16.mxu0 %v1304
        %6150 = vmatmul.mubr.bf16.gmra.mxu0 %v1303
        %v6151 = vpop.f32.mrf.mxu0
        %v6152 = vadd.f32 %v6109, %v6151
        %v6153 = vpop.f32.mrf.mxu0
        %v6154 = vadd.f32 %v6111, %v6153
        %v6155 = vpop.f32.mrf.mxu0
        %v6156 = vadd.f32 %v6113, %v6155
        %v6157 = vpop.f32.mrf.mxu0
        %v6158 = vadd.f32 %v6115, %v6157
        %6159 = vdwg.mxu0
        %6160 = vmatprep.subr.bf16.mxu0 %v4158
        %6161 = vmatpush1.bf16.msra.mxu0 %v4157
        %6162 = vmatprep.subr.bf16.mxu0 %v4154
        %6163 = vmatpush1.bf16.msra.mxu0 %v4153
        %6164 = vmatprep.subr.bf16.mxu0 %v4150
        %6165 = vmatpush1.bf16.msra.mxu0 %v4149
        %6166 = vmatprep.subr.bf16.mxu0 %v4146
        %6167 = vmatpush1.bf16.msra.mxu0 %v4145
        %6168 = vmatprep.subr.bf16.mxu0 %v4142
        %6169 = vmatpush1.bf16.msra.mxu0 %v4141
        %6170 = vmatprep.subr.bf16.mxu0 %v4138
        %6171 = vmatpush1.bf16.msra.mxu0 %v4137
        %6172 = vmatprep.subr.bf16.mxu0 %v4134
        %6173 = vmatpush1.bf16.msra.mxu0 %v4133
        %6174 = vmatprep.subr.bf16.mxu0 %v4130
        %6175 = vmatpush1.bf16.msra.mxu0 %v4129
        %6176 = vmatprep.subr.bf16.mxu0 %v4190
        %6177 = vmatpush2.bf16.msra.mxu0 %v4189
        %6178 = vmatprep.subr.bf16.mxu0 %v4186
        %6179 = vmatpush2.bf16.msra.mxu0 %v4185
        %6180 = vmatprep.subr.bf16.mxu0 %v4182
        %6181 = vmatpush2.bf16.msra.mxu0 %v4181
        %6182 = vmatprep.subr.bf16.mxu0 %v4178
        %6183 = vmatpush2.bf16.msra.mxu0 %v4177
        %6184 = vmatprep.subr.bf16.mxu0 %v4174
        %6185 = vmatpush2.bf16.msra.mxu0 %v4173
        %6186 = vmatprep.subr.bf16.mxu0 %v4170
        %6187 = vmatpush2.bf16.msra.mxu0 %v4169
        %6188 = vmatprep.subr.bf16.mxu0 %v4166
        %6189 = vmatpush2.bf16.msra.mxu0 %v4165
        %6190 = vmatprep.subr.bf16.mxu0 %v4162
        %6191 = vmatpush2.bf16.msra.mxu0 %v4161
        %6192 = vmatprep.mubr.bf16.mxu0 %v1306
        %6193 = vmatmul.mubr.bf16.gmra.mxu0 %v1305
        %v6194 = vpop.f32.mrf.mxu0
        %v6195 = vadd.f32 %v6152, %v6194
        %v6196 = vpop.f32.mrf.mxu0
        %v6197 = vadd.f32 %v6154, %v6196
        %v6198 = vpop.f32.mrf.mxu0
        %v6199 = vadd.f32 %v6156, %v6198
        %v6200 = vpop.f32.mrf.mxu0
        %v6201 = vadd.f32 %v6158, %v6200
        %6202 = vdwg.mxu0
        %6203 = vmatprep.subr.bf16.mxu0 %v4222
        %6204 = vmatpush1.bf16.msra.mxu0 %v4221
        %6205 = vmatprep.subr.bf16.mxu0 %v4218
        %6206 = vmatpush1.bf16.msra.mxu0 %v4217
        %6207 = vmatprep.subr.bf16.mxu0 %v4214
        %6208 = vmatpush1.bf16.msra.mxu0 %v4213
        %6209 = vmatprep.subr.bf16.mxu0 %v4210
        %6210 = vmatpush1.bf16.msra.mxu0 %v4209
        %6211 = vmatprep.subr.bf16.mxu0 %v4206
        %6212 = vmatpush1.bf16.msra.mxu0 %v4205
        %6213 = vmatprep.subr.bf16.mxu0 %v4202
        %6214 = vmatpush1.bf16.msra.mxu0 %v4201
        %6215 = vmatprep.subr.bf16.mxu0 %v4198
        %6216 = vmatpush1.bf16.msra.mxu0 %v4197
        %6217 = vmatprep.subr.bf16.mxu0 %v4194
        %6218 = vmatpush1.bf16.msra.mxu0 %v4193
        %6219 = vmatprep.subr.bf16.mxu0 %v4254
        %6220 = vmatpush2.bf16.msra.mxu0 %v4253
        %6221 = vmatprep.subr.bf16.mxu0 %v4250
        %6222 = vmatpush2.bf16.msra.mxu0 %v4249
        %6223 = vmatprep.subr.bf16.mxu0 %v4246
        %6224 = vmatpush2.bf16.msra.mxu0 %v4245
        %6225 = vmatprep.subr.bf16.mxu0 %v4242
        %6226 = vmatpush2.bf16.msra.mxu0 %v4241
        %6227 = vmatprep.subr.bf16.mxu0 %v4238
        %6228 = vmatpush2.bf16.msra.mxu0 %v4237
        %6229 = vmatprep.subr.bf16.mxu0 %v4234
        %6230 = vmatpush2.bf16.msra.mxu0 %v4233
        %6231 = vmatprep.subr.bf16.mxu0 %v4230
        %6232 = vmatpush2.bf16.msra.mxu0 %v4229
        %6233 = vmatprep.subr.bf16.mxu0 %v4226
        %6234 = vmatpush2.bf16.msra.mxu0 %v4225
        %6235 = vmatprep.mubr.bf16.mxu0 %v1308
        %6236 = vmatmul.mubr.bf16.gmra.mxu0 %v1307
        %v6237 = vpop.f32.mrf.mxu0
        %v6238 = vadd.f32 %v6195, %v6237
        %v6239 = vpop.f32.mrf.mxu0
        %v6240 = vadd.f32 %v6197, %v6239
        %v6241 = vpop.f32.mrf.mxu0
        %v6242 = vadd.f32 %v6199, %v6241
        %v6243 = vpop.f32.mrf.mxu0
        %v6244 = vadd.f32 %v6201, %v6243
        %6245 = vdwg.mxu0
        %6246 = vmatprep.subr.bf16.mxu0 %v4286
        %6247 = vmatpush1.bf16.msra.mxu0 %v4285
        %6248 = vmatprep.subr.bf16.mxu0 %v4282
        %6249 = vmatpush1.bf16.msra.mxu0 %v4281
        %6250 = vmatprep.subr.bf16.mxu0 %v4278
        %6251 = vmatpush1.bf16.msra.mxu0 %v4277
        %6252 = vmatprep.subr.bf16.mxu0 %v4274
        %6253 = vmatpush1.bf16.msra.mxu0 %v4273
        %6254 = vmatprep.subr.bf16.mxu0 %v4270
        %6255 = vmatpush1.bf16.msra.mxu0 %v4269
        %6256 = vmatprep.subr.bf16.mxu0 %v4266
        %6257 = vmatpush1.bf16.msra.mxu0 %v4265
        %6258 = vmatprep.subr.bf16.mxu0 %v4262
        %6259 = vmatpush1.bf16.msra.mxu0 %v4261
        %6260 = vmatprep.subr.bf16.mxu0 %v4258
        %6261 = vmatpush1.bf16.msra.mxu0 %v4257
        %6262 = vmatprep.subr.bf16.mxu0 %v4318
        %6263 = vmatpush2.bf16.msra.mxu0 %v4317
        %6264 = vmatprep.subr.bf16.mxu0 %v4314
        %6265 = vmatpush2.bf16.msra.mxu0 %v4313
        %6266 = vmatprep.subr.bf16.mxu0 %v4310
        %6267 = vmatpush2.bf16.msra.mxu0 %v4309
        %6268 = vmatprep.subr.bf16.mxu0 %v4306
        %6269 = vmatpush2.bf16.msra.mxu0 %v4305
        %6270 = vmatprep.subr.bf16.mxu0 %v4302
        %6271 = vmatpush2.bf16.msra.mxu0 %v4301
        %6272 = vmatprep.subr.bf16.mxu0 %v4298
        %6273 = vmatpush2.bf16.msra.mxu0 %v4297
        %6274 = vmatprep.subr.bf16.mxu0 %v4294
        %6275 = vmatpush2.bf16.msra.mxu0 %v4293
        %6276 = vmatprep.subr.bf16.mxu0 %v4290
        %6277 = vmatpush2.bf16.msra.mxu0 %v4289
        %6278 = vmatprep.mubr.bf16.mxu0 %v1310
        %6279 = vmatmul.mubr.bf16.gmra.mxu0 %v1309
        %v6280 = vpop.f32.mrf.mxu0
        %v6281 = vadd.f32 %v6238, %v6280
        %v6282 = vpop.f32.mrf.mxu0
        %v6283 = vadd.f32 %v6240, %v6282
        %v6284 = vpop.f32.mrf.mxu0
        %v6285 = vadd.f32 %v6242, %v6284
        %v6286 = vpop.f32.mrf.mxu0
        %v6287 = vadd.f32 %v6244, %v6286
        %6288 = vdwg.mxu0
        %6289 = vmatprep.subr.bf16.mxu0 %v4350
        %6290 = vmatpush1.bf16.msra.mxu0 %v4349
        %6291 = vmatprep.subr.bf16.mxu0 %v4346
        %6292 = vmatpush1.bf16.msra.mxu0 %v4345
        %6293 = vmatprep.subr.bf16.mxu0 %v4342
        %6294 = vmatpush1.bf16.msra.mxu0 %v4341
        %6295 = vmatprep.subr.bf16.mxu0 %v4338
        %6296 = vmatpush1.bf16.msra.mxu0 %v4337
        %6297 = vmatprep.subr.bf16.mxu0 %v4334
        %6298 = vmatpush1.bf16.msra.mxu0 %v4333
        %6299 = vmatprep.subr.bf16.mxu0 %v4330
        %6300 = vmatpush1.bf16.msra.mxu0 %v4329
        %6301 = vmatprep.subr.bf16.mxu0 %v4326
        %6302 = vmatpush1.bf16.msra.mxu0 %v4325
        %6303 = vmatprep.subr.bf16.mxu0 %v4322
        %6304 = vmatpush1.bf16.msra.mxu0 %v4321
        %6305 = vmatprep.subr.bf16.mxu0 %v4382
        %6306 = vmatpush2.bf16.msra.mxu0 %v4381
        %6307 = vmatprep.subr.bf16.mxu0 %v4378
        %6308 = vmatpush2.bf16.msra.mxu0 %v4377
        %6309 = vmatprep.subr.bf16.mxu0 %v4374
        %6310 = vmatpush2.bf16.msra.mxu0 %v4373
        %6311 = vmatprep.subr.bf16.mxu0 %v4370
        %6312 = vmatpush2.bf16.msra.mxu0 %v4369
        %6313 = vmatprep.subr.bf16.mxu0 %v4366
        %6314 = vmatpush2.bf16.msra.mxu0 %v4365
        %6315 = vmatprep.subr.bf16.mxu0 %v4362
        %6316 = vmatpush2.bf16.msra.mxu0 %v4361
        %6317 = vmatprep.subr.bf16.mxu0 %v4358
        %6318 = vmatpush2.bf16.msra.mxu0 %v4357
        %6319 = vmatprep.subr.bf16.mxu0 %v4354
        %6320 = vmatpush2.bf16.msra.mxu0 %v4353
        %6321 = vmatprep.mubr.bf16.mxu0 %v1312
        %6322 = vmatmul.mubr.bf16.gmra.mxu0 %v1311
        %v6323 = vpop.f32.mrf.mxu0
        %v6324 = vadd.f32 %v6281, %v6323
        %v6325 = vpop.f32.mrf.mxu0
        %v6326 = vadd.f32 %v6283, %v6325
        %v6327 = vpop.f32.mrf.mxu0
        %v6328 = vadd.f32 %v6285, %v6327
        %v6329 = vpop.f32.mrf.mxu0
        %v6330 = vadd.f32 %v6287, %v6329
        %6331 = vdwg.mxu0
        %6332 = vmatprep.subr.bf16.mxu0 %v4414
        %6333 = vmatpush1.bf16.msra.mxu0 %v4413
        %6334 = vmatprep.subr.bf16.mxu0 %v4410
        %6335 = vmatpush1.bf16.msra.mxu0 %v4409
        %6336 = vmatprep.subr.bf16.mxu0 %v4406
        %6337 = vmatpush1.bf16.msra.mxu0 %v4405
        %6338 = vmatprep.subr.bf16.mxu0 %v4402
        %6339 = vmatpush1.bf16.msra.mxu0 %v4401
        %6340 = vmatprep.subr.bf16.mxu0 %v4398
        %6341 = vmatpush1.bf16.msra.mxu0 %v4397
        %6342 = vmatprep.subr.bf16.mxu0 %v4394
        %6343 = vmatpush1.bf16.msra.mxu0 %v4393
        %6344 = vmatprep.subr.bf16.mxu0 %v4390
        %6345 = vmatpush1.bf16.msra.mxu0 %v4389
        %6346 = vmatprep.subr.bf16.mxu0 %v4386
        %6347 = vmatpush1.bf16.msra.mxu0 %v4385
        %6348 = vmatprep.subr.bf16.mxu0 %v4446
        %6349 = vmatpush2.bf16.msra.mxu0 %v4445
        %6350 = vmatprep.subr.bf16.mxu0 %v4442
        %6351 = vmatpush2.bf16.msra.mxu0 %v4441
        %6352 = vmatprep.subr.bf16.mxu0 %v4438
        %6353 = vmatpush2.bf16.msra.mxu0 %v4437
        %6354 = vmatprep.subr.bf16.mxu0 %v4434
        %6355 = vmatpush2.bf16.msra.mxu0 %v4433
        %6356 = vmatprep.subr.bf16.mxu0 %v4430
        %6357 = vmatpush2.bf16.msra.mxu0 %v4429
        %6358 = vmatprep.subr.bf16.mxu0 %v4426
        %6359 = vmatpush2.bf16.msra.mxu0 %v4425
        %6360 = vmatprep.subr.bf16.mxu0 %v4422
        %6361 = vmatpush2.bf16.msra.mxu0 %v4421
        %6362 = vmatprep.subr.bf16.mxu0 %v4418
        %6363 = vmatpush2.bf16.msra.mxu0 %v4417
        %6364 = vmatprep.mubr.bf16.mxu0 %v1314
        %6365 = vmatmul.mubr.bf16.gmra.mxu0 %v1313
        %v6366 = vpop.f32.mrf.mxu0
        %v6367 = vadd.f32 %v6324, %v6366
        %v6368 = vpop.f32.mrf.mxu0
        %v6369 = vadd.f32 %v6326, %v6368
        %v6370 = vpop.f32.mrf.mxu0
        %v6371 = vadd.f32 %v6328, %v6370
        %v6372 = vpop.f32.mrf.mxu0
        %v6373 = vadd.f32 %v6330, %v6372
        %6374 = vdwg.mxu0
        %6375 = vmatprep.subr.bf16.mxu0 %v4478
        %6376 = vmatpush1.bf16.msra.mxu0 %v4477
        %6377 = vmatprep.subr.bf16.mxu0 %v4474
        %6378 = vmatpush1.bf16.msra.mxu0 %v4473
        %6379 = vmatprep.subr.bf16.mxu0 %v4470
        %6380 = vmatpush1.bf16.msra.mxu0 %v4469
        %6381 = vmatprep.subr.bf16.mxu0 %v4466
        %6382 = vmatpush1.bf16.msra.mxu0 %v4465
        %6383 = vmatprep.subr.bf16.mxu0 %v4462
        %6384 = vmatpush1.bf16.msra.mxu0 %v4461
        %6385 = vmatprep.subr.bf16.mxu0 %v4458
        %6386 = vmatpush1.bf16.msra.mxu0 %v4457
        %6387 = vmatprep.subr.bf16.mxu0 %v4454
        %6388 = vmatpush1.bf16.msra.mxu0 %v4453
        %6389 = vmatprep.subr.bf16.mxu0 %v4450
        %6390 = vmatpush1.bf16.msra.mxu0 %v4449
        %6391 = vmatprep.subr.bf16.mxu0 %v4510
        %6392 = vmatpush2.bf16.msra.mxu0 %v4509
        %6393 = vmatprep.subr.bf16.mxu0 %v4506
        %6394 = vmatpush2.bf16.msra.mxu0 %v4505
        %6395 = vmatprep.subr.bf16.mxu0 %v4502
        %6396 = vmatpush2.bf16.msra.mxu0 %v4501
        %6397 = vmatprep.subr.bf16.mxu0 %v4498
        %6398 = vmatpush2.bf16.msra.mxu0 %v4497
        %6399 = vmatprep.subr.bf16.mxu0 %v4494
        %6400 = vmatpush2.bf16.msra.mxu0 %v4493
        %6401 = vmatprep.subr.bf16.mxu0 %v4490
        %6402 = vmatpush2.bf16.msra.mxu0 %v4489
        %6403 = vmatprep.subr.bf16.mxu0 %v4486
        %6404 = vmatpush2.bf16.msra.mxu0 %v4485
        %6405 = vmatprep.subr.bf16.mxu0 %v4482
        %6406 = vmatpush2.bf16.msra.mxu0 %v4481
        %6407 = vmatprep.mubr.bf16.mxu0 %v1316
        %6408 = vmatmul.mubr.bf16.gmra.mxu0 %v1315
        %v6409 = vpop.f32.mrf.mxu0
        %v6410 = vadd.f32 %v6367, %v6409
        %v6411 = vpop.f32.mrf.mxu0
        %v6412 = vadd.f32 %v6369, %v6411
        %v6413 = vpop.f32.mrf.mxu0
        %v6414 = vadd.f32 %v6371, %v6413
        %v6415 = vpop.f32.mrf.mxu0
        %v6416 = vadd.f32 %v6373, %v6415
        %6417 = vdwg.mxu0
        %6418 = vmatprep.subr.bf16.mxu0 %v4542
        %6419 = vmatpush1.bf16.msra.mxu0 %v4541
        %6420 = vmatprep.subr.bf16.mxu0 %v4538
        %6421 = vmatpush1.bf16.msra.mxu0 %v4537
        %6422 = vmatprep.subr.bf16.mxu0 %v4534
        %6423 = vmatpush1.bf16.msra.mxu0 %v4533
        %6424 = vmatprep.subr.bf16.mxu0 %v4530
        %6425 = vmatpush1.bf16.msra.mxu0 %v4529
        %6426 = vmatprep.subr.bf16.mxu0 %v4526
        %6427 = vmatpush1.bf16.msra.mxu0 %v4525
        %6428 = vmatprep.subr.bf16.mxu0 %v4522
        %6429 = vmatpush1.bf16.msra.mxu0 %v4521
        %6430 = vmatprep.subr.bf16.mxu0 %v4518
        %6431 = vmatpush1.bf16.msra.mxu0 %v4517
        %6432 = vmatprep.subr.bf16.mxu0 %v4514
        %6433 = vmatpush1.bf16.msra.mxu0 %v4513
        %6434 = vmatprep.subr.bf16.mxu0 0
        %6435 = vmatpush2.bf16.msra.mxu0 0
        %6436 = vmatprep.subr.bf16.mxu0 0
        %6437 = vmatpush2.bf16.msra.mxu0 0
        %6438 = vmatprep.subr.bf16.mxu0 0
        %6439 = vmatpush2.bf16.msra.mxu0 0
        %6440 = vmatprep.subr.bf16.mxu0 0
        %6441 = vmatpush2.bf16.msra.mxu0 0
        %6442 = vmatprep.subr.bf16.mxu0 0
        %6443 = vmatpush2.bf16.msra.mxu0 0
        %6444 = vmatprep.subr.bf16.mxu0 0
        %6445 = vmatpush2.bf16.msra.mxu0 0
        %6446 = vmatprep.subr.bf16.mxu0 0
        %6447 = vmatpush2.bf16.msra.mxu0 0
        %6448 = vmatprep.subr.bf16.mxu0 0
        %6449 = vmatpush2.bf16.msra.mxu0 0
        %6450 = vmatprep.mubr.bf16.mxu0 0
        %6451 = vmatmul.mubr.bf16.gmra.mxu0 %v1317
        %v6452 = vpop.f32.mrf.mxu0
        %v6453 = vadd.f32 %v6410, %v6452
        %v6454 = vpop.f32.mrf.mxu0
        %v6455 = vadd.f32 %v6412, %v6454
        %v6456 = vpop.f32.mrf.mxu0
        %v6457 = vadd.f32 %v6414, %v6456
        %v6458 = vpop.f32.mrf.mxu0
        %v6459 = vadd.f32 %v6416, %v6458
        %6460 = vdwg.mxu0
        %v6461 = vadd.f32 %v383, %v5894
        %v6462 = vadd.f32 %v384, %v5896
        %v6463 = vadd.f32 %v385, %v6453
        %v6464 = vadd.f32 %v386, %v6455
        %v6465 = vadd.f32 %v387, %v5898
        %v6466 = vadd.f32 %v388, %v5900
        %v6467 = vadd.f32 %v389, %v6457
        %v6468 = vadd.f32 %v390, %v6459
        %6469 = vst [vmem:[#allocation2] sm:$0xff] %v6461
        %6470 = vst [vmem:[#allocation2 + $0x8] sm:$0xff] %v6462
        %6471 = vst [vmem:[#allocation2 + $0x10] sm:$0xff] %v6463
        %6472 = vst [vmem:[#allocation2 + $0x18] sm:$0xff] %v6464
        %6473 = vst [vmem:[#allocation2 + $0x20] sm:$0xff] %v6465
        %6474 = vst [vmem:[#allocation2 + $0x28] sm:$0xff] %v6466
        %6475 = vst [vmem:[#allocation2 + $0x30] sm:$0xff] %v6467
        %6476 = vst [vmem:[#allocation2 + $0x38] sm:$0xff] %v6468
        %p6477 = scmp.eq.s32.totalorder %s18, 3
        // Predicated region
        $region79: #{network_forward.9} parent=69 // pred_check
          %p6478 = pneg %p6477
        $region80: #{network_forward.9} parent=69 // pred_check_branch
          %6480 = sbr.rel (%p6478) target = $region82
        $region81: #{network_forward.9} parent=69 // pred_region
          %v6481 = vld [vmem:[#allocation2] sm:$0xff]
          %v6482 = vld [vmem:[#allocation2 + $0x8] sm:$0xff]
          %v6483 = vld [vmem:[#allocation2 + $0x10] sm:$0xff]
          %v6484 = vld [vmem:[#allocation2 + $0x18] sm:$0xff]
          %v6485 = vld [vmem:[#allocation2 + $0x20] sm:$0xff]
          %v6486 = vld [vmem:[#allocation2 + $0x28] sm:$0xff]
          %v6487 = vld [vmem:[#allocation2 + $0x30] sm:$0xff]
          %v6488 = vld [vmem:[#allocation2 + $0x38] sm:$0xff]
          %v6489 = vld [vmem:[%s2] sm:$0xf]
          %v6491 = vlaneseq
          %v6492 = vshrl.u32 %v6491, 7
          %v6493 = vsub.s32 0, %v6492
          %v6494 = vrot.slane %v6489, %v6493
          %v6495 = vlaneseq
          %v6496 = vshrl.u32 %v6495, 7
          %v6497 = vsub.s32 1, %v6496
          %v6498 = vrot.slane %v6489, %v6497
          %v6499 = vlaneseq
          %v6500 = vshrl.u32 %v6499, 7
          %v6501 = vsub.s32 2, %v6500
          %v6502 = vrot.slane %v6489, %v6501
          %v6503 = vlaneseq
          %v6504 = vshrl.u32 %v6503, 7
          %v6505 = vsub.s32 3, %v6504
          %v6506 = vrot.slane %v6489, %v6505
          %v6511 = vadd.f32 %v6481, %v6494
          %v6512 = vadd.f32 %v6482, %v6498
          %v6513 = vadd.f32 %v6483, %v6502
          %v6514 = vadd.f32 %v6484, %v6506
          %v6515 = vadd.f32 %v6485, %v6494
          %v6516 = vadd.f32 %v6486, %v6498
          %v6517 = vadd.f32 %v6487, %v6502
          %v6518 = vadd.f32 %v6488, %v6506
          %v6519 = vmax.f32 %v6511, 0.0
          %v6520 = vmax.f32 %v6512, 0.0
          %v6521 = vmax.f32 %v6513, 0.0
          %v6522 = vmax.f32 %v6514, 0.0
          %v6523 = vmax.f32 %v6515, 0.0
          %v6524 = vmax.f32 %v6516, 0.0
          %v6525 = vmax.f32 %v6517, 0.0
          %v6526 = vmax.f32 %v6518, 0.0
          %v6527 = vpack.c.bf16 %v6523, %v6519
          %v6528 = vpack.c.bf16 %v6524, %v6520
          %v6529 = vpack.c.bf16 %v6525, %v6521
          %v6530 = vpack.c.bf16 %v6526, %v6522
          %v6531 = vld [vmem:[%s3] sm:$0xff]
          %v6532 = vld [vmem:[%s3 + $0x8] sm:$0xff]
          %v6533 = vld [vmem:[%s3 + $0x10] sm:$0xff]
          %v6534 = vld [vmem:[%s3 + $0x18] sm:$0xff]
          %v6535 = vld [vmem:[%s3 + $0x20] sm:$0xff]
          %v6536 = vld [vmem:[%s3 + $0x28] sm:$0xff]
          %v6537 = vld [vmem:[%s3 + $0x30] sm:$0xff]
          %v6538 = vld [vmem:[%s3 + $0x38] sm:$0xff]
          %v6539 = vld [vmem:[%s3 + $0x40] sm:$0xff]
          %v6540 = vld [vmem:[%s3 + $0x48] sm:$0xff]
          %v6541 = vld [vmem:[%s3 + $0x50] sm:$0xff]
          %v6542 = vld [vmem:[%s3 + $0x58] sm:$0xff]
          %v6543 = vld [vmem:[%s3 + $0x60] sm:$0xff]
          %v6544 = vld [vmem:[%s3 + $0x68] sm:$0xff]
          %v6545 = vld [vmem:[%s3 + $0x70] sm:$0xff]
          %v6546 = vld [vmem:[%s3 + $0x78] sm:$0xff]
          %v6547 = vld [vmem:[%s3 + $0x80] sm:$0xff]
          %v6548 = vld [vmem:[%s3 + $0x88] sm:$0xff]
          %v6549 = vld [vmem:[%s3 + $0x90] sm:$0xff]
          %v6550 = vld [vmem:[%s3 + $0x98] sm:$0xff]
          %v6551 = vld [vmem:[%s3 + $0xa0] sm:$0xff]
          %v6552 = vld [vmem:[%s3 + $0xa8] sm:$0xff]
          %v6553 = vld [vmem:[%s3 + $0xb0] sm:$0xff]
          %v6554 = vld [vmem:[%s3 + $0xb8] sm:$0xff]
          %v6555 = vld [vmem:[%s3 + $0xc0] sm:$0xff]
          %v6556 = vld [vmem:[%s3 + $0xc8] sm:$0xff]
          %v6557 = vld [vmem:[%s3 + $0xd0] sm:$0xff]
          %v6558 = vld [vmem:[%s3 + $0xd8] sm:$0xff]
          %v6559 = vld [vmem:[%s3 + $0xe0] sm:$0xff]
          %v6560 = vld [vmem:[%s3 + $0xe8] sm:$0xff]
          %v6561 = vld [vmem:[%s3 + $0xf0] sm:$0xff]
          %v6562 = vld [vmem:[%s3 + $0xf8] sm:$0xff]
          %v6563 = vld [vmem:[%s3 + $0x100] sm:$0xff]
          %v6564 = vld [vmem:[%s3 + $0x108] sm:$0xff]
          %v6565 = vld [vmem:[%s3 + $0x110] sm:$0xff]
          %v6566 = vld [vmem:[%s3 + $0x118] sm:$0xff]
          %v6567 = vld [vmem:[%s3 + $0x120] sm:$0xff]
          %v6568 = vld [vmem:[%s3 + $0x128] sm:$0xff]
          %v6569 = vld [vmem:[%s3 + $0x130] sm:$0xff]
          %v6570 = vld [vmem:[%s3 + $0x138] sm:$0xff]
          %v6571 = vld [vmem:[%s3 + $0x140] sm:$0xff]
          %v6572 = vld [vmem:[%s3 + $0x148] sm:$0xff]
          %v6573 = vld [vmem:[%s3 + $0x150] sm:$0xff]
          %v6574 = vld [vmem:[%s3 + $0x158] sm:$0xff]
          %v6575 = vld [vmem:[%s3 + $0x160] sm:$0xff]
          %v6576 = vld [vmem:[%s3 + $0x168] sm:$0xff]
          %v6577 = vld [vmem:[%s3 + $0x170] sm:$0xff]
          %v6578 = vld [vmem:[%s3 + $0x178] sm:$0xff]
          %v6579 = vld [vmem:[%s3 + $0x180] sm:$0xff]
          %v6580 = vld [vmem:[%s3 + $0x188] sm:$0xff]
          %v6581 = vld [vmem:[%s3 + $0x190] sm:$0xff]
          %v6582 = vld [vmem:[%s3 + $0x198] sm:$0xff]
          %v6583 = vld [vmem:[%s3 + $0x1a0] sm:$0xff]
          %v6584 = vld [vmem:[%s3 + $0x1a8] sm:$0xff]
          %v6585 = vld [vmem:[%s3 + $0x1b0] sm:$0xff]
          %v6586 = vld [vmem:[%s3 + $0x1b8] sm:$0xff]
          %v6587 = vld [vmem:[%s3 + $0x1c0] sm:$0xff]
          %v6588 = vld [vmem:[%s3 + $0x1c8] sm:$0xff]
          %v6589 = vld [vmem:[%s3 + $0x1d0] sm:$0xff]
          %v6590 = vld [vmem:[%s3 + $0x1d8] sm:$0xff]
          %v6591 = vld [vmem:[%s3 + $0x1e0] sm:$0xff]
          %v6592 = vld [vmem:[%s3 + $0x1e8] sm:$0xff]
          %v6593 = vld [vmem:[%s3 + $0x1f0] sm:$0xff]
          %v6594 = vld [vmem:[%s3 + $0x1f8] sm:$0xff]
          %v6595 = vld [vmem:[%s4] sm:$0x3]
          %v6597 = vlaneseq
          %v6598 = vshrl.u32 %v6597, 7
          %v6599 = vsub.s32 0, %v6598
          %v6600 = vrot.slane %v6595, %v6599
          %v6601 = vlaneseq
          %v6602 = vshrl.u32 %v6601, 7
          %v6603 = vsub.s32 1, %v6602
          %v6604 = vrot.slane %v6595, %v6603
          %v6671 = vunpack.c.l.b16 %v6531
          %v6672 = vunpack.c.h.b16 %v6531
          %v6673 = vunpack.c.l.b16 %v6532
          %v6674 = vunpack.c.h.b16 %v6532
          %v6675 = vunpack.c.l.b16 %v6533
          %v6676 = vunpack.c.h.b16 %v6533
          %v6677 = vunpack.c.l.b16 %v6534
          %v6678 = vunpack.c.h.b16 %v6534
          %v6679 = vunpack.c.l.b16 %v6535
          %v6680 = vunpack.c.h.b16 %v6535
          %v6681 = vunpack.c.l.b16 %v6536
          %v6682 = vunpack.c.h.b16 %v6536
          %v6683 = vunpack.c.l.b16 %v6537
          %v6684 = vunpack.c.h.b16 %v6537
          %v6685 = vunpack.c.l.b16 %v6538
          %v6686 = vunpack.c.h.b16 %v6538
          %v6687 = vunpack.c.l.b16 %v6539
          %v6688 = vunpack.c.h.b16 %v6539
          %v6689 = vunpack.c.l.b16 %v6540
          %v6690 = vunpack.c.h.b16 %v6540
          %v6691 = vunpack.c.l.b16 %v6541
          %v6692 = vunpack.c.h.b16 %v6541
          %v6693 = vunpack.c.l.b16 %v6542
          %v6694 = vunpack.c.h.b16 %v6542
          %v6695 = vunpack.c.l.b16 %v6543
          %v6696 = vunpack.c.h.b16 %v6543
          %v6697 = vunpack.c.l.b16 %v6544
          %v6698 = vunpack.c.h.b16 %v6544
          %v6699 = vunpack.c.l.b16 %v6545
          %v6700 = vunpack.c.h.b16 %v6545
          %v6701 = vunpack.c.l.b16 %v6546
          %v6702 = vunpack.c.h.b16 %v6546
          %v6703 = vunpack.c.l.b16 %v6547
          %v6704 = vunpack.c.h.b16 %v6547
          %v6705 = vunpack.c.l.b16 %v6548
          %v6706 = vunpack.c.h.b16 %v6548
          %v6707 = vunpack.c.l.b16 %v6549
          %v6708 = vunpack.c.h.b16 %v6549
          %v6709 = vunpack.c.l.b16 %v6550
          %v6710 = vunpack.c.h.b16 %v6550
          %v6711 = vunpack.c.l.b16 %v6551
          %v6712 = vunpack.c.h.b16 %v6551
          %v6713 = vunpack.c.l.b16 %v6552
          %v6714 = vunpack.c.h.b16 %v6552
          %v6715 = vunpack.c.l.b16 %v6553
          %v6716 = vunpack.c.h.b16 %v6553
          %v6717 = vunpack.c.l.b16 %v6554
          %v6718 = vunpack.c.h.b16 %v6554
          %v6719 = vunpack.c.l.b16 %v6555
          %v6720 = vunpack.c.h.b16 %v6555
          %v6721 = vunpack.c.l.b16 %v6556
          %v6722 = vunpack.c.h.b16 %v6556
          %v6723 = vunpack.c.l.b16 %v6557
          %v6724 = vunpack.c.h.b16 %v6557
          %v6725 = vunpack.c.l.b16 %v6558
          %v6726 = vunpack.c.h.b16 %v6558
          %v6727 = vunpack.c.l.b16 %v6559
          %v6728 = vunpack.c.h.b16 %v6559
          %v6729 = vunpack.c.l.b16 %v6560
          %v6730 = vunpack.c.h.b16 %v6560
          %v6731 = vunpack.c.l.b16 %v6561
          %v6732 = vunpack.c.h.b16 %v6561
          %v6733 = vunpack.c.l.b16 %v6562
          %v6734 = vunpack.c.h.b16 %v6562
          %v6735 = vunpack.c.l.b16 %v6563
          %v6736 = vunpack.c.h.b16 %v6563
          %v6737 = vunpack.c.l.b16 %v6564
          %v6738 = vunpack.c.h.b16 %v6564
          %v6739 = vunpack.c.l.b16 %v6565
          %v6740 = vunpack.c.h.b16 %v6565
          %v6741 = vunpack.c.l.b16 %v6566
          %v6742 = vunpack.c.h.b16 %v6566
          %v6743 = vunpack.c.l.b16 %v6567
          %v6744 = vunpack.c.h.b16 %v6567
          %v6745 = vunpack.c.l.b16 %v6568
          %v6746 = vunpack.c.h.b16 %v6568
          %v6747 = vunpack.c.l.b16 %v6569
          %v6748 = vunpack.c.h.b16 %v6569
          %v6749 = vunpack.c.l.b16 %v6570
          %v6750 = vunpack.c.h.b16 %v6570
          %v6751 = vunpack.c.l.b16 %v6571
          %v6752 = vunpack.c.h.b16 %v6571
          %v6753 = vunpack.c.l.b16 %v6572
          %v6754 = vunpack.c.h.b16 %v6572
          %v6755 = vunpack.c.l.b16 %v6573
          %v6756 = vunpack.c.h.b16 %v6573
          %v6757 = vunpack.c.l.b16 %v6574
          %v6758 = vunpack.c.h.b16 %v6574
          %v6759 = vunpack.c.l.b16 %v6575
          %v6760 = vunpack.c.h.b16 %v6575
          %v6761 = vunpack.c.l.b16 %v6576
          %v6762 = vunpack.c.h.b16 %v6576
          %v6763 = vunpack.c.l.b16 %v6577
          %v6764 = vunpack.c.h.b16 %v6577
          %v6765 = vunpack.c.l.b16 %v6578
          %v6766 = vunpack.c.h.b16 %v6578
          %v6767 = vunpack.c.l.b16 %v6579
          %v6768 = vunpack.c.h.b16 %v6579
          %v6769 = vunpack.c.l.b16 %v6580
          %v6770 = vunpack.c.h.b16 %v6580
          %v6771 = vunpack.c.l.b16 %v6581
          %v6772 = vunpack.c.h.b16 %v6581
          %v6773 = vunpack.c.l.b16 %v6582
          %v6774 = vunpack.c.h.b16 %v6582
          %v6775 = vunpack.c.l.b16 %v6583
          %v6776 = vunpack.c.h.b16 %v6583
          %v6777 = vunpack.c.l.b16 %v6584
          %v6778 = vunpack.c.h.b16 %v6584
          %v6779 = vunpack.c.l.b16 %v6585
          %v6780 = vunpack.c.h.b16 %v6585
          %v6781 = vunpack.c.l.b16 %v6586
          %v6782 = vunpack.c.h.b16 %v6586
          %v6783 = vunpack.c.l.b16 %v6587
          %v6784 = vunpack.c.h.b16 %v6587
          %v6785 = vunpack.c.l.b16 %v6588
          %v6786 = vunpack.c.h.b16 %v6588
          %v6787 = vunpack.c.l.b16 %v6589
          %v6788 = vunpack.c.h.b16 %v6589
          %v6789 = vunpack.c.l.b16 %v6590
          %v6790 = vunpack.c.h.b16 %v6590
          %v6791 = vunpack.c.l.b16 %v6591
          %v6792 = vunpack.c.h.b16 %v6591
          %v6793 = vunpack.c.l.b16 %v6592
          %v6794 = vunpack.c.h.b16 %v6592
          %v6795 = vunpack.c.l.b16 %v6593
          %v6796 = vunpack.c.h.b16 %v6593
          %v6797 = vunpack.c.l.b16 %v6594
          %v6798 = vunpack.c.h.b16 %v6594
          %v6799 = vpack.c.b16 %v6673, %v6671
          %v6800 = vpack.c.b16 %v6674, %v6672
          %v6801 = vpack.c.b16 %v6677, %v6675
          %v6802 = vpack.c.b16 %v6678, %v6676
          %v6803 = vpack.c.b16 %v6681, %v6679
          %v6804 = vpack.c.b16 %v6682, %v6680
          %v6805 = vpack.c.b16 %v6685, %v6683
          %v6806 = vpack.c.b16 %v6686, %v6684
          %v6807 = vpack.c.b16 %v6689, %v6687
          %v6808 = vpack.c.b16 %v6690, %v6688
          %v6809 = vpack.c.b16 %v6693, %v6691
          %v6810 = vpack.c.b16 %v6694, %v6692
          %v6811 = vpack.c.b16 %v6697, %v6695
          %v6812 = vpack.c.b16 %v6698, %v6696
          %v6813 = vpack.c.b16 %v6701, %v6699
          %v6814 = vpack.c.b16 %v6702, %v6700
          %v6815 = vpack.c.b16 %v6705, %v6703
          %v6816 = vpack.c.b16 %v6706, %v6704
          %v6817 = vpack.c.b16 %v6709, %v6707
          %v6818 = vpack.c.b16 %v6710, %v6708
          %v6819 = vpack.c.b16 %v6713, %v6711
          %v6820 = vpack.c.b16 %v6714, %v6712
          %v6821 = vpack.c.b16 %v6717, %v6715
          %v6822 = vpack.c.b16 %v6718, %v6716
          %v6823 = vpack.c.b16 %v6721, %v6719
          %v6824 = vpack.c.b16 %v6722, %v6720
          %v6825 = vpack.c.b16 %v6725, %v6723
          %v6826 = vpack.c.b16 %v6726, %v6724
          %v6827 = vpack.c.b16 %v6729, %v6727
          %v6828 = vpack.c.b16 %v6730, %v6728
          %v6829 = vpack.c.b16 %v6733, %v6731
          %v6830 = vpack.c.b16 %v6734, %v6732
          %v6831 = vpack.c.b16 %v6737, %v6735
          %v6832 = vpack.c.b16 %v6738, %v6736
          %v6833 = vpack.c.b16 %v6741, %v6739
          %v6834 = vpack.c.b16 %v6742, %v6740
          %v6835 = vpack.c.b16 %v6745, %v6743
          %v6836 = vpack.c.b16 %v6746, %v6744
          %v6837 = vpack.c.b16 %v6749, %v6747
          %v6838 = vpack.c.b16 %v6750, %v6748
          %v6839 = vpack.c.b16 %v6753, %v6751
          %v6840 = vpack.c.b16 %v6754, %v6752
          %v6841 = vpack.c.b16 %v6757, %v6755
          %v6842 = vpack.c.b16 %v6758, %v6756
          %v6843 = vpack.c.b16 %v6761, %v6759
          %v6844 = vpack.c.b16 %v6762, %v6760
          %v6845 = vpack.c.b16 %v6765, %v6763
          %v6846 = vpack.c.b16 %v6766, %v6764
          %v6847 = vpack.c.b16 %v6769, %v6767
          %v6848 = vpack.c.b16 %v6770, %v6768
          %v6849 = vpack.c.b16 %v6773, %v6771
          %v6850 = vpack.c.b16 %v6774, %v6772
          %v6851 = vpack.c.b16 %v6777, %v6775
          %v6852 = vpack.c.b16 %v6778, %v6776
          %v6853 = vpack.c.b16 %v6781, %v6779
          %v6854 = vpack.c.b16 %v6782, %v6780
          %v6855 = vpack.c.b16 %v6785, %v6783
          %v6856 = vpack.c.b16 %v6786, %v6784
          %v6857 = vpack.c.b16 %v6789, %v6787
          %v6858 = vpack.c.b16 %v6790, %v6788
          %v6859 = vpack.c.b16 %v6793, %v6791
          %v6860 = vpack.c.b16 %v6794, %v6792
          %v6861 = vpack.c.b16 %v6797, %v6795
          %v6862 = vpack.c.b16 %v6798, %v6796
          %6927 = vmatprep.subr.bf16.mxu0 %v6814
          %6928 = vmatpush1.bf16.msra.mxu0 %v6813
          %6929 = vmatprep.subr.bf16.mxu0 %v6812
          %6930 = vmatpush1.bf16.msra.mxu0 %v6811
          %6931 = vmatprep.subr.bf16.mxu0 %v6810
          %6932 = vmatpush1.bf16.msra.mxu0 %v6809
          %6933 = vmatprep.subr.bf16.mxu0 %v6808
          %6934 = vmatpush1.bf16.msra.mxu0 %v6807
          %6935 = vmatprep.subr.bf16.mxu0 %v6806
          %6936 = vmatpush1.bf16.msra.mxu0 %v6805
          %6937 = vmatprep.subr.bf16.mxu0 %v6804
          %6938 = vmatpush1.bf16.msra.mxu0 %v6803
          %6939 = vmatprep.subr.bf16.mxu0 %v6802
          %6940 = vmatpush1.bf16.msra.mxu0 %v6801
          %6941 = vmatprep.subr.bf16.mxu0 %v6800
          %6942 = vmatpush1.bf16.msra.mxu0 %v6799
          %6943 = vmatprep.subr.bf16.mxu0 %v6830
          %6944 = vmatpush2.bf16.msra.mxu0 %v6829
          %6945 = vmatprep.subr.bf16.mxu0 %v6828
          %6946 = vmatpush2.bf16.msra.mxu0 %v6827
          %6947 = vmatprep.subr.bf16.mxu0 %v6826
          %6948 = vmatpush2.bf16.msra.mxu0 %v6825
          %6949 = vmatprep.subr.bf16.mxu0 %v6824
          %6950 = vmatpush2.bf16.msra.mxu0 %v6823
          %6951 = vmatprep.subr.bf16.mxu0 %v6822
          %6952 = vmatpush2.bf16.msra.mxu0 %v6821
          %6953 = vmatprep.subr.bf16.mxu0 %v6820
          %6954 = vmatpush2.bf16.msra.mxu0 %v6819
          %6955 = vmatprep.subr.bf16.mxu0 %v6818
          %6956 = vmatpush2.bf16.msra.mxu0 %v6817
          %6957 = vmatprep.subr.bf16.mxu0 %v6816
          %6958 = vmatpush2.bf16.msra.mxu0 %v6815
          %6959 = vmatprep.mubr.bf16.mxu0 %v6528
          %6960 = vmatmul.mubr.bf16.gmra.mxu0 %v6527
          %v6961 = vpop.f32.mrf.mxu0
          %v6962 = vadd.f32 %v6600, %v6961
          %v6963 = vpop.f32.mrf.mxu0
          %v6964 = vadd.f32 %v6604, %v6963
          %v6965 = vpop.f32.mrf.mxu0
          %v6966 = vadd.f32 %v6600, %v6965
          %v6967 = vpop.f32.mrf.mxu0
          %v6968 = vadd.f32 %v6604, %v6967
          %6969 = vdwg.mxu0
          %6970 = vmatprep.subr.bf16.mxu0 %v6846
          %6971 = vmatpush1.bf16.msra.mxu0 %v6845
          %6972 = vmatprep.subr.bf16.mxu0 %v6844
          %6973 = vmatpush1.bf16.msra.mxu0 %v6843
          %6974 = vmatprep.subr.bf16.mxu0 %v6842
          %6975 = vmatpush1.bf16.msra.mxu0 %v6841
          %6976 = vmatprep.subr.bf16.mxu0 %v6840
          %6977 = vmatpush1.bf16.msra.mxu0 %v6839
          %6978 = vmatprep.subr.bf16.mxu0 %v6838
          %6979 = vmatpush1.bf16.msra.mxu0 %v6837
          %6980 = vmatprep.subr.bf16.mxu0 %v6836
          %6981 = vmatpush1.bf16.msra.mxu0 %v6835
          %6982 = vmatprep.subr.bf16.mxu0 %v6834
          %6983 = vmatpush1.bf16.msra.mxu0 %v6833
          %6984 = vmatprep.subr.bf16.mxu0 %v6832
          %6985 = vmatpush1.bf16.msra.mxu0 %v6831
          %6986 = vmatprep.subr.bf16.mxu0 %v6862
          %6987 = vmatpush2.bf16.msra.mxu0 %v6861
          %6988 = vmatprep.subr.bf16.mxu0 %v6860
          %6989 = vmatpush2.bf16.msra.mxu0 %v6859
          %6990 = vmatprep.subr.bf16.mxu0 %v6858
          %6991 = vmatpush2.bf16.msra.mxu0 %v6857
          %6992 = vmatprep.subr.bf16.mxu0 %v6856
          %6993 = vmatpush2.bf16.msra.mxu0 %v6855
          %6994 = vmatprep.subr.bf16.mxu0 %v6854
          %6995 = vmatpush2.bf16.msra.mxu0 %v6853
          %6996 = vmatprep.subr.bf16.mxu0 %v6852
          %6997 = vmatpush2.bf16.msra.mxu0 %v6851
          %6998 = vmatprep.subr.bf16.mxu0 %v6850
          %6999 = vmatpush2.bf16.msra.mxu0 %v6849
          %7000 = vmatprep.subr.bf16.mxu0 %v6848
          %7001 = vmatpush2.bf16.msra.mxu0 %v6847
          %7002 = vmatprep.mubr.bf16.mxu0 %v6530
          %7003 = vmatmul.mubr.bf16.gmra.mxu0 %v6529
          %v7004 = vpop.f32.mrf.mxu0
          %v7005 = vadd.f32 %v6962, %v7004
          %v7006 = vpop.f32.mrf.mxu0
          %v7007 = vadd.f32 %v6964, %v7006
          %v7008 = vpop.f32.mrf.mxu0
          %v7009 = vadd.f32 %v6966, %v7008
          %v7010 = vpop.f32.mrf.mxu0
          %v7011 = vadd.f32 %v6968, %v7010
          %7012 = vdwg.mxu0
          %v7013 = vmax.f32 %v7005, 0.0
          %v7014 = vmax.f32 %v7007, 0.0
          %v7015 = vmax.f32 %v7009, 0.0
          %v7016 = vmax.f32 %v7011, 0.0
          %v7017 = vpack.c.bf16 %v7015, %v7013
          %v7018 = vpack.c.bf16 %v7016, %v7014
          %v7019 = vld [vmem:[%s5] sm:$0xf]
          %v7020 = vld [vmem:[%s5 + $0x4] sm:$0xf]
          %v7021 = vld [vmem:[%s5 + $0x8] sm:$0xf]
          %v7022 = vld [vmem:[%s5 + $0xc] sm:$0xf]
          %v7023 = vld [vmem:[%s5 + $0x10] sm:$0xf]
          %v7024 = vld [vmem:[%s5 + $0x14] sm:$0xf]
          %v7025 = vld [vmem:[%s5 + $0x18] sm:$0xf]
          %v7026 = vld [vmem:[%s5 + $0x1c] sm:$0xf]
          %v7027 = vld [vmem:[%s5 + $0x20] sm:$0xf]
          %v7028 = vld [vmem:[%s5 + $0x24] sm:$0xf]
          %v7029 = vld [vmem:[%s5 + $0x28] sm:$0xf]
          %v7030 = vld [vmem:[%s5 + $0x2c] sm:$0xf]
          %v7031 = vld [vmem:[%s5 + $0x30] sm:$0xf]
          %v7032 = vld [vmem:[%s5 + $0x34] sm:$0xf]
          %v7033 = vld [vmem:[%s5 + $0x38] sm:$0xf]
          %v7034 = vld [vmem:[%s5 + $0x3c] sm:$0xf]
          %v7035 = vld [vmem:[%s5 + $0x40] sm:$0xf]
          %v7036 = vld [vmem:[%s5 + $0x44] sm:$0xf]
          %v7037 = vld [vmem:[%s5 + $0x48] sm:$0xf]
          %v7038 = vld [vmem:[%s5 + $0x4c] sm:$0xf]
          %v7039 = vld [vmem:[%s5 + $0x50] sm:$0xf]
          %v7040 = vld [vmem:[%s5 + $0x54] sm:$0xf]
          %v7041 = vld [vmem:[%s5 + $0x58] sm:$0xf]
          %v7042 = vld [vmem:[%s5 + $0x5c] sm:$0xf]
          %v7043 = vld [vmem:[%s5 + $0x60] sm:$0xf]
          %v7044 = vld [vmem:[%s5 + $0x64] sm:$0xf]
          %v7045 = vld [vmem:[%s5 + $0x68] sm:$0xf]
          %v7046 = vld [vmem:[%s5 + $0x6c] sm:$0xf]
          %v7047 = vld [vmem:[%s5 + $0x70] sm:$0xf]
          %v7048 = vld [vmem:[%s5 + $0x74] sm:$0xf]
          %v7049 = vld [vmem:[%s5 + $0x78] sm:$0xf]
          %v7050 = vld [vmem:[%s5 + $0x7c] sm:$0xf]
          %v7051 = vld [vmem:[%s6] sm:$0x1]
          %v7053 = vlaneseq
          %v7054 = vshrl.u32 %v7053, 7
          %v7055 = vsub.s32 0, %v7054
          %v7056 = vrot.slane %v7051, %v7055
          %v7090 = vunpack.c.l.b16 %v7019
          %v7091 = vunpack.c.l.b16 %v7020
          %v7092 = vunpack.c.l.b16 %v7021
          %v7093 = vunpack.c.l.b16 %v7022
          %v7094 = vunpack.c.l.b16 %v7023
          %v7095 = vunpack.c.l.b16 %v7024
          %v7096 = vunpack.c.l.b16 %v7025
          %v7097 = vunpack.c.l.b16 %v7026
          %v7098 = vunpack.c.l.b16 %v7027
          %v7099 = vunpack.c.l.b16 %v7028
          %v7100 = vunpack.c.l.b16 %v7029
          %v7101 = vunpack.c.l.b16 %v7030
          %v7102 = vunpack.c.l.b16 %v7031
          %v7103 = vunpack.c.l.b16 %v7032
          %v7104 = vunpack.c.l.b16 %v7033
          %v7105 = vunpack.c.l.b16 %v7034
          %v7106 = vunpack.c.l.b16 %v7035
          %v7107 = vunpack.c.l.b16 %v7036
          %v7108 = vunpack.c.l.b16 %v7037
          %v7109 = vunpack.c.l.b16 %v7038
          %v7110 = vunpack.c.l.b16 %v7039
          %v7111 = vunpack.c.l.b16 %v7040
          %v7112 = vunpack.c.l.b16 %v7041
          %v7113 = vunpack.c.l.b16 %v7042
          %v7114 = vunpack.c.l.b16 %v7043
          %v7115 = vunpack.c.l.b16 %v7044
          %v7116 = vunpack.c.l.b16 %v7045
          %v7117 = vunpack.c.l.b16 %v7046
          %v7118 = vunpack.c.l.b16 %v7047
          %v7119 = vunpack.c.l.b16 %v7048
          %v7120 = vunpack.c.l.b16 %v7049
          %v7121 = vunpack.c.l.b16 %v7050
          %v7122 = vpack.c.b16 %v7091, %v7090
          %v7123 = vpack.c.b16 %v7093, %v7092
          %v7124 = vpack.c.b16 %v7095, %v7094
          %v7125 = vpack.c.b16 %v7097, %v7096
          %v7126 = vpack.c.b16 %v7099, %v7098
          %v7127 = vpack.c.b16 %v7101, %v7100
          %v7128 = vpack.c.b16 %v7103, %v7102
          %v7129 = vpack.c.b16 %v7105, %v7104
          %v7130 = vpack.c.b16 %v7107, %v7106
          %v7131 = vpack.c.b16 %v7109, %v7108
          %v7132 = vpack.c.b16 %v7111, %v7110
          %v7133 = vpack.c.b16 %v7113, %v7112
          %v7134 = vpack.c.b16 %v7115, %v7114
          %v7135 = vpack.c.b16 %v7117, %v7116
          %v7136 = vpack.c.b16 %v7119, %v7118
          %v7137 = vpack.c.b16 %v7121, %v7120
          %7154 = vmatprep.subr.bf16.mxu0 0
          %7155 = vmatpush1.bf16.msra.mxu0 %v7129
          %7156 = vmatprep.subr.bf16.mxu0 0
          %7157 = vmatpush1.bf16.msra.mxu0 %v7128
          %7158 = vmatprep.subr.bf16.mxu0 0
          %7159 = vmatpush1.bf16.msra.mxu0 %v7127
          %7160 = vmatprep.subr.bf16.mxu0 0
          %7161 = vmatpush1.bf16.msra.mxu0 %v7126
          %7162 = vmatprep.subr.bf16.mxu0 0
          %7163 = vmatpush1.bf16.msra.mxu0 %v7125
          %7164 = vmatprep.subr.bf16.mxu0 0
          %7165 = vmatpush1.bf16.msra.mxu0 %v7124
          %7166 = vmatprep.subr.bf16.mxu0 0
          %7167 = vmatpush1.bf16.msra.mxu0 %v7123
          %7168 = vmatprep.subr.bf16.mxu0 0
          %7169 = vmatpush1.bf16.msra.mxu0 %v7122
          %7170 = vmatprep.subr.bf16.mxu0 0
          %7171 = vmatpush2.bf16.msra.mxu0 %v7137
          %7172 = vmatprep.subr.bf16.mxu0 0
          %7173 = vmatpush2.bf16.msra.mxu0 %v7136
          %7174 = vmatprep.subr.bf16.mxu0 0
          %7175 = vmatpush2.bf16.msra.mxu0 %v7135
          %7176 = vmatprep.subr.bf16.mxu0 0
          %7177 = vmatpush2.bf16.msra.mxu0 %v7134
          %7178 = vmatprep.subr.bf16.mxu0 0
          %7179 = vmatpush2.bf16.msra.mxu0 %v7133
          %7180 = vmatprep.subr.bf16.mxu0 0
          %7181 = vmatpush2.bf16.msra.mxu0 %v7132
          %7182 = vmatprep.subr.bf16.mxu0 0
          %7183 = vmatpush2.bf16.msra.mxu0 %v7131
          %7184 = vmatprep.subr.bf16.mxu0 0
          %7185 = vmatpush2.bf16.msra.mxu0 %v7130
          %7186 = vmatprep.mubr.bf16.mxu0 %v7018
          %7187 = vmatmul.mubr.bf16.gmra.mxu0 %v7017
          %v7188 = vpop.f32.mrf.mxu0
          %v7189 = vadd.f32 %v7056, %v7188
          %v7190 = vpop.f32.mrf.mxu0
          %v7191 = vpop.f32.mrf.mxu0
          %v7192 = vadd.f32 %v7056, %v7191
          %v7193 = vpop.f32.mrf.mxu0
          %7194 = vdwg.mxu0
          %7195 = vst [vmem:[%s7] sm:$0xff] %v7189
          %7196 = vst [vmem:[%s7 + $0x8] sm:$0xff] %v7192
        $region82: #{network_forward.9} parent=69 // pred_fallthru
          _
        // Predicated region
        $region83: #{network_forward.9} parent=69 // pred_check
          %p7197 = pneg %p188
        $region84: #{network_forward.9} parent=69 // pred_check_branch
          %7199 = sbr.rel (%p7197) target = $region86
        $region85: #{network_forward.9} parent=69 // pred_region
          _
        $region86: #{network_forward.9} parent=69 // pred_fallthru
          _
        // Predicated region
        $region87: #{network_forward.9} parent=69 // pred_check
          %p7200 = pneg %p188
        $region88: #{network_forward.9} parent=69 // pred_check_branch
          %7202 = sbr.rel (%p7200) target = $region90
        $region89: #{network_forward.9} parent=69 // pred_region
          _
        $region90: #{network_forward.9} parent=69 // pred_fallthru
          _
      $region70: #{network_forward.9} parent=5 // pred_fallthru
        _
      %p7203 = scmp.le.s32.totalorder 2, %s13
      // Predicated region
      $region91: #{network_forward.9} parent=5 // pred_check
        %p7204 = pneg %p7203
      $region92: #{network_forward.9} parent=5 // pred_check_branch
        %7206 = sbr.rel (%p7204) target = $region94
      $region93: #{network_forward.9} parent=5 // pred_region
        %s7207 = ssub.s32 %s13, 2
      $region94: #{network_forward.9} parent=5 // pred_fallthru
        _
    $region6: #{network_forward.9} parent=1 // loop_footer
      %s17 = sadd.s32 1, %s13
    $region7: #{network_forward.9} parent=1 // loop_footer_branch
      %12 = sbr.rel target = $region3
    $region8: #{network_forward.9} parent=1 // loop_exit
      _

</llo_original>
